<compile_context>
chip_gen: v7x
topology: tpu7x:2x2x1
jax: 0.10.0
libtpu: 0.0.40
codegen_flags: <defaults>
</compile_context>

<pallas_src>
import functools

import jax
import jax.numpy as jnp
from jax import lax
from jax.experimental import pallas as pl
from jax.experimental.pallas import tpu as pltpu


_LANE = 128  # matmul N dim / pad lane width


def _round_up(x, m):
    return ((x + m - 1) // m) * m


def _double_conv_kernel(x_ref, w1_ref, w2_ref, s1_ref, b1_ref, s2_ref, b2_ref,
                        o_ref, pad_ref, col_ref, *, cmid):
    """Fused DoubleConv for one batch item.

    x_ref:   (1, H, W, Cin)    bf16 input (real channels only)
    w*_ref:  (K, CP)           bf16 compact im2col weights, K = round_up(9*C, 128)
    s*/b*:   (1, CP)           f32 folded BatchNorm scale / bias
    o_ref:   (1, H*W, Cout)    f32 output (real channels only)
    pad_ref: (H+2, Wp, CP)     bf16 VMEM scratch: spatially padded activation
    col_ref: (H, W, K)         bf16 VMEM scratch: compact im2col patch matrix
    """
    H, W, cin = x_ref.shape[1], x_ref.shape[2], x_ref.shape[3]
    Wp, CP = pad_ref.shape[1], pad_ref.shape[2]
    K = col_ref.shape[2]
    cout = o_ref.shape[2]

    # Per-step init: only the 1-px halo of pad_ref and the col scratch need
    # zeroing (the interior is fully rewritten every step).  Doing it every
    # step keeps the kernel correct when the batch axis is split across cores.
    zrow = jnp.zeros((1, Wp, CP), pad_ref.dtype)
    pad_ref[0:1, :, :] = zrow
    pad_ref[H + 1:H + 2, :, :] = zrow
    zcol = jnp.zeros((H, 1, CP), pad_ref.dtype)
    pad_ref[1:H + 1, 0:1, :] = zcol
    pad_ref[1:H + 1, W + 1:W + 2, :] = zcol
    col_ref[...] = jnp.zeros(col_ref.shape, col_ref.dtype)

    def conv_bn_relu(nc, w_ref, s_ref, b_ref):
        # Compact im2col: taps packed contiguously along K (column t*nc + c),
        # matching the weight row order, so one MXU pass covers all 9 taps.
        for dy in range(3):
            for dx in range(3):
                t = dy * 3 + dx
                col_ref[:, :, t * nc:(t + 1) * nc] = \
                    pad_ref[dy:dy + H, dx:dx + W, :nc]
        col = col_ref[...].reshape(H * W, K)          # lane-dense, free reshape
        acc = jnp.dot(col, w_ref[...],
                      preferred_element_type=jnp.float32)   # (H*W, CP) f32
        y = acc * s_ref[0] + b_ref[0]     # folded BatchNorm (eval mode), f32
        return jnp.maximum(y, 0.0)        # ReLU

    # Spatial zero padding happens in VMEM: the real-channel input goes
    # straight into the interior (no wrapper-side padded HBM copy).
    pad_ref[1:H + 1, 1:W + 1, :cin] = x_ref[0]

    y1 = conv_bn_relu(cin, w1_ref, s1_ref, b1_ref)

    # Intermediate activation stays in VMEM (bf16) — no HBM round trip.
    pad_ref[1:H + 1, 1:W + 1, :] = y1.reshape(H, W, CP).astype(pad_ref.dtype)

    y2 = conv_bn_relu(cmid, w2_ref, s2_ref, b2_ref)

    # Only the real output channels go back to HBM.
    o_ref[0] = y2[:, :cout]


def _fold_and_pad_params(w, scale, bias, k_pad, cp):
    """Compact im2col weight (row = (dy*3+dx)*cin + c), zero-padded to (K, CP)."""
    kh, kw, cin, cout = w.shape
    w2d = w.reshape(kh * kw * cin, cout)
    wp = (jnp.zeros((k_pad, cp), jnp.float32)
          .at[:kh * kw * cin, :cout].set(w2d)
          .astype(jnp.bfloat16))
    sp = jnp.zeros((1, cp), jnp.float32).at[0, :cout].set(scale)
    bp = jnp.zeros((1, cp), jnp.float32).at[0, :cout].set(bias)
    return wp, sp, bp


@jax.jit
def double_conv(x_nchw, w1, s1, b1, w2, s2, b2):
    """DoubleConv forward: NCHW in, NCHW out (matches the PyTorch module)."""
    N, Cin, H, W = x_nchw.shape
    Cmid, Cout = w1.shape[-1], w2.shape[-1]
    assert w2.shape[2] == Cmid
    CP = _LANE
    assert max(Cin, Cmid, Cout) <= CP, "channel counts above 128 need C-tiling"
    assert W % 8 == 0, "toy kernel assumes W is a multiple of 8"

    K = _round_up(9 * max(Cin, Cmid), CP)   # compact im2col contraction dim
    Wp = _round_up(W + 2, 8)                # sublane-friendly padded width

    # NCHW -> NHWC bf16; channel padding is handled inside the kernel.
    x = jnp.transpose(x_nchw, (0, 2, 3, 1)).astype(jnp.bfloat16)

    w1p, s1p, b1p = _fold_and_pad_params(w1, s1, b1, K, CP)
    w2p, s2p, b2p = _fold_and_pad_params(w2, s2, b2, K, CP)

    kernel = functools.partial(_double_conv_kernel, cmid=Cmid)
    out = pl.pallas_call(
        kernel,
        out_shape=jax.ShapeDtypeStruct((N, H * W, Cout), jnp.float32),
        grid_spec=pltpu.PrefetchScalarGridSpec(
            num_scalar_prefetch=0,
            grid=(N,),
            in_specs=[
                pl.BlockSpec((1, H, W, Cin), lambda n: (n, 0, 0, 0)),
                pl.BlockSpec((K, CP), lambda n: (0, 0)),
                pl.BlockSpec((K, CP), lambda n: (0, 0)),
                pl.BlockSpec((1, CP), lambda n: (0, 0)),
                pl.BlockSpec((1, CP), lambda n: (0, 0)),
                pl.BlockSpec((1, CP), lambda n: (0, 0)),
                pl.BlockSpec((1, CP), lambda n: (0, 0)),
            ],
            out_specs=pl.BlockSpec((1, H * W, Cout), lambda n: (n, 0, 0)),
            scratch_shapes=[
                pltpu.VMEM((H + 2, Wp, CP), jnp.bfloat16),   # padded activation
                pltpu.VMEM((H, W, K), jnp.bfloat16),         # compact im2col
            ],
        ),
        compiler_params=pltpu.CompilerParams(
            dimension_semantics=("parallel",),
            vmem_limit_bytes=32 * 1024 * 1024),
    )(x, w1p, w2p, s1p, b1p, s2p, b2p)

    out = out.reshape(N, H, W, Cout)          # free (contiguous) reshape
    return jnp.transpose(out, (0, 3, 1, 2))   # NHWC -> NCHW for the module API


def make_conv_bn_params(key, cin, cout, eps=1e-5):
    """Deterministic synthetic Conv2d + BatchNorm2d parameters, BN folded."""
    k = jax.random.split(key, 6)
    w = jax.random.normal(k[0], (3, 3, cin, cout), jnp.float32) * 0.1  # HWIO
    b_conv = jax.random.normal(k[1], (cout,), jnp.float32) * 0.1
    gamma = 1.0 + 0.1 * jax.random.normal(k[2], (cout,), jnp.float32)
    beta = 0.1 * jax.random.normal(k[3], (cout,), jnp.float32)
    running_mean = 0.1 * jax.random.normal(k[4], (cout,), jnp.float32)
    running_var = jax.random.uniform(k[5], (cout,), jnp.float32,
                                     minval=0.5, maxval=1.5)
    s = gamma / jnp.sqrt(running_var + eps)
    scale = s
    bias = (b_conv - running_mean) * s + beta
    return w, scale, bias


def _reference(x_nchw, w1, s1, b1, w2, s2, b2):
    """Pure-JAX reference matching the kernel's bf16-input / f32-accum math."""
    def block(x_nhwc, w, s, b):
        xr = x_nhwc.astype(jnp.bfloat16).astype(jnp.float32)
        wr = w.astype(jnp.bfloat16).astype(jnp.float32)
        y = lax.conv_general_dilated(
            xr, wr, window_strides=(1, 1), padding="SAME",
            dimension_numbers=("NHWC", "HWIO", "NHWC"),
            preferred_element_type=jnp.float32)
        return jnp.maximum(y * s + b, 0.0)

    x = jnp.transpose(x_nchw, (0, 2, 3, 1))
    y = block(x, w1, s1, b1)
    y = block(y, w2, s2, b2)
    return jnp.transpose(y, (0, 3, 1, 2))


if __name__ == "__main__":
    key = jax.random.PRNGKey(0)
    kx, kp1, kp2 = jax.random.split(key, 3)

    N, Cin, Cout, H, W = 2, 4, 8, 16, 16
    x = jax.random.normal(kx, (N, Cin, H, W), jnp.float32)

    w1, s1, b1 = make_conv_bn_params(kp1, Cin, Cout)
    w2, s2, b2 = make_conv_bn_params(kp2, Cout, Cout)

    out = double_conv(x, w1, s1, b1, w2, s2, b2)
    out = jax.block_until_ready(out)

    ref = _reference(x, w1, s1, b1, w2, s2, b2)
    assert out.shape == (N, Cout, H, W), out.shape
    max_err = float(jnp.max(jnp.abs(out - ref)))
    assert jnp.allclose(out, ref, atol=1e-2, rtol=1e-2), max_err

    print("KERNEL_OK")
</pallas_src>

<mosaic_0001>
module attributes {stable_mosaic.version = 11 : i64} {
  func.func @_double_conv_kernel(%arg0: i32, %arg1: memref<1x16x16x4xbf16, #tpu.memory_space<vmem>>, %arg2: memref<128x128xbf16, #tpu.memory_space<vmem>>, %arg3: memref<128x128xbf16, #tpu.memory_space<vmem>>, %arg4: memref<1x128xf32, #tpu.memory_space<vmem>>, %arg5: memref<1x128xf32, #tpu.memory_space<vmem>>, %arg6: memref<1x128xf32, #tpu.memory_space<vmem>>, %arg7: memref<1x128xf32, #tpu.memory_space<vmem>>, %arg8: memref<1x256x8xf32, #tpu.memory_space<vmem>>, %arg9: memref<18x24x128xbf16, #tpu.memory_space<vmem>>, %arg10: memref<16x16x128xbf16, #tpu.memory_space<vmem>>) attributes {dimension_semantics = [#tpu.dimension_semantics<parallel>], iteration_bounds = array<i64: 2>, scalar_prefetch = 0 : i64, scratch_operands = 2 : i64, tpu.core_type = #tpu.core_type<tc>, window_params = [{transform_indices = @transform_0, window_bounds = array<i64: 1, 16, 16, 4>}, {pipeline_mode = #tpu.pipeline_mode<synchronous>, transform_indices = @transform_1, window_bounds = array<i64: 128, 128>}, {pipeline_mode = #tpu.pipeline_mode<synchronous>, transform_indices = @transform_2, window_bounds = array<i64: 128, 128>}, {pipeline_mode = #tpu.pipeline_mode<synchronous>, transform_indices = @transform_3, window_bounds = array<i64: 1, 128>}, {pipeline_mode = #tpu.pipeline_mode<synchronous>, transform_indices = @transform_4, window_bounds = array<i64: 1, 128>}, {pipeline_mode = #tpu.pipeline_mode<synchronous>, transform_indices = @transform_5, window_bounds = array<i64: 1, 128>}, {pipeline_mode = #tpu.pipeline_mode<synchronous>, transform_indices = @transform_6, window_bounds = array<i64: 1, 128>}, {transform_indices = @transform_7, window_bounds = array<i64: 1, 256, 8>}]} {
    %cst = arith.constant 0.000000e+00 : bf16
    %0 = vector.broadcast %cst : bf16 to vector<1x24x128xbf16>
    %c0 = arith.constant 0 : index
    %c0_0 = arith.constant 0 : index
    %c0_1 = arith.constant 0 : index
    %1 = vector.load %arg9[%c0, %c0_0, %c0_1] : memref<18x24x128xbf16, #tpu.memory_space<vmem>>, vector<1x24x128xbf16>
    tpu.vector_store %arg9[%c0, %c0_0, %c0_1], %0 {strides = array<i32>} : memref<18x24x128xbf16, #tpu.memory_space<vmem>>, vector<1x24x128xbf16>,
    %c17 = arith.constant 17 : index
    %c0_2 = arith.constant 0 : index
    %c0_3 = arith.constant 0 : index
    %2 = vector.load %arg9[%c17, %c0_2, %c0_3] : memref<18x24x128xbf16, #tpu.memory_space<vmem>>, vector<1x24x128xbf16>
    tpu.vector_store %arg9[%c17, %c0_2, %c0_3], %0 {strides = array<i32>} : memref<18x24x128xbf16, #tpu.memory_space<vmem>>, vector<1x24x128xbf16>,
    %cst_4 = arith.constant 0.000000e+00 : bf16
    %3 = vector.broadcast %cst_4 : bf16 to vector<16x1x128xbf16>
    %c1 = arith.constant 1 : index
    %c0_5 = arith.constant 0 : index
    %c0_6 = arith.constant 0 : index
    %4 = vector.load %arg9[%c1, %c0_5, %c0_6] : memref<18x24x128xbf16, #tpu.memory_space<vmem>>, vector<16x1x128xbf16>
    tpu.vector_store %arg9[%c1, %c0_5, %c0_6], %3 {strides = array<i32>} : memref<18x24x128xbf16, #tpu.memory_space<vmem>>, vector<16x1x128xbf16>,
    %c1_7 = arith.constant 1 : index
    %c17_8 = arith.constant 17 : index
    %c0_9 = arith.constant 0 : index
    %5 = vector.load %arg9[%c1_7, %c17_8, %c0_9] : memref<18x24x128xbf16, #tpu.memory_space<vmem>>, vector<16x1x128xbf16>
    tpu.vector_store %arg9[%c1_7, %c17_8, %c0_9], %3 {strides = array<i32>} : memref<18x24x128xbf16, #tpu.memory_space<vmem>>, vector<16x1x128xbf16>,
    %cst_10 = arith.constant 0.000000e+00 : bf16
    %6 = vector.broadcast %cst_10 : bf16 to vector<16x16x128xbf16>
    %c0_11 = arith.constant 0 : index
    %c0_12 = arith.constant 0 : index
    %c0_13 = arith.constant 0 : index
    %7 = vector.load %arg10[%c0_11, %c0_12, %c0_13] : memref<16x16x128xbf16, #tpu.memory_space<vmem>>, vector<16x16x128xbf16>
    tpu.vector_store %arg10[%c0_11, %c0_12, %c0_13], %6 {strides = array<i32>} : memref<16x16x128xbf16, #tpu.memory_space<vmem>>, vector<16x16x128xbf16>,
    %c0_14 = arith.constant 0 : index
    %c0_15 = arith.constant 0 : index
    %c0_16 = arith.constant 0 : index
    %c0_17 = arith.constant 0 : index
    %8 = vector.load %arg1[%c0_14, %c0_15, %c0_16, %c0_17] : memref<1x16x16x4xbf16, #tpu.memory_space<vmem>>, vector<1x16x16x4xbf16>
    %9 = vector.shape_cast %8 : vector<1x16x16x4xbf16> to vector<16x16x4xbf16>
    %c1_18 = arith.constant 1 : index
    %c1_19 = arith.constant 1 : index
    %c0_20 = arith.constant 0 : index
    %10 = vector.load %arg9[%c1_18, %c1_19, %c0_20] : memref<18x24x128xbf16, #tpu.memory_space<vmem>>, vector<16x16x4xbf16>
    tpu.vector_store %arg9[%c1_18, %c1_19, %c0_20], %9 {strides = array<i32>} : memref<18x24x128xbf16, #tpu.memory_space<vmem>>, vector<16x16x4xbf16>,
    %c0_21 = arith.constant 0 : index
    %c0_22 = arith.constant 0 : index
    %c0_23 = arith.constant 0 : index
    %11 = vector.load %arg9[%c0_21, %c0_22, %c0_23] : memref<18x24x128xbf16, #tpu.memory_space<vmem>>, vector<16x16x4xbf16>
    %c0_24 = arith.constant 0 : index
    %c0_25 = arith.constant 0 : index
    %c0_26 = arith.constant 0 : index
    %12 = vector.load %arg10[%c0_24, %c0_25, %c0_26] : memref<16x16x128xbf16, #tpu.memory_space<vmem>>, vector<16x16x4xbf16>
    tpu.vector_store %arg10[%c0_24, %c0_25, %c0_26], %11 {strides = array<i32>} : memref<16x16x128xbf16, #tpu.memory_space<vmem>>, vector<16x16x4xbf16>,
    %c0_27 = arith.constant 0 : index
    %c1_28 = arith.constant 1 : index
    %c0_29 = arith.constant 0 : index
    %13 = vector.load %arg9[%c0_27, %c1_28, %c0_29] : memref<18x24x128xbf16, #tpu.memory_space<vmem>>, vector<16x16x4xbf16>
    %c0_30 = arith.constant 0 : index
    %c0_31 = arith.constant 0 : index
    %c4 = arith.constant 4 : index
    %14 = vector.load %arg10[%c0_30, %c0_31, %c4] : memref<16x16x128xbf16, #tpu.memory_space<vmem>>, vector<16x16x4xbf16>
    tpu.vector_store %arg10[%c0_30, %c0_31, %c4], %13 {strides = array<i32>} : memref<16x16x128xbf16, #tpu.memory_space<vmem>>, vector<16x16x4xbf16>,
    %c0_32 = arith.constant 0 : index
    %c2 = arith.constant 2 : index
    %c0_33 = arith.constant 0 : index
    %15 = vector.load %arg9[%c0_32, %c2, %c0_33] : memref<18x24x128xbf16, #tpu.memory_space<vmem>>, vector<16x16x4xbf16>
    %c0_34 = arith.constant 0 : index
    %c0_35 = arith.constant 0 : index
    %c8 = arith.constant 8 : index
    %16 = vector.load %arg10[%c0_34, %c0_35, %c8] : memref<16x16x128xbf16, #tpu.memory_space<vmem>>, vector<16x16x4xbf16>
    tpu.vector_store %arg10[%c0_34, %c0_35, %c8], %15 {strides = array<i32>} : memref<16x16x128xbf16, #tpu.memory_space<vmem>>, vector<16x16x4xbf16>,
    %c1_36 = arith.constant 1 : index
    %c0_37 = arith.constant 0 : index
    %c0_38 = arith.constant 0 : index
    %17 = vector.load %arg9[%c1_36, %c0_37, %c0_38] : memref<18x24x128xbf16, #tpu.memory_space<vmem>>, vector<16x16x4xbf16>
    %c0_39 = arith.constant 0 : index
    %c0_40 = arith.constant 0 : index
    %c12 = arith.constant 12 : index
    %18 = vector.load %arg10[%c0_39, %c0_40, %c12] : memref<16x16x128xbf16, #tpu.memory_space<vmem>>, vector<16x16x4xbf16>
    tpu.vector_store %arg10[%c0_39, %c0_40, %c12], %17 {strides = array<i32>} : memref<16x16x128xbf16, #tpu.memory_space<vmem>>, vector<16x16x4xbf16>,
    %c1_41 = arith.constant 1 : index
    %c1_42 = arith.constant 1 : index
    %c0_43 = arith.constant 0 : index
    %19 = vector.load %arg9[%c1_41, %c1_42, %c0_43] : memref<18x24x128xbf16, #tpu.memory_space<vmem>>, vector<16x16x4xbf16>
    %c0_44 = arith.constant 0 : index
    %c0_45 = arith.constant 0 : index
    %c16 = arith.constant 16 : index
    %20 = vector.load %arg10[%c0_44, %c0_45, %c16] : memref<16x16x128xbf16, #tpu.memory_space<vmem>>, vector<16x16x4xbf16>
    tpu.vector_store %arg10[%c0_44, %c0_45, %c16], %19 {strides = array<i32>} : memref<16x16x128xbf16, #tpu.memory_space<vmem>>, vector<16x16x4xbf16>,
    %c1_46 = arith.constant 1 : index
    %c2_47 = arith.constant 2 : index
    %c0_48 = arith.constant 0 : index
    %21 = vector.load %arg9[%c1_46, %c2_47, %c0_48] : memref<18x24x128xbf16, #tpu.memory_space<vmem>>, vector<16x16x4xbf16>
    %c0_49 = arith.constant 0 : index
    %c0_50 = arith.constant 0 : index
    %c20 = arith.constant 20 : index
    %22 = vector.load %arg10[%c0_49, %c0_50, %c20] : memref<16x16x128xbf16, #tpu.memory_space<vmem>>, vector<16x16x4xbf16>
    tpu.vector_store %arg10[%c0_49, %c0_50, %c20], %21 {strides = array<i32>} : memref<16x16x128xbf16, #tpu.memory_space<vmem>>, vector<16x16x4xbf16>,
    %c2_51 = arith.constant 2 : index
    %c0_52 = arith.constant 0 : index
    %c0_53 = arith.constant 0 : index
    %23 = vector.load %arg9[%c2_51, %c0_52, %c0_53] : memref<18x24x128xbf16, #tpu.memory_space<vmem>>, vector<16x16x4xbf16>
    %c0_54 = arith.constant 0 : index
    %c0_55 = arith.constant 0 : index
    %c24 = arith.constant 24 : index
    %24 = vector.load %arg10[%c0_54, %c0_55, %c24] : memref<16x16x128xbf16, #tpu.memory_space<vmem>>, vector<16x16x4xbf16>
    tpu.vector_store %arg10[%c0_54, %c0_55, %c24], %23 {strides = array<i32>} : memref<16x16x128xbf16, #tpu.memory_space<vmem>>, vector<16x16x4xbf16>,
    %c2_56 = arith.constant 2 : index
    %c1_57 = arith.constant 1 : index
    %c0_58 = arith.constant 0 : index
    %25 = vector.load %arg9[%c2_56, %c1_57, %c0_58] : memref<18x24x128xbf16, #tpu.memory_space<vmem>>, vector<16x16x4xbf16>
    %c0_59 = arith.constant 0 : index
    %c0_60 = arith.constant 0 : index
    %c28 = arith.constant 28 : index
    %26 = vector.load %arg10[%c0_59, %c0_60, %c28] : memref<16x16x128xbf16, #tpu.memory_space<vmem>>, vector<16x16x4xbf16>
    tpu.vector_store %arg10[%c0_59, %c0_60, %c28], %25 {strides = array<i32>} : memref<16x16x128xbf16, #tpu.memory_space<vmem>>, vector<16x16x4xbf16>,
    %c2_61 = arith.constant 2 : index
    %c2_62 = arith.constant 2 : index
    %c0_63 = arith.constant 0 : index
    %27 = vector.load %arg9[%c2_61, %c2_62, %c0_63] : memref<18x24x128xbf16, #tpu.memory_space<vmem>>, vector<16x16x4xbf16>
    %c0_64 = arith.constant 0 : index
    %c0_65 = arith.constant 0 : index
    %c32 = arith.constant 32 : index
    %28 = vector.load %arg10[%c0_64, %c0_65, %c32] : memref<16x16x128xbf16, #tpu.memory_space<vmem>>, vector<16x16x4xbf16>
    tpu.vector_store %arg10[%c0_64, %c0_65, %c32], %27 {strides = array<i32>} : memref<16x16x128xbf16, #tpu.memory_space<vmem>>, vector<16x16x4xbf16>,
    %c0_66 = arith.constant 0 : index
    %c0_67 = arith.constant 0 : index
    %c0_68 = arith.constant 0 : index
    %29 = vector.load %arg10[%c0_66, %c0_67, %c0_68] : memref<16x16x128xbf16, #tpu.memory_space<vmem>>, vector<16x16x128xbf16>
    %30 = vector.shape_cast %29 : vector<16x16x128xbf16> to vector<256x128xbf16>
    %c0_69 = arith.constant 0 : index
    %c0_70 = arith.constant 0 : index
    %31 = vector.load %arg2[%c0_69, %c0_70] : memref<128x128xbf16, #tpu.memory_space<vmem>>, vector<128x128xbf16>
    %cst_71 = arith.constant dense<0.000000e+00> : vector<256x128xf32>
    %32 = tpu.matmul %30, %31, %cst_71 {dimension_numbers = #tpu.dot_dimension_numbers<[1], [0], [0], [1], [0, 0, 1, 1], [], []>} : vector<256x128xbf16>, vector<128x128xbf16>, vector<256x128xf32> -> vector<256x128xf32>
    %c0_72 = arith.constant 0 : index
    %c0_73 = arith.constant 0 : index
    %33 = vector.load %arg4[%c0_72, %c0_73] : memref<1x128xf32, #tpu.memory_space<vmem>>, vector<1x128xf32>
    %34 = vector.shape_cast %33 : vector<1x128xf32> to vector<128xf32>
    %35 = vector.shape_cast %34 : vector<128xf32> to vector<1x128xf32>
    %36 = vector.broadcast %35 : vector<1x128xf32> to vector<256x128xf32>
    %37 = arith.mulf %32, %36 : vector<256x128xf32>
    %c0_74 = arith.constant 0 : index
    %c0_75 = arith.constant 0 : index
    %38 = vector.load %arg5[%c0_74, %c0_75] : memref<1x128xf32, #tpu.memory_space<vmem>>, vector<1x128xf32>
    %39 = vector.shape_cast %38 : vector<1x128xf32> to vector<128xf32>
    %40 = vector.shape_cast %39 : vector<128xf32> to vector<1x128xf32>
    %41 = vector.broadcast %40 : vector<1x128xf32> to vector<256x128xf32>
    %42 = arith.addf %37, %41 : vector<256x128xf32>
    %cst_76 = arith.constant 0.000000e+00 : f32
    %43 = vector.broadcast %cst_76 : f32 to vector<256x128xf32>
    %44 = arith.maximumf %42, %43 : vector<256x128xf32>
    %45 = vector.shape_cast %44 : vector<256x128xf32> to vector<16x16x128xf32>
    %46 = arith.truncf %45 : vector<16x16x128xf32> to vector<16x16x128xbf16>
    %c1_77 = arith.constant 1 : index
    %c1_78 = arith.constant 1 : index
    %c0_79 = arith.constant 0 : index
    %47 = vector.load %arg9[%c1_77, %c1_78, %c0_79] : memref<18x24x128xbf16, #tpu.memory_space<vmem>>, vector<16x16x128xbf16>
    tpu.vector_store %arg9[%c1_77, %c1_78, %c0_79], %46 {strides = array<i32>} : memref<18x24x128xbf16, #tpu.memory_space<vmem>>, vector<16x16x128xbf16>,
    %c0_80 = arith.constant 0 : index
    %c0_81 = arith.constant 0 : index
    %c0_82 = arith.constant 0 : index
    %48 = vector.load %arg9[%c0_80, %c0_81, %c0_82] : memref<18x24x128xbf16, #tpu.memory_space<vmem>>, vector<16x16x8xbf16>
    %c0_83 = arith.constant 0 : index
    %c0_84 = arith.constant 0 : index
    %c0_85 = arith.constant 0 : index
    %49 = vector.load %arg10[%c0_83, %c0_84, %c0_85] : memref<16x16x128xbf16, #tpu.memory_space<vmem>>, vector<16x16x8xbf16>
    tpu.vector_store %arg10[%c0_83, %c0_84, %c0_85], %48 {strides = array<i32>} : memref<16x16x128xbf16, #tpu.memory_space<vmem>>, vector<16x16x8xbf16>,
    %c0_86 = arith.constant 0 : index
    %c1_87 = arith.constant 1 : index
    %c0_88 = arith.constant 0 : index
    %50 = vector.load %arg9[%c0_86, %c1_87, %c0_88] : memref<18x24x128xbf16, #tpu.memory_space<vmem>>, vector<16x16x8xbf16>
    %c0_89 = arith.constant 0 : index
    %c0_90 = arith.constant 0 : index
    %c8_91 = arith.constant 8 : index
    %51 = vector.load %arg10[%c0_89, %c0_90, %c8_91] : memref<16x16x128xbf16, #tpu.memory_space<vmem>>, vector<16x16x8xbf16>
    tpu.vector_store %arg10[%c0_89, %c0_90, %c8_91], %50 {strides = array<i32>} : memref<16x16x128xbf16, #tpu.memory_space<vmem>>, vector<16x16x8xbf16>,
    %c0_92 = arith.constant 0 : index
    %c2_93 = arith.constant 2 : index
    %c0_94 = arith.constant 0 : index
    %52 = vector.load %arg9[%c0_92, %c2_93, %c0_94] : memref<18x24x128xbf16, #tpu.memory_space<vmem>>, vector<16x16x8xbf16>
    %c0_95 = arith.constant 0 : index
    %c0_96 = arith.constant 0 : index
    %c16_97 = arith.constant 16 : index
    %53 = vector.load %arg10[%c0_95, %c0_96, %c16_97] : memref<16x16x128xbf16, #tpu.memory_space<vmem>>, vector<16x16x8xbf16>
    tpu.vector_store %arg10[%c0_95, %c0_96, %c16_97], %52 {strides = array<i32>} : memref<16x16x128xbf16, #tpu.memory_space<vmem>>, vector<16x16x8xbf16>,
    %c1_98 = arith.constant 1 : index
    %c0_99 = arith.constant 0 : index
    %c0_100 = arith.constant 0 : index
    %54 = vector.load %arg9[%c1_98, %c0_99, %c0_100] : memref<18x24x128xbf16, #tpu.memory_space<vmem>>, vector<16x16x8xbf16>
    %c0_101 = arith.constant 0 : index
    %c0_102 = arith.constant 0 : index
    %c24_103 = arith.constant 24 : index
    %55 = vector.load %arg10[%c0_101, %c0_102, %c24_103] : memref<16x16x128xbf16, #tpu.memory_space<vmem>>, vector<16x16x8xbf16>
    tpu.vector_store %arg10[%c0_101, %c0_102, %c24_103], %54 {strides = array<i32>} : memref<16x16x128xbf16, #tpu.memory_space<vmem>>, vector<16x16x8xbf16>,
    %c1_104 = arith.constant 1 : index
    %c1_105 = arith.constant 1 : index
    %c0_106 = arith.constant 0 : index
    %56 = vector.load %arg9[%c1_104, %c1_105, %c0_106] : memref<18x24x128xbf16, #tpu.memory_space<vmem>>, vector<16x16x8xbf16>
    %c0_107 = arith.constant 0 : index
    %c0_108 = arith.constant 0 : index
    %c32_109 = arith.constant 32 : index
    %57 = vector.load %arg10[%c0_107, %c0_108, %c32_109] : memref<16x16x128xbf16, #tpu.memory_space<vmem>>, vector<16x16x8xbf16>
    tpu.vector_store %arg10[%c0_107, %c0_108, %c32_109], %56 {strides = array<i32>} : memref<16x16x128xbf16, #tpu.memory_space<vmem>>, vector<16x16x8xbf16>,
    %c1_110 = arith.constant 1 : index
    %c2_111 = arith.constant 2 : index
    %c0_112 = arith.constant 0 : index
    %58 = vector.load %arg9[%c1_110, %c2_111, %c0_112] : memref<18x24x128xbf16, #tpu.memory_space<vmem>>, vector<16x16x8xbf16>
    %c0_113 = arith.constant 0 : index
    %c0_114 = arith.constant 0 : index
    %c40 = arith.constant 40 : index
    %59 = vector.load %arg10[%c0_113, %c0_114, %c40] : memref<16x16x128xbf16, #tpu.memory_space<vmem>>, vector<16x16x8xbf16>
    tpu.vector_store %arg10[%c0_113, %c0_114, %c40], %58 {strides = array<i32>} : memref<16x16x128xbf16, #tpu.memory_space<vmem>>, vector<16x16x8xbf16>,
    %c2_115 = arith.constant 2 : index
    %c0_116 = arith.constant 0 : index
    %c0_117 = arith.constant 0 : index
    %60 = vector.load %arg9[%c2_115, %c0_116, %c0_117] : memref<18x24x128xbf16, #tpu.memory_space<vmem>>, vector<16x16x8xbf16>
    %c0_118 = arith.constant 0 : index
    %c0_119 = arith.constant 0 : index
    %c48 = arith.constant 48 : index
    %61 = vector.load %arg10[%c0_118, %c0_119, %c48] : memref<16x16x128xbf16, #tpu.memory_space<vmem>>, vector<16x16x8xbf16>
    tpu.vector_store %arg10[%c0_118, %c0_119, %c48], %60 {strides = array<i32>} : memref<16x16x128xbf16, #tpu.memory_space<vmem>>, vector<16x16x8xbf16>,
    %c2_120 = arith.constant 2 : index
    %c1_121 = arith.constant 1 : index
    %c0_122 = arith.constant 0 : index
    %62 = vector.load %arg9[%c2_120, %c1_121, %c0_122] : memref<18x24x128xbf16, #tpu.memory_space<vmem>>, vector<16x16x8xbf16>
    %c0_123 = arith.constant 0 : index
    %c0_124 = arith.constant 0 : index
    %c56 = arith.constant 56 : index
    %63 = vector.load %arg10[%c0_123, %c0_124, %c56] : memref<16x16x128xbf16, #tpu.memory_space<vmem>>, vector<16x16x8xbf16>
    tpu.vector_store %arg10[%c0_123, %c0_124, %c56], %62 {strides = array<i32>} : memref<16x16x128xbf16, #tpu.memory_space<vmem>>, vector<16x16x8xbf16>,
    %c2_125 = arith.constant 2 : index
    %c2_126 = arith.constant 2 : index
    %c0_127 = arith.constant 0 : index
    %64 = vector.load %arg9[%c2_125, %c2_126, %c0_127] : memref<18x24x128xbf16, #tpu.memory_space<vmem>>, vector<16x16x8xbf16>
    %c0_128 = arith.constant 0 : index
    %c0_129 = arith.constant 0 : index
    %c64 = arith.constant 64 : index
    %65 = vector.load %arg10[%c0_128, %c0_129, %c64] : memref<16x16x128xbf16, #tpu.memory_space<vmem>>, vector<16x16x8xbf16>
    tpu.vector_store %arg10[%c0_128, %c0_129, %c64], %64 {strides = array<i32>} : memref<16x16x128xbf16, #tpu.memory_space<vmem>>, vector<16x16x8xbf16>,
    %c0_130 = arith.constant 0 : index
    %c0_131 = arith.constant 0 : index
    %c0_132 = arith.constant 0 : index
    %66 = vector.load %arg10[%c0_130, %c0_131, %c0_132] : memref<16x16x128xbf16, #tpu.memory_space<vmem>>, vector<16x16x128xbf16>
    %67 = vector.shape_cast %66 : vector<16x16x128xbf16> to vector<256x128xbf16>
    %c0_133 = arith.constant 0 : index
    %c0_134 = arith.constant 0 : index
    %68 = vector.load %arg3[%c0_133, %c0_134] : memref<128x128xbf16, #tpu.memory_space<vmem>>, vector<128x128xbf16>
    %cst_135 = arith.constant dense<0.000000e+00> : vector<256x128xf32>
    %69 = tpu.matmul %67, %68, %cst_135 {dimension_numbers = #tpu.dot_dimension_numbers<[1], [0], [0], [1], [0, 0, 1, 1], [], []>} : vector<256x128xbf16>, vector<128x128xbf16>, vector<256x128xf32> -> vector<256x128xf32>
    %c0_136 = arith.constant 0 : index
    %c0_137 = arith.constant 0 : index
    %70 = vector.load %arg6[%c0_136, %c0_137] : memref<1x128xf32, #tpu.memory_space<vmem>>, vector<1x128xf32>
    %71 = vector.shape_cast %70 : vector<1x128xf32> to vector<128xf32>
    %72 = vector.shape_cast %71 : vector<128xf32> to vector<1x128xf32>
    %73 = vector.broadcast %72 : vector<1x128xf32> to vector<256x128xf32>
    %74 = arith.mulf %69, %73 : vector<256x128xf32>
    %c0_138 = arith.constant 0 : index
    %c0_139 = arith.constant 0 : index
    %75 = vector.load %arg7[%c0_138, %c0_139] : memref<1x128xf32, #tpu.memory_space<vmem>>, vector<1x128xf32>
    %76 = vector.shape_cast %75 : vector<1x128xf32> to vector<128xf32>
    %77 = vector.shape_cast %76 : vector<128xf32> to vector<1x128xf32>
    %78 = vector.broadcast %77 : vector<1x128xf32> to vector<256x128xf32>
    %79 = arith.addf %74, %78 : vector<256x128xf32>
    %cst_140 = arith.constant 0.000000e+00 : f32
    %80 = vector.broadcast %cst_140 : f32 to vector<256x128xf32>
    %81 = arith.maximumf %79, %80 : vector<256x128xf32>
    %82 = vector.extract_strided_slice %81 {offsets = [0, 0], sizes = [256, 8], strides = [1, 1]} : vector<256x128xf32> to vector<256x8xf32>
    %c0_141 = arith.constant 0 : index
    %c0_142 = arith.constant 0 : index
    %c0_143 = arith.constant 0 : index
    %83 = vector.load %arg8[%c0_141, %c0_142, %c0_143] : memref<1x256x8xf32, #tpu.memory_space<vmem>>, vector<1x256x8xf32>
    %84 = vector.shape_cast %83 : vector<1x256x8xf32> to vector<256x8xf32>
    %85 = vector.shape_cast %82 : vector<256x8xf32> to vector<1x256x8xf32>
    tpu.vector_store %arg8[%c0_141, %c0_142, %c0_143], %85 {strides = array<i32>} : memref<1x256x8xf32, #tpu.memory_space<vmem>>, vector<1x256x8xf32>,
    return
  }
  func.func @transform_0(%arg0: i32) -> (i32, i32, i32, i32) {
    %c0_i32 = arith.constant 0 : i32
    %c0_i32_0 = arith.constant 0 : i32
    %c0_i32_1 = arith.constant 0 : i32
    %c0_i32_2 = arith.constant 0 : i32
    return %arg0, %c0_i32, %c0_i32_0, %c0_i32_1 : i32, i32, i32, i32
  }
  func.func @transform_1(%arg0: i32) -> (i32, i32) {
    %c0_i32 = arith.constant 0 : i32
    %c0_i32_0 = arith.constant 0 : i32
    %c0_i32_1 = arith.constant 0 : i32
    return %c0_i32, %c0_i32_0 : i32, i32
  }
  func.func @transform_2(%arg0: i32) -> (i32, i32) {
    %c0_i32 = arith.constant 0 : i32
    %c0_i32_0 = arith.constant 0 : i32
    %c0_i32_1 = arith.constant 0 : i32
    return %c0_i32, %c0_i32_0 : i32, i32
  }
  func.func @transform_3(%arg0: i32) -> (i32, i32) {
    %c0_i32 = arith.constant 0 : i32
    %c0_i32_0 = arith.constant 0 : i32
    %c0_i32_1 = arith.constant 0 : i32
    return %c0_i32, %c0_i32_0 : i32, i32
  }
  func.func @transform_4(%arg0: i32) -> (i32, i32) {
    %c0_i32 = arith.constant 0 : i32
    %c0_i32_0 = arith.constant 0 : i32
    %c0_i32_1 = arith.constant 0 : i32
    return %c0_i32, %c0_i32_0 : i32, i32
  }
  func.func @transform_5(%arg0: i32) -> (i32, i32) {
    %c0_i32 = arith.constant 0 : i32
    %c0_i32_0 = arith.constant 0 : i32
    %c0_i32_1 = arith.constant 0 : i32
    return %c0_i32, %c0_i32_0 : i32, i32
  }
  func.func @transform_6(%arg0: i32) -> (i32, i32) {
    %c0_i32 = arith.constant 0 : i32
    %c0_i32_0 = arith.constant 0 : i32
    %c0_i32_1 = arith.constant 0 : i32
    return %c0_i32, %c0_i32_0 : i32, i32
  }
  func.func @transform_7(%arg0: i32) -> (i32, i32, i32) {
    %c0_i32 = arith.constant 0 : i32
    %c0_i32_0 = arith.constant 0 : i32
    %c0_i32_1 = arith.constant 0 : i32
    return %arg0, %c0_i32, %c0_i32_0 : i32, i32, i32
  }
}

</mosaic_0001>

<llo_original>
// kernel: double_conv.1
$region0: #{double_conv.1}
  #allocation0 [shape = 'u32[]', space=smem, size = 0x4, offset = 0x4, fixed_abs, tag = 'smem constant byte address 0x4 - core index']
  #allocation1 [shape = 'u32[144,128]{1,0:T(1,128)}', space=vmem, size = 0x12000, scoped, tag = 'internal scratch']
  #allocation2 [shape = 'bf16[18,24,128]{2,1,0:T(8,128)(2,1)}', space=vmem, size = 0x1b000, scoped, tag = 'scratch operand']
  #allocation3 [shape = 'bf16[16,16,128]{2,1,0:T(16,128)(2,1)}', space=vmem, size = 0x10000, scoped, tag = 'scratch operand']
  %s0 = inlined_call_operand.vmem [shape: bf16[2,16,16,4], index: 0, kind: input, shape index: {}]
  %s1 = inlined_call_operand.vmem [shape: bf16[128,128], index: 1, kind: input, shape index: {}]
  %s2 = inlined_call_operand.vmem [shape: bf16[128,128], index: 2, kind: input, shape index: {}]
  %s3 = inlined_call_operand.vmem [shape: f32[1,128], index: 3, kind: input, shape index: {}]
  %s4 = inlined_call_operand.vmem [shape: f32[1,128], index: 4, kind: input, shape index: {}]
  %s5 = inlined_call_operand.vmem [shape: f32[1,128], index: 5, kind: input, shape index: {}]
  %s6 = inlined_call_operand.vmem [shape: f32[1,128], index: 6, kind: input, shape index: {}]
  %s7 = inlined_call_operand.vmem [shape: f32[2,256,8], index: 7, kind: output, shape index: {}]
  %s8 = sld [smem:[#allocation0]]
  $region61: #{double_conv.1} parent=0
    _
  %s10 = ssub.s32 1, %s8
  %s11 = scalar_select 0, %s10, %s8
  loop: start=0, step=1, limit=4
  $region2: #{double_conv.1} parent=0 // loop_pre_header
    _
  $region3: #{double_conv.1} parent=0 // loop_header
    %s13 = sphi 0, %s17
    %p14 = scmp.ge.s32.totalorder %s13, 4
    %s23 = sphi 0, %s25
    %s26 = sphi 0, %s23
    %s27 = sphi 0, %s26
    %s43 = sphi 0, %s27
    %s47 = sphi 0, %s47
    %s49 = sphi 0, %s47
    %s50 = sphi 0, %s49
    %s64 = sphi 0, %s50
    %s68 = sphi 0, %s68
    %s70 = sphi 0, %s68
    %s71 = sphi 0, %s70
    %s85 = sphi 0, %s71
    %s89 = sphi 0, %s89
    %s91 = sphi 0, %s89
    %s92 = sphi 0, %s91
    %s106 = sphi 0, %s92
    %s110 = sphi 0, %s110
    %s112 = sphi 0, %s110
    %s113 = sphi 0, %s112
    %s127 = sphi 0, %s113
    %s131 = sphi 0, %s131
    %s133 = sphi 0, %s131
    %s134 = sphi 0, %s133
    %s148 = sphi 0, %s134
    %s152 = sphi 0, %s152
    %s154 = sphi 0, %s152
    %s155 = sphi 0, %s154
    %s169 = sphi 0, %s155
    %s175 = sphi 0, %s177
    %s178 = sphi 0, %s175
    %s179 = sphi 0, %s178
    %s195 = sphi 0, %s179
  $region4: #{double_conv.1} parent=0 // loop_header_branch
    %16 = sbr.rel (%p14) target = $region8
  $region5: #{double_conv.1} parent=0 // loop_body
    %s18 = ssub.s32 %s13, 1
    %s19 = ssub.s32 %s13, 2
    %s20 = sadd.s32 %s13, 1
    %s21 = ssub.s32 %s13, %s20
    %p22 = scmp.eq.s32.totalorder %s21, 0
    %s24 = sadd.s32 %s23, 1
    %s25 = scalar_select %p22, %s23, %s24
    %p28 = pneg %p22
    %p29 = scmp.eq.s32.totalorder %s13, 1
    %p30 = por %p28, %p29
    %p31 = scmp.ne.s32.totalorder %s23, %s26
    %p32 = scmp.eq.s32.totalorder %s13, 0
    %p33 = por %p31, %p32
    %p34 = scmp.ne.s32.totalorder %s23, %s26
    %p35 = scmp.eq.s32.totalorder %s18, 1
    %p36 = por %p34, %p35
    %p37 = scmp.ne.s32.totalorder %s26, %s27
    %p38 = scmp.eq.s32.totalorder %s18, 0
    %p39 = por %p37, %p38
    %p40 = scmp.ne.s32.totalorder %s26, %s27
    %p41 = scmp.eq.s32.totalorder %s19, 1
    %p42 = por %p40, %p41
    %p44 = scmp.ne.s32.totalorder %s27, %s43
    %p45 = scmp.eq.s32.totalorder %s19, 0
    %p46 = por %p44, %p45
    %s48 = sadd.s32 %s47, 1
    %p51 = scmp.eq.s32.totalorder %s13, 1
    %p52 = scmp.ne.s32.totalorder %s47, %s49
    %p53 = scmp.eq.s32.totalorder %s13, 0
    %p54 = por %p52, %p53
    %p55 = scmp.ne.s32.totalorder %s47, %s49
    %p56 = scmp.eq.s32.totalorder %s18, 1
    %p57 = por %p55, %p56
    %p58 = scmp.ne.s32.totalorder %s49, %s50
    %p59 = scmp.eq.s32.totalorder %s18, 0
    %p60 = por %p58, %p59
    %p61 = scmp.ne.s32.totalorder %s49, %s50
    %p62 = scmp.eq.s32.totalorder %s19, 1
    %p63 = por %p61, %p62
    %p65 = scmp.ne.s32.totalorder %s50, %s64
    %p66 = scmp.eq.s32.totalorder %s19, 0
    %p67 = por %p65, %p66
    %s69 = sadd.s32 %s68, 1
    %p72 = scmp.eq.s32.totalorder %s13, 1
    %p73 = scmp.ne.s32.totalorder %s68, %s70
    %p74 = scmp.eq.s32.totalorder %s13, 0
    %p75 = por %p73, %p74
    %p76 = scmp.ne.s32.totalorder %s68, %s70
    %p77 = scmp.eq.s32.totalorder %s18, 1
    %p78 = por %p76, %p77
    %p79 = scmp.ne.s32.totalorder %s70, %s71
    %p80 = scmp.eq.s32.totalorder %s18, 0
    %p81 = por %p79, %p80
    %p82 = scmp.ne.s32.totalorder %s70, %s71
    %p83 = scmp.eq.s32.totalorder %s19, 1
    %p84 = por %p82, %p83
    %p86 = scmp.ne.s32.totalorder %s71, %s85
    %p87 = scmp.eq.s32.totalorder %s19, 0
    %p88 = por %p86, %p87
    %s90 = sadd.s32 %s89, 1
    %p93 = scmp.eq.s32.totalorder %s13, 1
    %p94 = scmp.ne.s32.totalorder %s89, %s91
    %p95 = scmp.eq.s32.totalorder %s13, 0
    %p96 = por %p94, %p95
    %p97 = scmp.ne.s32.totalorder %s89, %s91
    %p98 = scmp.eq.s32.totalorder %s18, 1
    %p99 = por %p97, %p98
    %p100 = scmp.ne.s32.totalorder %s91, %s92
    %p101 = scmp.eq.s32.totalorder %s18, 0
    %p102 = por %p100, %p101
    %p103 = scmp.ne.s32.totalorder %s91, %s92
    %p104 = scmp.eq.s32.totalorder %s19, 1
    %p105 = por %p103, %p104
    %p107 = scmp.ne.s32.totalorder %s92, %s106
    %p108 = scmp.eq.s32.totalorder %s19, 0
    %p109 = por %p107, %p108
    %s111 = sadd.s32 %s110, 1
    %p114 = scmp.eq.s32.totalorder %s13, 1
    %p115 = scmp.ne.s32.totalorder %s110, %s112
    %p116 = scmp.eq.s32.totalorder %s13, 0
    %p117 = por %p115, %p116
    %p118 = scmp.ne.s32.totalorder %s110, %s112
    %p119 = scmp.eq.s32.totalorder %s18, 1
    %p120 = por %p118, %p119
    %p121 = scmp.ne.s32.totalorder %s112, %s113
    %p122 = scmp.eq.s32.totalorder %s18, 0
    %p123 = por %p121, %p122
    %p124 = scmp.ne.s32.totalorder %s112, %s113
    %p125 = scmp.eq.s32.totalorder %s19, 1
    %p126 = por %p124, %p125
    %p128 = scmp.ne.s32.totalorder %s113, %s127
    %p129 = scmp.eq.s32.totalorder %s19, 0
    %p130 = por %p128, %p129
    %s132 = sadd.s32 %s131, 1
    %p135 = scmp.eq.s32.totalorder %s13, 1
    %p136 = scmp.ne.s32.totalorder %s131, %s133
    %p137 = scmp.eq.s32.totalorder %s13, 0
    %p138 = por %p136, %p137
    %p139 = scmp.ne.s32.totalorder %s131, %s133
    %p140 = scmp.eq.s32.totalorder %s18, 1
    %p141 = por %p139, %p140
    %p142 = scmp.ne.s32.totalorder %s133, %s134
    %p143 = scmp.eq.s32.totalorder %s18, 0
    %p144 = por %p142, %p143
    %p145 = scmp.ne.s32.totalorder %s133, %s134
    %p146 = scmp.eq.s32.totalorder %s19, 1
    %p147 = por %p145, %p146
    %p149 = scmp.ne.s32.totalorder %s134, %s148
    %p150 = scmp.eq.s32.totalorder %s19, 0
    %p151 = por %p149, %p150
    %s153 = sadd.s32 %s152, 1
    %p156 = scmp.eq.s32.totalorder %s13, 1
    %p157 = scmp.ne.s32.totalorder %s152, %s154
    %p158 = scmp.eq.s32.totalorder %s13, 0
    %p159 = por %p157, %p158
    %p160 = scmp.ne.s32.totalorder %s152, %s154
    %p161 = scmp.eq.s32.totalorder %s18, 1
    %p162 = por %p160, %p161
    %p163 = scmp.ne.s32.totalorder %s154, %s155
    %p164 = scmp.eq.s32.totalorder %s18, 0
    %p165 = por %p163, %p164
    %p166 = scmp.ne.s32.totalorder %s154, %s155
    %p167 = scmp.eq.s32.totalorder %s19, 1
    %p168 = por %p166, %p167
    %p170 = scmp.ne.s32.totalorder %s155, %s169
    %p171 = scmp.eq.s32.totalorder %s19, 0
    %p172 = por %p170, %p171
    %s173 = ssub.s32 %s13, %s20
    %p174 = scmp.eq.s32.totalorder %s173, 0
    %s176 = sadd.s32 %s175, 1
    %s177 = scalar_select %p174, %s175, %s176
    %p180 = pneg %p174
    %p181 = scmp.eq.s32.totalorder %s13, 1
    %p182 = por %p180, %p181
    %p183 = scmp.ne.s32.totalorder %s175, %s178
    %p184 = scmp.eq.s32.totalorder %s13, 0
    %p185 = por %p183, %p184
    %p186 = scmp.ne.s32.totalorder %s175, %s178
    %p187 = scmp.eq.s32.totalorder %s18, 1
    %p188 = por %p186, %p187
    %p189 = scmp.ne.s32.totalorder %s178, %s179
    %p190 = scmp.eq.s32.totalorder %s18, 0
    %p191 = por %p189, %p190
    %p192 = scmp.ne.s32.totalorder %s178, %s179
    %p193 = scmp.eq.s32.totalorder %s19, 1
    %p194 = por %p192, %p193
    %p196 = scmp.ne.s32.totalorder %s179, %s195
    %p197 = scmp.eq.s32.totalorder %s19, 0
    %p198 = por %p196, %p197
    %p199 = scmp.le.s32.totalorder 1, %s13
    %p200 = scmp.lt.s32.totalorder %s13, 3
    %p201 = pnand %p199, %p200
    %p202 = pneg %p201
    // Predicated region
    $region9: #{double_conv.1} parent=5 // pred_check
      _
    $region10: #{double_conv.1} parent=5 // pred_check_branch
      %204 = sbr.rel (%p201) target = $region12
    $region11: #{double_conv.1} parent=5 // pred_region
      %s205 = ssub.s32 %s13, 1
      // Predicated region
      $region13: #{double_conv.1} parent=11 // pred_check
        %p206 = pneg %p60
      $region14: #{double_conv.1} parent=11 // pred_check_branch
        %208 = sbr.rel (%p206) target = $region16
      $region15: #{double_conv.1} parent=11 // pred_region
        _
      $region16: #{double_conv.1} parent=11 // pred_fallthru
        _
      // Predicated region
      $region17: #{double_conv.1} parent=11 // pred_check
        %p209 = pneg %p81
      $region18: #{double_conv.1} parent=11 // pred_check_branch
        %211 = sbr.rel (%p209) target = $region20
      $region19: #{double_conv.1} parent=11 // pred_region
        _
      $region20: #{double_conv.1} parent=11 // pred_fallthru
        _
      // Predicated region
      $region21: #{double_conv.1} parent=11 // pred_check
        %p212 = pneg %p102
      $region22: #{double_conv.1} parent=11 // pred_check_branch
        %214 = sbr.rel (%p212) target = $region24
      $region23: #{double_conv.1} parent=11 // pred_region
        _
      $region24: #{double_conv.1} parent=11 // pred_fallthru
        _
      // Predicated region
      $region25: #{double_conv.1} parent=11 // pred_check
        %p215 = pneg %p123
      $region26: #{double_conv.1} parent=11 // pred_check_branch
        %217 = sbr.rel (%p215) target = $region28
      $region27: #{double_conv.1} parent=11 // pred_region
        _
      $region28: #{double_conv.1} parent=11 // pred_fallthru
        _
      // Predicated region
      $region29: #{double_conv.1} parent=11 // pred_check
        %p218 = pneg %p144
      $region30: #{double_conv.1} parent=11 // pred_check_branch
        %220 = sbr.rel (%p218) target = $region32
      $region31: #{double_conv.1} parent=11 // pred_region
        _
      $region32: #{double_conv.1} parent=11 // pred_fallthru
        _
      // Predicated region
      $region33: #{double_conv.1} parent=11 // pred_check
        %p221 = pneg %p165
      $region34: #{double_conv.1} parent=11 // pred_check_branch
        %223 = sbr.rel (%p221) target = $region36
      $region35: #{double_conv.1} parent=11 // pred_region
        _
      $region36: #{double_conv.1} parent=11 // pred_fallthru
        _
    $region12: #{double_conv.1} parent=5 // pred_fallthru
      _
    %p224 = scmp.lt.s32.totalorder %s13, 2
    // Predicated region
    $region37: #{double_conv.1} parent=5 // pred_check
      %p225 = pneg %p224
    $region38: #{double_conv.1} parent=5 // pred_check_branch
      %227 = sbr.rel (%p225) target = $region40
    $region39: #{double_conv.1} parent=5 // pred_region
      // Predicated region
      $region41: #{double_conv.1} parent=39 // pred_check
        %p228 = pneg %p33
      $region42: #{double_conv.1} parent=39 // pred_check_branch
        %230 = sbr.rel (%p228) target = $region44
      $region43: #{double_conv.1} parent=39 // pred_region
        %p231 = scmp.lt.s32.totalorder %s13, 1
        %s232 = scalar_select %p231, %s13, 1
        %s233 = smul.addr %s232, 32
        %s234 = smul.addr %s233, 4
        %s235 = scalar_lea.vmem %s0, %s234
      $region44: #{double_conv.1} parent=39 // pred_fallthru
        _
    $region40: #{double_conv.1} parent=5 // pred_fallthru
      _
    %p236 = scmp.le.s32.totalorder 1, %s13
    %p237 = scmp.lt.s32.totalorder %s13, 3
    %p238 = pnand %p236, %p237
    %p239 = pneg %p238
    // Predicated region
    $region45: #{double_conv.1} parent=5 // pred_check
      _
    $region46: #{double_conv.1} parent=5 // pred_check_branch
      %241 = sbr.rel (%p238) target = $region48
    $region47: #{double_conv.1} parent=5 // pred_region
      %s242 = ssub.s32 %s13, 1
      %p243 = scmp.lt.s32.totalorder %s18, 1
      %s244 = scalar_select %p243, %s18, 1
      %s245 = smul.addr %s244, 32
      %s246 = smul.addr %s245, 4
      %s247 = scalar_lea.vmem %s0, %s246
      %p248 = pneg %p39
      %p249 = pneg %p36
      %p250 = pneg %p60
      %p251 = pneg %p57
      %p252 = pneg %p81
      %p253 = pneg %p78
      %p254 = pneg %p102
      %p255 = pneg %p99
      %p256 = pneg %p123
      %p257 = pneg %p120
      %p258 = pneg %p144
      %p259 = pneg %p141
      %p260 = pneg %p165
      %p261 = pneg %p162
      %p262 = pneg %p191
      %p263 = pneg %p188
      %p264 = scmp.lt.s32.totalorder %s18, 1
      %s265 = scalar_select %p264, %s18, 1
      %s266 = smul.addr %s265, 32
      %s267 = smul.addr %s266, 8
      %s268 = scalar_lea.vmem %s7, %s267
      %p269 = scmp.lt.s32.totalorder %s18, 1
      %s270 = scalar_select %p269, %s18, 1
      %s271 = smul.addr %s270, 32
      %s272 = smul.addr %s271, 4
      %s273 = scalar_lea.vmem %s0, %s272
      %p274 = scmp.lt.s32.totalorder %s18, 1
      %s275 = scalar_select %p274, %s18, 1
      %s276 = smul.addr %s275, 32
      %s277 = smul.addr %s276, 8
      %s278 = scalar_lea.vmem %s7, %s277
      %280 = vst [vmem:[#allocation2] sm:$0xf] 0
      %281 = vst [vmem:[#allocation2 + $0x4] sm:$0xf] 0
      %282 = vst [vmem:[#allocation2 + $0x8] sm:$0xf] 0
      %s283 = scalar_lea.vmem [#allocation2], 204
      %284 = vst [vmem:[%s283] sm:$0xf] 0
      %285 = vst [vmem:[%s283 + $0x4] sm:$0xf] 0
      %286 = vst [vmem:[%s283 + $0x8] sm:$0xf] 0
      %s287 = scalar_lea.vmem [#allocation2], 12
      %vm288 = vcmask 1040384
      %vm289 = vsmask.f32 256
      %vm290 = vmand %vm288, %vm289
      %v291 = vld [vmem:[%s287] sm:$0x1]
      %v292 = vsel %vm290, 0, %v291
      %293 = vst [vmem:[%s287] sm:$0x1] %v292
      %v294 = vld [vmem:[%s287 + $0xc] sm:$0x1]
      %v295 = vsel %vm290, 0, %v294
      %296 = vst [vmem:[%s287 + $0xc] sm:$0x1] %v295
      %v297 = vld [vmem:[%s287 + $0x18] sm:$0x1]
      %v298 = vsel %vm290, 0, %v297
      %299 = vst [vmem:[%s287 + $0x18] sm:$0x1] %v298
      %v300 = vld [vmem:[%s287 + $0x24] sm:$0x1]
      %v301 = vsel %vm290, 0, %v300
      %302 = vst [vmem:[%s287 + $0x24] sm:$0x1] %v301
      %v303 = vld [vmem:[%s287 + $0x30] sm:$0x1]
      %v304 = vsel %vm290, 0, %v303
      %305 = vst [vmem:[%s287 + $0x30] sm:$0x1] %v304
      %v306 = vld [vmem:[%s287 + $0x3c] sm:$0x1]
      %v307 = vsel %vm290, 0, %v306
      %308 = vst [vmem:[%s287 + $0x3c] sm:$0x1] %v307
      %v309 = vld [vmem:[%s287 + $0x48] sm:$0x1]
      %v310 = vsel %vm290, 0, %v309
      %311 = vst [vmem:[%s287 + $0x48] sm:$0x1] %v310
      %v312 = vld [vmem:[%s287 + $0x54] sm:$0x1]
      %v313 = vsel %vm290, 0, %v312
      %314 = vst [vmem:[%s287 + $0x54] sm:$0x1] %v313
      %v315 = vld [vmem:[%s287 + $0x60] sm:$0x1]
      %v316 = vsel %vm290, 0, %v315
      %317 = vst [vmem:[%s287 + $0x60] sm:$0x1] %v316
      %v318 = vld [vmem:[%s287 + $0x6c] sm:$0x1]
      %v319 = vsel %vm290, 0, %v318
      %320 = vst [vmem:[%s287 + $0x6c] sm:$0x1] %v319
      %v321 = vld [vmem:[%s287 + $0x78] sm:$0x1]
      %v322 = vsel %vm290, 0, %v321
      %323 = vst [vmem:[%s287 + $0x78] sm:$0x1] %v322
      %v324 = vld [vmem:[%s287 + $0x84] sm:$0x1]
      %v325 = vsel %vm290, 0, %v324
      %326 = vst [vmem:[%s287 + $0x84] sm:$0x1] %v325
      %v327 = vld [vmem:[%s287 + $0x90] sm:$0x1]
      %v328 = vsel %vm290, 0, %v327
      %329 = vst [vmem:[%s287 + $0x90] sm:$0x1] %v328
      %v330 = vld [vmem:[%s287 + $0x9c] sm:$0x1]
      %v331 = vsel %vm290, 0, %v330
      %332 = vst [vmem:[%s287 + $0x9c] sm:$0x1] %v331
      %v333 = vld [vmem:[%s287 + $0xa8] sm:$0x1]
      %v334 = vsel %vm290, 0, %v333
      %335 = vst [vmem:[%s287 + $0xa8] sm:$0x1] %v334
      %v336 = vld [vmem:[%s287 + $0xb4] sm:$0x1]
      %v337 = vsel %vm290, 0, %v336
      %338 = vst [vmem:[%s287 + $0xb4] sm:$0x1] %v337
      %vm339 = vsmask.f32 7938
      %vm340 = vmand %vm288, %vm339
      %v341 = vld [vmem:[%s287 + $0x8] sm:$0x1]
      %v342 = vsel %vm340, 0, %v341
      %343 = vst [vmem:[%s287 + $0x8] sm:$0x1] %v342
      %v344 = vld [vmem:[%s287 + $0x14] sm:$0x1]
      %v345 = vsel %vm340, 0, %v344
      %346 = vst [vmem:[%s287 + $0x14] sm:$0x1] %v345
      %v347 = vld [vmem:[%s287 + $0x20] sm:$0x1]
      %v348 = vsel %vm340, 0, %v347
      %349 = vst [vmem:[%s287 + $0x20] sm:$0x1] %v348
      %v350 = vld [vmem:[%s287 + $0x2c] sm:$0x1]
      %v351 = vsel %vm340, 0, %v350
      %352 = vst [vmem:[%s287 + $0x2c] sm:$0x1] %v351
      %v353 = vld [vmem:[%s287 + $0x38] sm:$0x1]
      %v354 = vsel %vm340, 0, %v353
      %355 = vst [vmem:[%s287 + $0x38] sm:$0x1] %v354
      %v356 = vld [vmem:[%s287 + $0x44] sm:$0x1]
      %v357 = vsel %vm340, 0, %v356
      %358 = vst [vmem:[%s287 + $0x44] sm:$0x1] %v357
      %v359 = vld [vmem:[%s287 + $0x50] sm:$0x1]
      %v360 = vsel %vm340, 0, %v359
      %361 = vst [vmem:[%s287 + $0x50] sm:$0x1] %v360
      %v362 = vld [vmem:[%s287 + $0x5c] sm:$0x1]
      %v363 = vsel %vm340, 0, %v362
      %364 = vst [vmem:[%s287 + $0x5c] sm:$0x1] %v363
      %v365 = vld [vmem:[%s287 + $0x68] sm:$0x1]
      %v366 = vsel %vm340, 0, %v365
      %367 = vst [vmem:[%s287 + $0x68] sm:$0x1] %v366
      %v368 = vld [vmem:[%s287 + $0x74] sm:$0x1]
      %v369 = vsel %vm340, 0, %v368
      %370 = vst [vmem:[%s287 + $0x74] sm:$0x1] %v369
      %v371 = vld [vmem:[%s287 + $0x80] sm:$0x1]
      %v372 = vsel %vm340, 0, %v371
      %373 = vst [vmem:[%s287 + $0x80] sm:$0x1] %v372
      %v374 = vld [vmem:[%s287 + $0x8c] sm:$0x1]
      %v375 = vsel %vm340, 0, %v374
      %376 = vst [vmem:[%s287 + $0x8c] sm:$0x1] %v375
      %v377 = vld [vmem:[%s287 + $0x98] sm:$0x1]
      %v378 = vsel %vm340, 0, %v377
      %379 = vst [vmem:[%s287 + $0x98] sm:$0x1] %v378
      %v380 = vld [vmem:[%s287 + $0xa4] sm:$0x1]
      %v381 = vsel %vm340, 0, %v380
      %382 = vst [vmem:[%s287 + $0xa4] sm:$0x1] %v381
      %v383 = vld [vmem:[%s287 + $0xb0] sm:$0x1]
      %v384 = vsel %vm340, 0, %v383
      %385 = vst [vmem:[%s287 + $0xb0] sm:$0x1] %v384
      %v386 = vld [vmem:[%s287 + $0xbc] sm:$0x1]
      %v387 = vsel %vm340, 0, %v386
      %388 = vst [vmem:[%s287 + $0xbc] sm:$0x1] %v387
      %389 = vst [vmem:[#allocation3] sm:$0xff] 0
      %390 = vst [vmem:[#allocation3 + $0x8] sm:$0xff] 0
      %391 = vst [vmem:[#allocation3 + $0x10] sm:$0xff] 0
      %392 = vst [vmem:[#allocation3 + $0x18] sm:$0xff] 0
      %393 = vst [vmem:[#allocation3 + $0x20] sm:$0xff] 0
      %394 = vst [vmem:[#allocation3 + $0x28] sm:$0xff] 0
      %395 = vst [vmem:[#allocation3 + $0x30] sm:$0xff] 0
      %396 = vst [vmem:[#allocation3 + $0x38] sm:$0xff] 0
      %397 = vst [vmem:[#allocation3 + $0x40] sm:$0xff] 0
      %398 = vst [vmem:[#allocation3 + $0x48] sm:$0xff] 0
      %399 = vst [vmem:[#allocation3 + $0x50] sm:$0xff] 0
      %400 = vst [vmem:[#allocation3 + $0x58] sm:$0xff] 0
      %401 = vst [vmem:[#allocation3 + $0x60] sm:$0xff] 0
      %402 = vst [vmem:[#allocation3 + $0x68] sm:$0xff] 0
      %403 = vst [vmem:[#allocation3 + $0x70] sm:$0xff] 0
      %404 = vst [vmem:[#allocation3 + $0x78] sm:$0xff] 0
      %v405 = vld [vmem:[%s273] sm:$0xf]
      %v406 = vld [vmem:[%s273 + $0x4] sm:$0xf]
      %v407 = vld [vmem:[%s273 + $0x8] sm:$0xf]
      %v408 = vld [vmem:[%s273 + $0xc] sm:$0xf]
      %v409 = vld [vmem:[%s273 + $0x10] sm:$0xf]
      %v410 = vld [vmem:[%s273 + $0x14] sm:$0xf]
      %v411 = vld [vmem:[%s273 + $0x18] sm:$0xf]
      %v412 = vld [vmem:[%s273 + $0x1c] sm:$0xf]
      %v413 = vld [vmem:[%s273 + $0x20] sm:$0xf]
      %v414 = vld [vmem:[%s273 + $0x24] sm:$0xf]
      %v415 = vld [vmem:[%s273 + $0x28] sm:$0xf]
      %v416 = vld [vmem:[%s273 + $0x2c] sm:$0xf]
      %v417 = vld [vmem:[%s273 + $0x30] sm:$0xf]
      %v418 = vld [vmem:[%s273 + $0x34] sm:$0xf]
      %v419 = vld [vmem:[%s273 + $0x38] sm:$0xf]
      %v420 = vld [vmem:[%s273 + $0x3c] sm:$0xf]
      %v421 = vld [vmem:[%s273 + $0x40] sm:$0xf]
      %v422 = vld [vmem:[%s273 + $0x44] sm:$0xf]
      %v423 = vld [vmem:[%s273 + $0x48] sm:$0xf]
      %v424 = vld [vmem:[%s273 + $0x4c] sm:$0xf]
      %v425 = vld [vmem:[%s273 + $0x50] sm:$0xf]
      %v426 = vld [vmem:[%s273 + $0x54] sm:$0xf]
      %v427 = vld [vmem:[%s273 + $0x58] sm:$0xf]
      %v428 = vld [vmem:[%s273 + $0x5c] sm:$0xf]
      %v429 = vld [vmem:[%s273 + $0x60] sm:$0xf]
      %v430 = vld [vmem:[%s273 + $0x64] sm:$0xf]
      %v431 = vld [vmem:[%s273 + $0x68] sm:$0xf]
      %v432 = vld [vmem:[%s273 + $0x6c] sm:$0xf]
      %v433 = vld [vmem:[%s273 + $0x70] sm:$0xf]
      %v434 = vld [vmem:[%s273 + $0x74] sm:$0xf]
      %v435 = vld [vmem:[%s273 + $0x78] sm:$0xf]
      %v436 = vld [vmem:[%s273 + $0x7c] sm:$0xf]
      %vm437 = vsmask.f32 4368
      %vm438 = vmor %vm289, %vm437
      %v440 = vshrl.u32 %v405, 16
      %v442 = vrot.slane %v440, 7
      %v443 = vshll.u32 %v405, 16
      %v445 = vor.u32 %v442, %v443
      %v446 = vrot.slane %v442, 4
      %v448 = vshrl.u32 %v406, 16
      %v450 = vrot.slane %v448, 7
      %v451 = vshll.u32 %v406, 16
      %v453 = vor.u32 %v450, %v451
      %v454 = vsel %vm438, %v446, %v453
      %v455 = vrot.slane %v450, 4
      %v457 = vshrl.u32 %v407, 16
      %v459 = vrot.slane %v457, 7
      %v460 = vshll.u32 %v407, 16
      %v462 = vor.u32 %v459, %v460
      %v463 = vrot.slane %v459, 4
      %v465 = vshrl.u32 %v408, 16
      %v467 = vrot.slane %v465, 7
      %v468 = vshll.u32 %v408, 16
      %v470 = vor.u32 %v467, %v468
      %v471 = vsel %vm438, %v463, %v470
      %v472 = vrot.slane %v467, 4
      %v474 = vshrl.u32 %v409, 16
      %v476 = vrot.slane %v474, 7
      %v477 = vshll.u32 %v409, 16
      %v479 = vor.u32 %v476, %v477
      %v480 = vrot.slane %v476, 4
      %v482 = vshrl.u32 %v410, 16
      %v484 = vrot.slane %v482, 7
      %v485 = vshll.u32 %v410, 16
      %v487 = vor.u32 %v484, %v485
      %v488 = vsel %vm438, %v480, %v487
      %v489 = vrot.slane %v484, 4
      %v491 = vshrl.u32 %v411, 16
      %v493 = vrot.slane %v491, 7
      %v494 = vshll.u32 %v411, 16
      %v496 = vor.u32 %v493, %v494
      %v497 = vrot.slane %v493, 4
      %v499 = vshrl.u32 %v412, 16
      %v501 = vrot.slane %v499, 7
      %v502 = vshll.u32 %v412, 16
      %v504 = vor.u32 %v501, %v502
      %v505 = vsel %vm438, %v497, %v504
      %v506 = vrot.slane %v501, 4
      %v508 = vshrl.u32 %v413, 16
      %v510 = vrot.slane %v508, 7
      %v511 = vshll.u32 %v413, 16
      %v513 = vor.u32 %v510, %v511
      %v514 = vrot.slane %v510, 4
      %v516 = vshrl.u32 %v414, 16
      %v518 = vrot.slane %v516, 7
      %v519 = vshll.u32 %v414, 16
      %v521 = vor.u32 %v518, %v519
      %v522 = vsel %vm438, %v514, %v521
      %v523 = vrot.slane %v518, 4
      %v525 = vshrl.u32 %v415, 16
      %v527 = vrot.slane %v525, 7
      %v528 = vshll.u32 %v415, 16
      %v530 = vor.u32 %v527, %v528
      %v531 = vrot.slane %v527, 4
      %v533 = vshrl.u32 %v416, 16
      %v535 = vrot.slane %v533, 7
      %v536 = vshll.u32 %v416, 16
      %v538 = vor.u32 %v535, %v536
      %v539 = vsel %vm438, %v531, %v538
      %v540 = vrot.slane %v535, 4
      %v542 = vshrl.u32 %v417, 16
      %v544 = vrot.slane %v542, 7
      %v545 = vshll.u32 %v417, 16
      %v547 = vor.u32 %v544, %v545
      %v548 = vrot.slane %v544, 4
      %v550 = vshrl.u32 %v418, 16
      %v552 = vrot.slane %v550, 7
      %v553 = vshll.u32 %v418, 16
      %v555 = vor.u32 %v552, %v553
      %v556 = vsel %vm438, %v548, %v555
      %v557 = vrot.slane %v552, 4
      %v559 = vshrl.u32 %v419, 16
      %v561 = vrot.slane %v559, 7
      %v562 = vshll.u32 %v419, 16
      %v564 = vor.u32 %v561, %v562
      %v565 = vrot.slane %v561, 4
      %v567 = vshrl.u32 %v420, 16
      %v569 = vrot.slane %v567, 7
      %v570 = vshll.u32 %v420, 16
      %v572 = vor.u32 %v569, %v570
      %v573 = vsel %vm438, %v565, %v572
      %v574 = vrot.slane %v569, 4
      %v576 = vshrl.u32 %v421, 16
      %v578 = vrot.slane %v576, 7
      %v579 = vshll.u32 %v421, 16
      %v581 = vor.u32 %v578, %v579
      %v582 = vrot.slane %v578, 4
      %v584 = vshrl.u32 %v422, 16
      %v586 = vrot.slane %v584, 7
      %v587 = vshll.u32 %v422, 16
      %v589 = vor.u32 %v586, %v587
      %v590 = vsel %vm438, %v582, %v589
      %v591 = vrot.slane %v586, 4
      %v593 = vshrl.u32 %v423, 16
      %v595 = vrot.slane %v593, 7
      %v596 = vshll.u32 %v423, 16
      %v598 = vor.u32 %v595, %v596
      %v599 = vrot.slane %v595, 4
      %v601 = vshrl.u32 %v424, 16
      %v603 = vrot.slane %v601, 7
      %v604 = vshll.u32 %v424, 16
      %v606 = vor.u32 %v603, %v604
      %v607 = vsel %vm438, %v599, %v606
      %v608 = vrot.slane %v603, 4
      %v610 = vshrl.u32 %v425, 16
      %v612 = vrot.slane %v610, 7
      %v613 = vshll.u32 %v425, 16
      %v615 = vor.u32 %v612, %v613
      %v616 = vrot.slane %v612, 4
      %v618 = vshrl.u32 %v426, 16
      %v620 = vrot.slane %v618, 7
      %v621 = vshll.u32 %v426, 16
      %v623 = vor.u32 %v620, %v621
      %v624 = vsel %vm438, %v616, %v623
      %v625 = vrot.slane %v620, 4
      %v627 = vshrl.u32 %v427, 16
      %v629 = vrot.slane %v627, 7
      %v630 = vshll.u32 %v427, 16
      %v632 = vor.u32 %v629, %v630
      %v633 = vrot.slane %v629, 4
      %v635 = vshrl.u32 %v428, 16
      %v637 = vrot.slane %v635, 7
      %v638 = vshll.u32 %v428, 16
      %v640 = vor.u32 %v637, %v638
      %v641 = vsel %vm438, %v633, %v640
      %v642 = vrot.slane %v637, 4
      %v644 = vshrl.u32 %v429, 16
      %v646 = vrot.slane %v644, 7
      %v647 = vshll.u32 %v429, 16
      %v649 = vor.u32 %v646, %v647
      %v650 = vrot.slane %v646, 4
      %v652 = vshrl.u32 %v430, 16
      %v654 = vrot.slane %v652, 7
      %v655 = vshll.u32 %v430, 16
      %v657 = vor.u32 %v654, %v655
      %v658 = vsel %vm438, %v650, %v657
      %v659 = vrot.slane %v654, 4
      %v661 = vshrl.u32 %v431, 16
      %v663 = vrot.slane %v661, 7
      %v664 = vshll.u32 %v431, 16
      %v666 = vor.u32 %v663, %v664
      %v667 = vrot.slane %v663, 4
      %v669 = vshrl.u32 %v432, 16
      %v671 = vrot.slane %v669, 7
      %v672 = vshll.u32 %v432, 16
      %v674 = vor.u32 %v671, %v672
      %v675 = vsel %vm438, %v667, %v674
      %v676 = vrot.slane %v671, 4
      %v678 = vshrl.u32 %v433, 16
      %v680 = vrot.slane %v678, 7
      %v681 = vshll.u32 %v433, 16
      %v683 = vor.u32 %v680, %v681
      %v684 = vrot.slane %v680, 4
      %v686 = vshrl.u32 %v434, 16
      %v688 = vrot.slane %v686, 7
      %v689 = vshll.u32 %v434, 16
      %v691 = vor.u32 %v688, %v689
      %v692 = vsel %vm438, %v684, %v691
      %v693 = vrot.slane %v688, 4
      %v695 = vshrl.u32 %v435, 16
      %v697 = vrot.slane %v695, 7
      %v698 = vshll.u32 %v435, 16
      %v700 = vor.u32 %v697, %v698
      %v701 = vrot.slane %v697, 4
      %v703 = vshrl.u32 %v436, 16
      %v705 = vrot.slane %v703, 7
      %v706 = vshll.u32 %v436, 16
      %v708 = vor.u32 %v705, %v706
      %v709 = vsel %vm438, %v701, %v708
      %v710 = vrot.slane %v705, 4
      %vm759 = vcmask 27648
      %vm760 = vmand %vm759, %vm339
      %v761 = vld [vmem:[%s287] sm:$0xf]
      %v762 = vsel %vm760, %v445, %v761
      %763 = vst [vmem:[%s287] sm:$0xf] %v762
      %vm764 = vcmask 27648
      %765 = vst.msk [vmem:[%s287 + $0x4] sm:$0xf] %vm764, %v454
      %vm766 = vcmask 24576
      %vm767 = vmand %vm766, %vm289
      %v768 = vld [vmem:[%s287 + $0x8] sm:$0x1]
      %v769 = vsel %vm767, %v455, %v768
      %770 = vst [vmem:[%s287 + $0x8] sm:$0x1] %v769
      %v771 = vld [vmem:[%s287 + $0xc] sm:$0xf]
      %v772 = vsel %vm760, %v462, %v771
      %773 = vst [vmem:[%s287 + $0xc] sm:$0xf] %v772
      %774 = vst.msk [vmem:[%s287 + $0x10] sm:$0xf] %vm764, %v471
      %v775 = vld [vmem:[%s287 + $0x14] sm:$0x1]
      %v776 = vsel %vm767, %v472, %v775
      %777 = vst [vmem:[%s287 + $0x14] sm:$0x1] %v776
      %v778 = vld [vmem:[%s287 + $0x18] sm:$0xf]
      %v779 = vsel %vm760, %v479, %v778
      %780 = vst [vmem:[%s287 + $0x18] sm:$0xf] %v779
      %781 = vst.msk [vmem:[%s287 + $0x1c] sm:$0xf] %vm764, %v488
      %v782 = vld [vmem:[%s287 + $0x20] sm:$0x1]
      %v783 = vsel %vm767, %v489, %v782
      %784 = vst [vmem:[%s287 + $0x20] sm:$0x1] %v783
      %v785 = vld [vmem:[%s287 + $0x24] sm:$0xf]
      %v786 = vsel %vm760, %v496, %v785
      %787 = vst [vmem:[%s287 + $0x24] sm:$0xf] %v786
      %788 = vst.msk [vmem:[%s287 + $0x28] sm:$0xf] %vm764, %v505
      %v789 = vld [vmem:[%s287 + $0x2c] sm:$0x1]
      %v790 = vsel %vm767, %v506, %v789
      %791 = vst [vmem:[%s287 + $0x2c] sm:$0x1] %v790
      %v792 = vld [vmem:[%s287 + $0x30] sm:$0xf]
      %v793 = vsel %vm760, %v513, %v792
      %794 = vst [vmem:[%s287 + $0x30] sm:$0xf] %v793
      %795 = vst.msk [vmem:[%s287 + $0x34] sm:$0xf] %vm764, %v522
      %v796 = vld [vmem:[%s287 + $0x38] sm:$0x1]
      %v797 = vsel %vm767, %v523, %v796
      %798 = vst [vmem:[%s287 + $0x38] sm:$0x1] %v797
      %v799 = vld [vmem:[%s287 + $0x3c] sm:$0xf]
      %v800 = vsel %vm760, %v530, %v799
      %801 = vst [vmem:[%s287 + $0x3c] sm:$0xf] %v800
      %802 = vst.msk [vmem:[%s287 + $0x40] sm:$0xf] %vm764, %v539
      %v803 = vld [vmem:[%s287 + $0x44] sm:$0x1]
      %v804 = vsel %vm767, %v540, %v803
      %805 = vst [vmem:[%s287 + $0x44] sm:$0x1] %v804
      %v806 = vld [vmem:[%s287 + $0x48] sm:$0xf]
      %v807 = vsel %vm760, %v547, %v806
      %808 = vst [vmem:[%s287 + $0x48] sm:$0xf] %v807
      %809 = vst.msk [vmem:[%s287 + $0x4c] sm:$0xf] %vm764, %v556
      %v810 = vld [vmem:[%s287 + $0x50] sm:$0x1]
      %v811 = vsel %vm767, %v557, %v810
      %812 = vst [vmem:[%s287 + $0x50] sm:$0x1] %v811
      %v813 = vld [vmem:[%s287 + $0x54] sm:$0xf]
      %v814 = vsel %vm760, %v564, %v813
      %815 = vst [vmem:[%s287 + $0x54] sm:$0xf] %v814
      %816 = vst.msk [vmem:[%s287 + $0x58] sm:$0xf] %vm764, %v573
      %v817 = vld [vmem:[%s287 + $0x5c] sm:$0x1]
      %v818 = vsel %vm767, %v574, %v817
      %819 = vst [vmem:[%s287 + $0x5c] sm:$0x1] %v818
      %v820 = vld [vmem:[%s287 + $0x60] sm:$0xf]
      %v821 = vsel %vm760, %v581, %v820
      %822 = vst [vmem:[%s287 + $0x60] sm:$0xf] %v821
      %823 = vst.msk [vmem:[%s287 + $0x64] sm:$0xf] %vm764, %v590
      %v824 = vld [vmem:[%s287 + $0x68] sm:$0x1]
      %v825 = vsel %vm767, %v591, %v824
      %826 = vst [vmem:[%s287 + $0x68] sm:$0x1] %v825
      %v827 = vld [vmem:[%s287 + $0x6c] sm:$0xf]
      %v828 = vsel %vm760, %v598, %v827
      %829 = vst [vmem:[%s287 + $0x6c] sm:$0xf] %v828
      %830 = vst.msk [vmem:[%s287 + $0x70] sm:$0xf] %vm764, %v607
      %v831 = vld [vmem:[%s287 + $0x74] sm:$0x1]
      %v832 = vsel %vm767, %v608, %v831
      %833 = vst [vmem:[%s287 + $0x74] sm:$0x1] %v832
      %v834 = vld [vmem:[%s287 + $0x78] sm:$0xf]
      %v835 = vsel %vm760, %v615, %v834
      %836 = vst [vmem:[%s287 + $0x78] sm:$0xf] %v835
      %837 = vst.msk [vmem:[%s287 + $0x7c] sm:$0xf] %vm764, %v624
      %v838 = vld [vmem:[%s287 + $0x80] sm:$0x1]
      %v839 = vsel %vm767, %v625, %v838
      %840 = vst [vmem:[%s287 + $0x80] sm:$0x1] %v839
      %v841 = vld [vmem:[%s287 + $0x84] sm:$0xf]
      %v842 = vsel %vm760, %v632, %v841
      %843 = vst [vmem:[%s287 + $0x84] sm:$0xf] %v842
      %844 = vst.msk [vmem:[%s287 + $0x88] sm:$0xf] %vm764, %v641
      %v845 = vld [vmem:[%s287 + $0x8c] sm:$0x1]
      %v846 = vsel %vm767, %v642, %v845
      %847 = vst [vmem:[%s287 + $0x8c] sm:$0x1] %v846
      %v848 = vld [vmem:[%s287 + $0x90] sm:$0xf]
      %v849 = vsel %vm760, %v649, %v848
      %850 = vst [vmem:[%s287 + $0x90] sm:$0xf] %v849
      %851 = vst.msk [vmem:[%s287 + $0x94] sm:$0xf] %vm764, %v658
      %v852 = vld [vmem:[%s287 + $0x98] sm:$0x1]
      %v853 = vsel %vm767, %v659, %v852
      %854 = vst [vmem:[%s287 + $0x98] sm:$0x1] %v853
      %v855 = vld [vmem:[%s287 + $0x9c] sm:$0xf]
      %v856 = vsel %vm760, %v666, %v855
      %857 = vst [vmem:[%s287 + $0x9c] sm:$0xf] %v856
      %858 = vst.msk [vmem:[%s287 + $0xa0] sm:$0xf] %vm764, %v675
      %v859 = vld [vmem:[%s287 + $0xa4] sm:$0x1]
      %v860 = vsel %vm767, %v676, %v859
      %861 = vst [vmem:[%s287 + $0xa4] sm:$0x1] %v860
      %v862 = vld [vmem:[%s287 + $0xa8] sm:$0xf]
      %v863 = vsel %vm760, %v683, %v862
      %864 = vst [vmem:[%s287 + $0xa8] sm:$0xf] %v863
      %865 = vst.msk [vmem:[%s287 + $0xac] sm:$0xf] %vm764, %v692
      %v866 = vld [vmem:[%s287 + $0xb0] sm:$0x1]
      %v867 = vsel %vm767, %v693, %v866
      %868 = vst [vmem:[%s287 + $0xb0] sm:$0x1] %v867
      %v869 = vld [vmem:[%s287 + $0xb4] sm:$0xf]
      %v870 = vsel %vm760, %v700, %v869
      %871 = vst [vmem:[%s287 + $0xb4] sm:$0xf] %v870
      %872 = vst.msk [vmem:[%s287 + $0xb8] sm:$0xf] %vm764, %v709
      %v873 = vld [vmem:[%s287 + $0xbc] sm:$0x1]
      %v874 = vsel %vm767, %v710, %v873
      %875 = vst [vmem:[%s287 + $0xbc] sm:$0x1] %v874
      %v876 = vld [vmem:[#allocation2] sm:$0xf]
      %v877 = vld [vmem:[#allocation2 + $0x4] sm:$0xf]
      %v878 = vld [vmem:[#allocation2 + $0xc] sm:$0xf]
      %v879 = vld [vmem:[#allocation2 + $0x10] sm:$0xf]
      %v880 = vld [vmem:[#allocation2 + $0x18] sm:$0xf]
      %v881 = vld [vmem:[#allocation2 + $0x1c] sm:$0xf]
      %v882 = vld [vmem:[#allocation2 + $0x24] sm:$0xf]
      %v883 = vld [vmem:[#allocation2 + $0x28] sm:$0xf]
      %v884 = vld [vmem:[#allocation2 + $0x30] sm:$0xf]
      %v885 = vld [vmem:[#allocation2 + $0x34] sm:$0xf]
      %v886 = vld [vmem:[#allocation2 + $0x3c] sm:$0xf]
      %v887 = vld [vmem:[#allocation2 + $0x40] sm:$0xf]
      %v888 = vld [vmem:[#allocation2 + $0x48] sm:$0xf]
      %v889 = vld [vmem:[#allocation2 + $0x4c] sm:$0xf]
      %v890 = vld [vmem:[#allocation2 + $0x54] sm:$0xf]
      %v891 = vld [vmem:[#allocation2 + $0x58] sm:$0xf]
      %v892 = vld [vmem:[#allocation2 + $0x60] sm:$0xf]
      %v893 = vld [vmem:[#allocation2 + $0x64] sm:$0xf]
      %v894 = vld [vmem:[#allocation2 + $0x6c] sm:$0xf]
      %v895 = vld [vmem:[#allocation2 + $0x70] sm:$0xf]
      %v896 = vld [vmem:[#allocation2 + $0x78] sm:$0xf]
      %v897 = vld [vmem:[#allocation2 + $0x7c] sm:$0xf]
      %v898 = vld [vmem:[#allocation2 + $0x84] sm:$0xf]
      %v899 = vld [vmem:[#allocation2 + $0x88] sm:$0xf]
      %v900 = vld [vmem:[#allocation2 + $0x90] sm:$0xf]
      %v901 = vld [vmem:[#allocation2 + $0x94] sm:$0xf]
      %v902 = vld [vmem:[#allocation2 + $0x9c] sm:$0xf]
      %v903 = vld [vmem:[#allocation2 + $0xa0] sm:$0xf]
      %v904 = vld [vmem:[#allocation2 + $0xa8] sm:$0xf]
      %v905 = vld [vmem:[#allocation2 + $0xac] sm:$0xf]
      %v906 = vld [vmem:[#allocation2 + $0xb4] sm:$0xf]
      %v907 = vld [vmem:[#allocation2 + $0xb8] sm:$0xf]
      %v940 = vunpack.c.l.b16 %v876
      %v941 = vunpack.c.l.b16 %v877
      %v942 = vunpack.c.l.b16 %v878
      %v943 = vunpack.c.l.b16 %v879
      %v944 = vunpack.c.l.b16 %v880
      %v945 = vunpack.c.l.b16 %v881
      %v946 = vunpack.c.l.b16 %v882
      %v947 = vunpack.c.l.b16 %v883
      %v948 = vunpack.c.l.b16 %v884
      %v949 = vunpack.c.l.b16 %v885
      %v950 = vunpack.c.l.b16 %v886
      %v951 = vunpack.c.l.b16 %v887
      %v952 = vunpack.c.l.b16 %v888
      %v953 = vunpack.c.l.b16 %v889
      %v954 = vunpack.c.l.b16 %v890
      %v955 = vunpack.c.l.b16 %v891
      %v956 = vunpack.c.l.b16 %v892
      %v957 = vunpack.c.l.b16 %v893
      %v958 = vunpack.c.l.b16 %v894
      %v959 = vunpack.c.l.b16 %v895
      %v960 = vunpack.c.l.b16 %v896
      %v961 = vunpack.c.l.b16 %v897
      %v962 = vunpack.c.l.b16 %v898
      %v963 = vunpack.c.l.b16 %v899
      %v964 = vunpack.c.l.b16 %v900
      %v965 = vunpack.c.l.b16 %v901
      %v966 = vunpack.c.l.b16 %v902
      %v967 = vunpack.c.l.b16 %v903
      %v968 = vunpack.c.l.b16 %v904
      %v969 = vunpack.c.l.b16 %v905
      %v970 = vunpack.c.l.b16 %v906
      %v971 = vunpack.c.l.b16 %v907
      %v972 = vpack.c.b16 %v941, %v940
      %v973 = vpack.c.b16 %v943, %v942
      %v974 = vpack.c.b16 %v945, %v944
      %v975 = vpack.c.b16 %v947, %v946
      %v976 = vpack.c.b16 %v949, %v948
      %v977 = vpack.c.b16 %v951, %v950
      %v978 = vpack.c.b16 %v953, %v952
      %v979 = vpack.c.b16 %v955, %v954
      %v980 = vpack.c.b16 %v957, %v956
      %v981 = vpack.c.b16 %v959, %v958
      %v982 = vpack.c.b16 %v961, %v960
      %v983 = vpack.c.b16 %v963, %v962
      %v984 = vpack.c.b16 %v965, %v964
      %v985 = vpack.c.b16 %v967, %v966
      %v986 = vpack.c.b16 %v969, %v968
      %v987 = vpack.c.b16 %v971, %v970
      %vm1004 = vcmask 31744
      %1005 = vst.msk [vmem:[#allocation3] sm:$0xff] %vm1004, %v972
      %1006 = vst.msk [vmem:[#allocation3 + $0x8] sm:$0xff] %vm1004, %v973
      %1007 = vst.msk [vmem:[#allocation3 + $0x10] sm:$0xff] %vm1004, %v974
      %1008 = vst.msk [vmem:[#allocation3 + $0x18] sm:$0xff] %vm1004, %v975
      %1009 = vst.msk [vmem:[#allocation3 + $0x20] sm:$0xff] %vm1004, %v976
      %1010 = vst.msk [vmem:[#allocation3 + $0x28] sm:$0xff] %vm1004, %v977
      %1011 = vst.msk [vmem:[#allocation3 + $0x30] sm:$0xff] %vm1004, %v978
      %1012 = vst.msk [vmem:[#allocation3 + $0x38] sm:$0xff] %vm1004, %v979
      %1013 = vst.msk [vmem:[#allocation3 + $0x40] sm:$0xff] %vm1004, %v980
      %1014 = vst.msk [vmem:[#allocation3 + $0x48] sm:$0xff] %vm1004, %v981
      %1015 = vst.msk [vmem:[#allocation3 + $0x50] sm:$0xff] %vm1004, %v982
      %1016 = vst.msk [vmem:[#allocation3 + $0x58] sm:$0xff] %vm1004, %v983
      %1017 = vst.msk [vmem:[#allocation3 + $0x60] sm:$0xff] %vm1004, %v984
      %1018 = vst.msk [vmem:[#allocation3 + $0x68] sm:$0xff] %vm1004, %v985
      %1019 = vst.msk [vmem:[#allocation3 + $0x70] sm:$0xff] %vm1004, %v986
      %1020 = vst.msk [vmem:[#allocation3 + $0x78] sm:$0xff] %vm1004, %v987
      %v1021 = vld [vmem:[#allocation2] sm:$0xf]
      %v1022 = vld [vmem:[#allocation2 + $0x4] sm:$0xf]
      %v1023 = vld [vmem:[#allocation2 + $0x8] sm:$0x1]
      %v1024 = vld [vmem:[#allocation2 + $0xc] sm:$0xf]
      %v1025 = vld [vmem:[#allocation2 + $0x10] sm:$0xf]
      %v1026 = vld [vmem:[#allocation2 + $0x14] sm:$0x1]
      %v1027 = vld [vmem:[#allocation2 + $0x18] sm:$0xf]
      %v1028 = vld [vmem:[#allocation2 + $0x1c] sm:$0xf]
      %v1029 = vld [vmem:[#allocation2 + $0x20] sm:$0x1]
      %v1030 = vld [vmem:[#allocation2 + $0x24] sm:$0xf]
      %v1031 = vld [vmem:[#allocation2 + $0x28] sm:$0xf]
      %v1032 = vld [vmem:[#allocation2 + $0x2c] sm:$0x1]
      %v1033 = vld [vmem:[#allocation2 + $0x30] sm:$0xf]
      %v1034 = vld [vmem:[#allocation2 + $0x34] sm:$0xf]
      %v1035 = vld [vmem:[#allocation2 + $0x38] sm:$0x1]
      %v1036 = vld [vmem:[#allocation2 + $0x3c] sm:$0xf]
      %v1037 = vld [vmem:[#allocation2 + $0x40] sm:$0xf]
      %v1038 = vld [vmem:[#allocation2 + $0x44] sm:$0x1]
      %v1039 = vld [vmem:[#allocation2 + $0x48] sm:$0xf]
      %v1040 = vld [vmem:[#allocation2 + $0x4c] sm:$0xf]
      %v1041 = vld [vmem:[#allocation2 + $0x50] sm:$0x1]
      %v1042 = vld [vmem:[#allocation2 + $0x54] sm:$0xf]
      %v1043 = vld [vmem:[#allocation2 + $0x58] sm:$0xf]
      %v1044 = vld [vmem:[#allocation2 + $0x5c] sm:$0x1]
      %v1045 = vld [vmem:[#allocation2 + $0x60] sm:$0xf]
      %v1046 = vld [vmem:[#allocation2 + $0x64] sm:$0xf]
      %v1047 = vld [vmem:[#allocation2 + $0x68] sm:$0x1]
      %v1048 = vld [vmem:[#allocation2 + $0x6c] sm:$0xf]
      %v1049 = vld [vmem:[#allocation2 + $0x70] sm:$0xf]
      %v1050 = vld [vmem:[#allocation2 + $0x74] sm:$0x1]
      %v1051 = vld [vmem:[#allocation2 + $0x78] sm:$0xf]
      %v1052 = vld [vmem:[#allocation2 + $0x7c] sm:$0xf]
      %v1053 = vld [vmem:[#allocation2 + $0x80] sm:$0x1]
      %v1054 = vld [vmem:[#allocation2 + $0x84] sm:$0xf]
      %v1055 = vld [vmem:[#allocation2 + $0x88] sm:$0xf]
      %v1056 = vld [vmem:[#allocation2 + $0x8c] sm:$0x1]
      %v1057 = vld [vmem:[#allocation2 + $0x90] sm:$0xf]
      %v1058 = vld [vmem:[#allocation2 + $0x94] sm:$0xf]
      %v1059 = vld [vmem:[#allocation2 + $0x98] sm:$0x1]
      %v1060 = vld [vmem:[#allocation2 + $0x9c] sm:$0xf]
      %v1061 = vld [vmem:[#allocation2 + $0xa0] sm:$0xf]
      %v1062 = vld [vmem:[#allocation2 + $0xa4] sm:$0x1]
      %v1063 = vld [vmem:[#allocation2 + $0xa8] sm:$0xf]
      %v1064 = vld [vmem:[#allocation2 + $0xac] sm:$0xf]
      %v1065 = vld [vmem:[#allocation2 + $0xb0] sm:$0x1]
      %v1066 = vld [vmem:[#allocation2 + $0xb4] sm:$0xf]
      %v1067 = vld [vmem:[#allocation2 + $0xb8] sm:$0xf]
      %v1068 = vld [vmem:[#allocation2 + $0xbc] sm:$0x1]
      %v1117 = vunpack.c.l.b16 %v1021
      %v1118 = vunpack.c.l.b16 %v1022
      %v1119 = vunpack.c.l.b16 %v1023
      %v1120 = vunpack.c.l.b16 %v1024
      %v1121 = vunpack.c.l.b16 %v1025
      %v1122 = vunpack.c.l.b16 %v1026
      %v1123 = vunpack.c.l.b16 %v1027
      %v1124 = vunpack.c.l.b16 %v1028
      %v1125 = vunpack.c.l.b16 %v1029
      %v1126 = vunpack.c.l.b16 %v1030
      %v1127 = vunpack.c.l.b16 %v1031
      %v1128 = vunpack.c.l.b16 %v1032
      %v1129 = vunpack.c.l.b16 %v1033
      %v1130 = vunpack.c.l.b16 %v1034
      %v1131 = vunpack.c.l.b16 %v1035
      %v1132 = vunpack.c.l.b16 %v1036
      %v1133 = vunpack.c.l.b16 %v1037
      %v1134 = vunpack.c.l.b16 %v1038
      %v1135 = vunpack.c.l.b16 %v1039
      %v1136 = vunpack.c.l.b16 %v1040
      %v1137 = vunpack.c.l.b16 %v1041
      %v1138 = vunpack.c.l.b16 %v1042
      %v1139 = vunpack.c.l.b16 %v1043
      %v1140 = vunpack.c.l.b16 %v1044
      %v1141 = vunpack.c.l.b16 %v1045
      %v1142 = vunpack.c.l.b16 %v1046
      %v1143 = vunpack.c.l.b16 %v1047
      %v1144 = vunpack.c.l.b16 %v1048
      %v1145 = vunpack.c.l.b16 %v1049
      %v1146 = vunpack.c.l.b16 %v1050
      %v1147 = vunpack.c.l.b16 %v1051
      %v1148 = vunpack.c.l.b16 %v1052
      %v1149 = vunpack.c.l.b16 %v1053
      %v1150 = vunpack.c.l.b16 %v1054
      %v1151 = vunpack.c.l.b16 %v1055
      %v1152 = vunpack.c.l.b16 %v1056
      %v1153 = vunpack.c.l.b16 %v1057
      %v1154 = vunpack.c.l.b16 %v1058
      %v1155 = vunpack.c.l.b16 %v1059
      %v1156 = vunpack.c.l.b16 %v1060
      %v1157 = vunpack.c.l.b16 %v1061
      %v1158 = vunpack.c.l.b16 %v1062
      %v1159 = vunpack.c.l.b16 %v1063
      %v1160 = vunpack.c.l.b16 %v1064
      %v1161 = vunpack.c.l.b16 %v1065
      %v1162 = vunpack.c.l.b16 %v1066
      %v1163 = vunpack.c.l.b16 %v1067
      %v1164 = vunpack.c.l.b16 %v1068
      %v1165 = vpack.c.b16 %v1118, %v1117
      %v1166 = vpack.c.b16 %v1119, %v1119
      %v1167 = vpack.c.b16 %v1121, %v1120
      %v1168 = vpack.c.b16 %v1122, %v1122
      %v1169 = vpack.c.b16 %v1124, %v1123
      %v1170 = vpack.c.b16 %v1125, %v1125
      %v1171 = vpack.c.b16 %v1127, %v1126
      %v1172 = vpack.c.b16 %v1128, %v1128
      %v1173 = vpack.c.b16 %v1130, %v1129
      %v1174 = vpack.c.b16 %v1131, %v1131
      %v1175 = vpack.c.b16 %v1133, %v1132
      %v1176 = vpack.c.b16 %v1134, %v1134
      %v1177 = vpack.c.b16 %v1136, %v1135
      %v1178 = vpack.c.b16 %v1137, %v1137
      %v1179 = vpack.c.b16 %v1139, %v1138
      %v1180 = vpack.c.b16 %v1140, %v1140
      %v1181 = vpack.c.b16 %v1142, %v1141
      %v1182 = vpack.c.b16 %v1143, %v1143
      %v1183 = vpack.c.b16 %v1145, %v1144
      %v1184 = vpack.c.b16 %v1146, %v1146
      %v1185 = vpack.c.b16 %v1148, %v1147
      %v1186 = vpack.c.b16 %v1149, %v1149
      %v1187 = vpack.c.b16 %v1151, %v1150
      %v1188 = vpack.c.b16 %v1152, %v1152
      %v1189 = vpack.c.b16 %v1154, %v1153
      %v1190 = vpack.c.b16 %v1155, %v1155
      %v1191 = vpack.c.b16 %v1157, %v1156
      %v1192 = vpack.c.b16 %v1158, %v1158
      %v1193 = vpack.c.b16 %v1160, %v1159
      %v1194 = vpack.c.b16 %v1161, %v1161
      %v1195 = vpack.c.b16 %v1163, %v1162
      %v1196 = vpack.c.b16 %v1164, %v1164
      %vm1197 = vsmask.f32 7424
      %v1199 = vshrl.u32 %v1165, 16
      %v1201 = vshll.u32 %v1165, 16
      %v1203 = vrot.slane %v1201, 1
      %v1204 = vor.u32 %v1199, %v1203
      %v1206 = vshll.u32 %v1166, 16
      %v1208 = vrot.slane %v1206, 1
      %v1209 = vsel %vm1197, %v1204, %v1208
      %v1211 = vshrl.u32 %v1167, 16
      %v1213 = vshll.u32 %v1167, 16
      %v1215 = vrot.slane %v1213, 1
      %v1216 = vor.u32 %v1211, %v1215
      %v1218 = vshll.u32 %v1168, 16
      %v1220 = vrot.slane %v1218, 1
      %v1221 = vsel %vm1197, %v1216, %v1220
      %v1223 = vshrl.u32 %v1169, 16
      %v1225 = vshll.u32 %v1169, 16
      %v1227 = vrot.slane %v1225, 1
      %v1228 = vor.u32 %v1223, %v1227
      %v1230 = vshll.u32 %v1170, 16
      %v1232 = vrot.slane %v1230, 1
      %v1233 = vsel %vm1197, %v1228, %v1232
      %v1235 = vshrl.u32 %v1171, 16
      %v1237 = vshll.u32 %v1171, 16
      %v1239 = vrot.slane %v1237, 1
      %v1240 = vor.u32 %v1235, %v1239
      %v1242 = vshll.u32 %v1172, 16
      %v1244 = vrot.slane %v1242, 1
      %v1245 = vsel %vm1197, %v1240, %v1244
      %v1247 = vshrl.u32 %v1173, 16
      %v1249 = vshll.u32 %v1173, 16
      %v1251 = vrot.slane %v1249, 1
      %v1252 = vor.u32 %v1247, %v1251
      %v1254 = vshll.u32 %v1174, 16
      %v1256 = vrot.slane %v1254, 1
      %v1257 = vsel %vm1197, %v1252, %v1256
      %v1259 = vshrl.u32 %v1175, 16
      %v1261 = vshll.u32 %v1175, 16
      %v1263 = vrot.slane %v1261, 1
      %v1264 = vor.u32 %v1259, %v1263
      %v1266 = vshll.u32 %v1176, 16
      %v1268 = vrot.slane %v1266, 1
      %v1269 = vsel %vm1197, %v1264, %v1268
      %v1271 = vshrl.u32 %v1177, 16
      %v1273 = vshll.u32 %v1177, 16
      %v1275 = vrot.slane %v1273, 1
      %v1276 = vor.u32 %v1271, %v1275
      %v1278 = vshll.u32 %v1178, 16
      %v1280 = vrot.slane %v1278, 1
      %v1281 = vsel %vm1197, %v1276, %v1280
      %v1283 = vshrl.u32 %v1179, 16
      %v1285 = vshll.u32 %v1179, 16
      %v1287 = vrot.slane %v1285, 1
      %v1288 = vor.u32 %v1283, %v1287
      %v1290 = vshll.u32 %v1180, 16
      %v1292 = vrot.slane %v1290, 1
      %v1293 = vsel %vm1197, %v1288, %v1292
      %v1295 = vshrl.u32 %v1181, 16
      %v1297 = vshll.u32 %v1181, 16
      %v1299 = vrot.slane %v1297, 1
      %v1300 = vor.u32 %v1295, %v1299
      %v1302 = vshll.u32 %v1182, 16
      %v1304 = vrot.slane %v1302, 1
      %v1305 = vsel %vm1197, %v1300, %v1304
      %v1307 = vshrl.u32 %v1183, 16
      %v1309 = vshll.u32 %v1183, 16
      %v1311 = vrot.slane %v1309, 1
      %v1312 = vor.u32 %v1307, %v1311
      %v1314 = vshll.u32 %v1184, 16
      %v1316 = vrot.slane %v1314, 1
      %v1317 = vsel %vm1197, %v1312, %v1316
      %v1319 = vshrl.u32 %v1185, 16
      %v1321 = vshll.u32 %v1185, 16
      %v1323 = vrot.slane %v1321, 1
      %v1324 = vor.u32 %v1319, %v1323
      %v1326 = vshll.u32 %v1186, 16
      %v1328 = vrot.slane %v1326, 1
      %v1329 = vsel %vm1197, %v1324, %v1328
      %v1331 = vshrl.u32 %v1187, 16
      %v1333 = vshll.u32 %v1187, 16
      %v1335 = vrot.slane %v1333, 1
      %v1336 = vor.u32 %v1331, %v1335
      %v1338 = vshll.u32 %v1188, 16
      %v1340 = vrot.slane %v1338, 1
      %v1341 = vsel %vm1197, %v1336, %v1340
      %v1343 = vshrl.u32 %v1189, 16
      %v1345 = vshll.u32 %v1189, 16
      %v1347 = vrot.slane %v1345, 1
      %v1348 = vor.u32 %v1343, %v1347
      %v1350 = vshll.u32 %v1190, 16
      %v1352 = vrot.slane %v1350, 1
      %v1353 = vsel %vm1197, %v1348, %v1352
      %v1355 = vshrl.u32 %v1191, 16
      %v1357 = vshll.u32 %v1191, 16
      %v1359 = vrot.slane %v1357, 1
      %v1360 = vor.u32 %v1355, %v1359
      %v1362 = vshll.u32 %v1192, 16
      %v1364 = vrot.slane %v1362, 1
      %v1365 = vsel %vm1197, %v1360, %v1364
      %v1367 = vshrl.u32 %v1193, 16
      %v1369 = vshll.u32 %v1193, 16
      %v1371 = vrot.slane %v1369, 1
      %v1372 = vor.u32 %v1367, %v1371
      %v1374 = vshll.u32 %v1194, 16
      %v1376 = vrot.slane %v1374, 1
      %v1377 = vsel %vm1197, %v1372, %v1376
      %v1379 = vshrl.u32 %v1195, 16
      %v1381 = vshll.u32 %v1195, 16
      %v1383 = vrot.slane %v1381, 1
      %v1384 = vor.u32 %v1379, %v1383
      %v1386 = vshll.u32 %v1196, 16
      %v1388 = vrot.slane %v1386, 1
      %v1389 = vsel %vm1197, %v1384, %v1388
      %1390 = vrot.lane.b32.xlu0 %v1209, 4
      %v1391 = vpop.permute.xlu0 %1390
      %1392 = vrot.lane.b32.xlu0 %v1221, 4
      %v1393 = vpop.permute.xlu0 %1392
      %1394 = vrot.lane.b32.xlu0 %v1233, 4
      %v1395 = vpop.permute.xlu0 %1394
      %1396 = vrot.lane.b32.xlu0 %v1245, 4
      %v1397 = vpop.permute.xlu0 %1396
      %1398 = vrot.lane.b32.xlu0 %v1257, 4
      %v1399 = vpop.permute.xlu0 %1398
      %1400 = vrot.lane.b32.xlu0 %v1269, 4
      %v1401 = vpop.permute.xlu0 %1400
      %1402 = vrot.lane.b32.xlu0 %v1281, 4
      %v1403 = vpop.permute.xlu0 %1402
      %1404 = vrot.lane.b32.xlu0 %v1293, 4
      %v1405 = vpop.permute.xlu0 %1404
      %1406 = vrot.lane.b32.xlu0 %v1305, 4
      %v1407 = vpop.permute.xlu0 %1406
      %1408 = vrot.lane.b32.xlu0 %v1317, 4
      %v1409 = vpop.permute.xlu0 %1408
      %1410 = vrot.lane.b32.xlu0 %v1329, 4
      %v1411 = vpop.permute.xlu0 %1410
      %1412 = vrot.lane.b32.xlu0 %v1341, 4
      %v1413 = vpop.permute.xlu0 %1412
      %1414 = vrot.lane.b32.xlu0 %v1353, 4
      %v1415 = vpop.permute.xlu0 %1414
      %1416 = vrot.lane.b32.xlu0 %v1365, 4
      %v1417 = vpop.permute.xlu0 %1416
      %1418 = vrot.lane.b32.xlu0 %v1377, 4
      %v1419 = vpop.permute.xlu0 %1418
      %1420 = vrot.lane.b32.xlu0 %v1389, 4
      %v1421 = vpop.permute.xlu0 %1420
      %vm1438 = vcmask 64544
      %1439 = vst.msk [vmem:[#allocation3] sm:$0xff] %vm1438, %v1391
      %1440 = vst.msk [vmem:[#allocation3 + $0x8] sm:$0xff] %vm1438, %v1393
      %1441 = vst.msk [vmem:[#allocation3 + $0x10] sm:$0xff] %vm1438, %v1395
      %1442 = vst.msk [vmem:[#allocation3 + $0x18] sm:$0xff] %vm1438, %v1397
      %1443 = vst.msk [vmem:[#allocation3 + $0x20] sm:$0xff] %vm1438, %v1399
      %1444 = vst.msk [vmem:[#allocation3 + $0x28] sm:$0xff] %vm1438, %v1401
      %1445 = vst.msk [vmem:[#allocation3 + $0x30] sm:$0xff] %vm1438, %v1403
      %1446 = vst.msk [vmem:[#allocation3 + $0x38] sm:$0xff] %vm1438, %v1405
      %1447 = vst.msk [vmem:[#allocation3 + $0x40] sm:$0xff] %vm1438, %v1407
      %1448 = vst.msk [vmem:[#allocation3 + $0x48] sm:$0xff] %vm1438, %v1409
      %1449 = vst.msk [vmem:[#allocation3 + $0x50] sm:$0xff] %vm1438, %v1411
      %1450 = vst.msk [vmem:[#allocation3 + $0x58] sm:$0xff] %vm1438, %v1413
      %1451 = vst.msk [vmem:[#allocation3 + $0x60] sm:$0xff] %vm1438, %v1415
      %1452 = vst.msk [vmem:[#allocation3 + $0x68] sm:$0xff] %vm1438, %v1417
      %1453 = vst.msk [vmem:[#allocation3 + $0x70] sm:$0xff] %vm1438, %v1419
      %1454 = vst.msk [vmem:[#allocation3 + $0x78] sm:$0xff] %vm1438, %v1421
      %v1455 = vld [vmem:[#allocation2] sm:$0xe]
      %v1456 = vld [vmem:[#allocation2 + $0x4] sm:$0xf]
      %v1457 = vld [vmem:[#allocation2 + $0x8] sm:$0x1]
      %v1458 = vld [vmem:[#allocation2 + $0xc] sm:$0xe]
      %v1459 = vld [vmem:[#allocation2 + $0x10] sm:$0xf]
      %v1460 = vld [vmem:[#allocation2 + $0x14] sm:$0x1]
      %v1461 = vld [vmem:[#allocation2 + $0x18] sm:$0xe]
      %v1462 = vld [vmem:[#allocation2 + $0x1c] sm:$0xf]
      %v1463 = vld [vmem:[#allocation2 + $0x20] sm:$0x1]
      %v1464 = vld [vmem:[#allocation2 + $0x24] sm:$0xe]
      %v1465 = vld [vmem:[#allocation2 + $0x28] sm:$0xf]
      %v1466 = vld [vmem:[#allocation2 + $0x2c] sm:$0x1]
      %v1467 = vld [vmem:[#allocation2 + $0x30] sm:$0xe]
      %v1468 = vld [vmem:[#allocation2 + $0x34] sm:$0xf]
      %v1469 = vld [vmem:[#allocation2 + $0x38] sm:$0x1]
      %v1470 = vld [vmem:[#allocation2 + $0x3c] sm:$0xe]
      %v1471 = vld [vmem:[#allocation2 + $0x40] sm:$0xf]
      %v1472 = vld [vmem:[#allocation2 + $0x44] sm:$0x1]
      %v1473 = vld [vmem:[#allocation2 + $0x48] sm:$0xe]
      %v1474 = vld [vmem:[#allocation2 + $0x4c] sm:$0xf]
      %v1475 = vld [vmem:[#allocation2 + $0x50] sm:$0x1]
      %v1476 = vld [vmem:[#allocation2 + $0x54] sm:$0xe]
      %v1477 = vld [vmem:[#allocation2 + $0x58] sm:$0xf]
      %v1478 = vld [vmem:[#allocation2 + $0x5c] sm:$0x1]
      %v1479 = vld [vmem:[#allocation2 + $0x60] sm:$0xe]
      %v1480 = vld [vmem:[#allocation2 + $0x64] sm:$0xf]
      %v1481 = vld [vmem:[#allocation2 + $0x68] sm:$0x1]
      %v1482 = vld [vmem:[#allocation2 + $0x6c] sm:$0xe]
      %v1483 = vld [vmem:[#allocation2 + $0x70] sm:$0xf]
      %v1484 = vld [vmem:[#allocation2 + $0x74] sm:$0x1]
      %v1485 = vld [vmem:[#allocation2 + $0x78] sm:$0xe]
      %v1486 = vld [vmem:[#allocation2 + $0x7c] sm:$0xf]
      %v1487 = vld [vmem:[#allocation2 + $0x80] sm:$0x1]
      %v1488 = vld [vmem:[#allocation2 + $0x84] sm:$0xe]
      %v1489 = vld [vmem:[#allocation2 + $0x88] sm:$0xf]
      %v1490 = vld [vmem:[#allocation2 + $0x8c] sm:$0x1]
      %v1491 = vld [vmem:[#allocation2 + $0x90] sm:$0xe]
      %v1492 = vld [vmem:[#allocation2 + $0x94] sm:$0xf]
      %v1493 = vld [vmem:[#allocation2 + $0x98] sm:$0x1]
      %v1494 = vld [vmem:[#allocation2 + $0x9c] sm:$0xe]
      %v1495 = vld [vmem:[#allocation2 + $0xa0] sm:$0xf]
      %v1496 = vld [vmem:[#allocation2 + $0xa4] sm:$0x1]
      %v1497 = vld [vmem:[#allocation2 + $0xa8] sm:$0xe]
      %v1498 = vld [vmem:[#allocation2 + $0xac] sm:$0xf]
      %v1499 = vld [vmem:[#allocation2 + $0xb0] sm:$0x1]
      %v1500 = vld [vmem:[#allocation2 + $0xb4] sm:$0xe]
      %v1501 = vld [vmem:[#allocation2 + $0xb8] sm:$0xf]
      %v1502 = vld [vmem:[#allocation2 + $0xbc] sm:$0x1]
      %v1551 = vunpack.c.l.b16 %v1455
      %v1552 = vunpack.c.l.b16 %v1456
      %v1553 = vunpack.c.l.b16 %v1457
      %v1554 = vunpack.c.l.b16 %v1458
      %v1555 = vunpack.c.l.b16 %v1459
      %v1556 = vunpack.c.l.b16 %v1460
      %v1557 = vunpack.c.l.b16 %v1461
      %v1558 = vunpack.c.l.b16 %v1462
      %v1559 = vunpack.c.l.b16 %v1463
      %v1560 = vunpack.c.l.b16 %v1464
      %v1561 = vunpack.c.l.b16 %v1465
      %v1562 = vunpack.c.l.b16 %v1466
      %v1563 = vunpack.c.l.b16 %v1467
      %v1564 = vunpack.c.l.b16 %v1468
      %v1565 = vunpack.c.l.b16 %v1469
      %v1566 = vunpack.c.l.b16 %v1470
      %v1567 = vunpack.c.l.b16 %v1471
      %v1568 = vunpack.c.l.b16 %v1472
      %v1569 = vunpack.c.l.b16 %v1473
      %v1570 = vunpack.c.l.b16 %v1474
      %v1571 = vunpack.c.l.b16 %v1475
      %v1572 = vunpack.c.l.b16 %v1476
      %v1573 = vunpack.c.l.b16 %v1477
      %v1574 = vunpack.c.l.b16 %v1478
      %v1575 = vunpack.c.l.b16 %v1479
      %v1576 = vunpack.c.l.b16 %v1480
      %v1577 = vunpack.c.l.b16 %v1481
      %v1578 = vunpack.c.l.b16 %v1482
      %v1579 = vunpack.c.l.b16 %v1483
      %v1580 = vunpack.c.l.b16 %v1484
      %v1581 = vunpack.c.l.b16 %v1485
      %v1582 = vunpack.c.l.b16 %v1486
      %v1583 = vunpack.c.l.b16 %v1487
      %v1584 = vunpack.c.l.b16 %v1488
      %v1585 = vunpack.c.l.b16 %v1489
      %v1586 = vunpack.c.l.b16 %v1490
      %v1587 = vunpack.c.l.b16 %v1491
      %v1588 = vunpack.c.l.b16 %v1492
      %v1589 = vunpack.c.l.b16 %v1493
      %v1590 = vunpack.c.l.b16 %v1494
      %v1591 = vunpack.c.l.b16 %v1495
      %v1592 = vunpack.c.l.b16 %v1496
      %v1593 = vunpack.c.l.b16 %v1497
      %v1594 = vunpack.c.l.b16 %v1498
      %v1595 = vunpack.c.l.b16 %v1499
      %v1596 = vunpack.c.l.b16 %v1500
      %v1597 = vunpack.c.l.b16 %v1501
      %v1598 = vunpack.c.l.b16 %v1502
      %v1599 = vpack.c.b16 %v1552, %v1551
      %v1600 = vpack.c.b16 %v1553, %v1553
      %v1601 = vpack.c.b16 %v1555, %v1554
      %v1602 = vpack.c.b16 %v1556, %v1556
      %v1603 = vpack.c.b16 %v1558, %v1557
      %v1604 = vpack.c.b16 %v1559, %v1559
      %v1605 = vpack.c.b16 %v1561, %v1560
      %v1606 = vpack.c.b16 %v1562, %v1562
      %v1607 = vpack.c.b16 %v1564, %v1563
      %v1608 = vpack.c.b16 %v1565, %v1565
      %v1609 = vpack.c.b16 %v1567, %v1566
      %v1610 = vpack.c.b16 %v1568, %v1568
      %v1611 = vpack.c.b16 %v1570, %v1569
      %v1612 = vpack.c.b16 %v1571, %v1571
      %v1613 = vpack.c.b16 %v1573, %v1572
      %v1614 = vpack.c.b16 %v1574, %v1574
      %v1615 = vpack.c.b16 %v1576, %v1575
      %v1616 = vpack.c.b16 %v1577, %v1577
      %v1617 = vpack.c.b16 %v1579, %v1578
      %v1618 = vpack.c.b16 %v1580, %v1580
      %v1619 = vpack.c.b16 %v1582, %v1581
      %v1620 = vpack.c.b16 %v1583, %v1583
      %v1621 = vpack.c.b16 %v1585, %v1584
      %v1622 = vpack.c.b16 %v1586, %v1586
      %v1623 = vpack.c.b16 %v1588, %v1587
      %v1624 = vpack.c.b16 %v1589, %v1589
      %v1625 = vpack.c.b16 %v1591, %v1590
      %v1626 = vpack.c.b16 %v1592, %v1592
      %v1627 = vpack.c.b16 %v1594, %v1593
      %v1628 = vpack.c.b16 %v1595, %v1595
      %v1629 = vpack.c.b16 %v1597, %v1596
      %v1630 = vpack.c.b16 %v1598, %v1598
      %vm1631 = vcmask 1046528
      %v1632 = vrot.slane %v1599, 1
      %v1633 = vrot.slane %v1600, 1
      %v1634 = vsel %vm1631, %v1632, %v1633
      %v1635 = vrot.slane %v1601, 1
      %v1636 = vrot.slane %v1602, 1
      %v1637 = vsel %vm1631, %v1635, %v1636
      %v1638 = vrot.slane %v1603, 1
      %v1639 = vrot.slane %v1604, 1
      %v1640 = vsel %vm1631, %v1638, %v1639
      %v1641 = vrot.slane %v1605, 1
      %v1642 = vrot.slane %v1606, 1
      %v1643 = vsel %vm1631, %v1641, %v1642
      %v1644 = vrot.slane %v1607, 1
      %v1645 = vrot.slane %v1608, 1
      %v1646 = vsel %vm1631, %v1644, %v1645
      %v1647 = vrot.slane %v1609, 1
      %v1648 = vrot.slane %v1610, 1
      %v1649 = vsel %vm1631, %v1647, %v1648
      %v1650 = vrot.slane %v1611, 1
      %v1651 = vrot.slane %v1612, 1
      %v1652 = vsel %vm1631, %v1650, %v1651
      %v1653 = vrot.slane %v1613, 1
      %v1654 = vrot.slane %v1614, 1
      %v1655 = vsel %vm1631, %v1653, %v1654
      %v1656 = vrot.slane %v1615, 1
      %v1657 = vrot.slane %v1616, 1
      %v1658 = vsel %vm1631, %v1656, %v1657
      %v1659 = vrot.slane %v1617, 1
      %v1660 = vrot.slane %v1618, 1
      %v1661 = vsel %vm1631, %v1659, %v1660
      %v1662 = vrot.slane %v1619, 1
      %v1663 = vrot.slane %v1620, 1
      %v1664 = vsel %vm1631, %v1662, %v1663
      %v1665 = vrot.slane %v1621, 1
      %v1666 = vrot.slane %v1622, 1
      %v1667 = vsel %vm1631, %v1665, %v1666
      %v1668 = vrot.slane %v1623, 1
      %v1669 = vrot.slane %v1624, 1
      %v1670 = vsel %vm1631, %v1668, %v1669
      %v1671 = vrot.slane %v1625, 1
      %v1672 = vrot.slane %v1626, 1
      %v1673 = vsel %vm1631, %v1671, %v1672
      %v1674 = vrot.slane %v1627, 1
      %v1675 = vrot.slane %v1628, 1
      %v1676 = vsel %vm1631, %v1674, %v1675
      %v1677 = vrot.slane %v1629, 1
      %v1678 = vrot.slane %v1630, 1
      %v1679 = vsel %vm1631, %v1677, %v1678
      %1680 = vrot.lane.b32.xlu0 %v1634, 8
      %v1681 = vpop.permute.xlu0 %1680
      %1682 = vrot.lane.b32.xlu0 %v1637, 8
      %v1683 = vpop.permute.xlu0 %1682
      %1684 = vrot.lane.b32.xlu0 %v1640, 8
      %v1685 = vpop.permute.xlu0 %1684
      %1686 = vrot.lane.b32.xlu0 %v1643, 8
      %v1687 = vpop.permute.xlu0 %1686
      %1688 = vrot.lane.b32.xlu0 %v1646, 8
      %v1689 = vpop.permute.xlu0 %1688
      %1690 = vrot.lane.b32.xlu0 %v1649, 8
      %v1691 = vpop.permute.xlu0 %1690
      %1692 = vrot.lane.b32.xlu0 %v1652, 8
      %v1693 = vpop.permute.xlu0 %1692
      %1694 = vrot.lane.b32.xlu0 %v1655, 8
      %v1695 = vpop.permute.xlu0 %1694
      %1696 = vrot.lane.b32.xlu0 %v1658, 8
      %v1697 = vpop.permute.xlu0 %1696
      %1698 = vrot.lane.b32.xlu0 %v1661, 8
      %v1699 = vpop.permute.xlu0 %1698
      %1700 = vrot.lane.b32.xlu0 %v1664, 8
      %v1701 = vpop.permute.xlu0 %1700
      %1702 = vrot.lane.b32.xlu0 %v1667, 8
      %v1703 = vpop.permute.xlu0 %1702
      %1704 = vrot.lane.b32.xlu0 %v1670, 8
      %v1705 = vpop.permute.xlu0 %1704
      %1706 = vrot.lane.b32.xlu0 %v1673, 8
      %v1707 = vpop.permute.xlu0 %1706
      %1708 = vrot.lane.b32.xlu0 %v1676, 8
      %v1709 = vpop.permute.xlu0 %1708
      %1710 = vrot.lane.b32.xlu0 %v1679, 8
      %v1711 = vpop.permute.xlu0 %1710
      %vm1728 = vcmask 97344
      %1729 = vst.msk [vmem:[#allocation3] sm:$0xff] %vm1728, %v1681
      %1730 = vst.msk [vmem:[#allocation3 + $0x8] sm:$0xff] %vm1728, %v1683
      %1731 = vst.msk [vmem:[#allocation3 + $0x10] sm:$0xff] %vm1728, %v1685
      %1732 = vst.msk [vmem:[#allocation3 + $0x18] sm:$0xff] %vm1728, %v1687
      %1733 = vst.msk [vmem:[#allocation3 + $0x20] sm:$0xff] %vm1728, %v1689
      %1734 = vst.msk [vmem:[#allocation3 + $0x28] sm:$0xff] %vm1728, %v1691
      %1735 = vst.msk [vmem:[#allocation3 + $0x30] sm:$0xff] %vm1728, %v1693
      %1736 = vst.msk [vmem:[#allocation3 + $0x38] sm:$0xff] %vm1728, %v1695
      %1737 = vst.msk [vmem:[#allocation3 + $0x40] sm:$0xff] %vm1728, %v1697
      %1738 = vst.msk [vmem:[#allocation3 + $0x48] sm:$0xff] %vm1728, %v1699
      %1739 = vst.msk [vmem:[#allocation3 + $0x50] sm:$0xff] %vm1728, %v1701
      %1740 = vst.msk [vmem:[#allocation3 + $0x58] sm:$0xff] %vm1728, %v1703
      %1741 = vst.msk [vmem:[#allocation3 + $0x60] sm:$0xff] %vm1728, %v1705
      %1742 = vst.msk [vmem:[#allocation3 + $0x68] sm:$0xff] %vm1728, %v1707
      %1743 = vst.msk [vmem:[#allocation3 + $0x70] sm:$0xff] %vm1728, %v1709
      %1744 = vst.msk [vmem:[#allocation3 + $0x78] sm:$0xff] %vm1728, %v1711
      %v1745 = vld [vmem:[%s287] sm:$0xf]
      %v1746 = vld [vmem:[%s287 + $0x4] sm:$0xf]
      %v1747 = vld [vmem:[%s287 + $0xc] sm:$0xf]
      %v1748 = vld [vmem:[%s287 + $0x10] sm:$0xf]
      %v1749 = vld [vmem:[%s287 + $0x18] sm:$0xf]
      %v1750 = vld [vmem:[%s287 + $0x1c] sm:$0xf]
      %v1751 = vld [vmem:[%s287 + $0x24] sm:$0xf]
      %v1752 = vld [vmem:[%s287 + $0x28] sm:$0xf]
      %v1753 = vld [vmem:[%s287 + $0x30] sm:$0xf]
      %v1754 = vld [vmem:[%s287 + $0x34] sm:$0xf]
      %v1755 = vld [vmem:[%s287 + $0x3c] sm:$0xf]
      %v1756 = vld [vmem:[%s287 + $0x40] sm:$0xf]
      %v1757 = vld [vmem:[%s287 + $0x48] sm:$0xf]
      %v1758 = vld [vmem:[%s287 + $0x4c] sm:$0xf]
      %v1759 = vld [vmem:[%s287 + $0x54] sm:$0xf]
      %v1760 = vld [vmem:[%s287 + $0x58] sm:$0xf]
      %v1761 = vld [vmem:[%s287 + $0x60] sm:$0xf]
      %v1762 = vld [vmem:[%s287 + $0x64] sm:$0xf]
      %v1763 = vld [vmem:[%s287 + $0x6c] sm:$0xf]
      %v1764 = vld [vmem:[%s287 + $0x70] sm:$0xf]
      %v1765 = vld [vmem:[%s287 + $0x78] sm:$0xf]
      %v1766 = vld [vmem:[%s287 + $0x7c] sm:$0xf]
      %v1767 = vld [vmem:[%s287 + $0x84] sm:$0xf]
      %v1768 = vld [vmem:[%s287 + $0x88] sm:$0xf]
      %v1769 = vld [vmem:[%s287 + $0x90] sm:$0xf]
      %v1770 = vld [vmem:[%s287 + $0x94] sm:$0xf]
      %v1771 = vld [vmem:[%s287 + $0x9c] sm:$0xf]
      %v1772 = vld [vmem:[%s287 + $0xa0] sm:$0xf]
      %v1773 = vld [vmem:[%s287 + $0xa8] sm:$0xf]
      %v1774 = vld [vmem:[%s287 + $0xac] sm:$0xf]
      %v1775 = vld [vmem:[%s287 + $0xb4] sm:$0xf]
      %v1776 = vld [vmem:[%s287 + $0xb8] sm:$0xf]
      %v1809 = vunpack.c.l.b16 %v1745
      %v1810 = vunpack.c.l.b16 %v1746
      %v1811 = vunpack.c.l.b16 %v1747
      %v1812 = vunpack.c.l.b16 %v1748
      %v1813 = vunpack.c.l.b16 %v1749
      %v1814 = vunpack.c.l.b16 %v1750
      %v1815 = vunpack.c.l.b16 %v1751
      %v1816 = vunpack.c.l.b16 %v1752
      %v1817 = vunpack.c.l.b16 %v1753
      %v1818 = vunpack.c.l.b16 %v1754
      %v1819 = vunpack.c.l.b16 %v1755
      %v1820 = vunpack.c.l.b16 %v1756
      %v1821 = vunpack.c.l.b16 %v1757
      %v1822 = vunpack.c.l.b16 %v1758
      %v1823 = vunpack.c.l.b16 %v1759
      %v1824 = vunpack.c.l.b16 %v1760
      %v1825 = vunpack.c.l.b16 %v1761
      %v1826 = vunpack.c.l.b16 %v1762
      %v1827 = vunpack.c.l.b16 %v1763
      %v1828 = vunpack.c.l.b16 %v1764
      %v1829 = vunpack.c.l.b16 %v1765
      %v1830 = vunpack.c.l.b16 %v1766
      %v1831 = vunpack.c.l.b16 %v1767
      %v1832 = vunpack.c.l.b16 %v1768
      %v1833 = vunpack.c.l.b16 %v1769
      %v1834 = vunpack.c.l.b16 %v1770
      %v1835 = vunpack.c.l.b16 %v1771
      %v1836 = vunpack.c.l.b16 %v1772
      %v1837 = vunpack.c.l.b16 %v1773
      %v1838 = vunpack.c.l.b16 %v1774
      %v1839 = vunpack.c.l.b16 %v1775
      %v1840 = vunpack.c.l.b16 %v1776
      %v1841 = vpack.c.b16 %v1810, %v1809
      %v1842 = vpack.c.b16 %v1812, %v1811
      %v1843 = vpack.c.b16 %v1814, %v1813
      %v1844 = vpack.c.b16 %v1816, %v1815
      %v1845 = vpack.c.b16 %v1818, %v1817
      %v1846 = vpack.c.b16 %v1820, %v1819
      %v1847 = vpack.c.b16 %v1822, %v1821
      %v1848 = vpack.c.b16 %v1824, %v1823
      %v1849 = vpack.c.b16 %v1826, %v1825
      %v1850 = vpack.c.b16 %v1828, %v1827
      %v1851 = vpack.c.b16 %v1830, %v1829
      %v1852 = vpack.c.b16 %v1832, %v1831
      %v1853 = vpack.c.b16 %v1834, %v1833
      %v1854 = vpack.c.b16 %v1836, %v1835
      %v1855 = vpack.c.b16 %v1838, %v1837
      %v1856 = vpack.c.b16 %v1840, %v1839
      %1857 = vrot.lane.b32.xlu0 %v1841, 12
      %v1858 = vpop.permute.xlu0 %1857
      %1859 = vrot.lane.b32.xlu0 %v1842, 12
      %v1860 = vpop.permute.xlu0 %1859
      %1861 = vrot.lane.b32.xlu0 %v1843, 12
      %v1862 = vpop.permute.xlu0 %1861
      %1863 = vrot.lane.b32.xlu0 %v1844, 12
      %v1864 = vpop.permute.xlu0 %1863
      %1865 = vrot.lane.b32.xlu0 %v1845, 12
      %v1866 = vpop.permute.xlu0 %1865
      %1867 = vrot.lane.b32.xlu0 %v1846, 12
      %v1868 = vpop.permute.xlu0 %1867
      %1869 = vrot.lane.b32.xlu0 %v1847, 12
      %v1870 = vpop.permute.xlu0 %1869
      %1871 = vrot.lane.b32.xlu0 %v1848, 12
      %v1872 = vpop.permute.xlu0 %1871
      %1873 = vrot.lane.b32.xlu0 %v1849, 12
      %v1874 = vpop.permute.xlu0 %1873
      %1875 = vrot.lane.b32.xlu0 %v1850, 12
      %v1876 = vpop.permute.xlu0 %1875
      %1877 = vrot.lane.b32.xlu0 %v1851, 12
      %v1878 = vpop.permute.xlu0 %1877
      %1879 = vrot.lane.b32.xlu0 %v1852, 12
      %v1880 = vpop.permute.xlu0 %1879
      %1881 = vrot.lane.b32.xlu0 %v1853, 12
      %v1882 = vpop.permute.xlu0 %1881
      %1883 = vrot.lane.b32.xlu0 %v1854, 12
      %v1884 = vpop.permute.xlu0 %1883
      %1885 = vrot.lane.b32.xlu0 %v1855, 12
      %v1886 = vpop.permute.xlu0 %1885
      %1887 = vrot.lane.b32.xlu0 %v1856, 12
      %v1888 = vpop.permute.xlu0 %1887
      %vm1905 = vcmask 130144
      %1906 = vst.msk [vmem:[#allocation3] sm:$0xff] %vm1905, %v1858
      %1907 = vst.msk [vmem:[#allocation3 + $0x8] sm:$0xff] %vm1905, %v1860
      %1908 = vst.msk [vmem:[#allocation3 + $0x10] sm:$0xff] %vm1905, %v1862
      %1909 = vst.msk [vmem:[#allocation3 + $0x18] sm:$0xff] %vm1905, %v1864
      %1910 = vst.msk [vmem:[#allocation3 + $0x20] sm:$0xff] %vm1905, %v1866
      %1911 = vst.msk [vmem:[#allocation3 + $0x28] sm:$0xff] %vm1905, %v1868
      %1912 = vst.msk [vmem:[#allocation3 + $0x30] sm:$0xff] %vm1905, %v1870
      %1913 = vst.msk [vmem:[#allocation3 + $0x38] sm:$0xff] %vm1905, %v1872
      %1914 = vst.msk [vmem:[#allocation3 + $0x40] sm:$0xff] %vm1905, %v1874
      %1915 = vst.msk [vmem:[#allocation3 + $0x48] sm:$0xff] %vm1905, %v1876
      %1916 = vst.msk [vmem:[#allocation3 + $0x50] sm:$0xff] %vm1905, %v1878
      %1917 = vst.msk [vmem:[#allocation3 + $0x58] sm:$0xff] %vm1905, %v1880
      %1918 = vst.msk [vmem:[#allocation3 + $0x60] sm:$0xff] %vm1905, %v1882
      %1919 = vst.msk [vmem:[#allocation3 + $0x68] sm:$0xff] %vm1905, %v1884
      %1920 = vst.msk [vmem:[#allocation3 + $0x70] sm:$0xff] %vm1905, %v1886
      %1921 = vst.msk [vmem:[#allocation3 + $0x78] sm:$0xff] %vm1905, %v1888
      %v1922 = vld [vmem:[%s287] sm:$0xf]
      %v1923 = vld [vmem:[%s287 + $0x4] sm:$0xf]
      %v1924 = vld [vmem:[%s287 + $0x8] sm:$0x1]
      %v1925 = vld [vmem:[%s287 + $0xc] sm:$0xf]
      %v1926 = vld [vmem:[%s287 + $0x10] sm:$0xf]
      %v1927 = vld [vmem:[%s287 + $0x14] sm:$0x1]
      %v1928 = vld [vmem:[%s287 + $0x18] sm:$0xf]
      %v1929 = vld [vmem:[%s287 + $0x1c] sm:$0xf]
      %v1930 = vld [vmem:[%s287 + $0x20] sm:$0x1]
      %v1931 = vld [vmem:[%s287 + $0x24] sm:$0xf]
      %v1932 = vld [vmem:[%s287 + $0x28] sm:$0xf]
      %v1933 = vld [vmem:[%s287 + $0x2c] sm:$0x1]
      %v1934 = vld [vmem:[%s287 + $0x30] sm:$0xf]
      %v1935 = vld [vmem:[%s287 + $0x34] sm:$0xf]
      %v1936 = vld [vmem:[%s287 + $0x38] sm:$0x1]
      %v1937 = vld [vmem:[%s287 + $0x3c] sm:$0xf]
      %v1938 = vld [vmem:[%s287 + $0x40] sm:$0xf]
      %v1939 = vld [vmem:[%s287 + $0x44] sm:$0x1]
      %v1940 = vld [vmem:[%s287 + $0x48] sm:$0xf]
      %v1941 = vld [vmem:[%s287 + $0x4c] sm:$0xf]
      %v1942 = vld [vmem:[%s287 + $0x50] sm:$0x1]
      %v1943 = vld [vmem:[%s287 + $0x54] sm:$0xf]
      %v1944 = vld [vmem:[%s287 + $0x58] sm:$0xf]
      %v1945 = vld [vmem:[%s287 + $0x5c] sm:$0x1]
      %v1946 = vld [vmem:[%s287 + $0x60] sm:$0xf]
      %v1947 = vld [vmem:[%s287 + $0x64] sm:$0xf]
      %v1948 = vld [vmem:[%s287 + $0x68] sm:$0x1]
      %v1949 = vld [vmem:[%s287 + $0x6c] sm:$0xf]
      %v1950 = vld [vmem:[%s287 + $0x70] sm:$0xf]
      %v1951 = vld [vmem:[%s287 + $0x74] sm:$0x1]
      %v1952 = vld [vmem:[%s287 + $0x78] sm:$0xf]
      %v1953 = vld [vmem:[%s287 + $0x7c] sm:$0xf]
      %v1954 = vld [vmem:[%s287 + $0x80] sm:$0x1]
      %v1955 = vld [vmem:[%s287 + $0x84] sm:$0xf]
      %v1956 = vld [vmem:[%s287 + $0x88] sm:$0xf]
      %v1957 = vld [vmem:[%s287 + $0x8c] sm:$0x1]
      %v1958 = vld [vmem:[%s287 + $0x90] sm:$0xf]
      %v1959 = vld [vmem:[%s287 + $0x94] sm:$0xf]
      %v1960 = vld [vmem:[%s287 + $0x98] sm:$0x1]
      %v1961 = vld [vmem:[%s287 + $0x9c] sm:$0xf]
      %v1962 = vld [vmem:[%s287 + $0xa0] sm:$0xf]
      %v1963 = vld [vmem:[%s287 + $0xa4] sm:$0x1]
      %v1964 = vld [vmem:[%s287 + $0xa8] sm:$0xf]
      %v1965 = vld [vmem:[%s287 + $0xac] sm:$0xf]
      %v1966 = vld [vmem:[%s287 + $0xb0] sm:$0x1]
      %v1967 = vld [vmem:[%s287 + $0xb4] sm:$0xf]
      %v1968 = vld [vmem:[%s287 + $0xb8] sm:$0xf]
      %v1969 = vld [vmem:[%s287 + $0xbc] sm:$0x1]
      %v2018 = vunpack.c.l.b16 %v1922
      %v2019 = vunpack.c.l.b16 %v1923
      %v2020 = vunpack.c.l.b16 %v1924
      %v2021 = vunpack.c.l.b16 %v1925
      %v2022 = vunpack.c.l.b16 %v1926
      %v2023 = vunpack.c.l.b16 %v1927
      %v2024 = vunpack.c.l.b16 %v1928
      %v2025 = vunpack.c.l.b16 %v1929
      %v2026 = vunpack.c.l.b16 %v1930
      %v2027 = vunpack.c.l.b16 %v1931
      %v2028 = vunpack.c.l.b16 %v1932
      %v2029 = vunpack.c.l.b16 %v1933
      %v2030 = vunpack.c.l.b16 %v1934
      %v2031 = vunpack.c.l.b16 %v1935
      %v2032 = vunpack.c.l.b16 %v1936
      %v2033 = vunpack.c.l.b16 %v1937
      %v2034 = vunpack.c.l.b16 %v1938
      %v2035 = vunpack.c.l.b16 %v1939
      %v2036 = vunpack.c.l.b16 %v1940
      %v2037 = vunpack.c.l.b16 %v1941
      %v2038 = vunpack.c.l.b16 %v1942
      %v2039 = vunpack.c.l.b16 %v1943
      %v2040 = vunpack.c.l.b16 %v1944
      %v2041 = vunpack.c.l.b16 %v1945
      %v2042 = vunpack.c.l.b16 %v1946
      %v2043 = vunpack.c.l.b16 %v1947
      %v2044 = vunpack.c.l.b16 %v1948
      %v2045 = vunpack.c.l.b16 %v1949
      %v2046 = vunpack.c.l.b16 %v1950
      %v2047 = vunpack.c.l.b16 %v1951
      %v2048 = vunpack.c.l.b16 %v1952
      %v2049 = vunpack.c.l.b16 %v1953
      %v2050 = vunpack.c.l.b16 %v1954
      %v2051 = vunpack.c.l.b16 %v1955
      %v2052 = vunpack.c.l.b16 %v1956
      %v2053 = vunpack.c.l.b16 %v1957
      %v2054 = vunpack.c.l.b16 %v1958
      %v2055 = vunpack.c.l.b16 %v1959
      %v2056 = vunpack.c.l.b16 %v1960
      %v2057 = vunpack.c.l.b16 %v1961
      %v2058 = vunpack.c.l.b16 %v1962
      %v2059 = vunpack.c.l.b16 %v1963
      %v2060 = vunpack.c.l.b16 %v1964
      %v2061 = vunpack.c.l.b16 %v1965
      %v2062 = vunpack.c.l.b16 %v1966
      %v2063 = vunpack.c.l.b16 %v1967
      %v2064 = vunpack.c.l.b16 %v1968
      %v2065 = vunpack.c.l.b16 %v1969
      %v2066 = vpack.c.b16 %v2019, %v2018
      %v2067 = vpack.c.b16 %v2020, %v2020
      %v2068 = vpack.c.b16 %v2022, %v2021
      %v2069 = vpack.c.b16 %v2023, %v2023
      %v2070 = vpack.c.b16 %v2025, %v2024
      %v2071 = vpack.c.b16 %v2026, %v2026
      %v2072 = vpack.c.b16 %v2028, %v2027
      %v2073 = vpack.c.b16 %v2029, %v2029
      %v2074 = vpack.c.b16 %v2031, %v2030
      %v2075 = vpack.c.b16 %v2032, %v2032
      %v2076 = vpack.c.b16 %v2034, %v2033
      %v2077 = vpack.c.b16 %v2035, %v2035
      %v2078 = vpack.c.b16 %v2037, %v2036
      %v2079 = vpack.c.b16 %v2038, %v2038
      %v2080 = vpack.c.b16 %v2040, %v2039
      %v2081 = vpack.c.b16 %v2041, %v2041
      %v2082 = vpack.c.b16 %v2043, %v2042
      %v2083 = vpack.c.b16 %v2044, %v2044
      %v2084 = vpack.c.b16 %v2046, %v2045
      %v2085 = vpack.c.b16 %v2047, %v2047
      %v2086 = vpack.c.b16 %v2049, %v2048
      %v2087 = vpack.c.b16 %v2050, %v2050
      %v2088 = vpack.c.b16 %v2052, %v2051
      %v2089 = vpack.c.b16 %v2053, %v2053
      %v2090 = vpack.c.b16 %v2055, %v2054
      %v2091 = vpack.c.b16 %v2056, %v2056
      %v2092 = vpack.c.b16 %v2058, %v2057
      %v2093 = vpack.c.b16 %v2059, %v2059
      %v2094 = vpack.c.b16 %v2061, %v2060
      %v2095 = vpack.c.b16 %v2062, %v2062
      %v2096 = vpack.c.b16 %v2064, %v2063
      %v2097 = vpack.c.b16 %v2065, %v2065
      %v2099 = vshrl.u32 %v2066, 16
      %v2101 = vshll.u32 %v2066, 16
      %v2103 = vrot.slane %v2101, 1
      %v2104 = vor.u32 %v2099, %v2103
      %v2106 = vshll.u32 %v2067, 16
      %v2108 = vrot.slane %v2106, 1
      %v2109 = vsel %vm1197, %v2104, %v2108
      %v2111 = vshrl.u32 %v2068, 16
      %v2113 = vshll.u32 %v2068, 16
      %v2115 = vrot.slane %v2113, 1
      %v2116 = vor.u32 %v2111, %v2115
      %v2118 = vshll.u32 %v2069, 16
      %v2120 = vrot.slane %v2118, 1
      %v2121 = vsel %vm1197, %v2116, %v2120
      %v2123 = vshrl.u32 %v2070, 16
      %v2125 = vshll.u32 %v2070, 16
      %v2127 = vrot.slane %v2125, 1
      %v2128 = vor.u32 %v2123, %v2127
      %v2130 = vshll.u32 %v2071, 16
      %v2132 = vrot.slane %v2130, 1
      %v2133 = vsel %vm1197, %v2128, %v2132
      %v2135 = vshrl.u32 %v2072, 16
      %v2137 = vshll.u32 %v2072, 16
      %v2139 = vrot.slane %v2137, 1
      %v2140 = vor.u32 %v2135, %v2139
      %v2142 = vshll.u32 %v2073, 16
      %v2144 = vrot.slane %v2142, 1
      %v2145 = vsel %vm1197, %v2140, %v2144
      %v2147 = vshrl.u32 %v2074, 16
      %v2149 = vshll.u32 %v2074, 16
      %v2151 = vrot.slane %v2149, 1
      %v2152 = vor.u32 %v2147, %v2151
      %v2154 = vshll.u32 %v2075, 16
      %v2156 = vrot.slane %v2154, 1
      %v2157 = vsel %vm1197, %v2152, %v2156
      %v2159 = vshrl.u32 %v2076, 16
      %v2161 = vshll.u32 %v2076, 16
      %v2163 = vrot.slane %v2161, 1
      %v2164 = vor.u32 %v2159, %v2163
      %v2166 = vshll.u32 %v2077, 16
      %v2168 = vrot.slane %v2166, 1
      %v2169 = vsel %vm1197, %v2164, %v2168
      %v2171 = vshrl.u32 %v2078, 16
      %v2173 = vshll.u32 %v2078, 16
      %v2175 = vrot.slane %v2173, 1
      %v2176 = vor.u32 %v2171, %v2175
      %v2178 = vshll.u32 %v2079, 16
      %v2180 = vrot.slane %v2178, 1
      %v2181 = vsel %vm1197, %v2176, %v2180
      %v2183 = vshrl.u32 %v2080, 16
      %v2185 = vshll.u32 %v2080, 16
      %v2187 = vrot.slane %v2185, 1
      %v2188 = vor.u32 %v2183, %v2187
      %v2190 = vshll.u32 %v2081, 16
      %v2192 = vrot.slane %v2190, 1
      %v2193 = vsel %vm1197, %v2188, %v2192
      %v2195 = vshrl.u32 %v2082, 16
      %v2197 = vshll.u32 %v2082, 16
      %v2199 = vrot.slane %v2197, 1
      %v2200 = vor.u32 %v2195, %v2199
      %v2202 = vshll.u32 %v2083, 16
      %v2204 = vrot.slane %v2202, 1
      %v2205 = vsel %vm1197, %v2200, %v2204
      %v2207 = vshrl.u32 %v2084, 16
      %v2209 = vshll.u32 %v2084, 16
      %v2211 = vrot.slane %v2209, 1
      %v2212 = vor.u32 %v2207, %v2211
      %v2214 = vshll.u32 %v2085, 16
      %v2216 = vrot.slane %v2214, 1
      %v2217 = vsel %vm1197, %v2212, %v2216
      %v2219 = vshrl.u32 %v2086, 16
      %v2221 = vshll.u32 %v2086, 16
      %v2223 = vrot.slane %v2221, 1
      %v2224 = vor.u32 %v2219, %v2223
      %v2226 = vshll.u32 %v2087, 16
      %v2228 = vrot.slane %v2226, 1
      %v2229 = vsel %vm1197, %v2224, %v2228
      %v2231 = vshrl.u32 %v2088, 16
      %v2233 = vshll.u32 %v2088, 16
      %v2235 = vrot.slane %v2233, 1
      %v2236 = vor.u32 %v2231, %v2235
      %v2238 = vshll.u32 %v2089, 16
      %v2240 = vrot.slane %v2238, 1
      %v2241 = vsel %vm1197, %v2236, %v2240
      %v2243 = vshrl.u32 %v2090, 16
      %v2245 = vshll.u32 %v2090, 16
      %v2247 = vrot.slane %v2245, 1
      %v2248 = vor.u32 %v2243, %v2247
      %v2250 = vshll.u32 %v2091, 16
      %v2252 = vrot.slane %v2250, 1
      %v2253 = vsel %vm1197, %v2248, %v2252
      %v2255 = vshrl.u32 %v2092, 16
      %v2257 = vshll.u32 %v2092, 16
      %v2259 = vrot.slane %v2257, 1
      %v2260 = vor.u32 %v2255, %v2259
      %v2262 = vshll.u32 %v2093, 16
      %v2264 = vrot.slane %v2262, 1
      %v2265 = vsel %vm1197, %v2260, %v2264
      %v2267 = vshrl.u32 %v2094, 16
      %v2269 = vshll.u32 %v2094, 16
      %v2271 = vrot.slane %v2269, 1
      %v2272 = vor.u32 %v2267, %v2271
      %v2274 = vshll.u32 %v2095, 16
      %v2276 = vrot.slane %v2274, 1
      %v2277 = vsel %vm1197, %v2272, %v2276
      %v2279 = vshrl.u32 %v2096, 16
      %v2281 = vshll.u32 %v2096, 16
      %v2283 = vrot.slane %v2281, 1
      %v2284 = vor.u32 %v2279, %v2283
      %v2286 = vshll.u32 %v2097, 16
      %v2288 = vrot.slane %v2286, 1
      %v2289 = vsel %vm1197, %v2284, %v2288
      %2290 = vrot.lane.b32.xlu0 %v2109, 16
      %v2291 = vpop.permute.xlu0 %2290
      %2292 = vrot.lane.b32.xlu0 %v2121, 16
      %v2293 = vpop.permute.xlu0 %2292
      %2294 = vrot.lane.b32.xlu0 %v2133, 16
      %v2295 = vpop.permute.xlu0 %2294
      %2296 = vrot.lane.b32.xlu0 %v2145, 16
      %v2297 = vpop.permute.xlu0 %2296
      %2298 = vrot.lane.b32.xlu0 %v2157, 16
      %v2299 = vpop.permute.xlu0 %2298
      %2300 = vrot.lane.b32.xlu0 %v2169, 16
      %v2301 = vpop.permute.xlu0 %2300
      %2302 = vrot.lane.b32.xlu0 %v2181, 16
      %v2303 = vpop.permute.xlu0 %2302
      %2304 = vrot.lane.b32.xlu0 %v2193, 16
      %v2305 = vpop.permute.xlu0 %2304
      %2306 = vrot.lane.b32.xlu0 %v2205, 16
      %v2307 = vpop.permute.xlu0 %2306
      %2308 = vrot.lane.b32.xlu0 %v2217, 16
      %v2309 = vpop.permute.xlu0 %2308
      %2310 = vrot.lane.b32.xlu0 %v2229, 16
      %v2311 = vpop.permute.xlu0 %2310
      %2312 = vrot.lane.b32.xlu0 %v2241, 16
      %v2313 = vpop.permute.xlu0 %2312
      %2314 = vrot.lane.b32.xlu0 %v2253, 16
      %v2315 = vpop.permute.xlu0 %2314
      %2316 = vrot.lane.b32.xlu0 %v2265, 16
      %v2317 = vpop.permute.xlu0 %2316
      %2318 = vrot.lane.b32.xlu0 %v2277, 16
      %v2319 = vpop.permute.xlu0 %2318
      %2320 = vrot.lane.b32.xlu0 %v2289, 16
      %v2321 = vpop.permute.xlu0 %2320
      %vm2338 = vcmask 162944
      %2339 = vst.msk [vmem:[#allocation3] sm:$0xff] %vm2338, %v2291
      %2340 = vst.msk [vmem:[#allocation3 + $0x8] sm:$0xff] %vm2338, %v2293
      %2341 = vst.msk [vmem:[#allocation3 + $0x10] sm:$0xff] %vm2338, %v2295
      %2342 = vst.msk [vmem:[#allocation3 + $0x18] sm:$0xff] %vm2338, %v2297
      %2343 = vst.msk [vmem:[#allocation3 + $0x20] sm:$0xff] %vm2338, %v2299
      %2344 = vst.msk [vmem:[#allocation3 + $0x28] sm:$0xff] %vm2338, %v2301
      %2345 = vst.msk [vmem:[#allocation3 + $0x30] sm:$0xff] %vm2338, %v2303
      %2346 = vst.msk [vmem:[#allocation3 + $0x38] sm:$0xff] %vm2338, %v2305
      %2347 = vst.msk [vmem:[#allocation3 + $0x40] sm:$0xff] %vm2338, %v2307
      %2348 = vst.msk [vmem:[#allocation3 + $0x48] sm:$0xff] %vm2338, %v2309
      %2349 = vst.msk [vmem:[#allocation3 + $0x50] sm:$0xff] %vm2338, %v2311
      %2350 = vst.msk [vmem:[#allocation3 + $0x58] sm:$0xff] %vm2338, %v2313
      %2351 = vst.msk [vmem:[#allocation3 + $0x60] sm:$0xff] %vm2338, %v2315
      %2352 = vst.msk [vmem:[#allocation3 + $0x68] sm:$0xff] %vm2338, %v2317
      %2353 = vst.msk [vmem:[#allocation3 + $0x70] sm:$0xff] %vm2338, %v2319
      %2354 = vst.msk [vmem:[#allocation3 + $0x78] sm:$0xff] %vm2338, %v2321
      %v2355 = vld [vmem:[%s287] sm:$0xe]
      %v2356 = vld [vmem:[%s287 + $0x4] sm:$0xf]
      %v2357 = vld [vmem:[%s287 + $0x8] sm:$0x1]
      %v2358 = vld [vmem:[%s287 + $0xc] sm:$0xe]
      %v2359 = vld [vmem:[%s287 + $0x10] sm:$0xf]
      %v2360 = vld [vmem:[%s287 + $0x14] sm:$0x1]
      %v2361 = vld [vmem:[%s287 + $0x18] sm:$0xe]
      %v2362 = vld [vmem:[%s287 + $0x1c] sm:$0xf]
      %v2363 = vld [vmem:[%s287 + $0x20] sm:$0x1]
      %v2364 = vld [vmem:[%s287 + $0x24] sm:$0xe]
      %v2365 = vld [vmem:[%s287 + $0x28] sm:$0xf]
      %v2366 = vld [vmem:[%s287 + $0x2c] sm:$0x1]
      %v2367 = vld [vmem:[%s287 + $0x30] sm:$0xe]
      %v2368 = vld [vmem:[%s287 + $0x34] sm:$0xf]
      %v2369 = vld [vmem:[%s287 + $0x38] sm:$0x1]
      %v2370 = vld [vmem:[%s287 + $0x3c] sm:$0xe]
      %v2371 = vld [vmem:[%s287 + $0x40] sm:$0xf]
      %v2372 = vld [vmem:[%s287 + $0x44] sm:$0x1]
      %v2373 = vld [vmem:[%s287 + $0x48] sm:$0xe]
      %v2374 = vld [vmem:[%s287 + $0x4c] sm:$0xf]
      %v2375 = vld [vmem:[%s287 + $0x50] sm:$0x1]
      %v2376 = vld [vmem:[%s287 + $0x54] sm:$0xe]
      %v2377 = vld [vmem:[%s287 + $0x58] sm:$0xf]
      %v2378 = vld [vmem:[%s287 + $0x5c] sm:$0x1]
      %v2379 = vld [vmem:[%s287 + $0x60] sm:$0xe]
      %v2380 = vld [vmem:[%s287 + $0x64] sm:$0xf]
      %v2381 = vld [vmem:[%s287 + $0x68] sm:$0x1]
      %v2382 = vld [vmem:[%s287 + $0x6c] sm:$0xe]
      %v2383 = vld [vmem:[%s287 + $0x70] sm:$0xf]
      %v2384 = vld [vmem:[%s287 + $0x74] sm:$0x1]
      %v2385 = vld [vmem:[%s287 + $0x78] sm:$0xe]
      %v2386 = vld [vmem:[%s287 + $0x7c] sm:$0xf]
      %v2387 = vld [vmem:[%s287 + $0x80] sm:$0x1]
      %v2388 = vld [vmem:[%s287 + $0x84] sm:$0xe]
      %v2389 = vld [vmem:[%s287 + $0x88] sm:$0xf]
      %v2390 = vld [vmem:[%s287 + $0x8c] sm:$0x1]
      %v2391 = vld [vmem:[%s287 + $0x90] sm:$0xe]
      %v2392 = vld [vmem:[%s287 + $0x94] sm:$0xf]
      %v2393 = vld [vmem:[%s287 + $0x98] sm:$0x1]
      %v2394 = vld [vmem:[%s287 + $0x9c] sm:$0xe]
      %v2395 = vld [vmem:[%s287 + $0xa0] sm:$0xf]
      %v2396 = vld [vmem:[%s287 + $0xa4] sm:$0x1]
      %v2397 = vld [vmem:[%s287 + $0xa8] sm:$0xe]
      %v2398 = vld [vmem:[%s287 + $0xac] sm:$0xf]
      %v2399 = vld [vmem:[%s287 + $0xb0] sm:$0x1]
      %v2400 = vld [vmem:[%s287 + $0xb4] sm:$0xe]
      %v2401 = vld [vmem:[%s287 + $0xb8] sm:$0xf]
      %v2402 = vld [vmem:[%s287 + $0xbc] sm:$0x1]
      %v2451 = vunpack.c.l.b16 %v2355
      %v2452 = vunpack.c.l.b16 %v2356
      %v2453 = vunpack.c.l.b16 %v2357
      %v2454 = vunpack.c.l.b16 %v2358
      %v2455 = vunpack.c.l.b16 %v2359
      %v2456 = vunpack.c.l.b16 %v2360
      %v2457 = vunpack.c.l.b16 %v2361
      %v2458 = vunpack.c.l.b16 %v2362
      %v2459 = vunpack.c.l.b16 %v2363
      %v2460 = vunpack.c.l.b16 %v2364
      %v2461 = vunpack.c.l.b16 %v2365
      %v2462 = vunpack.c.l.b16 %v2366
      %v2463 = vunpack.c.l.b16 %v2367
      %v2464 = vunpack.c.l.b16 %v2368
      %v2465 = vunpack.c.l.b16 %v2369
      %v2466 = vunpack.c.l.b16 %v2370
      %v2467 = vunpack.c.l.b16 %v2371
      %v2468 = vunpack.c.l.b16 %v2372
      %v2469 = vunpack.c.l.b16 %v2373
      %v2470 = vunpack.c.l.b16 %v2374
      %v2471 = vunpack.c.l.b16 %v2375
      %v2472 = vunpack.c.l.b16 %v2376
      %v2473 = vunpack.c.l.b16 %v2377
      %v2474 = vunpack.c.l.b16 %v2378
      %v2475 = vunpack.c.l.b16 %v2379
      %v2476 = vunpack.c.l.b16 %v2380
      %v2477 = vunpack.c.l.b16 %v2381
      %v2478 = vunpack.c.l.b16 %v2382
      %v2479 = vunpack.c.l.b16 %v2383
      %v2480 = vunpack.c.l.b16 %v2384
      %v2481 = vunpack.c.l.b16 %v2385
      %v2482 = vunpack.c.l.b16 %v2386
      %v2483 = vunpack.c.l.b16 %v2387
      %v2484 = vunpack.c.l.b16 %v2388
      %v2485 = vunpack.c.l.b16 %v2389
      %v2486 = vunpack.c.l.b16 %v2390
      %v2487 = vunpack.c.l.b16 %v2391
      %v2488 = vunpack.c.l.b16 %v2392
      %v2489 = vunpack.c.l.b16 %v2393
      %v2490 = vunpack.c.l.b16 %v2394
      %v2491 = vunpack.c.l.b16 %v2395
      %v2492 = vunpack.c.l.b16 %v2396
      %v2493 = vunpack.c.l.b16 %v2397
      %v2494 = vunpack.c.l.b16 %v2398
      %v2495 = vunpack.c.l.b16 %v2399
      %v2496 = vunpack.c.l.b16 %v2400
      %v2497 = vunpack.c.l.b16 %v2401
      %v2498 = vunpack.c.l.b16 %v2402
      %v2499 = vpack.c.b16 %v2452, %v2451
      %v2500 = vpack.c.b16 %v2453, %v2453
      %v2501 = vpack.c.b16 %v2455, %v2454
      %v2502 = vpack.c.b16 %v2456, %v2456
      %v2503 = vpack.c.b16 %v2458, %v2457
      %v2504 = vpack.c.b16 %v2459, %v2459
      %v2505 = vpack.c.b16 %v2461, %v2460
      %v2506 = vpack.c.b16 %v2462, %v2462
      %v2507 = vpack.c.b16 %v2464, %v2463
      %v2508 = vpack.c.b16 %v2465, %v2465
      %v2509 = vpack.c.b16 %v2467, %v2466
      %v2510 = vpack.c.b16 %v2468, %v2468
      %v2511 = vpack.c.b16 %v2470, %v2469
      %v2512 = vpack.c.b16 %v2471, %v2471
      %v2513 = vpack.c.b16 %v2473, %v2472
      %v2514 = vpack.c.b16 %v2474, %v2474
      %v2515 = vpack.c.b16 %v2476, %v2475
      %v2516 = vpack.c.b16 %v2477, %v2477
      %v2517 = vpack.c.b16 %v2479, %v2478
      %v2518 = vpack.c.b16 %v2480, %v2480
      %v2519 = vpack.c.b16 %v2482, %v2481
      %v2520 = vpack.c.b16 %v2483, %v2483
      %v2521 = vpack.c.b16 %v2485, %v2484
      %v2522 = vpack.c.b16 %v2486, %v2486
      %v2523 = vpack.c.b16 %v2488, %v2487
      %v2524 = vpack.c.b16 %v2489, %v2489
      %v2525 = vpack.c.b16 %v2491, %v2490
      %v2526 = vpack.c.b16 %v2492, %v2492
      %v2527 = vpack.c.b16 %v2494, %v2493
      %v2528 = vpack.c.b16 %v2495, %v2495
      %v2529 = vpack.c.b16 %v2497, %v2496
      %v2530 = vpack.c.b16 %v2498, %v2498
      %v2531 = vrot.slane %v2499, 1
      %v2532 = vrot.slane %v2500, 1
      %v2533 = vsel %vm1631, %v2531, %v2532
      %v2534 = vrot.slane %v2501, 1
      %v2535 = vrot.slane %v2502, 1
      %v2536 = vsel %vm1631, %v2534, %v2535
      %v2537 = vrot.slane %v2503, 1
      %v2538 = vrot.slane %v2504, 1
      %v2539 = vsel %vm1631, %v2537, %v2538
      %v2540 = vrot.slane %v2505, 1
      %v2541 = vrot.slane %v2506, 1
      %v2542 = vsel %vm1631, %v2540, %v2541
      %v2543 = vrot.slane %v2507, 1
      %v2544 = vrot.slane %v2508, 1
      %v2545 = vsel %vm1631, %v2543, %v2544
      %v2546 = vrot.slane %v2509, 1
      %v2547 = vrot.slane %v2510, 1
      %v2548 = vsel %vm1631, %v2546, %v2547
      %v2549 = vrot.slane %v2511, 1
      %v2550 = vrot.slane %v2512, 1
      %v2551 = vsel %vm1631, %v2549, %v2550
      %v2552 = vrot.slane %v2513, 1
      %v2553 = vrot.slane %v2514, 1
      %v2554 = vsel %vm1631, %v2552, %v2553
      %v2555 = vrot.slane %v2515, 1
      %v2556 = vrot.slane %v2516, 1
      %v2557 = vsel %vm1631, %v2555, %v2556
      %v2558 = vrot.slane %v2517, 1
      %v2559 = vrot.slane %v2518, 1
      %v2560 = vsel %vm1631, %v2558, %v2559
      %v2561 = vrot.slane %v2519, 1
      %v2562 = vrot.slane %v2520, 1
      %v2563 = vsel %vm1631, %v2561, %v2562
      %v2564 = vrot.slane %v2521, 1
      %v2565 = vrot.slane %v2522, 1
      %v2566 = vsel %vm1631, %v2564, %v2565
      %v2567 = vrot.slane %v2523, 1
      %v2568 = vrot.slane %v2524, 1
      %v2569 = vsel %vm1631, %v2567, %v2568
      %v2570 = vrot.slane %v2525, 1
      %v2571 = vrot.slane %v2526, 1
      %v2572 = vsel %vm1631, %v2570, %v2571
      %v2573 = vrot.slane %v2527, 1
      %v2574 = vrot.slane %v2528, 1
      %v2575 = vsel %vm1631, %v2573, %v2574
      %v2576 = vrot.slane %v2529, 1
      %v2577 = vrot.slane %v2530, 1
      %v2578 = vsel %vm1631, %v2576, %v2577
      %2579 = vrot.lane.b32.xlu0 %v2533, 20
      %v2580 = vpop.permute.xlu0 %2579
      %2581 = vrot.lane.b32.xlu0 %v2536, 20
      %v2582 = vpop.permute.xlu0 %2581
      %2583 = vrot.lane.b32.xlu0 %v2539, 20
      %v2584 = vpop.permute.xlu0 %2583
      %2585 = vrot.lane.b32.xlu0 %v2542, 20
      %v2586 = vpop.permute.xlu0 %2585
      %2587 = vrot.lane.b32.xlu0 %v2545, 20
      %v2588 = vpop.permute.xlu0 %2587
      %2589 = vrot.lane.b32.xlu0 %v2548, 20
      %v2590 = vpop.permute.xlu0 %2589
      %2591 = vrot.lane.b32.xlu0 %v2551, 20
      %v2592 = vpop.permute.xlu0 %2591
      %2593 = vrot.lane.b32.xlu0 %v2554, 20
      %v2594 = vpop.permute.xlu0 %2593
      %2595 = vrot.lane.b32.xlu0 %v2557, 20
      %v2596 = vpop.permute.xlu0 %2595
      %2597 = vrot.lane.b32.xlu0 %v2560, 20
      %v2598 = vpop.permute.xlu0 %2597
      %2599 = vrot.lane.b32.xlu0 %v2563, 20
      %v2600 = vpop.permute.xlu0 %2599
      %2601 = vrot.lane.b32.xlu0 %v2566, 20
      %v2602 = vpop.permute.xlu0 %2601
      %2603 = vrot.lane.b32.xlu0 %v2569, 20
      %v2604 = vpop.permute.xlu0 %2603
      %2605 = vrot.lane.b32.xlu0 %v2572, 20
      %v2606 = vpop.permute.xlu0 %2605
      %2607 = vrot.lane.b32.xlu0 %v2575, 20
      %v2608 = vpop.permute.xlu0 %2607
      %2609 = vrot.lane.b32.xlu0 %v2578, 20
      %v2610 = vpop.permute.xlu0 %2609
      %vm2627 = vcmask 195744
      %2628 = vst.msk [vmem:[#allocation3] sm:$0xff] %vm2627, %v2580
      %2629 = vst.msk [vmem:[#allocation3 + $0x8] sm:$0xff] %vm2627, %v2582
      %2630 = vst.msk [vmem:[#allocation3 + $0x10] sm:$0xff] %vm2627, %v2584
      %2631 = vst.msk [vmem:[#allocation3 + $0x18] sm:$0xff] %vm2627, %v2586
      %2632 = vst.msk [vmem:[#allocation3 + $0x20] sm:$0xff] %vm2627, %v2588
      %2633 = vst.msk [vmem:[#allocation3 + $0x28] sm:$0xff] %vm2627, %v2590
      %2634 = vst.msk [vmem:[#allocation3 + $0x30] sm:$0xff] %vm2627, %v2592
      %2635 = vst.msk [vmem:[#allocation3 + $0x38] sm:$0xff] %vm2627, %v2594
      %2636 = vst.msk [vmem:[#allocation3 + $0x40] sm:$0xff] %vm2627, %v2596
      %2637 = vst.msk [vmem:[#allocation3 + $0x48] sm:$0xff] %vm2627, %v2598
      %2638 = vst.msk [vmem:[#allocation3 + $0x50] sm:$0xff] %vm2627, %v2600
      %2639 = vst.msk [vmem:[#allocation3 + $0x58] sm:$0xff] %vm2627, %v2602
      %2640 = vst.msk [vmem:[#allocation3 + $0x60] sm:$0xff] %vm2627, %v2604
      %2641 = vst.msk [vmem:[#allocation3 + $0x68] sm:$0xff] %vm2627, %v2606
      %2642 = vst.msk [vmem:[#allocation3 + $0x70] sm:$0xff] %vm2627, %v2608
      %2643 = vst.msk [vmem:[#allocation3 + $0x78] sm:$0xff] %vm2627, %v2610
      %s2644 = scalar_lea.vmem [#allocation2], 24
      %v2645 = vld [vmem:[%s2644] sm:$0xf]
      %v2646 = vld [vmem:[%s2644 + $0x4] sm:$0xf]
      %v2647 = vld [vmem:[%s2644 + $0xc] sm:$0xf]
      %v2648 = vld [vmem:[%s2644 + $0x10] sm:$0xf]
      %v2649 = vld [vmem:[%s2644 + $0x18] sm:$0xf]
      %v2650 = vld [vmem:[%s2644 + $0x1c] sm:$0xf]
      %v2651 = vld [vmem:[%s2644 + $0x24] sm:$0xf]
      %v2652 = vld [vmem:[%s2644 + $0x28] sm:$0xf]
      %v2653 = vld [vmem:[%s2644 + $0x30] sm:$0xf]
      %v2654 = vld [vmem:[%s2644 + $0x34] sm:$0xf]
      %v2655 = vld [vmem:[%s2644 + $0x3c] sm:$0xf]
      %v2656 = vld [vmem:[%s2644 + $0x40] sm:$0xf]
      %v2657 = vld [vmem:[%s2644 + $0x48] sm:$0xf]
      %v2658 = vld [vmem:[%s2644 + $0x4c] sm:$0xf]
      %v2659 = vld [vmem:[%s2644 + $0x54] sm:$0xf]
      %v2660 = vld [vmem:[%s2644 + $0x58] sm:$0xf]
      %v2661 = vld [vmem:[%s2644 + $0x60] sm:$0xf]
      %v2662 = vld [vmem:[%s2644 + $0x64] sm:$0xf]
      %v2663 = vld [vmem:[%s2644 + $0x6c] sm:$0xf]
      %v2664 = vld [vmem:[%s2644 + $0x70] sm:$0xf]
      %v2665 = vld [vmem:[%s2644 + $0x78] sm:$0xf]
      %v2666 = vld [vmem:[%s2644 + $0x7c] sm:$0xf]
      %v2667 = vld [vmem:[%s2644 + $0x84] sm:$0xf]
      %v2668 = vld [vmem:[%s2644 + $0x88] sm:$0xf]
      %v2669 = vld [vmem:[%s2644 + $0x90] sm:$0xf]
      %v2670 = vld [vmem:[%s2644 + $0x94] sm:$0xf]
      %v2671 = vld [vmem:[%s2644 + $0x9c] sm:$0xf]
      %v2672 = vld [vmem:[%s2644 + $0xa0] sm:$0xf]
      %v2673 = vld [vmem:[%s2644 + $0xa8] sm:$0xf]
      %v2674 = vld [vmem:[%s2644 + $0xac] sm:$0xf]
      %v2675 = vld [vmem:[%s2644 + $0xb4] sm:$0xf]
      %v2676 = vld [vmem:[%s2644 + $0xb8] sm:$0xf]
      %v2709 = vunpack.c.l.b16 %v2645
      %v2710 = vunpack.c.l.b16 %v2646
      %v2711 = vunpack.c.l.b16 %v2647
      %v2712 = vunpack.c.l.b16 %v2648
      %v2713 = vunpack.c.l.b16 %v2649
      %v2714 = vunpack.c.l.b16 %v2650
      %v2715 = vunpack.c.l.b16 %v2651
      %v2716 = vunpack.c.l.b16 %v2652
      %v2717 = vunpack.c.l.b16 %v2653
      %v2718 = vunpack.c.l.b16 %v2654
      %v2719 = vunpack.c.l.b16 %v2655
      %v2720 = vunpack.c.l.b16 %v2656
      %v2721 = vunpack.c.l.b16 %v2657
      %v2722 = vunpack.c.l.b16 %v2658
      %v2723 = vunpack.c.l.b16 %v2659
      %v2724 = vunpack.c.l.b16 %v2660
      %v2725 = vunpack.c.l.b16 %v2661
      %v2726 = vunpack.c.l.b16 %v2662
      %v2727 = vunpack.c.l.b16 %v2663
      %v2728 = vunpack.c.l.b16 %v2664
      %v2729 = vunpack.c.l.b16 %v2665
      %v2730 = vunpack.c.l.b16 %v2666
      %v2731 = vunpack.c.l.b16 %v2667
      %v2732 = vunpack.c.l.b16 %v2668
      %v2733 = vunpack.c.l.b16 %v2669
      %v2734 = vunpack.c.l.b16 %v2670
      %v2735 = vunpack.c.l.b16 %v2671
      %v2736 = vunpack.c.l.b16 %v2672
      %v2737 = vunpack.c.l.b16 %v2673
      %v2738 = vunpack.c.l.b16 %v2674
      %v2739 = vunpack.c.l.b16 %v2675
      %v2740 = vunpack.c.l.b16 %v2676
      %v2741 = vpack.c.b16 %v2710, %v2709
      %v2742 = vpack.c.b16 %v2712, %v2711
      %v2743 = vpack.c.b16 %v2714, %v2713
      %v2744 = vpack.c.b16 %v2716, %v2715
      %v2745 = vpack.c.b16 %v2718, %v2717
      %v2746 = vpack.c.b16 %v2720, %v2719
      %v2747 = vpack.c.b16 %v2722, %v2721
      %v2748 = vpack.c.b16 %v2724, %v2723
      %v2749 = vpack.c.b16 %v2726, %v2725
      %v2750 = vpack.c.b16 %v2728, %v2727
      %v2751 = vpack.c.b16 %v2730, %v2729
      %v2752 = vpack.c.b16 %v2732, %v2731
      %v2753 = vpack.c.b16 %v2734, %v2733
      %v2754 = vpack.c.b16 %v2736, %v2735
      %v2755 = vpack.c.b16 %v2738, %v2737
      %v2756 = vpack.c.b16 %v2740, %v2739
      %2757 = vrot.lane.b32.xlu0 %v2741, 24
      %v2758 = vpop.permute.xlu0 %2757
      %2759 = vrot.lane.b32.xlu0 %v2742, 24
      %v2760 = vpop.permute.xlu0 %2759
      %2761 = vrot.lane.b32.xlu0 %v2743, 24
      %v2762 = vpop.permute.xlu0 %2761
      %2763 = vrot.lane.b32.xlu0 %v2744, 24
      %v2764 = vpop.permute.xlu0 %2763
      %2765 = vrot.lane.b32.xlu0 %v2745, 24
      %v2766 = vpop.permute.xlu0 %2765
      %2767 = vrot.lane.b32.xlu0 %v2746, 24
      %v2768 = vpop.permute.xlu0 %2767
      %2769 = vrot.lane.b32.xlu0 %v2747, 24
      %v2770 = vpop.permute.xlu0 %2769
      %2771 = vrot.lane.b32.xlu0 %v2748, 24
      %v2772 = vpop.permute.xlu0 %2771
      %2773 = vrot.lane.b32.xlu0 %v2749, 24
      %v2774 = vpop.permute.xlu0 %2773
      %2775 = vrot.lane.b32.xlu0 %v2750, 24
      %v2776 = vpop.permute.xlu0 %2775
      %2777 = vrot.lane.b32.xlu0 %v2751, 24
      %v2778 = vpop.permute.xlu0 %2777
      %2779 = vrot.lane.b32.xlu0 %v2752, 24
      %v2780 = vpop.permute.xlu0 %2779
      %2781 = vrot.lane.b32.xlu0 %v2753, 24
      %v2782 = vpop.permute.xlu0 %2781
      %2783 = vrot.lane.b32.xlu0 %v2754, 24
      %v2784 = vpop.permute.xlu0 %2783
      %2785 = vrot.lane.b32.xlu0 %v2755, 24
      %v2786 = vpop.permute.xlu0 %2785
      %2787 = vrot.lane.b32.xlu0 %v2756, 24
      %v2788 = vpop.permute.xlu0 %2787
      %vm2805 = vcmask 228544
      %2806 = vst.msk [vmem:[#allocation3] sm:$0xff] %vm2805, %v2758
      %2807 = vst.msk [vmem:[#allocation3 + $0x8] sm:$0xff] %vm2805, %v2760
      %2808 = vst.msk [vmem:[#allocation3 + $0x10] sm:$0xff] %vm2805, %v2762
      %2809 = vst.msk [vmem:[#allocation3 + $0x18] sm:$0xff] %vm2805, %v2764
      %2810 = vst.msk [vmem:[#allocation3 + $0x20] sm:$0xff] %vm2805, %v2766
      %2811 = vst.msk [vmem:[#allocation3 + $0x28] sm:$0xff] %vm2805, %v2768
      %2812 = vst.msk [vmem:[#allocation3 + $0x30] sm:$0xff] %vm2805, %v2770
      %2813 = vst.msk [vmem:[#allocation3 + $0x38] sm:$0xff] %vm2805, %v2772
      %2814 = vst.msk [vmem:[#allocation3 + $0x40] sm:$0xff] %vm2805, %v2774
      %2815 = vst.msk [vmem:[#allocation3 + $0x48] sm:$0xff] %vm2805, %v2776
      %2816 = vst.msk [vmem:[#allocation3 + $0x50] sm:$0xff] %vm2805, %v2778
      %2817 = vst.msk [vmem:[#allocation3 + $0x58] sm:$0xff] %vm2805, %v2780
      %2818 = vst.msk [vmem:[#allocation3 + $0x60] sm:$0xff] %vm2805, %v2782
      %2819 = vst.msk [vmem:[#allocation3 + $0x68] sm:$0xff] %vm2805, %v2784
      %2820 = vst.msk [vmem:[#allocation3 + $0x70] sm:$0xff] %vm2805, %v2786
      %2821 = vst.msk [vmem:[#allocation3 + $0x78] sm:$0xff] %vm2805, %v2788
      %v2822 = vld [vmem:[%s2644] sm:$0xf]
      %v2823 = vld [vmem:[%s2644 + $0x4] sm:$0xf]
      %v2824 = vld [vmem:[%s2644 + $0x8] sm:$0x1]
      %v2825 = vld [vmem:[%s2644 + $0xc] sm:$0xf]
      %v2826 = vld [vmem:[%s2644 + $0x10] sm:$0xf]
      %v2827 = vld [vmem:[%s2644 + $0x14] sm:$0x1]
      %v2828 = vld [vmem:[%s2644 + $0x18] sm:$0xf]
      %v2829 = vld [vmem:[%s2644 + $0x1c] sm:$0xf]
      %v2830 = vld [vmem:[%s2644 + $0x20] sm:$0x1]
      %v2831 = vld [vmem:[%s2644 + $0x24] sm:$0xf]
      %v2832 = vld [vmem:[%s2644 + $0x28] sm:$0xf]
      %v2833 = vld [vmem:[%s2644 + $0x2c] sm:$0x1]
      %v2834 = vld [vmem:[%s2644 + $0x30] sm:$0xf]
      %v2835 = vld [vmem:[%s2644 + $0x34] sm:$0xf]
      %v2836 = vld [vmem:[%s2644 + $0x38] sm:$0x1]
      %v2837 = vld [vmem:[%s2644 + $0x3c] sm:$0xf]
      %v2838 = vld [vmem:[%s2644 + $0x40] sm:$0xf]
      %v2839 = vld [vmem:[%s2644 + $0x44] sm:$0x1]
      %v2840 = vld [vmem:[%s2644 + $0x48] sm:$0xf]
      %v2841 = vld [vmem:[%s2644 + $0x4c] sm:$0xf]
      %v2842 = vld [vmem:[%s2644 + $0x50] sm:$0x1]
      %v2843 = vld [vmem:[%s2644 + $0x54] sm:$0xf]
      %v2844 = vld [vmem:[%s2644 + $0x58] sm:$0xf]
      %v2845 = vld [vmem:[%s2644 + $0x5c] sm:$0x1]
      %v2846 = vld [vmem:[%s2644 + $0x60] sm:$0xf]
      %v2847 = vld [vmem:[%s2644 + $0x64] sm:$0xf]
      %v2848 = vld [vmem:[%s2644 + $0x68] sm:$0x1]
      %v2849 = vld [vmem:[%s2644 + $0x6c] sm:$0xf]
      %v2850 = vld [vmem:[%s2644 + $0x70] sm:$0xf]
      %v2851 = vld [vmem:[%s2644 + $0x74] sm:$0x1]
      %v2852 = vld [vmem:[%s2644 + $0x78] sm:$0xf]
      %v2853 = vld [vmem:[%s2644 + $0x7c] sm:$0xf]
      %v2854 = vld [vmem:[%s2644 + $0x80] sm:$0x1]
      %v2855 = vld [vmem:[%s2644 + $0x84] sm:$0xf]
      %v2856 = vld [vmem:[%s2644 + $0x88] sm:$0xf]
      %v2857 = vld [vmem:[%s2644 + $0x8c] sm:$0x1]
      %v2858 = vld [vmem:[%s2644 + $0x90] sm:$0xf]
      %v2859 = vld [vmem:[%s2644 + $0x94] sm:$0xf]
      %v2860 = vld [vmem:[%s2644 + $0x98] sm:$0x1]
      %v2861 = vld [vmem:[%s2644 + $0x9c] sm:$0xf]
      %v2862 = vld [vmem:[%s2644 + $0xa0] sm:$0xf]
      %v2863 = vld [vmem:[%s2644 + $0xa4] sm:$0x1]
      %v2864 = vld [vmem:[%s2644 + $0xa8] sm:$0xf]
      %v2865 = vld [vmem:[%s2644 + $0xac] sm:$0xf]
      %v2866 = vld [vmem:[%s2644 + $0xb0] sm:$0x1]
      %v2867 = vld [vmem:[%s2644 + $0xb4] sm:$0xf]
      %v2868 = vld [vmem:[%s2644 + $0xb8] sm:$0xf]
      %v2869 = vld [vmem:[%s2644 + $0xbc] sm:$0x1]
      %v2918 = vunpack.c.l.b16 %v2822
      %v2919 = vunpack.c.l.b16 %v2823
      %v2920 = vunpack.c.l.b16 %v2824
      %v2921 = vunpack.c.l.b16 %v2825
      %v2922 = vunpack.c.l.b16 %v2826
      %v2923 = vunpack.c.l.b16 %v2827
      %v2924 = vunpack.c.l.b16 %v2828
      %v2925 = vunpack.c.l.b16 %v2829
      %v2926 = vunpack.c.l.b16 %v2830
      %v2927 = vunpack.c.l.b16 %v2831
      %v2928 = vunpack.c.l.b16 %v2832
      %v2929 = vunpack.c.l.b16 %v2833
      %v2930 = vunpack.c.l.b16 %v2834
      %v2931 = vunpack.c.l.b16 %v2835
      %v2932 = vunpack.c.l.b16 %v2836
      %v2933 = vunpack.c.l.b16 %v2837
      %v2934 = vunpack.c.l.b16 %v2838
      %v2935 = vunpack.c.l.b16 %v2839
      %v2936 = vunpack.c.l.b16 %v2840
      %v2937 = vunpack.c.l.b16 %v2841
      %v2938 = vunpack.c.l.b16 %v2842
      %v2939 = vunpack.c.l.b16 %v2843
      %v2940 = vunpack.c.l.b16 %v2844
      %v2941 = vunpack.c.l.b16 %v2845
      %v2942 = vunpack.c.l.b16 %v2846
      %v2943 = vunpack.c.l.b16 %v2847
      %v2944 = vunpack.c.l.b16 %v2848
      %v2945 = vunpack.c.l.b16 %v2849
      %v2946 = vunpack.c.l.b16 %v2850
      %v2947 = vunpack.c.l.b16 %v2851
      %v2948 = vunpack.c.l.b16 %v2852
      %v2949 = vunpack.c.l.b16 %v2853
      %v2950 = vunpack.c.l.b16 %v2854
      %v2951 = vunpack.c.l.b16 %v2855
      %v2952 = vunpack.c.l.b16 %v2856
      %v2953 = vunpack.c.l.b16 %v2857
      %v2954 = vunpack.c.l.b16 %v2858
      %v2955 = vunpack.c.l.b16 %v2859
      %v2956 = vunpack.c.l.b16 %v2860
      %v2957 = vunpack.c.l.b16 %v2861
      %v2958 = vunpack.c.l.b16 %v2862
      %v2959 = vunpack.c.l.b16 %v2863
      %v2960 = vunpack.c.l.b16 %v2864
      %v2961 = vunpack.c.l.b16 %v2865
      %v2962 = vunpack.c.l.b16 %v2866
      %v2963 = vunpack.c.l.b16 %v2867
      %v2964 = vunpack.c.l.b16 %v2868
      %v2965 = vunpack.c.l.b16 %v2869
      %v2966 = vpack.c.b16 %v2919, %v2918
      %v2967 = vpack.c.b16 %v2920, %v2920
      %v2968 = vpack.c.b16 %v2922, %v2921
      %v2969 = vpack.c.b16 %v2923, %v2923
      %v2970 = vpack.c.b16 %v2925, %v2924
      %v2971 = vpack.c.b16 %v2926, %v2926
      %v2972 = vpack.c.b16 %v2928, %v2927
      %v2973 = vpack.c.b16 %v2929, %v2929
      %v2974 = vpack.c.b16 %v2931, %v2930
      %v2975 = vpack.c.b16 %v2932, %v2932
      %v2976 = vpack.c.b16 %v2934, %v2933
      %v2977 = vpack.c.b16 %v2935, %v2935
      %v2978 = vpack.c.b16 %v2937, %v2936
      %v2979 = vpack.c.b16 %v2938, %v2938
      %v2980 = vpack.c.b16 %v2940, %v2939
      %v2981 = vpack.c.b16 %v2941, %v2941
      %v2982 = vpack.c.b16 %v2943, %v2942
      %v2983 = vpack.c.b16 %v2944, %v2944
      %v2984 = vpack.c.b16 %v2946, %v2945
      %v2985 = vpack.c.b16 %v2947, %v2947
      %v2986 = vpack.c.b16 %v2949, %v2948
      %v2987 = vpack.c.b16 %v2950, %v2950
      %v2988 = vpack.c.b16 %v2952, %v2951
      %v2989 = vpack.c.b16 %v2953, %v2953
      %v2990 = vpack.c.b16 %v2955, %v2954
      %v2991 = vpack.c.b16 %v2956, %v2956
      %v2992 = vpack.c.b16 %v2958, %v2957
      %v2993 = vpack.c.b16 %v2959, %v2959
      %v2994 = vpack.c.b16 %v2961, %v2960
      %v2995 = vpack.c.b16 %v2962, %v2962
      %v2996 = vpack.c.b16 %v2964, %v2963
      %v2997 = vpack.c.b16 %v2965, %v2965
      %v2999 = vshrl.u32 %v2966, 16
      %v3001 = vshll.u32 %v2966, 16
      %v3003 = vrot.slane %v3001, 1
      %v3004 = vor.u32 %v2999, %v3003
      %v3006 = vshll.u32 %v2967, 16
      %v3008 = vrot.slane %v3006, 1
      %v3009 = vsel %vm1197, %v3004, %v3008
      %v3011 = vshrl.u32 %v2968, 16
      %v3013 = vshll.u32 %v2968, 16
      %v3015 = vrot.slane %v3013, 1
      %v3016 = vor.u32 %v3011, %v3015
      %v3018 = vshll.u32 %v2969, 16
      %v3020 = vrot.slane %v3018, 1
      %v3021 = vsel %vm1197, %v3016, %v3020
      %v3023 = vshrl.u32 %v2970, 16
      %v3025 = vshll.u32 %v2970, 16
      %v3027 = vrot.slane %v3025, 1
      %v3028 = vor.u32 %v3023, %v3027
      %v3030 = vshll.u32 %v2971, 16
      %v3032 = vrot.slane %v3030, 1
      %v3033 = vsel %vm1197, %v3028, %v3032
      %v3035 = vshrl.u32 %v2972, 16
      %v3037 = vshll.u32 %v2972, 16
      %v3039 = vrot.slane %v3037, 1
      %v3040 = vor.u32 %v3035, %v3039
      %v3042 = vshll.u32 %v2973, 16
      %v3044 = vrot.slane %v3042, 1
      %v3045 = vsel %vm1197, %v3040, %v3044
      %v3047 = vshrl.u32 %v2974, 16
      %v3049 = vshll.u32 %v2974, 16
      %v3051 = vrot.slane %v3049, 1
      %v3052 = vor.u32 %v3047, %v3051
      %v3054 = vshll.u32 %v2975, 16
      %v3056 = vrot.slane %v3054, 1
      %v3057 = vsel %vm1197, %v3052, %v3056
      %v3059 = vshrl.u32 %v2976, 16
      %v3061 = vshll.u32 %v2976, 16
      %v3063 = vrot.slane %v3061, 1
      %v3064 = vor.u32 %v3059, %v3063
      %v3066 = vshll.u32 %v2977, 16
      %v3068 = vrot.slane %v3066, 1
      %v3069 = vsel %vm1197, %v3064, %v3068
      %v3071 = vshrl.u32 %v2978, 16
      %v3073 = vshll.u32 %v2978, 16
      %v3075 = vrot.slane %v3073, 1
      %v3076 = vor.u32 %v3071, %v3075
      %v3078 = vshll.u32 %v2979, 16
      %v3080 = vrot.slane %v3078, 1
      %v3081 = vsel %vm1197, %v3076, %v3080
      %v3083 = vshrl.u32 %v2980, 16
      %v3085 = vshll.u32 %v2980, 16
      %v3087 = vrot.slane %v3085, 1
      %v3088 = vor.u32 %v3083, %v3087
      %v3090 = vshll.u32 %v2981, 16
      %v3092 = vrot.slane %v3090, 1
      %v3093 = vsel %vm1197, %v3088, %v3092
      %v3095 = vshrl.u32 %v2982, 16
      %v3097 = vshll.u32 %v2982, 16
      %v3099 = vrot.slane %v3097, 1
      %v3100 = vor.u32 %v3095, %v3099
      %v3102 = vshll.u32 %v2983, 16
      %v3104 = vrot.slane %v3102, 1
      %v3105 = vsel %vm1197, %v3100, %v3104
      %v3107 = vshrl.u32 %v2984, 16
      %v3109 = vshll.u32 %v2984, 16
      %v3111 = vrot.slane %v3109, 1
      %v3112 = vor.u32 %v3107, %v3111
      %v3114 = vshll.u32 %v2985, 16
      %v3116 = vrot.slane %v3114, 1
      %v3117 = vsel %vm1197, %v3112, %v3116
      %v3119 = vshrl.u32 %v2986, 16
      %v3121 = vshll.u32 %v2986, 16
      %v3123 = vrot.slane %v3121, 1
      %v3124 = vor.u32 %v3119, %v3123
      %v3126 = vshll.u32 %v2987, 16
      %v3128 = vrot.slane %v3126, 1
      %v3129 = vsel %vm1197, %v3124, %v3128
      %v3131 = vshrl.u32 %v2988, 16
      %v3133 = vshll.u32 %v2988, 16
      %v3135 = vrot.slane %v3133, 1
      %v3136 = vor.u32 %v3131, %v3135
      %v3138 = vshll.u32 %v2989, 16
      %v3140 = vrot.slane %v3138, 1
      %v3141 = vsel %vm1197, %v3136, %v3140
      %v3143 = vshrl.u32 %v2990, 16
      %v3145 = vshll.u32 %v2990, 16
      %v3147 = vrot.slane %v3145, 1
      %v3148 = vor.u32 %v3143, %v3147
      %v3150 = vshll.u32 %v2991, 16
      %v3152 = vrot.slane %v3150, 1
      %v3153 = vsel %vm1197, %v3148, %v3152
      %v3155 = vshrl.u32 %v2992, 16
      %v3157 = vshll.u32 %v2992, 16
      %v3159 = vrot.slane %v3157, 1
      %v3160 = vor.u32 %v3155, %v3159
      %v3162 = vshll.u32 %v2993, 16
      %v3164 = vrot.slane %v3162, 1
      %v3165 = vsel %vm1197, %v3160, %v3164
      %v3167 = vshrl.u32 %v2994, 16
      %v3169 = vshll.u32 %v2994, 16
      %v3171 = vrot.slane %v3169, 1
      %v3172 = vor.u32 %v3167, %v3171
      %v3174 = vshll.u32 %v2995, 16
      %v3176 = vrot.slane %v3174, 1
      %v3177 = vsel %vm1197, %v3172, %v3176
      %v3179 = vshrl.u32 %v2996, 16
      %v3181 = vshll.u32 %v2996, 16
      %v3183 = vrot.slane %v3181, 1
      %v3184 = vor.u32 %v3179, %v3183
      %v3186 = vshll.u32 %v2997, 16
      %v3188 = vrot.slane %v3186, 1
      %v3189 = vsel %vm1197, %v3184, %v3188
      %3190 = vrot.lane.b32.xlu0 %v3009, 28
      %v3191 = vpop.permute.xlu0 %3190
      %3192 = vrot.lane.b32.xlu0 %v3021, 28
      %v3193 = vpop.permute.xlu0 %3192
      %3194 = vrot.lane.b32.xlu0 %v3033, 28
      %v3195 = vpop.permute.xlu0 %3194
      %3196 = vrot.lane.b32.xlu0 %v3045, 28
      %v3197 = vpop.permute.xlu0 %3196
      %3198 = vrot.lane.b32.xlu0 %v3057, 28
      %v3199 = vpop.permute.xlu0 %3198
      %3200 = vrot.lane.b32.xlu0 %v3069, 28
      %v3201 = vpop.permute.xlu0 %3200
      %3202 = vrot.lane.b32.xlu0 %v3081, 28
      %v3203 = vpop.permute.xlu0 %3202
      %3204 = vrot.lane.b32.xlu0 %v3093, 28
      %v3205 = vpop.permute.xlu0 %3204
      %3206 = vrot.lane.b32.xlu0 %v3105, 28
      %v3207 = vpop.permute.xlu0 %3206
      %3208 = vrot.lane.b32.xlu0 %v3117, 28
      %v3209 = vpop.permute.xlu0 %3208
      %3210 = vrot.lane.b32.xlu0 %v3129, 28
      %v3211 = vpop.permute.xlu0 %3210
      %3212 = vrot.lane.b32.xlu0 %v3141, 28
      %v3213 = vpop.permute.xlu0 %3212
      %3214 = vrot.lane.b32.xlu0 %v3153, 28
      %v3215 = vpop.permute.xlu0 %3214
      %3216 = vrot.lane.b32.xlu0 %v3165, 28
      %v3217 = vpop.permute.xlu0 %3216
      %3218 = vrot.lane.b32.xlu0 %v3177, 28
      %v3219 = vpop.permute.xlu0 %3218
      %3220 = vrot.lane.b32.xlu0 %v3189, 28
      %v3221 = vpop.permute.xlu0 %3220
      %vm3238 = vcmask 261344
      %3239 = vst.msk [vmem:[#allocation3] sm:$0xff] %vm3238, %v3191
      %3240 = vst.msk [vmem:[#allocation3 + $0x8] sm:$0xff] %vm3238, %v3193
      %3241 = vst.msk [vmem:[#allocation3 + $0x10] sm:$0xff] %vm3238, %v3195
      %3242 = vst.msk [vmem:[#allocation3 + $0x18] sm:$0xff] %vm3238, %v3197
      %3243 = vst.msk [vmem:[#allocation3 + $0x20] sm:$0xff] %vm3238, %v3199
      %3244 = vst.msk [vmem:[#allocation3 + $0x28] sm:$0xff] %vm3238, %v3201
      %3245 = vst.msk [vmem:[#allocation3 + $0x30] sm:$0xff] %vm3238, %v3203
      %3246 = vst.msk [vmem:[#allocation3 + $0x38] sm:$0xff] %vm3238, %v3205
      %3247 = vst.msk [vmem:[#allocation3 + $0x40] sm:$0xff] %vm3238, %v3207
      %3248 = vst.msk [vmem:[#allocation3 + $0x48] sm:$0xff] %vm3238, %v3209
      %3249 = vst.msk [vmem:[#allocation3 + $0x50] sm:$0xff] %vm3238, %v3211
      %3250 = vst.msk [vmem:[#allocation3 + $0x58] sm:$0xff] %vm3238, %v3213
      %3251 = vst.msk [vmem:[#allocation3 + $0x60] sm:$0xff] %vm3238, %v3215
      %3252 = vst.msk [vmem:[#allocation3 + $0x68] sm:$0xff] %vm3238, %v3217
      %3253 = vst.msk [vmem:[#allocation3 + $0x70] sm:$0xff] %vm3238, %v3219
      %3254 = vst.msk [vmem:[#allocation3 + $0x78] sm:$0xff] %vm3238, %v3221
      %v3255 = vld [vmem:[%s2644] sm:$0xe]
      %v3256 = vld [vmem:[%s2644 + $0x4] sm:$0xf]
      %v3257 = vld [vmem:[%s2644 + $0x8] sm:$0x1]
      %v3258 = vld [vmem:[%s2644 + $0xc] sm:$0xe]
      %v3259 = vld [vmem:[%s2644 + $0x10] sm:$0xf]
      %v3260 = vld [vmem:[%s2644 + $0x14] sm:$0x1]
      %v3261 = vld [vmem:[%s2644 + $0x18] sm:$0xe]
      %v3262 = vld [vmem:[%s2644 + $0x1c] sm:$0xf]
      %v3263 = vld [vmem:[%s2644 + $0x20] sm:$0x1]
      %v3264 = vld [vmem:[%s2644 + $0x24] sm:$0xe]
      %v3265 = vld [vmem:[%s2644 + $0x28] sm:$0xf]
      %v3266 = vld [vmem:[%s2644 + $0x2c] sm:$0x1]
      %v3267 = vld [vmem:[%s2644 + $0x30] sm:$0xe]
      %v3268 = vld [vmem:[%s2644 + $0x34] sm:$0xf]
      %v3269 = vld [vmem:[%s2644 + $0x38] sm:$0x1]
      %v3270 = vld [vmem:[%s2644 + $0x3c] sm:$0xe]
      %v3271 = vld [vmem:[%s2644 + $0x40] sm:$0xf]
      %v3272 = vld [vmem:[%s2644 + $0x44] sm:$0x1]
      %v3273 = vld [vmem:[%s2644 + $0x48] sm:$0xe]
      %v3274 = vld [vmem:[%s2644 + $0x4c] sm:$0xf]
      %v3275 = vld [vmem:[%s2644 + $0x50] sm:$0x1]
      %v3276 = vld [vmem:[%s2644 + $0x54] sm:$0xe]
      %v3277 = vld [vmem:[%s2644 + $0x58] sm:$0xf]
      %v3278 = vld [vmem:[%s2644 + $0x5c] sm:$0x1]
      %v3279 = vld [vmem:[%s2644 + $0x60] sm:$0xe]
      %v3280 = vld [vmem:[%s2644 + $0x64] sm:$0xf]
      %v3281 = vld [vmem:[%s2644 + $0x68] sm:$0x1]
      %v3282 = vld [vmem:[%s2644 + $0x6c] sm:$0xe]
      %v3283 = vld [vmem:[%s2644 + $0x70] sm:$0xf]
      %v3284 = vld [vmem:[%s2644 + $0x74] sm:$0x1]
      %v3285 = vld [vmem:[%s2644 + $0x78] sm:$0xe]
      %v3286 = vld [vmem:[%s2644 + $0x7c] sm:$0xf]
      %v3287 = vld [vmem:[%s2644 + $0x80] sm:$0x1]
      %v3288 = vld [vmem:[%s2644 + $0x84] sm:$0xe]
      %v3289 = vld [vmem:[%s2644 + $0x88] sm:$0xf]
      %v3290 = vld [vmem:[%s2644 + $0x8c] sm:$0x1]
      %v3291 = vld [vmem:[%s2644 + $0x90] sm:$0xe]
      %v3292 = vld [vmem:[%s2644 + $0x94] sm:$0xf]
      %v3293 = vld [vmem:[%s2644 + $0x98] sm:$0x1]
      %v3294 = vld [vmem:[%s2644 + $0x9c] sm:$0xe]
      %v3295 = vld [vmem:[%s2644 + $0xa0] sm:$0xf]
      %v3296 = vld [vmem:[%s2644 + $0xa4] sm:$0x1]
      %v3297 = vld [vmem:[%s2644 + $0xa8] sm:$0xe]
      %v3298 = vld [vmem:[%s2644 + $0xac] sm:$0xf]
      %v3299 = vld [vmem:[%s2644 + $0xb0] sm:$0x1]
      %v3300 = vld [vmem:[%s2644 + $0xb4] sm:$0xe]
      %v3301 = vld [vmem:[%s2644 + $0xb8] sm:$0xf]
      %v3302 = vld [vmem:[%s2644 + $0xbc] sm:$0x1]
      %v3351 = vunpack.c.l.b16 %v3255
      %v3352 = vunpack.c.l.b16 %v3256
      %v3353 = vunpack.c.l.b16 %v3257
      %v3354 = vunpack.c.l.b16 %v3258
      %v3355 = vunpack.c.l.b16 %v3259
      %v3356 = vunpack.c.l.b16 %v3260
      %v3357 = vunpack.c.l.b16 %v3261
      %v3358 = vunpack.c.l.b16 %v3262
      %v3359 = vunpack.c.l.b16 %v3263
      %v3360 = vunpack.c.l.b16 %v3264
      %v3361 = vunpack.c.l.b16 %v3265
      %v3362 = vunpack.c.l.b16 %v3266
      %v3363 = vunpack.c.l.b16 %v3267
      %v3364 = vunpack.c.l.b16 %v3268
      %v3365 = vunpack.c.l.b16 %v3269
      %v3366 = vunpack.c.l.b16 %v3270
      %v3367 = vunpack.c.l.b16 %v3271
      %v3368 = vunpack.c.l.b16 %v3272
      %v3369 = vunpack.c.l.b16 %v3273
      %v3370 = vunpack.c.l.b16 %v3274
      %v3371 = vunpack.c.l.b16 %v3275
      %v3372 = vunpack.c.l.b16 %v3276
      %v3373 = vunpack.c.l.b16 %v3277
      %v3374 = vunpack.c.l.b16 %v3278
      %v3375 = vunpack.c.l.b16 %v3279
      %v3376 = vunpack.c.l.b16 %v3280
      %v3377 = vunpack.c.l.b16 %v3281
      %v3378 = vunpack.c.l.b16 %v3282
      %v3379 = vunpack.c.l.b16 %v3283
      %v3380 = vunpack.c.l.b16 %v3284
      %v3381 = vunpack.c.l.b16 %v3285
      %v3382 = vunpack.c.l.b16 %v3286
      %v3383 = vunpack.c.l.b16 %v3287
      %v3384 = vunpack.c.l.b16 %v3288
      %v3385 = vunpack.c.l.b16 %v3289
      %v3386 = vunpack.c.l.b16 %v3290
      %v3387 = vunpack.c.l.b16 %v3291
      %v3388 = vunpack.c.l.b16 %v3292
      %v3389 = vunpack.c.l.b16 %v3293
      %v3390 = vunpack.c.l.b16 %v3294
      %v3391 = vunpack.c.l.b16 %v3295
      %v3392 = vunpack.c.l.b16 %v3296
      %v3393 = vunpack.c.l.b16 %v3297
      %v3394 = vunpack.c.l.b16 %v3298
      %v3395 = vunpack.c.l.b16 %v3299
      %v3396 = vunpack.c.l.b16 %v3300
      %v3397 = vunpack.c.l.b16 %v3301
      %v3398 = vunpack.c.l.b16 %v3302
      %v3399 = vpack.c.b16 %v3352, %v3351
      %v3400 = vpack.c.b16 %v3353, %v3353
      %v3401 = vpack.c.b16 %v3355, %v3354
      %v3402 = vpack.c.b16 %v3356, %v3356
      %v3403 = vpack.c.b16 %v3358, %v3357
      %v3404 = vpack.c.b16 %v3359, %v3359
      %v3405 = vpack.c.b16 %v3361, %v3360
      %v3406 = vpack.c.b16 %v3362, %v3362
      %v3407 = vpack.c.b16 %v3364, %v3363
      %v3408 = vpack.c.b16 %v3365, %v3365
      %v3409 = vpack.c.b16 %v3367, %v3366
      %v3410 = vpack.c.b16 %v3368, %v3368
      %v3411 = vpack.c.b16 %v3370, %v3369
      %v3412 = vpack.c.b16 %v3371, %v3371
      %v3413 = vpack.c.b16 %v3373, %v3372
      %v3414 = vpack.c.b16 %v3374, %v3374
      %v3415 = vpack.c.b16 %v3376, %v3375
      %v3416 = vpack.c.b16 %v3377, %v3377
      %v3417 = vpack.c.b16 %v3379, %v3378
      %v3418 = vpack.c.b16 %v3380, %v3380
      %v3419 = vpack.c.b16 %v3382, %v3381
      %v3420 = vpack.c.b16 %v3383, %v3383
      %v3421 = vpack.c.b16 %v3385, %v3384
      %v3422 = vpack.c.b16 %v3386, %v3386
      %v3423 = vpack.c.b16 %v3388, %v3387
      %v3424 = vpack.c.b16 %v3389, %v3389
      %v3425 = vpack.c.b16 %v3391, %v3390
      %v3426 = vpack.c.b16 %v3392, %v3392
      %v3427 = vpack.c.b16 %v3394, %v3393
      %v3428 = vpack.c.b16 %v3395, %v3395
      %v3429 = vpack.c.b16 %v3397, %v3396
      %v3430 = vpack.c.b16 %v3398, %v3398
      %v3431 = vrot.slane %v3399, 1
      %v3432 = vrot.slane %v3400, 1
      %v3433 = vsel %vm1631, %v3431, %v3432
      %v3434 = vrot.slane %v3401, 1
      %v3435 = vrot.slane %v3402, 1
      %v3436 = vsel %vm1631, %v3434, %v3435
      %v3437 = vrot.slane %v3403, 1
      %v3438 = vrot.slane %v3404, 1
      %v3439 = vsel %vm1631, %v3437, %v3438
      %v3440 = vrot.slane %v3405, 1
      %v3441 = vrot.slane %v3406, 1
      %v3442 = vsel %vm1631, %v3440, %v3441
      %v3443 = vrot.slane %v3407, 1
      %v3444 = vrot.slane %v3408, 1
      %v3445 = vsel %vm1631, %v3443, %v3444
      %v3446 = vrot.slane %v3409, 1
      %v3447 = vrot.slane %v3410, 1
      %v3448 = vsel %vm1631, %v3446, %v3447
      %v3449 = vrot.slane %v3411, 1
      %v3450 = vrot.slane %v3412, 1
      %v3451 = vsel %vm1631, %v3449, %v3450
      %v3452 = vrot.slane %v3413, 1
      %v3453 = vrot.slane %v3414, 1
      %v3454 = vsel %vm1631, %v3452, %v3453
      %v3455 = vrot.slane %v3415, 1
      %v3456 = vrot.slane %v3416, 1
      %v3457 = vsel %vm1631, %v3455, %v3456
      %v3458 = vrot.slane %v3417, 1
      %v3459 = vrot.slane %v3418, 1
      %v3460 = vsel %vm1631, %v3458, %v3459
      %v3461 = vrot.slane %v3419, 1
      %v3462 = vrot.slane %v3420, 1
      %v3463 = vsel %vm1631, %v3461, %v3462
      %v3464 = vrot.slane %v3421, 1
      %v3465 = vrot.slane %v3422, 1
      %v3466 = vsel %vm1631, %v3464, %v3465
      %v3467 = vrot.slane %v3423, 1
      %v3468 = vrot.slane %v3424, 1
      %v3469 = vsel %vm1631, %v3467, %v3468
      %v3470 = vrot.slane %v3425, 1
      %v3471 = vrot.slane %v3426, 1
      %v3472 = vsel %vm1631, %v3470, %v3471
      %v3473 = vrot.slane %v3427, 1
      %v3474 = vrot.slane %v3428, 1
      %v3475 = vsel %vm1631, %v3473, %v3474
      %v3476 = vrot.slane %v3429, 1
      %v3477 = vrot.slane %v3430, 1
      %v3478 = vsel %vm1631, %v3476, %v3477
      %3479 = vrot.lane.b32.xlu0 %v3433, 32
      %v3480 = vpop.permute.xlu0 %3479
      %3481 = vrot.lane.b32.xlu0 %v3436, 32
      %v3482 = vpop.permute.xlu0 %3481
      %3483 = vrot.lane.b32.xlu0 %v3439, 32
      %v3484 = vpop.permute.xlu0 %3483
      %3485 = vrot.lane.b32.xlu0 %v3442, 32
      %v3486 = vpop.permute.xlu0 %3485
      %3487 = vrot.lane.b32.xlu0 %v3445, 32
      %v3488 = vpop.permute.xlu0 %3487
      %3489 = vrot.lane.b32.xlu0 %v3448, 32
      %v3490 = vpop.permute.xlu0 %3489
      %3491 = vrot.lane.b32.xlu0 %v3451, 32
      %v3492 = vpop.permute.xlu0 %3491
      %3493 = vrot.lane.b32.xlu0 %v3454, 32
      %v3494 = vpop.permute.xlu0 %3493
      %3495 = vrot.lane.b32.xlu0 %v3457, 32
      %v3496 = vpop.permute.xlu0 %3495
      %3497 = vrot.lane.b32.xlu0 %v3460, 32
      %v3498 = vpop.permute.xlu0 %3497
      %3499 = vrot.lane.b32.xlu0 %v3463, 32
      %v3500 = vpop.permute.xlu0 %3499
      %3501 = vrot.lane.b32.xlu0 %v3466, 32
      %v3502 = vpop.permute.xlu0 %3501
      %3503 = vrot.lane.b32.xlu0 %v3469, 32
      %v3504 = vpop.permute.xlu0 %3503
      %3505 = vrot.lane.b32.xlu0 %v3472, 32
      %v3506 = vpop.permute.xlu0 %3505
      %3507 = vrot.lane.b32.xlu0 %v3475, 32
      %v3508 = vpop.permute.xlu0 %3507
      %3509 = vrot.lane.b32.xlu0 %v3478, 32
      %v3510 = vpop.permute.xlu0 %3509
      %vm3527 = vcmask 294144
      %3528 = vst.msk [vmem:[#allocation3] sm:$0xff] %vm3527, %v3480
      %3529 = vst.msk [vmem:[#allocation3 + $0x8] sm:$0xff] %vm3527, %v3482
      %3530 = vst.msk [vmem:[#allocation3 + $0x10] sm:$0xff] %vm3527, %v3484
      %3531 = vst.msk [vmem:[#allocation3 + $0x18] sm:$0xff] %vm3527, %v3486
      %3532 = vst.msk [vmem:[#allocation3 + $0x20] sm:$0xff] %vm3527, %v3488
      %3533 = vst.msk [vmem:[#allocation3 + $0x28] sm:$0xff] %vm3527, %v3490
      %3534 = vst.msk [vmem:[#allocation3 + $0x30] sm:$0xff] %vm3527, %v3492
      %3535 = vst.msk [vmem:[#allocation3 + $0x38] sm:$0xff] %vm3527, %v3494
      %3536 = vst.msk [vmem:[#allocation3 + $0x40] sm:$0xff] %vm3527, %v3496
      %3537 = vst.msk [vmem:[#allocation3 + $0x48] sm:$0xff] %vm3527, %v3498
      %3538 = vst.msk [vmem:[#allocation3 + $0x50] sm:$0xff] %vm3527, %v3500
      %3539 = vst.msk [vmem:[#allocation3 + $0x58] sm:$0xff] %vm3527, %v3502
      %3540 = vst.msk [vmem:[#allocation3 + $0x60] sm:$0xff] %vm3527, %v3504
      %3541 = vst.msk [vmem:[#allocation3 + $0x68] sm:$0xff] %vm3527, %v3506
      %3542 = vst.msk [vmem:[#allocation3 + $0x70] sm:$0xff] %vm3527, %v3508
      %3543 = vst.msk [vmem:[#allocation3 + $0x78] sm:$0xff] %vm3527, %v3510
      %v3544 = vld [vmem:[#allocation3] sm:$0xff]
      %v3545 = vld [vmem:[#allocation3 + $0x8] sm:$0xff]
      %v3546 = vld [vmem:[#allocation3 + $0x10] sm:$0xff]
      %v3547 = vld [vmem:[#allocation3 + $0x18] sm:$0xff]
      %v3548 = vld [vmem:[#allocation3 + $0x20] sm:$0xff]
      %v3549 = vld [vmem:[#allocation3 + $0x28] sm:$0xff]
      %v3550 = vld [vmem:[#allocation3 + $0x30] sm:$0xff]
      %v3551 = vld [vmem:[#allocation3 + $0x38] sm:$0xff]
      %v3552 = vld [vmem:[#allocation3 + $0x40] sm:$0xff]
      %v3553 = vld [vmem:[#allocation3 + $0x48] sm:$0xff]
      %v3554 = vld [vmem:[#allocation3 + $0x50] sm:$0xff]
      %v3555 = vld [vmem:[#allocation3 + $0x58] sm:$0xff]
      %v3556 = vld [vmem:[#allocation3 + $0x60] sm:$0xff]
      %v3557 = vld [vmem:[#allocation3 + $0x68] sm:$0xff]
      %v3558 = vld [vmem:[#allocation3 + $0x70] sm:$0xff]
      %v3559 = vld [vmem:[#allocation3 + $0x78] sm:$0xff]
      %v3560 = vld [vmem:[%s1] sm:$0xf]
      %v3561 = vld [vmem:[%s1 + $0x4] sm:$0xf]
      %v3562 = vld [vmem:[%s1 + $0x8] sm:$0xf]
      %v3563 = vld [vmem:[%s1 + $0xc] sm:$0xf]
      %v3564 = vld [vmem:[%s1 + $0x10] sm:$0xf]
      %v3565 = vld [vmem:[%s1 + $0x14] sm:$0xf]
      %v3566 = vld [vmem:[%s1 + $0x18] sm:$0xf]
      %v3567 = vld [vmem:[%s1 + $0x1c] sm:$0xf]
      %v3568 = vld [vmem:[%s1 + $0x20] sm:$0xf]
      %v3569 = vld [vmem:[%s1 + $0x24] sm:$0xf]
      %v3570 = vld [vmem:[%s1 + $0x28] sm:$0xf]
      %v3571 = vld [vmem:[%s1 + $0x2c] sm:$0xf]
      %v3572 = vld [vmem:[%s1 + $0x30] sm:$0xf]
      %v3573 = vld [vmem:[%s1 + $0x34] sm:$0xf]
      %v3574 = vld [vmem:[%s1 + $0x38] sm:$0xf]
      %v3575 = vld [vmem:[%s1 + $0x3c] sm:$0xf]
      %v3592 = vunpack.c.l.b16 %v3560
      %v3593 = vunpack.c.l.b16 %v3561
      %v3594 = vunpack.c.l.b16 %v3562
      %v3595 = vunpack.c.l.b16 %v3563
      %v3596 = vunpack.c.l.b16 %v3564
      %v3597 = vunpack.c.l.b16 %v3565
      %v3598 = vunpack.c.l.b16 %v3566
      %v3599 = vunpack.c.l.b16 %v3567
      %v3600 = vunpack.c.l.b16 %v3568
      %v3601 = vunpack.c.l.b16 %v3569
      %v3602 = vunpack.c.l.b16 %v3570
      %v3603 = vunpack.c.l.b16 %v3571
      %v3604 = vunpack.c.l.b16 %v3572
      %v3605 = vunpack.c.l.b16 %v3573
      %v3606 = vunpack.c.l.b16 %v3574
      %v3607 = vunpack.c.l.b16 %v3575
      %v3608 = vpack.c.b16 %v3593, %v3592
      %v3609 = vpack.c.b16 %v3595, %v3594
      %v3610 = vpack.c.b16 %v3597, %v3596
      %v3611 = vpack.c.b16 %v3599, %v3598
      %v3612 = vpack.c.b16 %v3601, %v3600
      %v3613 = vpack.c.b16 %v3603, %v3602
      %v3614 = vpack.c.b16 %v3605, %v3604
      %v3615 = vpack.c.b16 %v3607, %v3606
      %3624 = vmatprep.subr.bf16.mxu0 0
      %3625 = vmatpush1.bf16.msra.mxu0 %v3608
      %3626 = vmatprep.subr.bf16.mxu0 0
      %3627 = vmatpush1.bf16.msra.mxu0 %v3609
      %3628 = vmatprep.subr.bf16.mxu0 0
      %3629 = vmatpush1.bf16.msra.mxu0 %v3610
      %3630 = vmatprep.subr.bf16.mxu0 0
      %3631 = vmatpush1.bf16.msra.mxu0 %v3611
      %3632 = vmatprep.subr.bf16.mxu0 0
      %3633 = vmatpush1.bf16.msra.mxu0 %v3612
      %3634 = vmatprep.subr.bf16.mxu0 0
      %3635 = vmatpush1.bf16.msra.mxu0 %v3613
      %3636 = vmatprep.subr.bf16.mxu0 0
      %3637 = vmatpush1.bf16.msra.mxu0 %v3614
      %3638 = vmatprep.subr.bf16.mxu0 0
      %3639 = vmatpush1.bf16.msra.mxu0 %v3615
      %3640 = vmatprep.subr.bf16.mxu0 0
      %3641 = vmatpush1.bf16.msra.mxu0 0
      %3642 = vmatprep.subr.bf16.mxu0 0
      %3643 = vmatpush1.bf16.msra.mxu0 0
      %3644 = vmatprep.subr.bf16.mxu0 0
      %3645 = vmatpush1.bf16.msra.mxu0 0
      %3646 = vmatprep.subr.bf16.mxu0 0
      %3647 = vmatpush1.bf16.msra.mxu0 0
      %3648 = vmatprep.subr.bf16.mxu0 0
      %3649 = vmatpush1.bf16.msra.mxu0 0
      %3650 = vmatprep.subr.bf16.mxu0 0
      %3651 = vmatpush1.bf16.msra.mxu0 0
      %3652 = vmatprep.subr.bf16.mxu0 0
      %3653 = vmatpush1.bf16.msra.mxu0 0
      %3654 = vmatprep.subr.bf16.mxu0 0
      %3655 = vmatpush1.bf16.msra.mxu0 0
      %3656 = vmatprep.mubr.bf16.mxu0 0
      %3657 = vmatmul.mubr.bf16.gmra.mrb[0].mxu0 %v3544
      %v3658 = vpop.f32.mrb[0].mxu0
      %v3659 = vadd.f32 0.0, %v3658
      %v3660 = vpop.f32.mrb[0].mxu0
      %v3661 = vpop.f32.mrb[0].mxu0
      %v3662 = vadd.f32 0.0, %v3661
      %v3663 = vpop.f32.mrb[0].mxu0
      %3664 = vmatprep.mubr.bf16.mxu0 0
      %3665 = vmatmul.mubr.bf16.gmra.mrb[0].mxu0 %v3545
      %v3666 = vpop.f32.mrb[0].mxu0
      %v3667 = vadd.f32 0.0, %v3666
      %v3668 = vpop.f32.mrb[0].mxu0
      %v3669 = vpop.f32.mrb[0].mxu0
      %v3670 = vadd.f32 0.0, %v3669
      %v3671 = vpop.f32.mrb[0].mxu0
      %3672 = vmatprep.mubr.bf16.mxu0 0
      %3673 = vmatmul.mubr.bf16.gmra.mrb[0].mxu0 %v3546
      %v3674 = vpop.f32.mrb[0].mxu0
      %v3675 = vadd.f32 0.0, %v3674
      %v3676 = vpop.f32.mrb[0].mxu0
      %v3677 = vpop.f32.mrb[0].mxu0
      %v3678 = vadd.f32 0.0, %v3677
      %v3679 = vpop.f32.mrb[0].mxu0
      %3680 = vmatprep.mubr.bf16.mxu0 0
      %3681 = vmatmul.mubr.bf16.gmra.mrb[0].mxu0 %v3547
      %v3682 = vpop.f32.mrb[0].mxu0
      %v3683 = vadd.f32 0.0, %v3682
      %v3684 = vpop.f32.mrb[0].mxu0
      %v3685 = vpop.f32.mrb[0].mxu0
      %v3686 = vadd.f32 0.0, %v3685
      %v3687 = vpop.f32.mrb[0].mxu0
      %3688 = vmatprep.mubr.bf16.mxu0 0
      %3689 = vmatmul.mubr.bf16.gmra.mrb[0].mxu0 %v3548
      %v3690 = vpop.f32.mrb[0].mxu0
      %v3691 = vadd.f32 0.0, %v3690
      %v3692 = vpop.f32.mrb[0].mxu0
      %v3693 = vpop.f32.mrb[0].mxu0
      %v3694 = vadd.f32 0.0, %v3693
      %v3695 = vpop.f32.mrb[0].mxu0
      %3696 = vmatprep.mubr.bf16.mxu0 0
      %3697 = vmatmul.mubr.bf16.gmra.mrb[0].mxu0 %v3549
      %v3698 = vpop.f32.mrb[0].mxu0
      %v3699 = vadd.f32 0.0, %v3698
      %v3700 = vpop.f32.mrb[0].mxu0
      %v3701 = vpop.f32.mrb[0].mxu0
      %v3702 = vadd.f32 0.0, %v3701
      %v3703 = vpop.f32.mrb[0].mxu0
      %3704 = vmatprep.mubr.bf16.mxu0 0
      %3705 = vmatmul.mubr.bf16.gmra.mrb[0].mxu0 %v3550
      %v3706 = vpop.f32.mrb[0].mxu0
      %v3707 = vadd.f32 0.0, %v3706
      %v3708 = vpop.f32.mrb[0].mxu0
      %v3709 = vpop.f32.mrb[0].mxu0
      %v3710 = vadd.f32 0.0, %v3709
      %v3711 = vpop.f32.mrb[0].mxu0
      %3712 = vmatprep.mubr.bf16.mxu0 0
      %3713 = vmatmul.mubr.bf16.gmra.mrb[0].mxu0 %v3551
      %v3714 = vpop.f32.mrb[0].mxu0
      %v3715 = vadd.f32 0.0, %v3714
      %v3716 = vpop.f32.mrb[0].mxu0
      %v3717 = vpop.f32.mrb[0].mxu0
      %v3718 = vadd.f32 0.0, %v3717
      %v3719 = vpop.f32.mrb[0].mxu0
      %3720 = vmatprep.mubr.bf16.mxu0 0
      %3721 = vmatmul.mubr.bf16.gmra.mrb[0].mxu0 %v3552
      %v3722 = vpop.f32.mrb[0].mxu0
      %v3723 = vadd.f32 0.0, %v3722
      %v3724 = vpop.f32.mrb[0].mxu0
      %v3725 = vpop.f32.mrb[0].mxu0
      %v3726 = vadd.f32 0.0, %v3725
      %v3727 = vpop.f32.mrb[0].mxu0
      %3728 = vmatprep.mubr.bf16.mxu0 0
      %3729 = vmatmul.mubr.bf16.gmra.mrb[0].mxu0 %v3553
      %v3730 = vpop.f32.mrb[0].mxu0
      %v3731 = vadd.f32 0.0, %v3730
      %v3732 = vpop.f32.mrb[0].mxu0
      %v3733 = vpop.f32.mrb[0].mxu0
      %v3734 = vadd.f32 0.0, %v3733
      %v3735 = vpop.f32.mrb[0].mxu0
      %3736 = vmatprep.mubr.bf16.mxu0 0
      %3737 = vmatmul.mubr.bf16.gmra.mrb[0].mxu0 %v3554
      %v3738 = vpop.f32.mrb[0].mxu0
      %v3739 = vadd.f32 0.0, %v3738
      %v3740 = vpop.f32.mrb[0].mxu0
      %v3741 = vpop.f32.mrb[0].mxu0
      %v3742 = vadd.f32 0.0, %v3741
      %v3743 = vpop.f32.mrb[0].mxu0
      %3744 = vmatprep.mubr.bf16.mxu0 0
      %3745 = vmatmul.mubr.bf16.gmra.mrb[0].mxu0 %v3555
      %v3746 = vpop.f32.mrb[0].mxu0
      %v3747 = vadd.f32 0.0, %v3746
      %v3748 = vpop.f32.mrb[0].mxu0
      %v3749 = vpop.f32.mrb[0].mxu0
      %v3750 = vadd.f32 0.0, %v3749
      %v3751 = vpop.f32.mrb[0].mxu0
      %3752 = vmatprep.mubr.bf16.mxu0 0
      %3753 = vmatmul.mubr.bf16.gmra.mrb[0].mxu0 %v3556
      %v3754 = vpop.f32.mrb[0].mxu0
      %v3755 = vadd.f32 0.0, %v3754
      %v3756 = vpop.f32.mrb[0].mxu0
      %v3757 = vpop.f32.mrb[0].mxu0
      %v3758 = vadd.f32 0.0, %v3757
      %v3759 = vpop.f32.mrb[0].mxu0
      %3760 = vmatprep.mubr.bf16.mxu0 0
      %3761 = vmatmul.mubr.bf16.gmra.mrb[0].mxu0 %v3557
      %v3762 = vpop.f32.mrb[0].mxu0
      %v3763 = vadd.f32 0.0, %v3762
      %v3764 = vpop.f32.mrb[0].mxu0
      %v3765 = vpop.f32.mrb[0].mxu0
      %v3766 = vadd.f32 0.0, %v3765
      %v3767 = vpop.f32.mrb[0].mxu0
      %3768 = vmatprep.mubr.bf16.mxu0 0
      %3769 = vmatmul.mubr.bf16.gmra.mrb[0].mxu0 %v3558
      %v3770 = vpop.f32.mrb[0].mxu0
      %v3771 = vadd.f32 0.0, %v3770
      %v3772 = vpop.f32.mrb[0].mxu0
      %v3773 = vpop.f32.mrb[0].mxu0
      %v3774 = vadd.f32 0.0, %v3773
      %v3775 = vpop.f32.mrb[0].mxu0
      %3776 = vmatprep.mubr.bf16.mxu0 0
      %3777 = vmatmul.mubr.bf16.gmra.mrb[0].mxu0 %v3559
      %v3778 = vpop.f32.mrb[0].mxu0
      %v3779 = vadd.f32 0.0, %v3778
      %v3780 = vpop.f32.mrb[0].mxu0
      %v3781 = vpop.f32.mrb[0].mxu0
      %v3782 = vadd.f32 0.0, %v3781
      %v3783 = vpop.f32.mrb[0].mxu0
      %3784 = vdwg.mxu0
      %v3785 = vld [vmem:[%s3] sm:$0x1]
      %v3787 = vlaneseq
      %v3788 = vshrl.u32 %v3787, 7
      %v3789 = vsub.s32 0, %v3788
      %v3790 = vrot.slane %v3785, %v3789
      %v3792 = vmul.f32 %v3659, %v3790
      %v3793 = vmul.f32 %v3662, %v3790
      %v3794 = vmul.f32 %v3667, %v3790
      %v3795 = vmul.f32 %v3670, %v3790
      %v3796 = vmul.f32 %v3675, %v3790
      %v3797 = vmul.f32 %v3678, %v3790
      %v3798 = vmul.f32 %v3683, %v3790
      %v3799 = vmul.f32 %v3686, %v3790
      %v3800 = vmul.f32 %v3691, %v3790
      %v3801 = vmul.f32 %v3694, %v3790
      %v3802 = vmul.f32 %v3699, %v3790
      %v3803 = vmul.f32 %v3702, %v3790
      %v3804 = vmul.f32 %v3707, %v3790
      %v3805 = vmul.f32 %v3710, %v3790
      %v3806 = vmul.f32 %v3715, %v3790
      %v3807 = vmul.f32 %v3718, %v3790
      %v3808 = vmul.f32 %v3723, %v3790
      %v3809 = vmul.f32 %v3726, %v3790
      %v3810 = vmul.f32 %v3731, %v3790
      %v3811 = vmul.f32 %v3734, %v3790
      %v3812 = vmul.f32 %v3739, %v3790
      %v3813 = vmul.f32 %v3742, %v3790
      %v3814 = vmul.f32 %v3747, %v3790
      %v3815 = vmul.f32 %v3750, %v3790
      %v3816 = vmul.f32 %v3755, %v3790
      %v3817 = vmul.f32 %v3758, %v3790
      %v3818 = vmul.f32 %v3763, %v3790
      %v3819 = vmul.f32 %v3766, %v3790
      %v3820 = vmul.f32 %v3771, %v3790
      %v3821 = vmul.f32 %v3774, %v3790
      %v3822 = vmul.f32 %v3779, %v3790
      %v3823 = vmul.f32 %v3782, %v3790
      %v3824 = vld [vmem:[%s4] sm:$0x1]
      %v3826 = vlaneseq
      %v3827 = vshrl.u32 %v3826, 7
      %v3828 = vsub.s32 0, %v3827
      %v3829 = vrot.slane %v3824, %v3828
      %v3831 = vadd.f32 %v3792, %v3829
      %v3832 = vadd.f32 %v3793, %v3829
      %v3833 = vadd.f32 %v3794, %v3829
      %v3834 = vadd.f32 %v3795, %v3829
      %v3835 = vadd.f32 %v3796, %v3829
      %v3836 = vadd.f32 %v3797, %v3829
      %v3837 = vadd.f32 %v3798, %v3829
      %v3838 = vadd.f32 %v3799, %v3829
      %v3839 = vadd.f32 %v3800, %v3829
      %v3840 = vadd.f32 %v3801, %v3829
      %v3841 = vadd.f32 %v3802, %v3829
      %v3842 = vadd.f32 %v3803, %v3829
      %v3843 = vadd.f32 %v3804, %v3829
      %v3844 = vadd.f32 %v3805, %v3829
      %v3845 = vadd.f32 %v3806, %v3829
      %v3846 = vadd.f32 %v3807, %v3829
      %v3847 = vadd.f32 %v3808, %v3829
      %v3848 = vadd.f32 %v3809, %v3829
      %v3849 = vadd.f32 %v3810, %v3829
      %v3850 = vadd.f32 %v3811, %v3829
      %v3851 = vadd.f32 %v3812, %v3829
      %v3852 = vadd.f32 %v3813, %v3829
      %v3853 = vadd.f32 %v3814, %v3829
      %v3854 = vadd.f32 %v3815, %v3829
      %v3855 = vadd.f32 %v3816, %v3829
      %v3856 = vadd.f32 %v3817, %v3829
      %v3857 = vadd.f32 %v3818, %v3829
      %v3858 = vadd.f32 %v3819, %v3829
      %v3859 = vadd.f32 %v3820, %v3829
      %v3860 = vadd.f32 %v3821, %v3829
      %v3861 = vadd.f32 %v3822, %v3829
      %v3862 = vadd.f32 %v3823, %v3829
      %v3863 = vmax.f32 %v3831, 0.0
      %v3864 = vmax.f32 %v3832, 0.0
      %v3865 = vmax.f32 %v3833, 0.0
      %v3866 = vmax.f32 %v3834, 0.0
      %v3867 = vmax.f32 %v3835, 0.0
      %v3868 = vmax.f32 %v3836, 0.0
      %v3869 = vmax.f32 %v3837, 0.0
      %v3870 = vmax.f32 %v3838, 0.0
      %v3871 = vmax.f32 %v3839, 0.0
      %v3872 = vmax.f32 %v3840, 0.0
      %v3873 = vmax.f32 %v3841, 0.0
      %v3874 = vmax.f32 %v3842, 0.0
      %v3875 = vmax.f32 %v3843, 0.0
      %v3876 = vmax.f32 %v3844, 0.0
      %v3877 = vmax.f32 %v3845, 0.0
      %v3878 = vmax.f32 %v3846, 0.0
      %v3879 = vmax.f32 %v3847, 0.0
      %v3880 = vmax.f32 %v3848, 0.0
      %v3881 = vmax.f32 %v3849, 0.0
      %v3882 = vmax.f32 %v3850, 0.0
      %v3883 = vmax.f32 %v3851, 0.0
      %v3884 = vmax.f32 %v3852, 0.0
      %v3885 = vmax.f32 %v3853, 0.0
      %v3886 = vmax.f32 %v3854, 0.0
      %v3887 = vmax.f32 %v3855, 0.0
      %v3888 = vmax.f32 %v3856, 0.0
      %v3889 = vmax.f32 %v3857, 0.0
      %v3890 = vmax.f32 %v3858, 0.0
      %v3891 = vmax.f32 %v3859, 0.0
      %v3892 = vmax.f32 %v3860, 0.0
      %v3893 = vmax.f32 %v3861, 0.0
      %v3894 = vmax.f32 %v3862, 0.0
      %v3895 = vpack.c.bf16 %v3864, %v3863
      %v3896 = vpack.c.bf16 %v3866, %v3865
      %v3897 = vpack.c.bf16 %v3868, %v3867
      %v3898 = vpack.c.bf16 %v3870, %v3869
      %v3899 = vpack.c.bf16 %v3872, %v3871
      %v3900 = vpack.c.bf16 %v3874, %v3873
      %v3901 = vpack.c.bf16 %v3876, %v3875
      %v3902 = vpack.c.bf16 %v3878, %v3877
      %v3903 = vpack.c.bf16 %v3880, %v3879
      %v3904 = vpack.c.bf16 %v3882, %v3881
      %v3905 = vpack.c.bf16 %v3884, %v3883
      %v3906 = vpack.c.bf16 %v3886, %v3885
      %v3907 = vpack.c.bf16 %v3888, %v3887
      %v3908 = vpack.c.bf16 %v3890, %v3889
      %v3909 = vpack.c.bf16 %v3892, %v3891
      %v3910 = vpack.c.bf16 %v3894, %v3893
      %v3927 = vunpack.c.l.b16 %v3895
      %v3928 = vunpack.c.h.b16 %v3895
      %v3929 = vunpack.c.l.b16 %v3896
      %v3930 = vunpack.c.h.b16 %v3896
      %v3931 = vunpack.c.l.b16 %v3897
      %v3932 = vunpack.c.h.b16 %v3897
      %v3933 = vunpack.c.l.b16 %v3898
      %v3934 = vunpack.c.h.b16 %v3898
      %v3935 = vunpack.c.l.b16 %v3899
      %v3936 = vunpack.c.h.b16 %v3899
      %v3937 = vunpack.c.l.b16 %v3900
      %v3938 = vunpack.c.h.b16 %v3900
      %v3939 = vunpack.c.l.b16 %v3901
      %v3940 = vunpack.c.h.b16 %v3901
      %v3941 = vunpack.c.l.b16 %v3902
      %v3942 = vunpack.c.h.b16 %v3902
      %v3943 = vunpack.c.l.b16 %v3903
      %v3944 = vunpack.c.h.b16 %v3903
      %v3945 = vunpack.c.l.b16 %v3904
      %v3946 = vunpack.c.h.b16 %v3904
      %v3947 = vunpack.c.l.b16 %v3905
      %v3948 = vunpack.c.h.b16 %v3905
      %v3949 = vunpack.c.l.b16 %v3906
      %v3950 = vunpack.c.h.b16 %v3906
      %v3951 = vunpack.c.l.b16 %v3907
      %v3952 = vunpack.c.h.b16 %v3907
      %v3953 = vunpack.c.l.b16 %v3908
      %v3954 = vunpack.c.h.b16 %v3908
      %v3955 = vunpack.c.l.b16 %v3909
      %v3956 = vunpack.c.h.b16 %v3909
      %v3957 = vunpack.c.l.b16 %v3910
      %v3958 = vunpack.c.h.b16 %v3910
      %v3959 = vpack.c.b16 %v3927, %v3927
      %v3960 = vpack.c.b16 %v3928, %v3928
      %v3961 = vpack.c.b16 %v3929, %v3929
      %v3962 = vpack.c.b16 %v3930, %v3930
      %v3963 = vpack.c.b16 %v3931, %v3931
      %v3964 = vpack.c.b16 %v3932, %v3932
      %v3965 = vpack.c.b16 %v3933, %v3933
      %v3966 = vpack.c.b16 %v3934, %v3934
      %v3967 = vpack.c.b16 %v3935, %v3935
      %v3968 = vpack.c.b16 %v3936, %v3936
      %v3969 = vpack.c.b16 %v3937, %v3937
      %v3970 = vpack.c.b16 %v3938, %v3938
      %v3971 = vpack.c.b16 %v3939, %v3939
      %v3972 = vpack.c.b16 %v3940, %v3940
      %v3973 = vpack.c.b16 %v3941, %v3941
      %v3974 = vpack.c.b16 %v3942, %v3942
      %v3975 = vpack.c.b16 %v3943, %v3943
      %v3976 = vpack.c.b16 %v3944, %v3944
      %v3977 = vpack.c.b16 %v3945, %v3945
      %v3978 = vpack.c.b16 %v3946, %v3946
      %v3979 = vpack.c.b16 %v3947, %v3947
      %v3980 = vpack.c.b16 %v3948, %v3948
      %v3981 = vpack.c.b16 %v3949, %v3949
      %v3982 = vpack.c.b16 %v3950, %v3950
      %v3983 = vpack.c.b16 %v3951, %v3951
      %v3984 = vpack.c.b16 %v3952, %v3952
      %v3985 = vpack.c.b16 %v3953, %v3953
      %v3986 = vpack.c.b16 %v3954, %v3954
      %v3987 = vpack.c.b16 %v3955, %v3955
      %v3988 = vpack.c.b16 %v3956, %v3956
      %v3989 = vpack.c.b16 %v3957, %v3957
      %v3990 = vpack.c.b16 %v3958, %v3958
      %v3992 = vshrl.u32 %v3959, 16
      %v3994 = vrot.slane %v3992, 7
      %v3995 = vshll.u32 %v3959, 16
      %v3997 = vor.u32 %v3994, %v3995
      %v3998 = vrot.slane %v3994, 4
      %v4000 = vshrl.u32 %v3960, 16
      %v4002 = vrot.slane %v4000, 7
      %v4003 = vshll.u32 %v3960, 16
      %v4005 = vor.u32 %v4002, %v4003
      %v4006 = vsel %vm438, %v3998, %v4005
      %v4007 = vrot.slane %v4002, 4
      %v4009 = vshrl.u32 %v3961, 16
      %v4011 = vrot.slane %v4009, 7
      %v4012 = vshll.u32 %v3961, 16
      %v4014 = vor.u32 %v4011, %v4012
      %v4015 = vrot.slane %v4011, 4
      %v4017 = vshrl.u32 %v3962, 16
      %v4019 = vrot.slane %v4017, 7
      %v4020 = vshll.u32 %v3962, 16
      %v4022 = vor.u32 %v4019, %v4020
      %v4023 = vsel %vm438, %v4015, %v4022
      %v4024 = vrot.slane %v4019, 4
      %v4026 = vshrl.u32 %v3963, 16
      %v4028 = vrot.slane %v4026, 7
      %v4029 = vshll.u32 %v3963, 16
      %v4031 = vor.u32 %v4028, %v4029
      %v4032 = vrot.slane %v4028, 4
      %v4034 = vshrl.u32 %v3964, 16
      %v4036 = vrot.slane %v4034, 7
      %v4037 = vshll.u32 %v3964, 16
      %v4039 = vor.u32 %v4036, %v4037
      %v4040 = vsel %vm438, %v4032, %v4039
      %v4041 = vrot.slane %v4036, 4
      %v4043 = vshrl.u32 %v3965, 16
      %v4045 = vrot.slane %v4043, 7
      %v4046 = vshll.u32 %v3965, 16
      %v4048 = vor.u32 %v4045, %v4046
      %v4049 = vrot.slane %v4045, 4
      %v4051 = vshrl.u32 %v3966, 16
      %v4053 = vrot.slane %v4051, 7
      %v4054 = vshll.u32 %v3966, 16
      %v4056 = vor.u32 %v4053, %v4054
      %v4057 = vsel %vm438, %v4049, %v4056
      %v4058 = vrot.slane %v4053, 4
      %v4060 = vshrl.u32 %v3967, 16
      %v4062 = vrot.slane %v4060, 7
      %v4063 = vshll.u32 %v3967, 16
      %v4065 = vor.u32 %v4062, %v4063
      %v4066 = vrot.slane %v4062, 4
      %v4068 = vshrl.u32 %v3968, 16
      %v4070 = vrot.slane %v4068, 7
      %v4071 = vshll.u32 %v3968, 16
      %v4073 = vor.u32 %v4070, %v4071
      %v4074 = vsel %vm438, %v4066, %v4073
      %v4075 = vrot.slane %v4070, 4
      %v4077 = vshrl.u32 %v3969, 16
      %v4079 = vrot.slane %v4077, 7
      %v4080 = vshll.u32 %v3969, 16
      %v4082 = vor.u32 %v4079, %v4080
      %v4083 = vrot.slane %v4079, 4
      %v4085 = vshrl.u32 %v3970, 16
      %v4087 = vrot.slane %v4085, 7
      %v4088 = vshll.u32 %v3970, 16
      %v4090 = vor.u32 %v4087, %v4088
      %v4091 = vsel %vm438, %v4083, %v4090
      %v4092 = vrot.slane %v4087, 4
      %v4094 = vshrl.u32 %v3971, 16
      %v4096 = vrot.slane %v4094, 7
      %v4097 = vshll.u32 %v3971, 16
      %v4099 = vor.u32 %v4096, %v4097
      %v4100 = vrot.slane %v4096, 4
      %v4102 = vshrl.u32 %v3972, 16
      %v4104 = vrot.slane %v4102, 7
      %v4105 = vshll.u32 %v3972, 16
      %v4107 = vor.u32 %v4104, %v4105
      %v4108 = vsel %vm438, %v4100, %v4107
      %v4109 = vrot.slane %v4104, 4
      %v4111 = vshrl.u32 %v3973, 16
      %v4113 = vrot.slane %v4111, 7
      %v4114 = vshll.u32 %v3973, 16
      %v4116 = vor.u32 %v4113, %v4114
      %v4117 = vrot.slane %v4113, 4
      %v4119 = vshrl.u32 %v3974, 16
      %v4121 = vrot.slane %v4119, 7
      %v4122 = vshll.u32 %v3974, 16
      %v4124 = vor.u32 %v4121, %v4122
      %v4125 = vsel %vm438, %v4117, %v4124
      %v4126 = vrot.slane %v4121, 4
      %v4128 = vshrl.u32 %v3975, 16
      %v4130 = vrot.slane %v4128, 7
      %v4131 = vshll.u32 %v3975, 16
      %v4133 = vor.u32 %v4130, %v4131
      %v4134 = vrot.slane %v4130, 4
      %v4136 = vshrl.u32 %v3976, 16
      %v4138 = vrot.slane %v4136, 7
      %v4139 = vshll.u32 %v3976, 16
      %v4141 = vor.u32 %v4138, %v4139
      %v4142 = vsel %vm438, %v4134, %v4141
      %v4143 = vrot.slane %v4138, 4
      %v4145 = vshrl.u32 %v3977, 16
      %v4147 = vrot.slane %v4145, 7
      %v4148 = vshll.u32 %v3977, 16
      %v4150 = vor.u32 %v4147, %v4148
      %v4151 = vrot.slane %v4147, 4
      %v4153 = vshrl.u32 %v3978, 16
      %v4155 = vrot.slane %v4153, 7
      %v4156 = vshll.u32 %v3978, 16
      %v4158 = vor.u32 %v4155, %v4156
      %v4159 = vsel %vm438, %v4151, %v4158
      %v4160 = vrot.slane %v4155, 4
      %v4162 = vshrl.u32 %v3979, 16
      %v4164 = vrot.slane %v4162, 7
      %v4165 = vshll.u32 %v3979, 16
      %v4167 = vor.u32 %v4164, %v4165
      %v4168 = vrot.slane %v4164, 4
      %v4170 = vshrl.u32 %v3980, 16
      %v4172 = vrot.slane %v4170, 7
      %v4173 = vshll.u32 %v3980, 16
      %v4175 = vor.u32 %v4172, %v4173
      %v4176 = vsel %vm438, %v4168, %v4175
      %v4177 = vrot.slane %v4172, 4
      %v4179 = vshrl.u32 %v3981, 16
      %v4181 = vrot.slane %v4179, 7
      %v4182 = vshll.u32 %v3981, 16
      %v4184 = vor.u32 %v4181, %v4182
      %v4185 = vrot.slane %v4181, 4
      %v4187 = vshrl.u32 %v3982, 16
      %v4189 = vrot.slane %v4187, 7
      %v4190 = vshll.u32 %v3982, 16
      %v4192 = vor.u32 %v4189, %v4190
      %v4193 = vsel %vm438, %v4185, %v4192
      %v4194 = vrot.slane %v4189, 4
      %v4196 = vshrl.u32 %v3983, 16
      %v4198 = vrot.slane %v4196, 7
      %v4199 = vshll.u32 %v3983, 16
      %v4201 = vor.u32 %v4198, %v4199
      %v4202 = vrot.slane %v4198, 4
      %v4204 = vshrl.u32 %v3984, 16
      %v4206 = vrot.slane %v4204, 7
      %v4207 = vshll.u32 %v3984, 16
      %v4209 = vor.u32 %v4206, %v4207
      %v4210 = vsel %vm438, %v4202, %v4209
      %v4211 = vrot.slane %v4206, 4
      %v4213 = vshrl.u32 %v3985, 16
      %v4215 = vrot.slane %v4213, 7
      %v4216 = vshll.u32 %v3985, 16
      %v4218 = vor.u32 %v4215, %v4216
      %v4219 = vrot.slane %v4215, 4
      %v4221 = vshrl.u32 %v3986, 16
      %v4223 = vrot.slane %v4221, 7
      %v4224 = vshll.u32 %v3986, 16
      %v4226 = vor.u32 %v4223, %v4224
      %v4227 = vsel %vm438, %v4219, %v4226
      %v4228 = vrot.slane %v4223, 4
      %v4230 = vshrl.u32 %v3987, 16
      %v4232 = vrot.slane %v4230, 7
      %v4233 = vshll.u32 %v3987, 16
      %v4235 = vor.u32 %v4232, %v4233
      %v4236 = vrot.slane %v4232, 4
      %v4238 = vshrl.u32 %v3988, 16
      %v4240 = vrot.slane %v4238, 7
      %v4241 = vshll.u32 %v3988, 16
      %v4243 = vor.u32 %v4240, %v4241
      %v4244 = vsel %vm438, %v4236, %v4243
      %v4245 = vrot.slane %v4240, 4
      %v4247 = vshrl.u32 %v3989, 16
      %v4249 = vrot.slane %v4247, 7
      %v4250 = vshll.u32 %v3989, 16
      %v4252 = vor.u32 %v4249, %v4250
      %v4253 = vrot.slane %v4249, 4
      %v4255 = vshrl.u32 %v3990, 16
      %v4257 = vrot.slane %v4255, 7
      %v4258 = vshll.u32 %v3990, 16
      %v4260 = vor.u32 %v4257, %v4258
      %v4261 = vsel %vm438, %v4253, %v4260
      %v4262 = vrot.slane %v4257, 4
      %vm4311 = vcmask 1043456
      %vm4312 = vmand %vm4311, %vm339
      %v4313 = vld [vmem:[%s287] sm:$0xf]
      %v4314 = vsel %vm4312, %v3997, %v4313
      %4315 = vst [vmem:[%s287] sm:$0xf] %v4314
      %4316 = vst [vmem:[%s287 + $0x4] sm:$0xf] %v4006
      %v4317 = vld [vmem:[%s287 + $0x8] sm:$0x1]
      %v4318 = vsel %vm290, %v4007, %v4317
      %4319 = vst [vmem:[%s287 + $0x8] sm:$0x1] %v4318
      %v4320 = vld [vmem:[%s287 + $0xc] sm:$0xf]
      %v4321 = vsel %vm4312, %v4014, %v4320
      %4322 = vst [vmem:[%s287 + $0xc] sm:$0xf] %v4321
      %4323 = vst [vmem:[%s287 + $0x10] sm:$0xf] %v4023
      %v4324 = vld [vmem:[%s287 + $0x14] sm:$0x1]
      %v4325 = vsel %vm290, %v4024, %v4324
      %4326 = vst [vmem:[%s287 + $0x14] sm:$0x1] %v4325
      %v4327 = vld [vmem:[%s287 + $0x18] sm:$0xf]
      %v4328 = vsel %vm4312, %v4031, %v4327
      %4329 = vst [vmem:[%s287 + $0x18] sm:$0xf] %v4328
      %4330 = vst [vmem:[%s287 + $0x1c] sm:$0xf] %v4040
      %v4331 = vld [vmem:[%s287 + $0x20] sm:$0x1]
      %v4332 = vsel %vm290, %v4041, %v4331
      %4333 = vst [vmem:[%s287 + $0x20] sm:$0x1] %v4332
      %v4334 = vld [vmem:[%s287 + $0x24] sm:$0xf]
      %v4335 = vsel %vm4312, %v4048, %v4334
      %4336 = vst [vmem:[%s287 + $0x24] sm:$0xf] %v4335
      %4337 = vst [vmem:[%s287 + $0x28] sm:$0xf] %v4057
      %v4338 = vld [vmem:[%s287 + $0x2c] sm:$0x1]
      %v4339 = vsel %vm290, %v4058, %v4338
      %4340 = vst [vmem:[%s287 + $0x2c] sm:$0x1] %v4339
      %v4341 = vld [vmem:[%s287 + $0x30] sm:$0xf]
      %v4342 = vsel %vm4312, %v4065, %v4341
      %4343 = vst [vmem:[%s287 + $0x30] sm:$0xf] %v4342
      %4344 = vst [vmem:[%s287 + $0x34] sm:$0xf] %v4074
      %v4345 = vld [vmem:[%s287 + $0x38] sm:$0x1]
      %v4346 = vsel %vm290, %v4075, %v4345
      %4347 = vst [vmem:[%s287 + $0x38] sm:$0x1] %v4346
      %v4348 = vld [vmem:[%s287 + $0x3c] sm:$0xf]
      %v4349 = vsel %vm4312, %v4082, %v4348
      %4350 = vst [vmem:[%s287 + $0x3c] sm:$0xf] %v4349
      %4351 = vst [vmem:[%s287 + $0x40] sm:$0xf] %v4091
      %v4352 = vld [vmem:[%s287 + $0x44] sm:$0x1]
      %v4353 = vsel %vm290, %v4092, %v4352
      %4354 = vst [vmem:[%s287 + $0x44] sm:$0x1] %v4353
      %v4355 = vld [vmem:[%s287 + $0x48] sm:$0xf]
      %v4356 = vsel %vm4312, %v4099, %v4355
      %4357 = vst [vmem:[%s287 + $0x48] sm:$0xf] %v4356
      %4358 = vst [vmem:[%s287 + $0x4c] sm:$0xf] %v4108
      %v4359 = vld [vmem:[%s287 + $0x50] sm:$0x1]
      %v4360 = vsel %vm290, %v4109, %v4359
      %4361 = vst [vmem:[%s287 + $0x50] sm:$0x1] %v4360
      %v4362 = vld [vmem:[%s287 + $0x54] sm:$0xf]
      %v4363 = vsel %vm4312, %v4116, %v4362
      %4364 = vst [vmem:[%s287 + $0x54] sm:$0xf] %v4363
      %4365 = vst [vmem:[%s287 + $0x58] sm:$0xf] %v4125
      %v4366 = vld [vmem:[%s287 + $0x5c] sm:$0x1]
      %v4367 = vsel %vm290, %v4126, %v4366
      %4368 = vst [vmem:[%s287 + $0x5c] sm:$0x1] %v4367
      %v4369 = vld [vmem:[%s287 + $0x60] sm:$0xf]
      %v4370 = vsel %vm4312, %v4133, %v4369
      %4371 = vst [vmem:[%s287 + $0x60] sm:$0xf] %v4370
      %4372 = vst [vmem:[%s287 + $0x64] sm:$0xf] %v4142
      %v4373 = vld [vmem:[%s287 + $0x68] sm:$0x1]
      %v4374 = vsel %vm290, %v4143, %v4373
      %4375 = vst [vmem:[%s287 + $0x68] sm:$0x1] %v4374
      %v4376 = vld [vmem:[%s287 + $0x6c] sm:$0xf]
      %v4377 = vsel %vm4312, %v4150, %v4376
      %4378 = vst [vmem:[%s287 + $0x6c] sm:$0xf] %v4377
      %4379 = vst [vmem:[%s287 + $0x70] sm:$0xf] %v4159
      %v4380 = vld [vmem:[%s287 + $0x74] sm:$0x1]
      %v4381 = vsel %vm290, %v4160, %v4380
      %4382 = vst [vmem:[%s287 + $0x74] sm:$0x1] %v4381
      %v4383 = vld [vmem:[%s287 + $0x78] sm:$0xf]
      %v4384 = vsel %vm4312, %v4167, %v4383
      %4385 = vst [vmem:[%s287 + $0x78] sm:$0xf] %v4384
      %4386 = vst [vmem:[%s287 + $0x7c] sm:$0xf] %v4176
      %v4387 = vld [vmem:[%s287 + $0x80] sm:$0x1]
      %v4388 = vsel %vm290, %v4177, %v4387
      %4389 = vst [vmem:[%s287 + $0x80] sm:$0x1] %v4388
      %v4390 = vld [vmem:[%s287 + $0x84] sm:$0xf]
      %v4391 = vsel %vm4312, %v4184, %v4390
      %4392 = vst [vmem:[%s287 + $0x84] sm:$0xf] %v4391
      %4393 = vst [vmem:[%s287 + $0x88] sm:$0xf] %v4193
      %v4394 = vld [vmem:[%s287 + $0x8c] sm:$0x1]
      %v4395 = vsel %vm290, %v4194, %v4394
      %4396 = vst [vmem:[%s287 + $0x8c] sm:$0x1] %v4395
      %v4397 = vld [vmem:[%s287 + $0x90] sm:$0xf]
      %v4398 = vsel %vm4312, %v4201, %v4397
      %4399 = vst [vmem:[%s287 + $0x90] sm:$0xf] %v4398
      %4400 = vst [vmem:[%s287 + $0x94] sm:$0xf] %v4210
      %v4401 = vld [vmem:[%s287 + $0x98] sm:$0x1]
      %v4402 = vsel %vm290, %v4211, %v4401
      %4403 = vst [vmem:[%s287 + $0x98] sm:$0x1] %v4402
      %v4404 = vld [vmem:[%s287 + $0x9c] sm:$0xf]
      %v4405 = vsel %vm4312, %v4218, %v4404
      %4406 = vst [vmem:[%s287 + $0x9c] sm:$0xf] %v4405
      %4407 = vst [vmem:[%s287 + $0xa0] sm:$0xf] %v4227
      %v4408 = vld [vmem:[%s287 + $0xa4] sm:$0x1]
      %v4409 = vsel %vm290, %v4228, %v4408
      %4410 = vst [vmem:[%s287 + $0xa4] sm:$0x1] %v4409
      %v4411 = vld [vmem:[%s287 + $0xa8] sm:$0xf]
      %v4412 = vsel %vm4312, %v4235, %v4411
      %4413 = vst [vmem:[%s287 + $0xa8] sm:$0xf] %v4412
      %4414 = vst [vmem:[%s287 + $0xac] sm:$0xf] %v4244
      %v4415 = vld [vmem:[%s287 + $0xb0] sm:$0x1]
      %v4416 = vsel %vm290, %v4245, %v4415
      %4417 = vst [vmem:[%s287 + $0xb0] sm:$0x1] %v4416
      %v4418 = vld [vmem:[%s287 + $0xb4] sm:$0xf]
      %v4419 = vsel %vm4312, %v4252, %v4418
      %4420 = vst [vmem:[%s287 + $0xb4] sm:$0xf] %v4419
      %4421 = vst [vmem:[%s287 + $0xb8] sm:$0xf] %v4261
      %v4422 = vld [vmem:[%s287 + $0xbc] sm:$0x1]
      %v4423 = vsel %vm290, %v4262, %v4422
      %4424 = vst [vmem:[%s287 + $0xbc] sm:$0x1] %v4423
      %v4425 = vld [vmem:[#allocation2] sm:$0xf]
      %v4426 = vld [vmem:[#allocation2 + $0x4] sm:$0xf]
      %v4427 = vld [vmem:[#allocation2 + $0xc] sm:$0xf]
      %v4428 = vld [vmem:[#allocation2 + $0x10] sm:$0xf]
      %v4429 = vld [vmem:[#allocation2 + $0x18] sm:$0xf]
      %v4430 = vld [vmem:[#allocation2 + $0x1c] sm:$0xf]
      %v4431 = vld [vmem:[#allocation2 + $0x24] sm:$0xf]
      %v4432 = vld [vmem:[#allocation2 + $0x28] sm:$0xf]
      %v4433 = vld [vmem:[#allocation2 + $0x30] sm:$0xf]
      %v4434 = vld [vmem:[#allocation2 + $0x34] sm:$0xf]
      %v4435 = vld [vmem:[#allocation2 + $0x3c] sm:$0xf]
      %v4436 = vld [vmem:[#allocation2 + $0x40] sm:$0xf]
      %v4437 = vld [vmem:[#allocation2 + $0x48] sm:$0xf]
      %v4438 = vld [vmem:[#allocation2 + $0x4c] sm:$0xf]
      %v4439 = vld [vmem:[#allocation2 + $0x54] sm:$0xf]
      %v4440 = vld [vmem:[#allocation2 + $0x58] sm:$0xf]
      %v4441 = vld [vmem:[#allocation2 + $0x60] sm:$0xf]
      %v4442 = vld [vmem:[#allocation2 + $0x64] sm:$0xf]
      %v4443 = vld [vmem:[#allocation2 + $0x6c] sm:$0xf]
      %v4444 = vld [vmem:[#allocation2 + $0x70] sm:$0xf]
      %v4445 = vld [vmem:[#allocation2 + $0x78] sm:$0xf]
      %v4446 = vld [vmem:[#allocation2 + $0x7c] sm:$0xf]
      %v4447 = vld [vmem:[#allocation2 + $0x84] sm:$0xf]
      %v4448 = vld [vmem:[#allocation2 + $0x88] sm:$0xf]
      %v4449 = vld [vmem:[#allocation2 + $0x90] sm:$0xf]
      %v4450 = vld [vmem:[#allocation2 + $0x94] sm:$0xf]
      %v4451 = vld [vmem:[#allocation2 + $0x9c] sm:$0xf]
      %v4452 = vld [vmem:[#allocation2 + $0xa0] sm:$0xf]
      %v4453 = vld [vmem:[#allocation2 + $0xa8] sm:$0xf]
      %v4454 = vld [vmem:[#allocation2 + $0xac] sm:$0xf]
      %v4455 = vld [vmem:[#allocation2 + $0xb4] sm:$0xf]
      %v4456 = vld [vmem:[#allocation2 + $0xb8] sm:$0xf]
      %v4489 = vunpack.c.l.b16 %v4425
      %v4490 = vunpack.c.l.b16 %v4426
      %v4491 = vunpack.c.l.b16 %v4427
      %v4492 = vunpack.c.l.b16 %v4428
      %v4493 = vunpack.c.l.b16 %v4429
      %v4494 = vunpack.c.l.b16 %v4430
      %v4495 = vunpack.c.l.b16 %v4431
      %v4496 = vunpack.c.l.b16 %v4432
      %v4497 = vunpack.c.l.b16 %v4433
      %v4498 = vunpack.c.l.b16 %v4434
      %v4499 = vunpack.c.l.b16 %v4435
      %v4500 = vunpack.c.l.b16 %v4436
      %v4501 = vunpack.c.l.b16 %v4437
      %v4502 = vunpack.c.l.b16 %v4438
      %v4503 = vunpack.c.l.b16 %v4439
      %v4504 = vunpack.c.l.b16 %v4440
      %v4505 = vunpack.c.l.b16 %v4441
      %v4506 = vunpack.c.l.b16 %v4442
      %v4507 = vunpack.c.l.b16 %v4443
      %v4508 = vunpack.c.l.b16 %v4444
      %v4509 = vunpack.c.l.b16 %v4445
      %v4510 = vunpack.c.l.b16 %v4446
      %v4511 = vunpack.c.l.b16 %v4447
      %v4512 = vunpack.c.l.b16 %v4448
      %v4513 = vunpack.c.l.b16 %v4449
      %v4514 = vunpack.c.l.b16 %v4450
      %v4515 = vunpack.c.l.b16 %v4451
      %v4516 = vunpack.c.l.b16 %v4452
      %v4517 = vunpack.c.l.b16 %v4453
      %v4518 = vunpack.c.l.b16 %v4454
      %v4519 = vunpack.c.l.b16 %v4455
      %v4520 = vunpack.c.l.b16 %v4456
      %v4521 = vpack.c.b16 %v4490, %v4489
      %v4522 = vpack.c.b16 %v4492, %v4491
      %v4523 = vpack.c.b16 %v4494, %v4493
      %v4524 = vpack.c.b16 %v4496, %v4495
      %v4525 = vpack.c.b16 %v4498, %v4497
      %v4526 = vpack.c.b16 %v4500, %v4499
      %v4527 = vpack.c.b16 %v4502, %v4501
      %v4528 = vpack.c.b16 %v4504, %v4503
      %v4529 = vpack.c.b16 %v4506, %v4505
      %v4530 = vpack.c.b16 %v4508, %v4507
      %v4531 = vpack.c.b16 %v4510, %v4509
      %v4532 = vpack.c.b16 %v4512, %v4511
      %v4533 = vpack.c.b16 %v4514, %v4513
      %v4534 = vpack.c.b16 %v4516, %v4515
      %v4535 = vpack.c.b16 %v4518, %v4517
      %v4536 = vpack.c.b16 %v4520, %v4519
      %vm4553 = vcmask 64512
      %4554 = vst.msk [vmem:[#allocation3] sm:$0xff] %vm4553, %v4521
      %4555 = vst.msk [vmem:[#allocation3 + $0x8] sm:$0xff] %vm4553, %v4522
      %4556 = vst.msk [vmem:[#allocation3 + $0x10] sm:$0xff] %vm4553, %v4523
      %4557 = vst.msk [vmem:[#allocation3 + $0x18] sm:$0xff] %vm4553, %v4524
      %4558 = vst.msk [vmem:[#allocation3 + $0x20] sm:$0xff] %vm4553, %v4525
      %4559 = vst.msk [vmem:[#allocation3 + $0x28] sm:$0xff] %vm4553, %v4526
      %4560 = vst.msk [vmem:[#allocation3 + $0x30] sm:$0xff] %vm4553, %v4527
      %4561 = vst.msk [vmem:[#allocation3 + $0x38] sm:$0xff] %vm4553, %v4528
      %4562 = vst.msk [vmem:[#allocation3 + $0x40] sm:$0xff] %vm4553, %v4529
      %4563 = vst.msk [vmem:[#allocation3 + $0x48] sm:$0xff] %vm4553, %v4530
      %4564 = vst.msk [vmem:[#allocation3 + $0x50] sm:$0xff] %vm4553, %v4531
      %4565 = vst.msk [vmem:[#allocation3 + $0x58] sm:$0xff] %vm4553, %v4532
      %4566 = vst.msk [vmem:[#allocation3 + $0x60] sm:$0xff] %vm4553, %v4533
      %4567 = vst.msk [vmem:[#allocation3 + $0x68] sm:$0xff] %vm4553, %v4534
      %4568 = vst.msk [vmem:[#allocation3 + $0x70] sm:$0xff] %vm4553, %v4535
      %4569 = vst.msk [vmem:[#allocation3 + $0x78] sm:$0xff] %vm4553, %v4536
      %v4570 = vld [vmem:[#allocation2] sm:$0xf]
      %v4571 = vld [vmem:[#allocation2 + $0x4] sm:$0xf]
      %v4572 = vld [vmem:[#allocation2 + $0x8] sm:$0x1]
      %v4573 = vld [vmem:[#allocation2 + $0xc] sm:$0xf]
      %v4574 = vld [vmem:[#allocation2 + $0x10] sm:$0xf]
      %v4575 = vld [vmem:[#allocation2 + $0x14] sm:$0x1]
      %v4576 = vld [vmem:[#allocation2 + $0x18] sm:$0xf]
      %v4577 = vld [vmem:[#allocation2 + $0x1c] sm:$0xf]
      %v4578 = vld [vmem:[#allocation2 + $0x20] sm:$0x1]
      %v4579 = vld [vmem:[#allocation2 + $0x24] sm:$0xf]
      %v4580 = vld [vmem:[#allocation2 + $0x28] sm:$0xf]
      %v4581 = vld [vmem:[#allocation2 + $0x2c] sm:$0x1]
      %v4582 = vld [vmem:[#allocation2 + $0x30] sm:$0xf]
      %v4583 = vld [vmem:[#allocation2 + $0x34] sm:$0xf]
      %v4584 = vld [vmem:[#allocation2 + $0x38] sm:$0x1]
      %v4585 = vld [vmem:[#allocation2 + $0x3c] sm:$0xf]
      %v4586 = vld [vmem:[#allocation2 + $0x40] sm:$0xf]
      %v4587 = vld [vmem:[#allocation2 + $0x44] sm:$0x1]
      %v4588 = vld [vmem:[#allocation2 + $0x48] sm:$0xf]
      %v4589 = vld [vmem:[#allocation2 + $0x4c] sm:$0xf]
      %v4590 = vld [vmem:[#allocation2 + $0x50] sm:$0x1]
      %v4591 = vld [vmem:[#allocation2 + $0x54] sm:$0xf]
      %v4592 = vld [vmem:[#allocation2 + $0x58] sm:$0xf]
      %v4593 = vld [vmem:[#allocation2 + $0x5c] sm:$0x1]
      %v4594 = vld [vmem:[#allocation2 + $0x60] sm:$0xf]
      %v4595 = vld [vmem:[#allocation2 + $0x64] sm:$0xf]
      %v4596 = vld [vmem:[#allocation2 + $0x68] sm:$0x1]
      %v4597 = vld [vmem:[#allocation2 + $0x6c] sm:$0xf]
      %v4598 = vld [vmem:[#allocation2 + $0x70] sm:$0xf]
      %v4599 = vld [vmem:[#allocation2 + $0x74] sm:$0x1]
      %v4600 = vld [vmem:[#allocation2 + $0x78] sm:$0xf]
      %v4601 = vld [vmem:[#allocation2 + $0x7c] sm:$0xf]
      %v4602 = vld [vmem:[#allocation2 + $0x80] sm:$0x1]
      %v4603 = vld [vmem:[#allocation2 + $0x84] sm:$0xf]
      %v4604 = vld [vmem:[#allocation2 + $0x88] sm:$0xf]
      %v4605 = vld [vmem:[#allocation2 + $0x8c] sm:$0x1]
      %v4606 = vld [vmem:[#allocation2 + $0x90] sm:$0xf]
      %v4607 = vld [vmem:[#allocation2 + $0x94] sm:$0xf]
      %v4608 = vld [vmem:[#allocation2 + $0x98] sm:$0x1]
      %v4609 = vld [vmem:[#allocation2 + $0x9c] sm:$0xf]
      %v4610 = vld [vmem:[#allocation2 + $0xa0] sm:$0xf]
      %v4611 = vld [vmem:[#allocation2 + $0xa4] sm:$0x1]
      %v4612 = vld [vmem:[#allocation2 + $0xa8] sm:$0xf]
      %v4613 = vld [vmem:[#allocation2 + $0xac] sm:$0xf]
      %v4614 = vld [vmem:[#allocation2 + $0xb0] sm:$0x1]
      %v4615 = vld [vmem:[#allocation2 + $0xb4] sm:$0xf]
      %v4616 = vld [vmem:[#allocation2 + $0xb8] sm:$0xf]
      %v4617 = vld [vmem:[#allocation2 + $0xbc] sm:$0x1]
      %v4666 = vunpack.c.l.b16 %v4570
      %v4667 = vunpack.c.l.b16 %v4571
      %v4668 = vunpack.c.l.b16 %v4572
      %v4669 = vunpack.c.l.b16 %v4573
      %v4670 = vunpack.c.l.b16 %v4574
      %v4671 = vunpack.c.l.b16 %v4575
      %v4672 = vunpack.c.l.b16 %v4576
      %v4673 = vunpack.c.l.b16 %v4577
      %v4674 = vunpack.c.l.b16 %v4578
      %v4675 = vunpack.c.l.b16 %v4579
      %v4676 = vunpack.c.l.b16 %v4580
      %v4677 = vunpack.c.l.b16 %v4581
      %v4678 = vunpack.c.l.b16 %v4582
      %v4679 = vunpack.c.l.b16 %v4583
      %v4680 = vunpack.c.l.b16 %v4584
      %v4681 = vunpack.c.l.b16 %v4585
      %v4682 = vunpack.c.l.b16 %v4586
      %v4683 = vunpack.c.l.b16 %v4587
      %v4684 = vunpack.c.l.b16 %v4588
      %v4685 = vunpack.c.l.b16 %v4589
      %v4686 = vunpack.c.l.b16 %v4590
      %v4687 = vunpack.c.l.b16 %v4591
      %v4688 = vunpack.c.l.b16 %v4592
      %v4689 = vunpack.c.l.b16 %v4593
      %v4690 = vunpack.c.l.b16 %v4594
      %v4691 = vunpack.c.l.b16 %v4595
      %v4692 = vunpack.c.l.b16 %v4596
      %v4693 = vunpack.c.l.b16 %v4597
      %v4694 = vunpack.c.l.b16 %v4598
      %v4695 = vunpack.c.l.b16 %v4599
      %v4696 = vunpack.c.l.b16 %v4600
      %v4697 = vunpack.c.l.b16 %v4601
      %v4698 = vunpack.c.l.b16 %v4602
      %v4699 = vunpack.c.l.b16 %v4603
      %v4700 = vunpack.c.l.b16 %v4604
      %v4701 = vunpack.c.l.b16 %v4605
      %v4702 = vunpack.c.l.b16 %v4606
      %v4703 = vunpack.c.l.b16 %v4607
      %v4704 = vunpack.c.l.b16 %v4608
      %v4705 = vunpack.c.l.b16 %v4609
      %v4706 = vunpack.c.l.b16 %v4610
      %v4707 = vunpack.c.l.b16 %v4611
      %v4708 = vunpack.c.l.b16 %v4612
      %v4709 = vunpack.c.l.b16 %v4613
      %v4710 = vunpack.c.l.b16 %v4614
      %v4711 = vunpack.c.l.b16 %v4615
      %v4712 = vunpack.c.l.b16 %v4616
      %v4713 = vunpack.c.l.b16 %v4617
      %v4714 = vpack.c.b16 %v4667, %v4666
      %v4715 = vpack.c.b16 %v4668, %v4668
      %v4716 = vpack.c.b16 %v4670, %v4669
      %v4717 = vpack.c.b16 %v4671, %v4671
      %v4718 = vpack.c.b16 %v4673, %v4672
      %v4719 = vpack.c.b16 %v4674, %v4674
      %v4720 = vpack.c.b16 %v4676, %v4675
      %v4721 = vpack.c.b16 %v4677, %v4677
      %v4722 = vpack.c.b16 %v4679, %v4678
      %v4723 = vpack.c.b16 %v4680, %v4680
      %v4724 = vpack.c.b16 %v4682, %v4681
      %v4725 = vpack.c.b16 %v4683, %v4683
      %v4726 = vpack.c.b16 %v4685, %v4684
      %v4727 = vpack.c.b16 %v4686, %v4686
      %v4728 = vpack.c.b16 %v4688, %v4687
      %v4729 = vpack.c.b16 %v4689, %v4689
      %v4730 = vpack.c.b16 %v4691, %v4690
      %v4731 = vpack.c.b16 %v4692, %v4692
      %v4732 = vpack.c.b16 %v4694, %v4693
      %v4733 = vpack.c.b16 %v4695, %v4695
      %v4734 = vpack.c.b16 %v4697, %v4696
      %v4735 = vpack.c.b16 %v4698, %v4698
      %v4736 = vpack.c.b16 %v4700, %v4699
      %v4737 = vpack.c.b16 %v4701, %v4701
      %v4738 = vpack.c.b16 %v4703, %v4702
      %v4739 = vpack.c.b16 %v4704, %v4704
      %v4740 = vpack.c.b16 %v4706, %v4705
      %v4741 = vpack.c.b16 %v4707, %v4707
      %v4742 = vpack.c.b16 %v4709, %v4708
      %v4743 = vpack.c.b16 %v4710, %v4710
      %v4744 = vpack.c.b16 %v4712, %v4711
      %v4745 = vpack.c.b16 %v4713, %v4713
      %v4747 = vshrl.u32 %v4714, 16
      %v4749 = vshll.u32 %v4714, 16
      %v4751 = vrot.slane %v4749, 1
      %v4752 = vor.u32 %v4747, %v4751
      %v4754 = vshll.u32 %v4715, 16
      %v4756 = vrot.slane %v4754, 1
      %v4757 = vsel %vm1197, %v4752, %v4756
      %v4759 = vshrl.u32 %v4716, 16
      %v4761 = vshll.u32 %v4716, 16
      %v4763 = vrot.slane %v4761, 1
      %v4764 = vor.u32 %v4759, %v4763
      %v4766 = vshll.u32 %v4717, 16
      %v4768 = vrot.slane %v4766, 1
      %v4769 = vsel %vm1197, %v4764, %v4768
      %v4771 = vshrl.u32 %v4718, 16
      %v4773 = vshll.u32 %v4718, 16
      %v4775 = vrot.slane %v4773, 1
      %v4776 = vor.u32 %v4771, %v4775
      %v4778 = vshll.u32 %v4719, 16
      %v4780 = vrot.slane %v4778, 1
      %v4781 = vsel %vm1197, %v4776, %v4780
      %v4783 = vshrl.u32 %v4720, 16
      %v4785 = vshll.u32 %v4720, 16
      %v4787 = vrot.slane %v4785, 1
      %v4788 = vor.u32 %v4783, %v4787
      %v4790 = vshll.u32 %v4721, 16
      %v4792 = vrot.slane %v4790, 1
      %v4793 = vsel %vm1197, %v4788, %v4792
      %v4795 = vshrl.u32 %v4722, 16
      %v4797 = vshll.u32 %v4722, 16
      %v4799 = vrot.slane %v4797, 1
      %v4800 = vor.u32 %v4795, %v4799
      %v4802 = vshll.u32 %v4723, 16
      %v4804 = vrot.slane %v4802, 1
      %v4805 = vsel %vm1197, %v4800, %v4804
      %v4807 = vshrl.u32 %v4724, 16
      %v4809 = vshll.u32 %v4724, 16
      %v4811 = vrot.slane %v4809, 1
      %v4812 = vor.u32 %v4807, %v4811
      %v4814 = vshll.u32 %v4725, 16
      %v4816 = vrot.slane %v4814, 1
      %v4817 = vsel %vm1197, %v4812, %v4816
      %v4819 = vshrl.u32 %v4726, 16
      %v4821 = vshll.u32 %v4726, 16
      %v4823 = vrot.slane %v4821, 1
      %v4824 = vor.u32 %v4819, %v4823
      %v4826 = vshll.u32 %v4727, 16
      %v4828 = vrot.slane %v4826, 1
      %v4829 = vsel %vm1197, %v4824, %v4828
      %v4831 = vshrl.u32 %v4728, 16
      %v4833 = vshll.u32 %v4728, 16
      %v4835 = vrot.slane %v4833, 1
      %v4836 = vor.u32 %v4831, %v4835
      %v4838 = vshll.u32 %v4729, 16
      %v4840 = vrot.slane %v4838, 1
      %v4841 = vsel %vm1197, %v4836, %v4840
      %v4843 = vshrl.u32 %v4730, 16
      %v4845 = vshll.u32 %v4730, 16
      %v4847 = vrot.slane %v4845, 1
      %v4848 = vor.u32 %v4843, %v4847
      %v4850 = vshll.u32 %v4731, 16
      %v4852 = vrot.slane %v4850, 1
      %v4853 = vsel %vm1197, %v4848, %v4852
      %v4855 = vshrl.u32 %v4732, 16
      %v4857 = vshll.u32 %v4732, 16
      %v4859 = vrot.slane %v4857, 1
      %v4860 = vor.u32 %v4855, %v4859
      %v4862 = vshll.u32 %v4733, 16
      %v4864 = vrot.slane %v4862, 1
      %v4865 = vsel %vm1197, %v4860, %v4864
      %v4867 = vshrl.u32 %v4734, 16
      %v4869 = vshll.u32 %v4734, 16
      %v4871 = vrot.slane %v4869, 1
      %v4872 = vor.u32 %v4867, %v4871
      %v4874 = vshll.u32 %v4735, 16
      %v4876 = vrot.slane %v4874, 1
      %v4877 = vsel %vm1197, %v4872, %v4876
      %v4879 = vshrl.u32 %v4736, 16
      %v4881 = vshll.u32 %v4736, 16
      %v4883 = vrot.slane %v4881, 1
      %v4884 = vor.u32 %v4879, %v4883
      %v4886 = vshll.u32 %v4737, 16
      %v4888 = vrot.slane %v4886, 1
      %v4889 = vsel %vm1197, %v4884, %v4888
      %v4891 = vshrl.u32 %v4738, 16
      %v4893 = vshll.u32 %v4738, 16
      %v4895 = vrot.slane %v4893, 1
      %v4896 = vor.u32 %v4891, %v4895
      %v4898 = vshll.u32 %v4739, 16
      %v4900 = vrot.slane %v4898, 1
      %v4901 = vsel %vm1197, %v4896, %v4900
      %v4903 = vshrl.u32 %v4740, 16
      %v4905 = vshll.u32 %v4740, 16
      %v4907 = vrot.slane %v4905, 1
      %v4908 = vor.u32 %v4903, %v4907
      %v4910 = vshll.u32 %v4741, 16
      %v4912 = vrot.slane %v4910, 1
      %v4913 = vsel %vm1197, %v4908, %v4912
      %v4915 = vshrl.u32 %v4742, 16
      %v4917 = vshll.u32 %v4742, 16
      %v4919 = vrot.slane %v4917, 1
      %v4920 = vor.u32 %v4915, %v4919
      %v4922 = vshll.u32 %v4743, 16
      %v4924 = vrot.slane %v4922, 1
      %v4925 = vsel %vm1197, %v4920, %v4924
      %v4927 = vshrl.u32 %v4744, 16
      %v4929 = vshll.u32 %v4744, 16
      %v4931 = vrot.slane %v4929, 1
      %v4932 = vor.u32 %v4927, %v4931
      %v4934 = vshll.u32 %v4745, 16
      %v4936 = vrot.slane %v4934, 1
      %v4937 = vsel %vm1197, %v4932, %v4936
      %4938 = vrot.lane.b32.xlu0 %v4757, 8
      %v4939 = vpop.permute.xlu0 %4938
      %4940 = vrot.lane.b32.xlu0 %v4769, 8
      %v4941 = vpop.permute.xlu0 %4940
      %4942 = vrot.lane.b32.xlu0 %v4781, 8
      %v4943 = vpop.permute.xlu0 %4942
      %4944 = vrot.lane.b32.xlu0 %v4793, 8
      %v4945 = vpop.permute.xlu0 %4944
      %4946 = vrot.lane.b32.xlu0 %v4805, 8
      %v4947 = vpop.permute.xlu0 %4946
      %4948 = vrot.lane.b32.xlu0 %v4817, 8
      %v4949 = vpop.permute.xlu0 %4948
      %4950 = vrot.lane.b32.xlu0 %v4829, 8
      %v4951 = vpop.permute.xlu0 %4950
      %4952 = vrot.lane.b32.xlu0 %v4841, 8
      %v4953 = vpop.permute.xlu0 %4952
      %4954 = vrot.lane.b32.xlu0 %v4853, 8
      %v4955 = vpop.permute.xlu0 %4954
      %4956 = vrot.lane.b32.xlu0 %v4865, 8
      %v4957 = vpop.permute.xlu0 %4956
      %4958 = vrot.lane.b32.xlu0 %v4877, 8
      %v4959 = vpop.permute.xlu0 %4958
      %4960 = vrot.lane.b32.xlu0 %v4889, 8
      %v4961 = vpop.permute.xlu0 %4960
      %4962 = vrot.lane.b32.xlu0 %v4901, 8
      %v4963 = vpop.permute.xlu0 %4962
      %4964 = vrot.lane.b32.xlu0 %v4913, 8
      %v4965 = vpop.permute.xlu0 %4964
      %4966 = vrot.lane.b32.xlu0 %v4925, 8
      %v4967 = vpop.permute.xlu0 %4966
      %4968 = vrot.lane.b32.xlu0 %v4937, 8
      %v4969 = vpop.permute.xlu0 %4968
      %vm4986 = vcmask 130112
      %4987 = vst.msk [vmem:[#allocation3] sm:$0xff] %vm4986, %v4939
      %4988 = vst.msk [vmem:[#allocation3 + $0x8] sm:$0xff] %vm4986, %v4941
      %4989 = vst.msk [vmem:[#allocation3 + $0x10] sm:$0xff] %vm4986, %v4943
      %4990 = vst.msk [vmem:[#allocation3 + $0x18] sm:$0xff] %vm4986, %v4945
      %4991 = vst.msk [vmem:[#allocation3 + $0x20] sm:$0xff] %vm4986, %v4947
      %4992 = vst.msk [vmem:[#allocation3 + $0x28] sm:$0xff] %vm4986, %v4949
      %4993 = vst.msk [vmem:[#allocation3 + $0x30] sm:$0xff] %vm4986, %v4951
      %4994 = vst.msk [vmem:[#allocation3 + $0x38] sm:$0xff] %vm4986, %v4953
      %4995 = vst.msk [vmem:[#allocation3 + $0x40] sm:$0xff] %vm4986, %v4955
      %4996 = vst.msk [vmem:[#allocation3 + $0x48] sm:$0xff] %vm4986, %v4957
      %4997 = vst.msk [vmem:[#allocation3 + $0x50] sm:$0xff] %vm4986, %v4959
      %4998 = vst.msk [vmem:[#allocation3 + $0x58] sm:$0xff] %vm4986, %v4961
      %4999 = vst.msk [vmem:[#allocation3 + $0x60] sm:$0xff] %vm4986, %v4963
      %5000 = vst.msk [vmem:[#allocation3 + $0x68] sm:$0xff] %vm4986, %v4965
      %5001 = vst.msk [vmem:[#allocation3 + $0x70] sm:$0xff] %vm4986, %v4967
      %5002 = vst.msk [vmem:[#allocation3 + $0x78] sm:$0xff] %vm4986, %v4969
      %v5003 = vld [vmem:[#allocation2] sm:$0xe]
      %v5004 = vld [vmem:[#allocation2 + $0x4] sm:$0xf]
      %v5005 = vld [vmem:[#allocation2 + $0x8] sm:$0x1]
      %v5006 = vld [vmem:[#allocation2 + $0xc] sm:$0xe]
      %v5007 = vld [vmem:[#allocation2 + $0x10] sm:$0xf]
      %v5008 = vld [vmem:[#allocation2 + $0x14] sm:$0x1]
      %v5009 = vld [vmem:[#allocation2 + $0x18] sm:$0xe]
      %v5010 = vld [vmem:[#allocation2 + $0x1c] sm:$0xf]
      %v5011 = vld [vmem:[#allocation2 + $0x20] sm:$0x1]
      %v5012 = vld [vmem:[#allocation2 + $0x24] sm:$0xe]
      %v5013 = vld [vmem:[#allocation2 + $0x28] sm:$0xf]
      %v5014 = vld [vmem:[#allocation2 + $0x2c] sm:$0x1]
      %v5015 = vld [vmem:[#allocation2 + $0x30] sm:$0xe]
      %v5016 = vld [vmem:[#allocation2 + $0x34] sm:$0xf]
      %v5017 = vld [vmem:[#allocation2 + $0x38] sm:$0x1]
      %v5018 = vld [vmem:[#allocation2 + $0x3c] sm:$0xe]
      %v5019 = vld [vmem:[#allocation2 + $0x40] sm:$0xf]
      %v5020 = vld [vmem:[#allocation2 + $0x44] sm:$0x1]
      %v5021 = vld [vmem:[#allocation2 + $0x48] sm:$0xe]
      %v5022 = vld [vmem:[#allocation2 + $0x4c] sm:$0xf]
      %v5023 = vld [vmem:[#allocation2 + $0x50] sm:$0x1]
      %v5024 = vld [vmem:[#allocation2 + $0x54] sm:$0xe]
      %v5025 = vld [vmem:[#allocation2 + $0x58] sm:$0xf]
      %v5026 = vld [vmem:[#allocation2 + $0x5c] sm:$0x1]
      %v5027 = vld [vmem:[#allocation2 + $0x60] sm:$0xe]
      %v5028 = vld [vmem:[#allocation2 + $0x64] sm:$0xf]
      %v5029 = vld [vmem:[#allocation2 + $0x68] sm:$0x1]
      %v5030 = vld [vmem:[#allocation2 + $0x6c] sm:$0xe]
      %v5031 = vld [vmem:[#allocation2 + $0x70] sm:$0xf]
      %v5032 = vld [vmem:[#allocation2 + $0x74] sm:$0x1]
      %v5033 = vld [vmem:[#allocation2 + $0x78] sm:$0xe]
      %v5034 = vld [vmem:[#allocation2 + $0x7c] sm:$0xf]
      %v5035 = vld [vmem:[#allocation2 + $0x80] sm:$0x1]
      %v5036 = vld [vmem:[#allocation2 + $0x84] sm:$0xe]
      %v5037 = vld [vmem:[#allocation2 + $0x88] sm:$0xf]
      %v5038 = vld [vmem:[#allocation2 + $0x8c] sm:$0x1]
      %v5039 = vld [vmem:[#allocation2 + $0x90] sm:$0xe]
      %v5040 = vld [vmem:[#allocation2 + $0x94] sm:$0xf]
      %v5041 = vld [vmem:[#allocation2 + $0x98] sm:$0x1]
      %v5042 = vld [vmem:[#allocation2 + $0x9c] sm:$0xe]
      %v5043 = vld [vmem:[#allocation2 + $0xa0] sm:$0xf]
      %v5044 = vld [vmem:[#allocation2 + $0xa4] sm:$0x1]
      %v5045 = vld [vmem:[#allocation2 + $0xa8] sm:$0xe]
      %v5046 = vld [vmem:[#allocation2 + $0xac] sm:$0xf]
      %v5047 = vld [vmem:[#allocation2 + $0xb0] sm:$0x1]
      %v5048 = vld [vmem:[#allocation2 + $0xb4] sm:$0xe]
      %v5049 = vld [vmem:[#allocation2 + $0xb8] sm:$0xf]
      %v5050 = vld [vmem:[#allocation2 + $0xbc] sm:$0x1]
      %v5099 = vunpack.c.l.b16 %v5003
      %v5100 = vunpack.c.l.b16 %v5004
      %v5101 = vunpack.c.l.b16 %v5005
      %v5102 = vunpack.c.l.b16 %v5006
      %v5103 = vunpack.c.l.b16 %v5007
      %v5104 = vunpack.c.l.b16 %v5008
      %v5105 = vunpack.c.l.b16 %v5009
      %v5106 = vunpack.c.l.b16 %v5010
      %v5107 = vunpack.c.l.b16 %v5011
      %v5108 = vunpack.c.l.b16 %v5012
      %v5109 = vunpack.c.l.b16 %v5013
      %v5110 = vunpack.c.l.b16 %v5014
      %v5111 = vunpack.c.l.b16 %v5015
      %v5112 = vunpack.c.l.b16 %v5016
      %v5113 = vunpack.c.l.b16 %v5017
      %v5114 = vunpack.c.l.b16 %v5018
      %v5115 = vunpack.c.l.b16 %v5019
      %v5116 = vunpack.c.l.b16 %v5020
      %v5117 = vunpack.c.l.b16 %v5021
      %v5118 = vunpack.c.l.b16 %v5022
      %v5119 = vunpack.c.l.b16 %v5023
      %v5120 = vunpack.c.l.b16 %v5024
      %v5121 = vunpack.c.l.b16 %v5025
      %v5122 = vunpack.c.l.b16 %v5026
      %v5123 = vunpack.c.l.b16 %v5027
      %v5124 = vunpack.c.l.b16 %v5028
      %v5125 = vunpack.c.l.b16 %v5029
      %v5126 = vunpack.c.l.b16 %v5030
      %v5127 = vunpack.c.l.b16 %v5031
      %v5128 = vunpack.c.l.b16 %v5032
      %v5129 = vunpack.c.l.b16 %v5033
      %v5130 = vunpack.c.l.b16 %v5034
      %v5131 = vunpack.c.l.b16 %v5035
      %v5132 = vunpack.c.l.b16 %v5036
      %v5133 = vunpack.c.l.b16 %v5037
      %v5134 = vunpack.c.l.b16 %v5038
      %v5135 = vunpack.c.l.b16 %v5039
      %v5136 = vunpack.c.l.b16 %v5040
      %v5137 = vunpack.c.l.b16 %v5041
      %v5138 = vunpack.c.l.b16 %v5042
      %v5139 = vunpack.c.l.b16 %v5043
      %v5140 = vunpack.c.l.b16 %v5044
      %v5141 = vunpack.c.l.b16 %v5045
      %v5142 = vunpack.c.l.b16 %v5046
      %v5143 = vunpack.c.l.b16 %v5047
      %v5144 = vunpack.c.l.b16 %v5048
      %v5145 = vunpack.c.l.b16 %v5049
      %v5146 = vunpack.c.l.b16 %v5050
      %v5147 = vpack.c.b16 %v5100, %v5099
      %v5148 = vpack.c.b16 %v5101, %v5101
      %v5149 = vpack.c.b16 %v5103, %v5102
      %v5150 = vpack.c.b16 %v5104, %v5104
      %v5151 = vpack.c.b16 %v5106, %v5105
      %v5152 = vpack.c.b16 %v5107, %v5107
      %v5153 = vpack.c.b16 %v5109, %v5108
      %v5154 = vpack.c.b16 %v5110, %v5110
      %v5155 = vpack.c.b16 %v5112, %v5111
      %v5156 = vpack.c.b16 %v5113, %v5113
      %v5157 = vpack.c.b16 %v5115, %v5114
      %v5158 = vpack.c.b16 %v5116, %v5116
      %v5159 = vpack.c.b16 %v5118, %v5117
      %v5160 = vpack.c.b16 %v5119, %v5119
      %v5161 = vpack.c.b16 %v5121, %v5120
      %v5162 = vpack.c.b16 %v5122, %v5122
      %v5163 = vpack.c.b16 %v5124, %v5123
      %v5164 = vpack.c.b16 %v5125, %v5125
      %v5165 = vpack.c.b16 %v5127, %v5126
      %v5166 = vpack.c.b16 %v5128, %v5128
      %v5167 = vpack.c.b16 %v5130, %v5129
      %v5168 = vpack.c.b16 %v5131, %v5131
      %v5169 = vpack.c.b16 %v5133, %v5132
      %v5170 = vpack.c.b16 %v5134, %v5134
      %v5171 = vpack.c.b16 %v5136, %v5135
      %v5172 = vpack.c.b16 %v5137, %v5137
      %v5173 = vpack.c.b16 %v5139, %v5138
      %v5174 = vpack.c.b16 %v5140, %v5140
      %v5175 = vpack.c.b16 %v5142, %v5141
      %v5176 = vpack.c.b16 %v5143, %v5143
      %v5177 = vpack.c.b16 %v5145, %v5144
      %v5178 = vpack.c.b16 %v5146, %v5146
      %v5179 = vrot.slane %v5147, 1
      %v5180 = vrot.slane %v5148, 1
      %v5181 = vsel %vm1631, %v5179, %v5180
      %v5182 = vrot.slane %v5149, 1
      %v5183 = vrot.slane %v5150, 1
      %v5184 = vsel %vm1631, %v5182, %v5183
      %v5185 = vrot.slane %v5151, 1
      %v5186 = vrot.slane %v5152, 1
      %v5187 = vsel %vm1631, %v5185, %v5186
      %v5188 = vrot.slane %v5153, 1
      %v5189 = vrot.slane %v5154, 1
      %v5190 = vsel %vm1631, %v5188, %v5189
      %v5191 = vrot.slane %v5155, 1
      %v5192 = vrot.slane %v5156, 1
      %v5193 = vsel %vm1631, %v5191, %v5192
      %v5194 = vrot.slane %v5157, 1
      %v5195 = vrot.slane %v5158, 1
      %v5196 = vsel %vm1631, %v5194, %v5195
      %v5197 = vrot.slane %v5159, 1
      %v5198 = vrot.slane %v5160, 1
      %v5199 = vsel %vm1631, %v5197, %v5198
      %v5200 = vrot.slane %v5161, 1
      %v5201 = vrot.slane %v5162, 1
      %v5202 = vsel %vm1631, %v5200, %v5201
      %v5203 = vrot.slane %v5163, 1
      %v5204 = vrot.slane %v5164, 1
      %v5205 = vsel %vm1631, %v5203, %v5204
      %v5206 = vrot.slane %v5165, 1
      %v5207 = vrot.slane %v5166, 1
      %v5208 = vsel %vm1631, %v5206, %v5207
      %v5209 = vrot.slane %v5167, 1
      %v5210 = vrot.slane %v5168, 1
      %v5211 = vsel %vm1631, %v5209, %v5210
      %v5212 = vrot.slane %v5169, 1
      %v5213 = vrot.slane %v5170, 1
      %v5214 = vsel %vm1631, %v5212, %v5213
      %v5215 = vrot.slane %v5171, 1
      %v5216 = vrot.slane %v5172, 1
      %v5217 = vsel %vm1631, %v5215, %v5216
      %v5218 = vrot.slane %v5173, 1
      %v5219 = vrot.slane %v5174, 1
      %v5220 = vsel %vm1631, %v5218, %v5219
      %v5221 = vrot.slane %v5175, 1
      %v5222 = vrot.slane %v5176, 1
      %v5223 = vsel %vm1631, %v5221, %v5222
      %v5224 = vrot.slane %v5177, 1
      %v5225 = vrot.slane %v5178, 1
      %v5226 = vsel %vm1631, %v5224, %v5225
      %5227 = vrot.lane.b32.xlu0 %v5181, 16
      %v5228 = vpop.permute.xlu0 %5227
      %5229 = vrot.lane.b32.xlu0 %v5184, 16
      %v5230 = vpop.permute.xlu0 %5229
      %5231 = vrot.lane.b32.xlu0 %v5187, 16
      %v5232 = vpop.permute.xlu0 %5231
      %5233 = vrot.lane.b32.xlu0 %v5190, 16
      %v5234 = vpop.permute.xlu0 %5233
      %5235 = vrot.lane.b32.xlu0 %v5193, 16
      %v5236 = vpop.permute.xlu0 %5235
      %5237 = vrot.lane.b32.xlu0 %v5196, 16
      %v5238 = vpop.permute.xlu0 %5237
      %5239 = vrot.lane.b32.xlu0 %v5199, 16
      %v5240 = vpop.permute.xlu0 %5239
      %5241 = vrot.lane.b32.xlu0 %v5202, 16
      %v5242 = vpop.permute.xlu0 %5241
      %5243 = vrot.lane.b32.xlu0 %v5205, 16
      %v5244 = vpop.permute.xlu0 %5243
      %5245 = vrot.lane.b32.xlu0 %v5208, 16
      %v5246 = vpop.permute.xlu0 %5245
      %5247 = vrot.lane.b32.xlu0 %v5211, 16
      %v5248 = vpop.permute.xlu0 %5247
      %5249 = vrot.lane.b32.xlu0 %v5214, 16
      %v5250 = vpop.permute.xlu0 %5249
      %5251 = vrot.lane.b32.xlu0 %v5217, 16
      %v5252 = vpop.permute.xlu0 %5251
      %5253 = vrot.lane.b32.xlu0 %v5220, 16
      %v5254 = vpop.permute.xlu0 %5253
      %5255 = vrot.lane.b32.xlu0 %v5223, 16
      %v5256 = vpop.permute.xlu0 %5255
      %5257 = vrot.lane.b32.xlu0 %v5226, 16
      %v5258 = vpop.permute.xlu0 %5257
      %vm5275 = vcmask 195712
      %5276 = vst.msk [vmem:[#allocation3] sm:$0xff] %vm5275, %v5228
      %5277 = vst.msk [vmem:[#allocation3 + $0x8] sm:$0xff] %vm5275, %v5230
      %5278 = vst.msk [vmem:[#allocation3 + $0x10] sm:$0xff] %vm5275, %v5232
      %5279 = vst.msk [vmem:[#allocation3 + $0x18] sm:$0xff] %vm5275, %v5234
      %5280 = vst.msk [vmem:[#allocation3 + $0x20] sm:$0xff] %vm5275, %v5236
      %5281 = vst.msk [vmem:[#allocation3 + $0x28] sm:$0xff] %vm5275, %v5238
      %5282 = vst.msk [vmem:[#allocation3 + $0x30] sm:$0xff] %vm5275, %v5240
      %5283 = vst.msk [vmem:[#allocation3 + $0x38] sm:$0xff] %vm5275, %v5242
      %5284 = vst.msk [vmem:[#allocation3 + $0x40] sm:$0xff] %vm5275, %v5244
      %5285 = vst.msk [vmem:[#allocation3 + $0x48] sm:$0xff] %vm5275, %v5246
      %5286 = vst.msk [vmem:[#allocation3 + $0x50] sm:$0xff] %vm5275, %v5248
      %5287 = vst.msk [vmem:[#allocation3 + $0x58] sm:$0xff] %vm5275, %v5250
      %5288 = vst.msk [vmem:[#allocation3 + $0x60] sm:$0xff] %vm5275, %v5252
      %5289 = vst.msk [vmem:[#allocation3 + $0x68] sm:$0xff] %vm5275, %v5254
      %5290 = vst.msk [vmem:[#allocation3 + $0x70] sm:$0xff] %vm5275, %v5256
      %5291 = vst.msk [vmem:[#allocation3 + $0x78] sm:$0xff] %vm5275, %v5258
      %v5292 = vld [vmem:[%s287] sm:$0xf]
      %v5293 = vld [vmem:[%s287 + $0x4] sm:$0xf]
      %v5294 = vld [vmem:[%s287 + $0xc] sm:$0xf]
      %v5295 = vld [vmem:[%s287 + $0x10] sm:$0xf]
      %v5296 = vld [vmem:[%s287 + $0x18] sm:$0xf]
      %v5297 = vld [vmem:[%s287 + $0x1c] sm:$0xf]
      %v5298 = vld [vmem:[%s287 + $0x24] sm:$0xf]
      %v5299 = vld [vmem:[%s287 + $0x28] sm:$0xf]
      %v5300 = vld [vmem:[%s287 + $0x30] sm:$0xf]
      %v5301 = vld [vmem:[%s287 + $0x34] sm:$0xf]
      %v5302 = vld [vmem:[%s287 + $0x3c] sm:$0xf]
      %v5303 = vld [vmem:[%s287 + $0x40] sm:$0xf]
      %v5304 = vld [vmem:[%s287 + $0x48] sm:$0xf]
      %v5305 = vld [vmem:[%s287 + $0x4c] sm:$0xf]
      %v5306 = vld [vmem:[%s287 + $0x54] sm:$0xf]
      %v5307 = vld [vmem:[%s287 + $0x58] sm:$0xf]
      %v5308 = vld [vmem:[%s287 + $0x60] sm:$0xf]
      %v5309 = vld [vmem:[%s287 + $0x64] sm:$0xf]
      %v5310 = vld [vmem:[%s287 + $0x6c] sm:$0xf]
      %v5311 = vld [vmem:[%s287 + $0x70] sm:$0xf]
      %v5312 = vld [vmem:[%s287 + $0x78] sm:$0xf]
      %v5313 = vld [vmem:[%s287 + $0x7c] sm:$0xf]
      %v5314 = vld [vmem:[%s287 + $0x84] sm:$0xf]
      %v5315 = vld [vmem:[%s287 + $0x88] sm:$0xf]
      %v5316 = vld [vmem:[%s287 + $0x90] sm:$0xf]
      %v5317 = vld [vmem:[%s287 + $0x94] sm:$0xf]
      %v5318 = vld [vmem:[%s287 + $0x9c] sm:$0xf]
      %v5319 = vld [vmem:[%s287 + $0xa0] sm:$0xf]
      %v5320 = vld [vmem:[%s287 + $0xa8] sm:$0xf]
      %v5321 = vld [vmem:[%s287 + $0xac] sm:$0xf]
      %v5322 = vld [vmem:[%s287 + $0xb4] sm:$0xf]
      %v5323 = vld [vmem:[%s287 + $0xb8] sm:$0xf]
      %v5356 = vunpack.c.l.b16 %v5292
      %v5357 = vunpack.c.l.b16 %v5293
      %v5358 = vunpack.c.l.b16 %v5294
      %v5359 = vunpack.c.l.b16 %v5295
      %v5360 = vunpack.c.l.b16 %v5296
      %v5361 = vunpack.c.l.b16 %v5297
      %v5362 = vunpack.c.l.b16 %v5298
      %v5363 = vunpack.c.l.b16 %v5299
      %v5364 = vunpack.c.l.b16 %v5300
      %v5365 = vunpack.c.l.b16 %v5301
      %v5366 = vunpack.c.l.b16 %v5302
      %v5367 = vunpack.c.l.b16 %v5303
      %v5368 = vunpack.c.l.b16 %v5304
      %v5369 = vunpack.c.l.b16 %v5305
      %v5370 = vunpack.c.l.b16 %v5306
      %v5371 = vunpack.c.l.b16 %v5307
      %v5372 = vunpack.c.l.b16 %v5308
      %v5373 = vunpack.c.l.b16 %v5309
      %v5374 = vunpack.c.l.b16 %v5310
      %v5375 = vunpack.c.l.b16 %v5311
      %v5376 = vunpack.c.l.b16 %v5312
      %v5377 = vunpack.c.l.b16 %v5313
      %v5378 = vunpack.c.l.b16 %v5314
      %v5379 = vunpack.c.l.b16 %v5315
      %v5380 = vunpack.c.l.b16 %v5316
      %v5381 = vunpack.c.l.b16 %v5317
      %v5382 = vunpack.c.l.b16 %v5318
      %v5383 = vunpack.c.l.b16 %v5319
      %v5384 = vunpack.c.l.b16 %v5320
      %v5385 = vunpack.c.l.b16 %v5321
      %v5386 = vunpack.c.l.b16 %v5322
      %v5387 = vunpack.c.l.b16 %v5323
      %v5388 = vpack.c.b16 %v5357, %v5356
      %v5389 = vpack.c.b16 %v5359, %v5358
      %v5390 = vpack.c.b16 %v5361, %v5360
      %v5391 = vpack.c.b16 %v5363, %v5362
      %v5392 = vpack.c.b16 %v5365, %v5364
      %v5393 = vpack.c.b16 %v5367, %v5366
      %v5394 = vpack.c.b16 %v5369, %v5368
      %v5395 = vpack.c.b16 %v5371, %v5370
      %v5396 = vpack.c.b16 %v5373, %v5372
      %v5397 = vpack.c.b16 %v5375, %v5374
      %v5398 = vpack.c.b16 %v5377, %v5376
      %v5399 = vpack.c.b16 %v5379, %v5378
      %v5400 = vpack.c.b16 %v5381, %v5380
      %v5401 = vpack.c.b16 %v5383, %v5382
      %v5402 = vpack.c.b16 %v5385, %v5384
      %v5403 = vpack.c.b16 %v5387, %v5386
      %5404 = vrot.lane.b32.xlu0 %v5388, 24
      %v5405 = vpop.permute.xlu0 %5404
      %5406 = vrot.lane.b32.xlu0 %v5389, 24
      %v5407 = vpop.permute.xlu0 %5406
      %5408 = vrot.lane.b32.xlu0 %v5390, 24
      %v5409 = vpop.permute.xlu0 %5408
      %5410 = vrot.lane.b32.xlu0 %v5391, 24
      %v5411 = vpop.permute.xlu0 %5410
      %5412 = vrot.lane.b32.xlu0 %v5392, 24
      %v5413 = vpop.permute.xlu0 %5412
      %5414 = vrot.lane.b32.xlu0 %v5393, 24
      %v5415 = vpop.permute.xlu0 %5414
      %5416 = vrot.lane.b32.xlu0 %v5394, 24
      %v5417 = vpop.permute.xlu0 %5416
      %5418 = vrot.lane.b32.xlu0 %v5395, 24
      %v5419 = vpop.permute.xlu0 %5418
      %5420 = vrot.lane.b32.xlu0 %v5396, 24
      %v5421 = vpop.permute.xlu0 %5420
      %5422 = vrot.lane.b32.xlu0 %v5397, 24
      %v5423 = vpop.permute.xlu0 %5422
      %5424 = vrot.lane.b32.xlu0 %v5398, 24
      %v5425 = vpop.permute.xlu0 %5424
      %5426 = vrot.lane.b32.xlu0 %v5399, 24
      %v5427 = vpop.permute.xlu0 %5426
      %5428 = vrot.lane.b32.xlu0 %v5400, 24
      %v5429 = vpop.permute.xlu0 %5428
      %5430 = vrot.lane.b32.xlu0 %v5401, 24
      %v5431 = vpop.permute.xlu0 %5430
      %5432 = vrot.lane.b32.xlu0 %v5402, 24
      %v5433 = vpop.permute.xlu0 %5432
      %5434 = vrot.lane.b32.xlu0 %v5403, 24
      %v5435 = vpop.permute.xlu0 %5434
      %vm5452 = vcmask 261312
      %5453 = vst.msk [vmem:[#allocation3] sm:$0xff] %vm5452, %v5405
      %5454 = vst.msk [vmem:[#allocation3 + $0x8] sm:$0xff] %vm5452, %v5407
      %5455 = vst.msk [vmem:[#allocation3 + $0x10] sm:$0xff] %vm5452, %v5409
      %5456 = vst.msk [vmem:[#allocation3 + $0x18] sm:$0xff] %vm5452, %v5411
      %5457 = vst.msk [vmem:[#allocation3 + $0x20] sm:$0xff] %vm5452, %v5413
      %5458 = vst.msk [vmem:[#allocation3 + $0x28] sm:$0xff] %vm5452, %v5415
      %5459 = vst.msk [vmem:[#allocation3 + $0x30] sm:$0xff] %vm5452, %v5417
      %5460 = vst.msk [vmem:[#allocation3 + $0x38] sm:$0xff] %vm5452, %v5419
      %5461 = vst.msk [vmem:[#allocation3 + $0x40] sm:$0xff] %vm5452, %v5421
      %5462 = vst.msk [vmem:[#allocation3 + $0x48] sm:$0xff] %vm5452, %v5423
      %5463 = vst.msk [vmem:[#allocation3 + $0x50] sm:$0xff] %vm5452, %v5425
      %5464 = vst.msk [vmem:[#allocation3 + $0x58] sm:$0xff] %vm5452, %v5427
      %5465 = vst.msk [vmem:[#allocation3 + $0x60] sm:$0xff] %vm5452, %v5429
      %5466 = vst.msk [vmem:[#allocation3 + $0x68] sm:$0xff] %vm5452, %v5431
      %5467 = vst.msk [vmem:[#allocation3 + $0x70] sm:$0xff] %vm5452, %v5433
      %5468 = vst.msk [vmem:[#allocation3 + $0x78] sm:$0xff] %vm5452, %v5435
      %v5469 = vld [vmem:[%s287] sm:$0xf]
      %v5470 = vld [vmem:[%s287 + $0x4] sm:$0xf]
      %v5471 = vld [vmem:[%s287 + $0x8] sm:$0x1]
      %v5472 = vld [vmem:[%s287 + $0xc] sm:$0xf]
      %v5473 = vld [vmem:[%s287 + $0x10] sm:$0xf]
      %v5474 = vld [vmem:[%s287 + $0x14] sm:$0x1]
      %v5475 = vld [vmem:[%s287 + $0x18] sm:$0xf]
      %v5476 = vld [vmem:[%s287 + $0x1c] sm:$0xf]
      %v5477 = vld [vmem:[%s287 + $0x20] sm:$0x1]
      %v5478 = vld [vmem:[%s287 + $0x24] sm:$0xf]
      %v5479 = vld [vmem:[%s287 + $0x28] sm:$0xf]
      %v5480 = vld [vmem:[%s287 + $0x2c] sm:$0x1]
      %v5481 = vld [vmem:[%s287 + $0x30] sm:$0xf]
      %v5482 = vld [vmem:[%s287 + $0x34] sm:$0xf]
      %v5483 = vld [vmem:[%s287 + $0x38] sm:$0x1]
      %v5484 = vld [vmem:[%s287 + $0x3c] sm:$0xf]
      %v5485 = vld [vmem:[%s287 + $0x40] sm:$0xf]
      %v5486 = vld [vmem:[%s287 + $0x44] sm:$0x1]
      %v5487 = vld [vmem:[%s287 + $0x48] sm:$0xf]
      %v5488 = vld [vmem:[%s287 + $0x4c] sm:$0xf]
      %v5489 = vld [vmem:[%s287 + $0x50] sm:$0x1]
      %v5490 = vld [vmem:[%s287 + $0x54] sm:$0xf]
      %v5491 = vld [vmem:[%s287 + $0x58] sm:$0xf]
      %v5492 = vld [vmem:[%s287 + $0x5c] sm:$0x1]
      %v5493 = vld [vmem:[%s287 + $0x60] sm:$0xf]
      %v5494 = vld [vmem:[%s287 + $0x64] sm:$0xf]
      %v5495 = vld [vmem:[%s287 + $0x68] sm:$0x1]
      %v5496 = vld [vmem:[%s287 + $0x6c] sm:$0xf]
      %v5497 = vld [vmem:[%s287 + $0x70] sm:$0xf]
      %v5498 = vld [vmem:[%s287 + $0x74] sm:$0x1]
      %v5499 = vld [vmem:[%s287 + $0x78] sm:$0xf]
      %v5500 = vld [vmem:[%s287 + $0x7c] sm:$0xf]
      %v5501 = vld [vmem:[%s287 + $0x80] sm:$0x1]
      %v5502 = vld [vmem:[%s287 + $0x84] sm:$0xf]
      %v5503 = vld [vmem:[%s287 + $0x88] sm:$0xf]
      %v5504 = vld [vmem:[%s287 + $0x8c] sm:$0x1]
      %v5505 = vld [vmem:[%s287 + $0x90] sm:$0xf]
      %v5506 = vld [vmem:[%s287 + $0x94] sm:$0xf]
      %v5507 = vld [vmem:[%s287 + $0x98] sm:$0x1]
      %v5508 = vld [vmem:[%s287 + $0x9c] sm:$0xf]
      %v5509 = vld [vmem:[%s287 + $0xa0] sm:$0xf]
      %v5510 = vld [vmem:[%s287 + $0xa4] sm:$0x1]
      %v5511 = vld [vmem:[%s287 + $0xa8] sm:$0xf]
      %v5512 = vld [vmem:[%s287 + $0xac] sm:$0xf]
      %v5513 = vld [vmem:[%s287 + $0xb0] sm:$0x1]
      %v5514 = vld [vmem:[%s287 + $0xb4] sm:$0xf]
      %v5515 = vld [vmem:[%s287 + $0xb8] sm:$0xf]
      %v5516 = vld [vmem:[%s287 + $0xbc] sm:$0x1]
      %v5565 = vunpack.c.l.b16 %v5469
      %v5566 = vunpack.c.l.b16 %v5470
      %v5567 = vunpack.c.l.b16 %v5471
      %v5568 = vunpack.c.l.b16 %v5472
      %v5569 = vunpack.c.l.b16 %v5473
      %v5570 = vunpack.c.l.b16 %v5474
      %v5571 = vunpack.c.l.b16 %v5475
      %v5572 = vunpack.c.l.b16 %v5476
      %v5573 = vunpack.c.l.b16 %v5477
      %v5574 = vunpack.c.l.b16 %v5478
      %v5575 = vunpack.c.l.b16 %v5479
      %v5576 = vunpack.c.l.b16 %v5480
      %v5577 = vunpack.c.l.b16 %v5481
      %v5578 = vunpack.c.l.b16 %v5482
      %v5579 = vunpack.c.l.b16 %v5483
      %v5580 = vunpack.c.l.b16 %v5484
      %v5581 = vunpack.c.l.b16 %v5485
      %v5582 = vunpack.c.l.b16 %v5486
      %v5583 = vunpack.c.l.b16 %v5487
      %v5584 = vunpack.c.l.b16 %v5488
      %v5585 = vunpack.c.l.b16 %v5489
      %v5586 = vunpack.c.l.b16 %v5490
      %v5587 = vunpack.c.l.b16 %v5491
      %v5588 = vunpack.c.l.b16 %v5492
      %v5589 = vunpack.c.l.b16 %v5493
      %v5590 = vunpack.c.l.b16 %v5494
      %v5591 = vunpack.c.l.b16 %v5495
      %v5592 = vunpack.c.l.b16 %v5496
      %v5593 = vunpack.c.l.b16 %v5497
      %v5594 = vunpack.c.l.b16 %v5498
      %v5595 = vunpack.c.l.b16 %v5499
      %v5596 = vunpack.c.l.b16 %v5500
      %v5597 = vunpack.c.l.b16 %v5501
      %v5598 = vunpack.c.l.b16 %v5502
      %v5599 = vunpack.c.l.b16 %v5503
      %v5600 = vunpack.c.l.b16 %v5504
      %v5601 = vunpack.c.l.b16 %v5505
      %v5602 = vunpack.c.l.b16 %v5506
      %v5603 = vunpack.c.l.b16 %v5507
      %v5604 = vunpack.c.l.b16 %v5508
      %v5605 = vunpack.c.l.b16 %v5509
      %v5606 = vunpack.c.l.b16 %v5510
      %v5607 = vunpack.c.l.b16 %v5511
      %v5608 = vunpack.c.l.b16 %v5512
      %v5609 = vunpack.c.l.b16 %v5513
      %v5610 = vunpack.c.l.b16 %v5514
      %v5611 = vunpack.c.l.b16 %v5515
      %v5612 = vunpack.c.l.b16 %v5516
      %v5613 = vpack.c.b16 %v5566, %v5565
      %v5614 = vpack.c.b16 %v5567, %v5567
      %v5615 = vpack.c.b16 %v5569, %v5568
      %v5616 = vpack.c.b16 %v5570, %v5570
      %v5617 = vpack.c.b16 %v5572, %v5571
      %v5618 = vpack.c.b16 %v5573, %v5573
      %v5619 = vpack.c.b16 %v5575, %v5574
      %v5620 = vpack.c.b16 %v5576, %v5576
      %v5621 = vpack.c.b16 %v5578, %v5577
      %v5622 = vpack.c.b16 %v5579, %v5579
      %v5623 = vpack.c.b16 %v5581, %v5580
      %v5624 = vpack.c.b16 %v5582, %v5582
      %v5625 = vpack.c.b16 %v5584, %v5583
      %v5626 = vpack.c.b16 %v5585, %v5585
      %v5627 = vpack.c.b16 %v5587, %v5586
      %v5628 = vpack.c.b16 %v5588, %v5588
      %v5629 = vpack.c.b16 %v5590, %v5589
      %v5630 = vpack.c.b16 %v5591, %v5591
      %v5631 = vpack.c.b16 %v5593, %v5592
      %v5632 = vpack.c.b16 %v5594, %v5594
      %v5633 = vpack.c.b16 %v5596, %v5595
      %v5634 = vpack.c.b16 %v5597, %v5597
      %v5635 = vpack.c.b16 %v5599, %v5598
      %v5636 = vpack.c.b16 %v5600, %v5600
      %v5637 = vpack.c.b16 %v5602, %v5601
      %v5638 = vpack.c.b16 %v5603, %v5603
      %v5639 = vpack.c.b16 %v5605, %v5604
      %v5640 = vpack.c.b16 %v5606, %v5606
      %v5641 = vpack.c.b16 %v5608, %v5607
      %v5642 = vpack.c.b16 %v5609, %v5609
      %v5643 = vpack.c.b16 %v5611, %v5610
      %v5644 = vpack.c.b16 %v5612, %v5612
      %v5646 = vshrl.u32 %v5613, 16
      %v5648 = vshll.u32 %v5613, 16
      %v5650 = vrot.slane %v5648, 1
      %v5651 = vor.u32 %v5646, %v5650
      %v5653 = vshll.u32 %v5614, 16
      %v5655 = vrot.slane %v5653, 1
      %v5656 = vsel %vm1197, %v5651, %v5655
      %v5658 = vshrl.u32 %v5615, 16
      %v5660 = vshll.u32 %v5615, 16
      %v5662 = vrot.slane %v5660, 1
      %v5663 = vor.u32 %v5658, %v5662
      %v5665 = vshll.u32 %v5616, 16
      %v5667 = vrot.slane %v5665, 1
      %v5668 = vsel %vm1197, %v5663, %v5667
      %v5670 = vshrl.u32 %v5617, 16
      %v5672 = vshll.u32 %v5617, 16
      %v5674 = vrot.slane %v5672, 1
      %v5675 = vor.u32 %v5670, %v5674
      %v5677 = vshll.u32 %v5618, 16
      %v5679 = vrot.slane %v5677, 1
      %v5680 = vsel %vm1197, %v5675, %v5679
      %v5682 = vshrl.u32 %v5619, 16
      %v5684 = vshll.u32 %v5619, 16
      %v5686 = vrot.slane %v5684, 1
      %v5687 = vor.u32 %v5682, %v5686
      %v5689 = vshll.u32 %v5620, 16
      %v5691 = vrot.slane %v5689, 1
      %v5692 = vsel %vm1197, %v5687, %v5691
      %v5694 = vshrl.u32 %v5621, 16
      %v5696 = vshll.u32 %v5621, 16
      %v5698 = vrot.slane %v5696, 1
      %v5699 = vor.u32 %v5694, %v5698
      %v5701 = vshll.u32 %v5622, 16
      %v5703 = vrot.slane %v5701, 1
      %v5704 = vsel %vm1197, %v5699, %v5703
      %v5706 = vshrl.u32 %v5623, 16
      %v5708 = vshll.u32 %v5623, 16
      %v5710 = vrot.slane %v5708, 1
      %v5711 = vor.u32 %v5706, %v5710
      %v5713 = vshll.u32 %v5624, 16
      %v5715 = vrot.slane %v5713, 1
      %v5716 = vsel %vm1197, %v5711, %v5715
      %v5718 = vshrl.u32 %v5625, 16
      %v5720 = vshll.u32 %v5625, 16
      %v5722 = vrot.slane %v5720, 1
      %v5723 = vor.u32 %v5718, %v5722
      %v5725 = vshll.u32 %v5626, 16
      %v5727 = vrot.slane %v5725, 1
      %v5728 = vsel %vm1197, %v5723, %v5727
      %v5730 = vshrl.u32 %v5627, 16
      %v5732 = vshll.u32 %v5627, 16
      %v5734 = vrot.slane %v5732, 1
      %v5735 = vor.u32 %v5730, %v5734
      %v5737 = vshll.u32 %v5628, 16
      %v5739 = vrot.slane %v5737, 1
      %v5740 = vsel %vm1197, %v5735, %v5739
      %v5742 = vshrl.u32 %v5629, 16
      %v5744 = vshll.u32 %v5629, 16
      %v5746 = vrot.slane %v5744, 1
      %v5747 = vor.u32 %v5742, %v5746
      %v5749 = vshll.u32 %v5630, 16
      %v5751 = vrot.slane %v5749, 1
      %v5752 = vsel %vm1197, %v5747, %v5751
      %v5754 = vshrl.u32 %v5631, 16
      %v5756 = vshll.u32 %v5631, 16
      %v5758 = vrot.slane %v5756, 1
      %v5759 = vor.u32 %v5754, %v5758
      %v5761 = vshll.u32 %v5632, 16
      %v5763 = vrot.slane %v5761, 1
      %v5764 = vsel %vm1197, %v5759, %v5763
      %v5766 = vshrl.u32 %v5633, 16
      %v5768 = vshll.u32 %v5633, 16
      %v5770 = vrot.slane %v5768, 1
      %v5771 = vor.u32 %v5766, %v5770
      %v5773 = vshll.u32 %v5634, 16
      %v5775 = vrot.slane %v5773, 1
      %v5776 = vsel %vm1197, %v5771, %v5775
      %v5778 = vshrl.u32 %v5635, 16
      %v5780 = vshll.u32 %v5635, 16
      %v5782 = vrot.slane %v5780, 1
      %v5783 = vor.u32 %v5778, %v5782
      %v5785 = vshll.u32 %v5636, 16
      %v5787 = vrot.slane %v5785, 1
      %v5788 = vsel %vm1197, %v5783, %v5787
      %v5790 = vshrl.u32 %v5637, 16
      %v5792 = vshll.u32 %v5637, 16
      %v5794 = vrot.slane %v5792, 1
      %v5795 = vor.u32 %v5790, %v5794
      %v5797 = vshll.u32 %v5638, 16
      %v5799 = vrot.slane %v5797, 1
      %v5800 = vsel %vm1197, %v5795, %v5799
      %v5802 = vshrl.u32 %v5639, 16
      %v5804 = vshll.u32 %v5639, 16
      %v5806 = vrot.slane %v5804, 1
      %v5807 = vor.u32 %v5802, %v5806
      %v5809 = vshll.u32 %v5640, 16
      %v5811 = vrot.slane %v5809, 1
      %v5812 = vsel %vm1197, %v5807, %v5811
      %v5814 = vshrl.u32 %v5641, 16
      %v5816 = vshll.u32 %v5641, 16
      %v5818 = vrot.slane %v5816, 1
      %v5819 = vor.u32 %v5814, %v5818
      %v5821 = vshll.u32 %v5642, 16
      %v5823 = vrot.slane %v5821, 1
      %v5824 = vsel %vm1197, %v5819, %v5823
      %v5826 = vshrl.u32 %v5643, 16
      %v5828 = vshll.u32 %v5643, 16
      %v5830 = vrot.slane %v5828, 1
      %v5831 = vor.u32 %v5826, %v5830
      %v5833 = vshll.u32 %v5644, 16
      %v5835 = vrot.slane %v5833, 1
      %v5836 = vsel %vm1197, %v5831, %v5835
      %5837 = vrot.lane.b32.xlu0 %v5656, 32
      %v5838 = vpop.permute.xlu0 %5837
      %5839 = vrot.lane.b32.xlu0 %v5668, 32
      %v5840 = vpop.permute.xlu0 %5839
      %5841 = vrot.lane.b32.xlu0 %v5680, 32
      %v5842 = vpop.permute.xlu0 %5841
      %5843 = vrot.lane.b32.xlu0 %v5692, 32
      %v5844 = vpop.permute.xlu0 %5843
      %5845 = vrot.lane.b32.xlu0 %v5704, 32
      %v5846 = vpop.permute.xlu0 %5845
      %5847 = vrot.lane.b32.xlu0 %v5716, 32
      %v5848 = vpop.permute.xlu0 %5847
      %5849 = vrot.lane.b32.xlu0 %v5728, 32
      %v5850 = vpop.permute.xlu0 %5849
      %5851 = vrot.lane.b32.xlu0 %v5740, 32
      %v5852 = vpop.permute.xlu0 %5851
      %5853 = vrot.lane.b32.xlu0 %v5752, 32
      %v5854 = vpop.permute.xlu0 %5853
      %5855 = vrot.lane.b32.xlu0 %v5764, 32
      %v5856 = vpop.permute.xlu0 %5855
      %5857 = vrot.lane.b32.xlu0 %v5776, 32
      %v5858 = vpop.permute.xlu0 %5857
      %5859 = vrot.lane.b32.xlu0 %v5788, 32
      %v5860 = vpop.permute.xlu0 %5859
      %5861 = vrot.lane.b32.xlu0 %v5800, 32
      %v5862 = vpop.permute.xlu0 %5861
      %5863 = vrot.lane.b32.xlu0 %v5812, 32
      %v5864 = vpop.permute.xlu0 %5863
      %5865 = vrot.lane.b32.xlu0 %v5824, 32
      %v5866 = vpop.permute.xlu0 %5865
      %5867 = vrot.lane.b32.xlu0 %v5836, 32
      %v5868 = vpop.permute.xlu0 %5867
      %vm5885 = vcmask 326912
      %5886 = vst.msk [vmem:[#allocation3] sm:$0xff] %vm5885, %v5838
      %5887 = vst.msk [vmem:[#allocation3 + $0x8] sm:$0xff] %vm5885, %v5840
      %5888 = vst.msk [vmem:[#allocation3 + $0x10] sm:$0xff] %vm5885, %v5842
      %5889 = vst.msk [vmem:[#allocation3 + $0x18] sm:$0xff] %vm5885, %v5844
      %5890 = vst.msk [vmem:[#allocation3 + $0x20] sm:$0xff] %vm5885, %v5846
      %5891 = vst.msk [vmem:[#allocation3 + $0x28] sm:$0xff] %vm5885, %v5848
      %5892 = vst.msk [vmem:[#allocation3 + $0x30] sm:$0xff] %vm5885, %v5850
      %5893 = vst.msk [vmem:[#allocation3 + $0x38] sm:$0xff] %vm5885, %v5852
      %5894 = vst.msk [vmem:[#allocation3 + $0x40] sm:$0xff] %vm5885, %v5854
      %5895 = vst.msk [vmem:[#allocation3 + $0x48] sm:$0xff] %vm5885, %v5856
      %5896 = vst.msk [vmem:[#allocation3 + $0x50] sm:$0xff] %vm5885, %v5858
      %5897 = vst.msk [vmem:[#allocation3 + $0x58] sm:$0xff] %vm5885, %v5860
      %5898 = vst.msk [vmem:[#allocation3 + $0x60] sm:$0xff] %vm5885, %v5862
      %5899 = vst.msk [vmem:[#allocation3 + $0x68] sm:$0xff] %vm5885, %v5864
      %5900 = vst.msk [vmem:[#allocation3 + $0x70] sm:$0xff] %vm5885, %v5866
      %5901 = vst.msk [vmem:[#allocation3 + $0x78] sm:$0xff] %vm5885, %v5868
      %v5902 = vld [vmem:[%s287] sm:$0xe]
      %v5903 = vld [vmem:[%s287 + $0x4] sm:$0xf]
      %v5904 = vld [vmem:[%s287 + $0x8] sm:$0x1]
      %v5905 = vld [vmem:[%s287 + $0xc] sm:$0xe]
      %v5906 = vld [vmem:[%s287 + $0x10] sm:$0xf]
      %v5907 = vld [vmem:[%s287 + $0x14] sm:$0x1]
      %v5908 = vld [vmem:[%s287 + $0x18] sm:$0xe]
      %v5909 = vld [vmem:[%s287 + $0x1c] sm:$0xf]
      %v5910 = vld [vmem:[%s287 + $0x20] sm:$0x1]
      %v5911 = vld [vmem:[%s287 + $0x24] sm:$0xe]
      %v5912 = vld [vmem:[%s287 + $0x28] sm:$0xf]
      %v5913 = vld [vmem:[%s287 + $0x2c] sm:$0x1]
      %v5914 = vld [vmem:[%s287 + $0x30] sm:$0xe]
      %v5915 = vld [vmem:[%s287 + $0x34] sm:$0xf]
      %v5916 = vld [vmem:[%s287 + $0x38] sm:$0x1]
      %v5917 = vld [vmem:[%s287 + $0x3c] sm:$0xe]
      %v5918 = vld [vmem:[%s287 + $0x40] sm:$0xf]
      %v5919 = vld [vmem:[%s287 + $0x44] sm:$0x1]
      %v5920 = vld [vmem:[%s287 + $0x48] sm:$0xe]
      %v5921 = vld [vmem:[%s287 + $0x4c] sm:$0xf]
      %v5922 = vld [vmem:[%s287 + $0x50] sm:$0x1]
      %v5923 = vld [vmem:[%s287 + $0x54] sm:$0xe]
      %v5924 = vld [vmem:[%s287 + $0x58] sm:$0xf]
      %v5925 = vld [vmem:[%s287 + $0x5c] sm:$0x1]
      %v5926 = vld [vmem:[%s287 + $0x60] sm:$0xe]
      %v5927 = vld [vmem:[%s287 + $0x64] sm:$0xf]
      %v5928 = vld [vmem:[%s287 + $0x68] sm:$0x1]
      %v5929 = vld [vmem:[%s287 + $0x6c] sm:$0xe]
      %v5930 = vld [vmem:[%s287 + $0x70] sm:$0xf]
      %v5931 = vld [vmem:[%s287 + $0x74] sm:$0x1]
      %v5932 = vld [vmem:[%s287 + $0x78] sm:$0xe]
      %v5933 = vld [vmem:[%s287 + $0x7c] sm:$0xf]
      %v5934 = vld [vmem:[%s287 + $0x80] sm:$0x1]
      %v5935 = vld [vmem:[%s287 + $0x84] sm:$0xe]
      %v5936 = vld [vmem:[%s287 + $0x88] sm:$0xf]
      %v5937 = vld [vmem:[%s287 + $0x8c] sm:$0x1]
      %v5938 = vld [vmem:[%s287 + $0x90] sm:$0xe]
      %v5939 = vld [vmem:[%s287 + $0x94] sm:$0xf]
      %v5940 = vld [vmem:[%s287 + $0x98] sm:$0x1]
      %v5941 = vld [vmem:[%s287 + $0x9c] sm:$0xe]
      %v5942 = vld [vmem:[%s287 + $0xa0] sm:$0xf]
      %v5943 = vld [vmem:[%s287 + $0xa4] sm:$0x1]
      %v5944 = vld [vmem:[%s287 + $0xa8] sm:$0xe]
      %v5945 = vld [vmem:[%s287 + $0xac] sm:$0xf]
      %v5946 = vld [vmem:[%s287 + $0xb0] sm:$0x1]
      %v5947 = vld [vmem:[%s287 + $0xb4] sm:$0xe]
      %v5948 = vld [vmem:[%s287 + $0xb8] sm:$0xf]
      %v5949 = vld [vmem:[%s287 + $0xbc] sm:$0x1]
      %v5998 = vunpack.c.l.b16 %v5902
      %v5999 = vunpack.c.l.b16 %v5903
      %v6000 = vunpack.c.l.b16 %v5904
      %v6001 = vunpack.c.l.b16 %v5905
      %v6002 = vunpack.c.l.b16 %v5906
      %v6003 = vunpack.c.l.b16 %v5907
      %v6004 = vunpack.c.l.b16 %v5908
      %v6005 = vunpack.c.l.b16 %v5909
      %v6006 = vunpack.c.l.b16 %v5910
      %v6007 = vunpack.c.l.b16 %v5911
      %v6008 = vunpack.c.l.b16 %v5912
      %v6009 = vunpack.c.l.b16 %v5913
      %v6010 = vunpack.c.l.b16 %v5914
      %v6011 = vunpack.c.l.b16 %v5915
      %v6012 = vunpack.c.l.b16 %v5916
      %v6013 = vunpack.c.l.b16 %v5917
      %v6014 = vunpack.c.l.b16 %v5918
      %v6015 = vunpack.c.l.b16 %v5919
      %v6016 = vunpack.c.l.b16 %v5920
      %v6017 = vunpack.c.l.b16 %v5921
      %v6018 = vunpack.c.l.b16 %v5922
      %v6019 = vunpack.c.l.b16 %v5923
      %v6020 = vunpack.c.l.b16 %v5924
      %v6021 = vunpack.c.l.b16 %v5925
      %v6022 = vunpack.c.l.b16 %v5926
      %v6023 = vunpack.c.l.b16 %v5927
      %v6024 = vunpack.c.l.b16 %v5928
      %v6025 = vunpack.c.l.b16 %v5929
      %v6026 = vunpack.c.l.b16 %v5930
      %v6027 = vunpack.c.l.b16 %v5931
      %v6028 = vunpack.c.l.b16 %v5932
      %v6029 = vunpack.c.l.b16 %v5933
      %v6030 = vunpack.c.l.b16 %v5934
      %v6031 = vunpack.c.l.b16 %v5935
      %v6032 = vunpack.c.l.b16 %v5936
      %v6033 = vunpack.c.l.b16 %v5937
      %v6034 = vunpack.c.l.b16 %v5938
      %v6035 = vunpack.c.l.b16 %v5939
      %v6036 = vunpack.c.l.b16 %v5940
      %v6037 = vunpack.c.l.b16 %v5941
      %v6038 = vunpack.c.l.b16 %v5942
      %v6039 = vunpack.c.l.b16 %v5943
      %v6040 = vunpack.c.l.b16 %v5944
      %v6041 = vunpack.c.l.b16 %v5945
      %v6042 = vunpack.c.l.b16 %v5946
      %v6043 = vunpack.c.l.b16 %v5947
      %v6044 = vunpack.c.l.b16 %v5948
      %v6045 = vunpack.c.l.b16 %v5949
      %v6046 = vpack.c.b16 %v5999, %v5998
      %v6047 = vpack.c.b16 %v6000, %v6000
      %v6048 = vpack.c.b16 %v6002, %v6001
      %v6049 = vpack.c.b16 %v6003, %v6003
      %v6050 = vpack.c.b16 %v6005, %v6004
      %v6051 = vpack.c.b16 %v6006, %v6006
      %v6052 = vpack.c.b16 %v6008, %v6007
      %v6053 = vpack.c.b16 %v6009, %v6009
      %v6054 = vpack.c.b16 %v6011, %v6010
      %v6055 = vpack.c.b16 %v6012, %v6012
      %v6056 = vpack.c.b16 %v6014, %v6013
      %v6057 = vpack.c.b16 %v6015, %v6015
      %v6058 = vpack.c.b16 %v6017, %v6016
      %v6059 = vpack.c.b16 %v6018, %v6018
      %v6060 = vpack.c.b16 %v6020, %v6019
      %v6061 = vpack.c.b16 %v6021, %v6021
      %v6062 = vpack.c.b16 %v6023, %v6022
      %v6063 = vpack.c.b16 %v6024, %v6024
      %v6064 = vpack.c.b16 %v6026, %v6025
      %v6065 = vpack.c.b16 %v6027, %v6027
      %v6066 = vpack.c.b16 %v6029, %v6028
      %v6067 = vpack.c.b16 %v6030, %v6030
      %v6068 = vpack.c.b16 %v6032, %v6031
      %v6069 = vpack.c.b16 %v6033, %v6033
      %v6070 = vpack.c.b16 %v6035, %v6034
      %v6071 = vpack.c.b16 %v6036, %v6036
      %v6072 = vpack.c.b16 %v6038, %v6037
      %v6073 = vpack.c.b16 %v6039, %v6039
      %v6074 = vpack.c.b16 %v6041, %v6040
      %v6075 = vpack.c.b16 %v6042, %v6042
      %v6076 = vpack.c.b16 %v6044, %v6043
      %v6077 = vpack.c.b16 %v6045, %v6045
      %v6078 = vrot.slane %v6046, 1
      %v6079 = vrot.slane %v6047, 1
      %v6080 = vsel %vm1631, %v6078, %v6079
      %v6081 = vrot.slane %v6048, 1
      %v6082 = vrot.slane %v6049, 1
      %v6083 = vsel %vm1631, %v6081, %v6082
      %v6084 = vrot.slane %v6050, 1
      %v6085 = vrot.slane %v6051, 1
      %v6086 = vsel %vm1631, %v6084, %v6085
      %v6087 = vrot.slane %v6052, 1
      %v6088 = vrot.slane %v6053, 1
      %v6089 = vsel %vm1631, %v6087, %v6088
      %v6090 = vrot.slane %v6054, 1
      %v6091 = vrot.slane %v6055, 1
      %v6092 = vsel %vm1631, %v6090, %v6091
      %v6093 = vrot.slane %v6056, 1
      %v6094 = vrot.slane %v6057, 1
      %v6095 = vsel %vm1631, %v6093, %v6094
      %v6096 = vrot.slane %v6058, 1
      %v6097 = vrot.slane %v6059, 1
      %v6098 = vsel %vm1631, %v6096, %v6097
      %v6099 = vrot.slane %v6060, 1
      %v6100 = vrot.slane %v6061, 1
      %v6101 = vsel %vm1631, %v6099, %v6100
      %v6102 = vrot.slane %v6062, 1
      %v6103 = vrot.slane %v6063, 1
      %v6104 = vsel %vm1631, %v6102, %v6103
      %v6105 = vrot.slane %v6064, 1
      %v6106 = vrot.slane %v6065, 1
      %v6107 = vsel %vm1631, %v6105, %v6106
      %v6108 = vrot.slane %v6066, 1
      %v6109 = vrot.slane %v6067, 1
      %v6110 = vsel %vm1631, %v6108, %v6109
      %v6111 = vrot.slane %v6068, 1
      %v6112 = vrot.slane %v6069, 1
      %v6113 = vsel %vm1631, %v6111, %v6112
      %v6114 = vrot.slane %v6070, 1
      %v6115 = vrot.slane %v6071, 1
      %v6116 = vsel %vm1631, %v6114, %v6115
      %v6117 = vrot.slane %v6072, 1
      %v6118 = vrot.slane %v6073, 1
      %v6119 = vsel %vm1631, %v6117, %v6118
      %v6120 = vrot.slane %v6074, 1
      %v6121 = vrot.slane %v6075, 1
      %v6122 = vsel %vm1631, %v6120, %v6121
      %v6123 = vrot.slane %v6076, 1
      %v6124 = vrot.slane %v6077, 1
      %v6125 = vsel %vm1631, %v6123, %v6124
      %6126 = vrot.lane.b32.xlu0 %v6080, 40
      %v6127 = vpop.permute.xlu0 %6126
      %6128 = vrot.lane.b32.xlu0 %v6083, 40
      %v6129 = vpop.permute.xlu0 %6128
      %6130 = vrot.lane.b32.xlu0 %v6086, 40
      %v6131 = vpop.permute.xlu0 %6130
      %6132 = vrot.lane.b32.xlu0 %v6089, 40
      %v6133 = vpop.permute.xlu0 %6132
      %6134 = vrot.lane.b32.xlu0 %v6092, 40
      %v6135 = vpop.permute.xlu0 %6134
      %6136 = vrot.lane.b32.xlu0 %v6095, 40
      %v6137 = vpop.permute.xlu0 %6136
      %6138 = vrot.lane.b32.xlu0 %v6098, 40
      %v6139 = vpop.permute.xlu0 %6138
      %6140 = vrot.lane.b32.xlu0 %v6101, 40
      %v6141 = vpop.permute.xlu0 %6140
      %6142 = vrot.lane.b32.xlu0 %v6104, 40
      %v6143 = vpop.permute.xlu0 %6142
      %6144 = vrot.lane.b32.xlu0 %v6107, 40
      %v6145 = vpop.permute.xlu0 %6144
      %6146 = vrot.lane.b32.xlu0 %v6110, 40
      %v6147 = vpop.permute.xlu0 %6146
      %6148 = vrot.lane.b32.xlu0 %v6113, 40
      %v6149 = vpop.permute.xlu0 %6148
      %6150 = vrot.lane.b32.xlu0 %v6116, 40
      %v6151 = vpop.permute.xlu0 %6150
      %6152 = vrot.lane.b32.xlu0 %v6119, 40
      %v6153 = vpop.permute.xlu0 %6152
      %6154 = vrot.lane.b32.xlu0 %v6122, 40
      %v6155 = vpop.permute.xlu0 %6154
      %6156 = vrot.lane.b32.xlu0 %v6125, 40
      %v6157 = vpop.permute.xlu0 %6156
      %vm6174 = vcmask 392512
      %6175 = vst.msk [vmem:[#allocation3] sm:$0xff] %vm6174, %v6127
      %6176 = vst.msk [vmem:[#allocation3 + $0x8] sm:$0xff] %vm6174, %v6129
      %6177 = vst.msk [vmem:[#allocation3 + $0x10] sm:$0xff] %vm6174, %v6131
      %6178 = vst.msk [vmem:[#allocation3 + $0x18] sm:$0xff] %vm6174, %v6133
      %6179 = vst.msk [vmem:[#allocation3 + $0x20] sm:$0xff] %vm6174, %v6135
      %6180 = vst.msk [vmem:[#allocation3 + $0x28] sm:$0xff] %vm6174, %v6137
      %6181 = vst.msk [vmem:[#allocation3 + $0x30] sm:$0xff] %vm6174, %v6139
      %6182 = vst.msk [vmem:[#allocation3 + $0x38] sm:$0xff] %vm6174, %v6141
      %6183 = vst.msk [vmem:[#allocation3 + $0x40] sm:$0xff] %vm6174, %v6143
      %6184 = vst.msk [vmem:[#allocation3 + $0x48] sm:$0xff] %vm6174, %v6145
      %6185 = vst.msk [vmem:[#allocation3 + $0x50] sm:$0xff] %vm6174, %v6147
      %6186 = vst.msk [vmem:[#allocation3 + $0x58] sm:$0xff] %vm6174, %v6149
      %6187 = vst.msk [vmem:[#allocation3 + $0x60] sm:$0xff] %vm6174, %v6151
      %6188 = vst.msk [vmem:[#allocation3 + $0x68] sm:$0xff] %vm6174, %v6153
      %6189 = vst.msk [vmem:[#allocation3 + $0x70] sm:$0xff] %vm6174, %v6155
      %6190 = vst.msk [vmem:[#allocation3 + $0x78] sm:$0xff] %vm6174, %v6157
      %v6191 = vld [vmem:[%s2644] sm:$0xf]
      %v6192 = vld [vmem:[%s2644 + $0x4] sm:$0xf]
      %v6193 = vld [vmem:[%s2644 + $0xc] sm:$0xf]
      %v6194 = vld [vmem:[%s2644 + $0x10] sm:$0xf]
      %v6195 = vld [vmem:[%s2644 + $0x18] sm:$0xf]
      %v6196 = vld [vmem:[%s2644 + $0x1c] sm:$0xf]
      %v6197 = vld [vmem:[%s2644 + $0x24] sm:$0xf]
      %v6198 = vld [vmem:[%s2644 + $0x28] sm:$0xf]
      %v6199 = vld [vmem:[%s2644 + $0x30] sm:$0xf]
      %v6200 = vld [vmem:[%s2644 + $0x34] sm:$0xf]
      %v6201 = vld [vmem:[%s2644 + $0x3c] sm:$0xf]
      %v6202 = vld [vmem:[%s2644 + $0x40] sm:$0xf]
      %v6203 = vld [vmem:[%s2644 + $0x48] sm:$0xf]
      %v6204 = vld [vmem:[%s2644 + $0x4c] sm:$0xf]
      %v6205 = vld [vmem:[%s2644 + $0x54] sm:$0xf]
      %v6206 = vld [vmem:[%s2644 + $0x58] sm:$0xf]
      %v6207 = vld [vmem:[%s2644 + $0x60] sm:$0xf]
      %v6208 = vld [vmem:[%s2644 + $0x64] sm:$0xf]
      %v6209 = vld [vmem:[%s2644 + $0x6c] sm:$0xf]
      %v6210 = vld [vmem:[%s2644 + $0x70] sm:$0xf]
      %v6211 = vld [vmem:[%s2644 + $0x78] sm:$0xf]
      %v6212 = vld [vmem:[%s2644 + $0x7c] sm:$0xf]
      %v6213 = vld [vmem:[%s2644 + $0x84] sm:$0xf]
      %v6214 = vld [vmem:[%s2644 + $0x88] sm:$0xf]
      %v6215 = vld [vmem:[%s2644 + $0x90] sm:$0xf]
      %v6216 = vld [vmem:[%s2644 + $0x94] sm:$0xf]
      %v6217 = vld [vmem:[%s2644 + $0x9c] sm:$0xf]
      %v6218 = vld [vmem:[%s2644 + $0xa0] sm:$0xf]
      %v6219 = vld [vmem:[%s2644 + $0xa8] sm:$0xf]
      %v6220 = vld [vmem:[%s2644 + $0xac] sm:$0xf]
      %v6221 = vld [vmem:[%s2644 + $0xb4] sm:$0xf]
      %v6222 = vld [vmem:[%s2644 + $0xb8] sm:$0xf]
      %v6255 = vunpack.c.l.b16 %v6191
      %v6256 = vunpack.c.l.b16 %v6192
      %v6257 = vunpack.c.l.b16 %v6193
      %v6258 = vunpack.c.l.b16 %v6194
      %v6259 = vunpack.c.l.b16 %v6195
      %v6260 = vunpack.c.l.b16 %v6196
      %v6261 = vunpack.c.l.b16 %v6197
      %v6262 = vunpack.c.l.b16 %v6198
      %v6263 = vunpack.c.l.b16 %v6199
      %v6264 = vunpack.c.l.b16 %v6200
      %v6265 = vunpack.c.l.b16 %v6201
      %v6266 = vunpack.c.l.b16 %v6202
      %v6267 = vunpack.c.l.b16 %v6203
      %v6268 = vunpack.c.l.b16 %v6204
      %v6269 = vunpack.c.l.b16 %v6205
      %v6270 = vunpack.c.l.b16 %v6206
      %v6271 = vunpack.c.l.b16 %v6207
      %v6272 = vunpack.c.l.b16 %v6208
      %v6273 = vunpack.c.l.b16 %v6209
      %v6274 = vunpack.c.l.b16 %v6210
      %v6275 = vunpack.c.l.b16 %v6211
      %v6276 = vunpack.c.l.b16 %v6212
      %v6277 = vunpack.c.l.b16 %v6213
      %v6278 = vunpack.c.l.b16 %v6214
      %v6279 = vunpack.c.l.b16 %v6215
      %v6280 = vunpack.c.l.b16 %v6216
      %v6281 = vunpack.c.l.b16 %v6217
      %v6282 = vunpack.c.l.b16 %v6218
      %v6283 = vunpack.c.l.b16 %v6219
      %v6284 = vunpack.c.l.b16 %v6220
      %v6285 = vunpack.c.l.b16 %v6221
      %v6286 = vunpack.c.l.b16 %v6222
      %v6287 = vpack.c.b16 %v6256, %v6255
      %v6288 = vpack.c.b16 %v6258, %v6257
      %v6289 = vpack.c.b16 %v6260, %v6259
      %v6290 = vpack.c.b16 %v6262, %v6261
      %v6291 = vpack.c.b16 %v6264, %v6263
      %v6292 = vpack.c.b16 %v6266, %v6265
      %v6293 = vpack.c.b16 %v6268, %v6267
      %v6294 = vpack.c.b16 %v6270, %v6269
      %v6295 = vpack.c.b16 %v6272, %v6271
      %v6296 = vpack.c.b16 %v6274, %v6273
      %v6297 = vpack.c.b16 %v6276, %v6275
      %v6298 = vpack.c.b16 %v6278, %v6277
      %v6299 = vpack.c.b16 %v6280, %v6279
      %v6300 = vpack.c.b16 %v6282, %v6281
      %v6301 = vpack.c.b16 %v6284, %v6283
      %v6302 = vpack.c.b16 %v6286, %v6285
      %6303 = vrot.lane.b32.xlu0 %v6287, 48
      %v6304 = vpop.permute.xlu0 %6303
      %6305 = vrot.lane.b32.xlu0 %v6288, 48
      %v6306 = vpop.permute.xlu0 %6305
      %6307 = vrot.lane.b32.xlu0 %v6289, 48
      %v6308 = vpop.permute.xlu0 %6307
      %6309 = vrot.lane.b32.xlu0 %v6290, 48
      %v6310 = vpop.permute.xlu0 %6309
      %6311 = vrot.lane.b32.xlu0 %v6291, 48
      %v6312 = vpop.permute.xlu0 %6311
      %6313 = vrot.lane.b32.xlu0 %v6292, 48
      %v6314 = vpop.permute.xlu0 %6313
      %6315 = vrot.lane.b32.xlu0 %v6293, 48
      %v6316 = vpop.permute.xlu0 %6315
      %6317 = vrot.lane.b32.xlu0 %v6294, 48
      %v6318 = vpop.permute.xlu0 %6317
      %6319 = vrot.lane.b32.xlu0 %v6295, 48
      %v6320 = vpop.permute.xlu0 %6319
      %6321 = vrot.lane.b32.xlu0 %v6296, 48
      %v6322 = vpop.permute.xlu0 %6321
      %6323 = vrot.lane.b32.xlu0 %v6297, 48
      %v6324 = vpop.permute.xlu0 %6323
      %6325 = vrot.lane.b32.xlu0 %v6298, 48
      %v6326 = vpop.permute.xlu0 %6325
      %6327 = vrot.lane.b32.xlu0 %v6299, 48
      %v6328 = vpop.permute.xlu0 %6327
      %6329 = vrot.lane.b32.xlu0 %v6300, 48
      %v6330 = vpop.permute.xlu0 %6329
      %6331 = vrot.lane.b32.xlu0 %v6301, 48
      %v6332 = vpop.permute.xlu0 %6331
      %6333 = vrot.lane.b32.xlu0 %v6302, 48
      %v6334 = vpop.permute.xlu0 %6333
      %vm6351 = vcmask 458112
      %6352 = vst.msk [vmem:[#allocation3] sm:$0xff] %vm6351, %v6304
      %6353 = vst.msk [vmem:[#allocation3 + $0x8] sm:$0xff] %vm6351, %v6306
      %6354 = vst.msk [vmem:[#allocation3 + $0x10] sm:$0xff] %vm6351, %v6308
      %6355 = vst.msk [vmem:[#allocation3 + $0x18] sm:$0xff] %vm6351, %v6310
      %6356 = vst.msk [vmem:[#allocation3 + $0x20] sm:$0xff] %vm6351, %v6312
      %6357 = vst.msk [vmem:[#allocation3 + $0x28] sm:$0xff] %vm6351, %v6314
      %6358 = vst.msk [vmem:[#allocation3 + $0x30] sm:$0xff] %vm6351, %v6316
      %6359 = vst.msk [vmem:[#allocation3 + $0x38] sm:$0xff] %vm6351, %v6318
      %6360 = vst.msk [vmem:[#allocation3 + $0x40] sm:$0xff] %vm6351, %v6320
      %6361 = vst.msk [vmem:[#allocation3 + $0x48] sm:$0xff] %vm6351, %v6322
      %6362 = vst.msk [vmem:[#allocation3 + $0x50] sm:$0xff] %vm6351, %v6324
      %6363 = vst.msk [vmem:[#allocation3 + $0x58] sm:$0xff] %vm6351, %v6326
      %6364 = vst.msk [vmem:[#allocation3 + $0x60] sm:$0xff] %vm6351, %v6328
      %6365 = vst.msk [vmem:[#allocation3 + $0x68] sm:$0xff] %vm6351, %v6330
      %6366 = vst.msk [vmem:[#allocation3 + $0x70] sm:$0xff] %vm6351, %v6332
      %6367 = vst.msk [vmem:[#allocation3 + $0x78] sm:$0xff] %vm6351, %v6334
      %v6368 = vld [vmem:[%s2644] sm:$0xf]
      %v6369 = vld [vmem:[%s2644 + $0x4] sm:$0xf]
      %v6370 = vld [vmem:[%s2644 + $0x8] sm:$0x1]
      %v6371 = vld [vmem:[%s2644 + $0xc] sm:$0xf]
      %v6372 = vld [vmem:[%s2644 + $0x10] sm:$0xf]
      %v6373 = vld [vmem:[%s2644 + $0x14] sm:$0x1]
      %v6374 = vld [vmem:[%s2644 + $0x18] sm:$0xf]
      %v6375 = vld [vmem:[%s2644 + $0x1c] sm:$0xf]
      %v6376 = vld [vmem:[%s2644 + $0x20] sm:$0x1]
      %v6377 = vld [vmem:[%s2644 + $0x24] sm:$0xf]
      %v6378 = vld [vmem:[%s2644 + $0x28] sm:$0xf]
      %v6379 = vld [vmem:[%s2644 + $0x2c] sm:$0x1]
      %v6380 = vld [vmem:[%s2644 + $0x30] sm:$0xf]
      %v6381 = vld [vmem:[%s2644 + $0x34] sm:$0xf]
      %v6382 = vld [vmem:[%s2644 + $0x38] sm:$0x1]
      %v6383 = vld [vmem:[%s2644 + $0x3c] sm:$0xf]
      %v6384 = vld [vmem:[%s2644 + $0x40] sm:$0xf]
      %v6385 = vld [vmem:[%s2644 + $0x44] sm:$0x1]
      %v6386 = vld [vmem:[%s2644 + $0x48] sm:$0xf]
      %v6387 = vld [vmem:[%s2644 + $0x4c] sm:$0xf]
      %v6388 = vld [vmem:[%s2644 + $0x50] sm:$0x1]
      %v6389 = vld [vmem:[%s2644 + $0x54] sm:$0xf]
      %v6390 = vld [vmem:[%s2644 + $0x58] sm:$0xf]
      %v6391 = vld [vmem:[%s2644 + $0x5c] sm:$0x1]
      %v6392 = vld [vmem:[%s2644 + $0x60] sm:$0xf]
      %v6393 = vld [vmem:[%s2644 + $0x64] sm:$0xf]
      %v6394 = vld [vmem:[%s2644 + $0x68] sm:$0x1]
      %v6395 = vld [vmem:[%s2644 + $0x6c] sm:$0xf]
      %v6396 = vld [vmem:[%s2644 + $0x70] sm:$0xf]
      %v6397 = vld [vmem:[%s2644 + $0x74] sm:$0x1]
      %v6398 = vld [vmem:[%s2644 + $0x78] sm:$0xf]
      %v6399 = vld [vmem:[%s2644 + $0x7c] sm:$0xf]
      %v6400 = vld [vmem:[%s2644 + $0x80] sm:$0x1]
      %v6401 = vld [vmem:[%s2644 + $0x84] sm:$0xf]
      %v6402 = vld [vmem:[%s2644 + $0x88] sm:$0xf]
      %v6403 = vld [vmem:[%s2644 + $0x8c] sm:$0x1]
      %v6404 = vld [vmem:[%s2644 + $0x90] sm:$0xf]
      %v6405 = vld [vmem:[%s2644 + $0x94] sm:$0xf]
      %v6406 = vld [vmem:[%s2644 + $0x98] sm:$0x1]
      %v6407 = vld [vmem:[%s2644 + $0x9c] sm:$0xf]
      %v6408 = vld [vmem:[%s2644 + $0xa0] sm:$0xf]
      %v6409 = vld [vmem:[%s2644 + $0xa4] sm:$0x1]
      %v6410 = vld [vmem:[%s2644 + $0xa8] sm:$0xf]
      %v6411 = vld [vmem:[%s2644 + $0xac] sm:$0xf]
      %v6412 = vld [vmem:[%s2644 + $0xb0] sm:$0x1]
      %v6413 = vld [vmem:[%s2644 + $0xb4] sm:$0xf]
      %v6414 = vld [vmem:[%s2644 + $0xb8] sm:$0xf]
      %v6415 = vld [vmem:[%s2644 + $0xbc] sm:$0x1]
      %v6464 = vunpack.c.l.b16 %v6368
      %v6465 = vunpack.c.l.b16 %v6369
      %v6466 = vunpack.c.l.b16 %v6370
      %v6467 = vunpack.c.l.b16 %v6371
      %v6468 = vunpack.c.l.b16 %v6372
      %v6469 = vunpack.c.l.b16 %v6373
      %v6470 = vunpack.c.l.b16 %v6374
      %v6471 = vunpack.c.l.b16 %v6375
      %v6472 = vunpack.c.l.b16 %v6376
      %v6473 = vunpack.c.l.b16 %v6377
      %v6474 = vunpack.c.l.b16 %v6378
      %v6475 = vunpack.c.l.b16 %v6379
      %v6476 = vunpack.c.l.b16 %v6380
      %v6477 = vunpack.c.l.b16 %v6381
      %v6478 = vunpack.c.l.b16 %v6382
      %v6479 = vunpack.c.l.b16 %v6383
      %v6480 = vunpack.c.l.b16 %v6384
      %v6481 = vunpack.c.l.b16 %v6385
      %v6482 = vunpack.c.l.b16 %v6386
      %v6483 = vunpack.c.l.b16 %v6387
      %v6484 = vunpack.c.l.b16 %v6388
      %v6485 = vunpack.c.l.b16 %v6389
      %v6486 = vunpack.c.l.b16 %v6390
      %v6487 = vunpack.c.l.b16 %v6391
      %v6488 = vunpack.c.l.b16 %v6392
      %v6489 = vunpack.c.l.b16 %v6393
      %v6490 = vunpack.c.l.b16 %v6394
      %v6491 = vunpack.c.l.b16 %v6395
      %v6492 = vunpack.c.l.b16 %v6396
      %v6493 = vunpack.c.l.b16 %v6397
      %v6494 = vunpack.c.l.b16 %v6398
      %v6495 = vunpack.c.l.b16 %v6399
      %v6496 = vunpack.c.l.b16 %v6400
      %v6497 = vunpack.c.l.b16 %v6401
      %v6498 = vunpack.c.l.b16 %v6402
      %v6499 = vunpack.c.l.b16 %v6403
      %v6500 = vunpack.c.l.b16 %v6404
      %v6501 = vunpack.c.l.b16 %v6405
      %v6502 = vunpack.c.l.b16 %v6406
      %v6503 = vunpack.c.l.b16 %v6407
      %v6504 = vunpack.c.l.b16 %v6408
      %v6505 = vunpack.c.l.b16 %v6409
      %v6506 = vunpack.c.l.b16 %v6410
      %v6507 = vunpack.c.l.b16 %v6411
      %v6508 = vunpack.c.l.b16 %v6412
      %v6509 = vunpack.c.l.b16 %v6413
      %v6510 = vunpack.c.l.b16 %v6414
      %v6511 = vunpack.c.l.b16 %v6415
      %v6512 = vpack.c.b16 %v6465, %v6464
      %v6513 = vpack.c.b16 %v6466, %v6466
      %v6514 = vpack.c.b16 %v6468, %v6467
      %v6515 = vpack.c.b16 %v6469, %v6469
      %v6516 = vpack.c.b16 %v6471, %v6470
      %v6517 = vpack.c.b16 %v6472, %v6472
      %v6518 = vpack.c.b16 %v6474, %v6473
      %v6519 = vpack.c.b16 %v6475, %v6475
      %v6520 = vpack.c.b16 %v6477, %v6476
      %v6521 = vpack.c.b16 %v6478, %v6478
      %v6522 = vpack.c.b16 %v6480, %v6479
      %v6523 = vpack.c.b16 %v6481, %v6481
      %v6524 = vpack.c.b16 %v6483, %v6482
      %v6525 = vpack.c.b16 %v6484, %v6484
      %v6526 = vpack.c.b16 %v6486, %v6485
      %v6527 = vpack.c.b16 %v6487, %v6487
      %v6528 = vpack.c.b16 %v6489, %v6488
      %v6529 = vpack.c.b16 %v6490, %v6490
      %v6530 = vpack.c.b16 %v6492, %v6491
      %v6531 = vpack.c.b16 %v6493, %v6493
      %v6532 = vpack.c.b16 %v6495, %v6494
      %v6533 = vpack.c.b16 %v6496, %v6496
      %v6534 = vpack.c.b16 %v6498, %v6497
      %v6535 = vpack.c.b16 %v6499, %v6499
      %v6536 = vpack.c.b16 %v6501, %v6500
      %v6537 = vpack.c.b16 %v6502, %v6502
      %v6538 = vpack.c.b16 %v6504, %v6503
      %v6539 = vpack.c.b16 %v6505, %v6505
      %v6540 = vpack.c.b16 %v6507, %v6506
      %v6541 = vpack.c.b16 %v6508, %v6508
      %v6542 = vpack.c.b16 %v6510, %v6509
      %v6543 = vpack.c.b16 %v6511, %v6511
      %v6545 = vshrl.u32 %v6512, 16
      %v6547 = vshll.u32 %v6512, 16
      %v6549 = vrot.slane %v6547, 1
      %v6550 = vor.u32 %v6545, %v6549
      %v6552 = vshll.u32 %v6513, 16
      %v6554 = vrot.slane %v6552, 1
      %v6555 = vsel %vm1197, %v6550, %v6554
      %v6557 = vshrl.u32 %v6514, 16
      %v6559 = vshll.u32 %v6514, 16
      %v6561 = vrot.slane %v6559, 1
      %v6562 = vor.u32 %v6557, %v6561
      %v6564 = vshll.u32 %v6515, 16
      %v6566 = vrot.slane %v6564, 1
      %v6567 = vsel %vm1197, %v6562, %v6566
      %v6569 = vshrl.u32 %v6516, 16
      %v6571 = vshll.u32 %v6516, 16
      %v6573 = vrot.slane %v6571, 1
      %v6574 = vor.u32 %v6569, %v6573
      %v6576 = vshll.u32 %v6517, 16
      %v6578 = vrot.slane %v6576, 1
      %v6579 = vsel %vm1197, %v6574, %v6578
      %v6581 = vshrl.u32 %v6518, 16
      %v6583 = vshll.u32 %v6518, 16
      %v6585 = vrot.slane %v6583, 1
      %v6586 = vor.u32 %v6581, %v6585
      %v6588 = vshll.u32 %v6519, 16
      %v6590 = vrot.slane %v6588, 1
      %v6591 = vsel %vm1197, %v6586, %v6590
      %v6593 = vshrl.u32 %v6520, 16
      %v6595 = vshll.u32 %v6520, 16
      %v6597 = vrot.slane %v6595, 1
      %v6598 = vor.u32 %v6593, %v6597
      %v6600 = vshll.u32 %v6521, 16
      %v6602 = vrot.slane %v6600, 1
      %v6603 = vsel %vm1197, %v6598, %v6602
      %v6605 = vshrl.u32 %v6522, 16
      %v6607 = vshll.u32 %v6522, 16
      %v6609 = vrot.slane %v6607, 1
      %v6610 = vor.u32 %v6605, %v6609
      %v6612 = vshll.u32 %v6523, 16
      %v6614 = vrot.slane %v6612, 1
      %v6615 = vsel %vm1197, %v6610, %v6614
      %v6617 = vshrl.u32 %v6524, 16
      %v6619 = vshll.u32 %v6524, 16
      %v6621 = vrot.slane %v6619, 1
      %v6622 = vor.u32 %v6617, %v6621
      %v6624 = vshll.u32 %v6525, 16
      %v6626 = vrot.slane %v6624, 1
      %v6627 = vsel %vm1197, %v6622, %v6626
      %v6629 = vshrl.u32 %v6526, 16
      %v6631 = vshll.u32 %v6526, 16
      %v6633 = vrot.slane %v6631, 1
      %v6634 = vor.u32 %v6629, %v6633
      %v6636 = vshll.u32 %v6527, 16
      %v6638 = vrot.slane %v6636, 1
      %v6639 = vsel %vm1197, %v6634, %v6638
      %v6641 = vshrl.u32 %v6528, 16
      %v6643 = vshll.u32 %v6528, 16
      %v6645 = vrot.slane %v6643, 1
      %v6646 = vor.u32 %v6641, %v6645
      %v6648 = vshll.u32 %v6529, 16
      %v6650 = vrot.slane %v6648, 1
      %v6651 = vsel %vm1197, %v6646, %v6650
      %v6653 = vshrl.u32 %v6530, 16
      %v6655 = vshll.u32 %v6530, 16
      %v6657 = vrot.slane %v6655, 1
      %v6658 = vor.u32 %v6653, %v6657
      %v6660 = vshll.u32 %v6531, 16
      %v6662 = vrot.slane %v6660, 1
      %v6663 = vsel %vm1197, %v6658, %v6662
      %v6665 = vshrl.u32 %v6532, 16
      %v6667 = vshll.u32 %v6532, 16
      %v6669 = vrot.slane %v6667, 1
      %v6670 = vor.u32 %v6665, %v6669
      %v6672 = vshll.u32 %v6533, 16
      %v6674 = vrot.slane %v6672, 1
      %v6675 = vsel %vm1197, %v6670, %v6674
      %v6677 = vshrl.u32 %v6534, 16
      %v6679 = vshll.u32 %v6534, 16
      %v6681 = vrot.slane %v6679, 1
      %v6682 = vor.u32 %v6677, %v6681
      %v6684 = vshll.u32 %v6535, 16
      %v6686 = vrot.slane %v6684, 1
      %v6687 = vsel %vm1197, %v6682, %v6686
      %v6689 = vshrl.u32 %v6536, 16
      %v6691 = vshll.u32 %v6536, 16
      %v6693 = vrot.slane %v6691, 1
      %v6694 = vor.u32 %v6689, %v6693
      %v6696 = vshll.u32 %v6537, 16
      %v6698 = vrot.slane %v6696, 1
      %v6699 = vsel %vm1197, %v6694, %v6698
      %v6701 = vshrl.u32 %v6538, 16
      %v6703 = vshll.u32 %v6538, 16
      %v6705 = vrot.slane %v6703, 1
      %v6706 = vor.u32 %v6701, %v6705
      %v6708 = vshll.u32 %v6539, 16
      %v6710 = vrot.slane %v6708, 1
      %v6711 = vsel %vm1197, %v6706, %v6710
      %v6713 = vshrl.u32 %v6540, 16
      %v6715 = vshll.u32 %v6540, 16
      %v6717 = vrot.slane %v6715, 1
      %v6718 = vor.u32 %v6713, %v6717
      %v6720 = vshll.u32 %v6541, 16
      %v6722 = vrot.slane %v6720, 1
      %v6723 = vsel %vm1197, %v6718, %v6722
      %v6725 = vshrl.u32 %v6542, 16
      %v6727 = vshll.u32 %v6542, 16
      %v6729 = vrot.slane %v6727, 1
      %v6730 = vor.u32 %v6725, %v6729
      %v6732 = vshll.u32 %v6543, 16
      %v6734 = vrot.slane %v6732, 1
      %v6735 = vsel %vm1197, %v6730, %v6734
      %6736 = vrot.lane.b32.xlu0 %v6555, 56
      %v6737 = vpop.permute.xlu0 %6736
      %6738 = vrot.lane.b32.xlu0 %v6567, 56
      %v6739 = vpop.permute.xlu0 %6738
      %6740 = vrot.lane.b32.xlu0 %v6579, 56
      %v6741 = vpop.permute.xlu0 %6740
      %6742 = vrot.lane.b32.xlu0 %v6591, 56
      %v6743 = vpop.permute.xlu0 %6742
      %6744 = vrot.lane.b32.xlu0 %v6603, 56
      %v6745 = vpop.permute.xlu0 %6744
      %6746 = vrot.lane.b32.xlu0 %v6615, 56
      %v6747 = vpop.permute.xlu0 %6746
      %6748 = vrot.lane.b32.xlu0 %v6627, 56
      %v6749 = vpop.permute.xlu0 %6748
      %6750 = vrot.lane.b32.xlu0 %v6639, 56
      %v6751 = vpop.permute.xlu0 %6750
      %6752 = vrot.lane.b32.xlu0 %v6651, 56
      %v6753 = vpop.permute.xlu0 %6752
      %6754 = vrot.lane.b32.xlu0 %v6663, 56
      %v6755 = vpop.permute.xlu0 %6754
      %6756 = vrot.lane.b32.xlu0 %v6675, 56
      %v6757 = vpop.permute.xlu0 %6756
      %6758 = vrot.lane.b32.xlu0 %v6687, 56
      %v6759 = vpop.permute.xlu0 %6758
      %6760 = vrot.lane.b32.xlu0 %v6699, 56
      %v6761 = vpop.permute.xlu0 %6760
      %6762 = vrot.lane.b32.xlu0 %v6711, 56
      %v6763 = vpop.permute.xlu0 %6762
      %6764 = vrot.lane.b32.xlu0 %v6723, 56
      %v6765 = vpop.permute.xlu0 %6764
      %6766 = vrot.lane.b32.xlu0 %v6735, 56
      %v6767 = vpop.permute.xlu0 %6766
      %vm6784 = vcmask 523712
      %6785 = vst.msk [vmem:[#allocation3] sm:$0xff] %vm6784, %v6737
      %6786 = vst.msk [vmem:[#allocation3 + $0x8] sm:$0xff] %vm6784, %v6739
      %6787 = vst.msk [vmem:[#allocation3 + $0x10] sm:$0xff] %vm6784, %v6741
      %6788 = vst.msk [vmem:[#allocation3 + $0x18] sm:$0xff] %vm6784, %v6743
      %6789 = vst.msk [vmem:[#allocation3 + $0x20] sm:$0xff] %vm6784, %v6745
      %6790 = vst.msk [vmem:[#allocation3 + $0x28] sm:$0xff] %vm6784, %v6747
      %6791 = vst.msk [vmem:[#allocation3 + $0x30] sm:$0xff] %vm6784, %v6749
      %6792 = vst.msk [vmem:[#allocation3 + $0x38] sm:$0xff] %vm6784, %v6751
      %6793 = vst.msk [vmem:[#allocation3 + $0x40] sm:$0xff] %vm6784, %v6753
      %6794 = vst.msk [vmem:[#allocation3 + $0x48] sm:$0xff] %vm6784, %v6755
      %6795 = vst.msk [vmem:[#allocation3 + $0x50] sm:$0xff] %vm6784, %v6757
      %6796 = vst.msk [vmem:[#allocation3 + $0x58] sm:$0xff] %vm6784, %v6759
      %6797 = vst.msk [vmem:[#allocation3 + $0x60] sm:$0xff] %vm6784, %v6761
      %6798 = vst.msk [vmem:[#allocation3 + $0x68] sm:$0xff] %vm6784, %v6763
      %6799 = vst.msk [vmem:[#allocation3 + $0x70] sm:$0xff] %vm6784, %v6765
      %6800 = vst.msk [vmem:[#allocation3 + $0x78] sm:$0xff] %vm6784, %v6767
      %v6801 = vld [vmem:[%s2644] sm:$0xe]
      %v6802 = vld [vmem:[%s2644 + $0x4] sm:$0xf]
      %v6803 = vld [vmem:[%s2644 + $0x8] sm:$0x1]
      %v6804 = vld [vmem:[%s2644 + $0xc] sm:$0xe]
      %v6805 = vld [vmem:[%s2644 + $0x10] sm:$0xf]
      %v6806 = vld [vmem:[%s2644 + $0x14] sm:$0x1]
      %v6807 = vld [vmem:[%s2644 + $0x18] sm:$0xe]
      %v6808 = vld [vmem:[%s2644 + $0x1c] sm:$0xf]
      %v6809 = vld [vmem:[%s2644 + $0x20] sm:$0x1]
      %v6810 = vld [vmem:[%s2644 + $0x24] sm:$0xe]
      %v6811 = vld [vmem:[%s2644 + $0x28] sm:$0xf]
      %v6812 = vld [vmem:[%s2644 + $0x2c] sm:$0x1]
      %v6813 = vld [vmem:[%s2644 + $0x30] sm:$0xe]
      %v6814 = vld [vmem:[%s2644 + $0x34] sm:$0xf]
      %v6815 = vld [vmem:[%s2644 + $0x38] sm:$0x1]
      %v6816 = vld [vmem:[%s2644 + $0x3c] sm:$0xe]
      %v6817 = vld [vmem:[%s2644 + $0x40] sm:$0xf]
      %v6818 = vld [vmem:[%s2644 + $0x44] sm:$0x1]
      %v6819 = vld [vmem:[%s2644 + $0x48] sm:$0xe]
      %v6820 = vld [vmem:[%s2644 + $0x4c] sm:$0xf]
      %v6821 = vld [vmem:[%s2644 + $0x50] sm:$0x1]
      %v6822 = vld [vmem:[%s2644 + $0x54] sm:$0xe]
      %v6823 = vld [vmem:[%s2644 + $0x58] sm:$0xf]
      %v6824 = vld [vmem:[%s2644 + $0x5c] sm:$0x1]
      %v6825 = vld [vmem:[%s2644 + $0x60] sm:$0xe]
      %v6826 = vld [vmem:[%s2644 + $0x64] sm:$0xf]
      %v6827 = vld [vmem:[%s2644 + $0x68] sm:$0x1]
      %v6828 = vld [vmem:[%s2644 + $0x6c] sm:$0xe]
      %v6829 = vld [vmem:[%s2644 + $0x70] sm:$0xf]
      %v6830 = vld [vmem:[%s2644 + $0x74] sm:$0x1]
      %v6831 = vld [vmem:[%s2644 + $0x78] sm:$0xe]
      %v6832 = vld [vmem:[%s2644 + $0x7c] sm:$0xf]
      %v6833 = vld [vmem:[%s2644 + $0x80] sm:$0x1]
      %v6834 = vld [vmem:[%s2644 + $0x84] sm:$0xe]
      %v6835 = vld [vmem:[%s2644 + $0x88] sm:$0xf]
      %v6836 = vld [vmem:[%s2644 + $0x8c] sm:$0x1]
      %v6837 = vld [vmem:[%s2644 + $0x90] sm:$0xe]
      %v6838 = vld [vmem:[%s2644 + $0x94] sm:$0xf]
      %v6839 = vld [vmem:[%s2644 + $0x98] sm:$0x1]
      %v6840 = vld [vmem:[%s2644 + $0x9c] sm:$0xe]
      %v6841 = vld [vmem:[%s2644 + $0xa0] sm:$0xf]
      %v6842 = vld [vmem:[%s2644 + $0xa4] sm:$0x1]
      %v6843 = vld [vmem:[%s2644 + $0xa8] sm:$0xe]
      %v6844 = vld [vmem:[%s2644 + $0xac] sm:$0xf]
      %v6845 = vld [vmem:[%s2644 + $0xb0] sm:$0x1]
      %v6846 = vld [vmem:[%s2644 + $0xb4] sm:$0xe]
      %v6847 = vld [vmem:[%s2644 + $0xb8] sm:$0xf]
      %v6848 = vld [vmem:[%s2644 + $0xbc] sm:$0x1]
      %v6897 = vunpack.c.l.b16 %v6801
      %v6898 = vunpack.c.l.b16 %v6802
      %v6899 = vunpack.c.l.b16 %v6803
      %v6900 = vunpack.c.l.b16 %v6804
      %v6901 = vunpack.c.l.b16 %v6805
      %v6902 = vunpack.c.l.b16 %v6806
      %v6903 = vunpack.c.l.b16 %v6807
      %v6904 = vunpack.c.l.b16 %v6808
      %v6905 = vunpack.c.l.b16 %v6809
      %v6906 = vunpack.c.l.b16 %v6810
      %v6907 = vunpack.c.l.b16 %v6811
      %v6908 = vunpack.c.l.b16 %v6812
      %v6909 = vunpack.c.l.b16 %v6813
      %v6910 = vunpack.c.l.b16 %v6814
      %v6911 = vunpack.c.l.b16 %v6815
      %v6912 = vunpack.c.l.b16 %v6816
      %v6913 = vunpack.c.l.b16 %v6817
      %v6914 = vunpack.c.l.b16 %v6818
      %v6915 = vunpack.c.l.b16 %v6819
      %v6916 = vunpack.c.l.b16 %v6820
      %v6917 = vunpack.c.l.b16 %v6821
      %v6918 = vunpack.c.l.b16 %v6822
      %v6919 = vunpack.c.l.b16 %v6823
      %v6920 = vunpack.c.l.b16 %v6824
      %v6921 = vunpack.c.l.b16 %v6825
      %v6922 = vunpack.c.l.b16 %v6826
      %v6923 = vunpack.c.l.b16 %v6827
      %v6924 = vunpack.c.l.b16 %v6828
      %v6925 = vunpack.c.l.b16 %v6829
      %v6926 = vunpack.c.l.b16 %v6830
      %v6927 = vunpack.c.l.b16 %v6831
      %v6928 = vunpack.c.l.b16 %v6832
      %v6929 = vunpack.c.l.b16 %v6833
      %v6930 = vunpack.c.l.b16 %v6834
      %v6931 = vunpack.c.l.b16 %v6835
      %v6932 = vunpack.c.l.b16 %v6836
      %v6933 = vunpack.c.l.b16 %v6837
      %v6934 = vunpack.c.l.b16 %v6838
      %v6935 = vunpack.c.l.b16 %v6839
      %v6936 = vunpack.c.l.b16 %v6840
      %v6937 = vunpack.c.l.b16 %v6841
      %v6938 = vunpack.c.l.b16 %v6842
      %v6939 = vunpack.c.l.b16 %v6843
      %v6940 = vunpack.c.l.b16 %v6844
      %v6941 = vunpack.c.l.b16 %v6845
      %v6942 = vunpack.c.l.b16 %v6846
      %v6943 = vunpack.c.l.b16 %v6847
      %v6944 = vunpack.c.l.b16 %v6848
      %v6945 = vpack.c.b16 %v6898, %v6897
      %v6946 = vpack.c.b16 %v6899, %v6899
      %v6947 = vpack.c.b16 %v6901, %v6900
      %v6948 = vpack.c.b16 %v6902, %v6902
      %v6949 = vpack.c.b16 %v6904, %v6903
      %v6950 = vpack.c.b16 %v6905, %v6905
      %v6951 = vpack.c.b16 %v6907, %v6906
      %v6952 = vpack.c.b16 %v6908, %v6908
      %v6953 = vpack.c.b16 %v6910, %v6909
      %v6954 = vpack.c.b16 %v6911, %v6911
      %v6955 = vpack.c.b16 %v6913, %v6912
      %v6956 = vpack.c.b16 %v6914, %v6914
      %v6957 = vpack.c.b16 %v6916, %v6915
      %v6958 = vpack.c.b16 %v6917, %v6917
      %v6959 = vpack.c.b16 %v6919, %v6918
      %v6960 = vpack.c.b16 %v6920, %v6920
      %v6961 = vpack.c.b16 %v6922, %v6921
      %v6962 = vpack.c.b16 %v6923, %v6923
      %v6963 = vpack.c.b16 %v6925, %v6924
      %v6964 = vpack.c.b16 %v6926, %v6926
      %v6965 = vpack.c.b16 %v6928, %v6927
      %v6966 = vpack.c.b16 %v6929, %v6929
      %v6967 = vpack.c.b16 %v6931, %v6930
      %v6968 = vpack.c.b16 %v6932, %v6932
      %v6969 = vpack.c.b16 %v6934, %v6933
      %v6970 = vpack.c.b16 %v6935, %v6935
      %v6971 = vpack.c.b16 %v6937, %v6936
      %v6972 = vpack.c.b16 %v6938, %v6938
      %v6973 = vpack.c.b16 %v6940, %v6939
      %v6974 = vpack.c.b16 %v6941, %v6941
      %v6975 = vpack.c.b16 %v6943, %v6942
      %v6976 = vpack.c.b16 %v6944, %v6944
      %v6977 = vrot.slane %v6945, 1
      %v6978 = vrot.slane %v6946, 1
      %v6979 = vsel %vm1631, %v6977, %v6978
      %v6980 = vrot.slane %v6947, 1
      %v6981 = vrot.slane %v6948, 1
      %v6982 = vsel %vm1631, %v6980, %v6981
      %v6983 = vrot.slane %v6949, 1
      %v6984 = vrot.slane %v6950, 1
      %v6985 = vsel %vm1631, %v6983, %v6984
      %v6986 = vrot.slane %v6951, 1
      %v6987 = vrot.slane %v6952, 1
      %v6988 = vsel %vm1631, %v6986, %v6987
      %v6989 = vrot.slane %v6953, 1
      %v6990 = vrot.slane %v6954, 1
      %v6991 = vsel %vm1631, %v6989, %v6990
      %v6992 = vrot.slane %v6955, 1
      %v6993 = vrot.slane %v6956, 1
      %v6994 = vsel %vm1631, %v6992, %v6993
      %v6995 = vrot.slane %v6957, 1
      %v6996 = vrot.slane %v6958, 1
      %v6997 = vsel %vm1631, %v6995, %v6996
      %v6998 = vrot.slane %v6959, 1
      %v6999 = vrot.slane %v6960, 1
      %v7000 = vsel %vm1631, %v6998, %v6999
      %v7001 = vrot.slane %v6961, 1
      %v7002 = vrot.slane %v6962, 1
      %v7003 = vsel %vm1631, %v7001, %v7002
      %v7004 = vrot.slane %v6963, 1
      %v7005 = vrot.slane %v6964, 1
      %v7006 = vsel %vm1631, %v7004, %v7005
      %v7007 = vrot.slane %v6965, 1
      %v7008 = vrot.slane %v6966, 1
      %v7009 = vsel %vm1631, %v7007, %v7008
      %v7010 = vrot.slane %v6967, 1
      %v7011 = vrot.slane %v6968, 1
      %v7012 = vsel %vm1631, %v7010, %v7011
      %v7013 = vrot.slane %v6969, 1
      %v7014 = vrot.slane %v6970, 1
      %v7015 = vsel %vm1631, %v7013, %v7014
      %v7016 = vrot.slane %v6971, 1
      %v7017 = vrot.slane %v6972, 1
      %v7018 = vsel %vm1631, %v7016, %v7017
      %v7019 = vrot.slane %v6973, 1
      %v7020 = vrot.slane %v6974, 1
      %v7021 = vsel %vm1631, %v7019, %v7020
      %v7022 = vrot.slane %v6975, 1
      %v7023 = vrot.slane %v6976, 1
      %v7024 = vsel %vm1631, %v7022, %v7023
      %7025 = vrot.lane.b32.xlu0 %v6979, 64
      %v7026 = vpop.permute.xlu0 %7025
      %7027 = vrot.lane.b32.xlu0 %v6982, 64
      %v7028 = vpop.permute.xlu0 %7027
      %7029 = vrot.lane.b32.xlu0 %v6985, 64
      %v7030 = vpop.permute.xlu0 %7029
      %7031 = vrot.lane.b32.xlu0 %v6988, 64
      %v7032 = vpop.permute.xlu0 %7031
      %7033 = vrot.lane.b32.xlu0 %v6991, 64
      %v7034 = vpop.permute.xlu0 %7033
      %7035 = vrot.lane.b32.xlu0 %v6994, 64
      %v7036 = vpop.permute.xlu0 %7035
      %7037 = vrot.lane.b32.xlu0 %v6997, 64
      %v7038 = vpop.permute.xlu0 %7037
      %7039 = vrot.lane.b32.xlu0 %v7000, 64
      %v7040 = vpop.permute.xlu0 %7039
      %7041 = vrot.lane.b32.xlu0 %v7003, 64
      %v7042 = vpop.permute.xlu0 %7041
      %7043 = vrot.lane.b32.xlu0 %v7006, 64
      %v7044 = vpop.permute.xlu0 %7043
      %7045 = vrot.lane.b32.xlu0 %v7009, 64
      %v7046 = vpop.permute.xlu0 %7045
      %7047 = vrot.lane.b32.xlu0 %v7012, 64
      %v7048 = vpop.permute.xlu0 %7047
      %7049 = vrot.lane.b32.xlu0 %v7015, 64
      %v7050 = vpop.permute.xlu0 %7049
      %7051 = vrot.lane.b32.xlu0 %v7018, 64
      %v7052 = vpop.permute.xlu0 %7051
      %7053 = vrot.lane.b32.xlu0 %v7021, 64
      %v7054 = vpop.permute.xlu0 %7053
      %7055 = vrot.lane.b32.xlu0 %v7024, 64
      %v7056 = vpop.permute.xlu0 %7055
      %vm7073 = vcmask 589312
      %7074 = vst.msk [vmem:[#allocation3] sm:$0xff] %vm7073, %v7026
      %7075 = vst.msk [vmem:[#allocation3 + $0x8] sm:$0xff] %vm7073, %v7028
      %7076 = vst.msk [vmem:[#allocation3 + $0x10] sm:$0xff] %vm7073, %v7030
      %7077 = vst.msk [vmem:[#allocation3 + $0x18] sm:$0xff] %vm7073, %v7032
      %7078 = vst.msk [vmem:[#allocation3 + $0x20] sm:$0xff] %vm7073, %v7034
      %7079 = vst.msk [vmem:[#allocation3 + $0x28] sm:$0xff] %vm7073, %v7036
      %7080 = vst.msk [vmem:[#allocation3 + $0x30] sm:$0xff] %vm7073, %v7038
      %7081 = vst.msk [vmem:[#allocation3 + $0x38] sm:$0xff] %vm7073, %v7040
      %7082 = vst.msk [vmem:[#allocation3 + $0x40] sm:$0xff] %vm7073, %v7042
      %7083 = vst.msk [vmem:[#allocation3 + $0x48] sm:$0xff] %vm7073, %v7044
      %7084 = vst.msk [vmem:[#allocation3 + $0x50] sm:$0xff] %vm7073, %v7046
      %7085 = vst.msk [vmem:[#allocation3 + $0x58] sm:$0xff] %vm7073, %v7048
      %7086 = vst.msk [vmem:[#allocation3 + $0x60] sm:$0xff] %vm7073, %v7050
      %7087 = vst.msk [vmem:[#allocation3 + $0x68] sm:$0xff] %vm7073, %v7052
      %7088 = vst.msk [vmem:[#allocation3 + $0x70] sm:$0xff] %vm7073, %v7054
      %7089 = vst.msk [vmem:[#allocation3 + $0x78] sm:$0xff] %vm7073, %v7056
      %v7090 = vld [vmem:[#allocation3] sm:$0xff]
      %v7091 = vld [vmem:[#allocation3 + $0x8] sm:$0xff]
      %v7092 = vld [vmem:[#allocation3 + $0x10] sm:$0xff]
      %v7093 = vld [vmem:[#allocation3 + $0x18] sm:$0xff]
      %v7094 = vld [vmem:[#allocation3 + $0x20] sm:$0xff]
      %v7095 = vld [vmem:[#allocation3 + $0x28] sm:$0xff]
      %v7096 = vld [vmem:[#allocation3 + $0x30] sm:$0xff]
      %v7097 = vld [vmem:[#allocation3 + $0x38] sm:$0xff]
      %v7098 = vld [vmem:[#allocation3 + $0x40] sm:$0xff]
      %v7099 = vld [vmem:[#allocation3 + $0x48] sm:$0xff]
      %v7100 = vld [vmem:[#allocation3 + $0x50] sm:$0xff]
      %v7101 = vld [vmem:[#allocation3 + $0x58] sm:$0xff]
      %v7102 = vld [vmem:[#allocation3 + $0x60] sm:$0xff]
      %v7103 = vld [vmem:[#allocation3 + $0x68] sm:$0xff]
      %v7104 = vld [vmem:[#allocation3 + $0x70] sm:$0xff]
      %v7105 = vld [vmem:[#allocation3 + $0x78] sm:$0xff]
      %v7106 = vld [vmem:[%s2] sm:$0xf]
      %v7107 = vld [vmem:[%s2 + $0x4] sm:$0xf]
      %v7108 = vld [vmem:[%s2 + $0x8] sm:$0xf]
      %v7109 = vld [vmem:[%s2 + $0xc] sm:$0xf]
      %v7110 = vld [vmem:[%s2 + $0x10] sm:$0xf]
      %v7111 = vld [vmem:[%s2 + $0x14] sm:$0xf]
      %v7112 = vld [vmem:[%s2 + $0x18] sm:$0xf]
      %v7113 = vld [vmem:[%s2 + $0x1c] sm:$0xf]
      %v7114 = vld [vmem:[%s2 + $0x20] sm:$0xf]
      %v7115 = vld [vmem:[%s2 + $0x24] sm:$0xf]
      %v7116 = vld [vmem:[%s2 + $0x28] sm:$0xf]
      %v7117 = vld [vmem:[%s2 + $0x2c] sm:$0xf]
      %v7118 = vld [vmem:[%s2 + $0x30] sm:$0xf]
      %v7119 = vld [vmem:[%s2 + $0x34] sm:$0xf]
      %v7120 = vld [vmem:[%s2 + $0x38] sm:$0xf]
      %v7121 = vld [vmem:[%s2 + $0x3c] sm:$0xf]
      %v7138 = vunpack.c.l.b16 %v7106
      %v7139 = vunpack.c.l.b16 %v7107
      %v7140 = vunpack.c.l.b16 %v7108
      %v7141 = vunpack.c.l.b16 %v7109
      %v7142 = vunpack.c.l.b16 %v7110
      %v7143 = vunpack.c.l.b16 %v7111
      %v7144 = vunpack.c.l.b16 %v7112
      %v7145 = vunpack.c.l.b16 %v7113
      %v7146 = vunpack.c.l.b16 %v7114
      %v7147 = vunpack.c.l.b16 %v7115
      %v7148 = vunpack.c.l.b16 %v7116
      %v7149 = vunpack.c.l.b16 %v7117
      %v7150 = vunpack.c.l.b16 %v7118
      %v7151 = vunpack.c.l.b16 %v7119
      %v7152 = vunpack.c.l.b16 %v7120
      %v7153 = vunpack.c.l.b16 %v7121
      %v7154 = vpack.c.b16 %v7139, %v7138
      %v7155 = vpack.c.b16 %v7141, %v7140
      %v7156 = vpack.c.b16 %v7143, %v7142
      %v7157 = vpack.c.b16 %v7145, %v7144
      %v7158 = vpack.c.b16 %v7147, %v7146
      %v7159 = vpack.c.b16 %v7149, %v7148
      %v7160 = vpack.c.b16 %v7151, %v7150
      %v7161 = vpack.c.b16 %v7153, %v7152
      %7170 = vmatprep.subr.bf16.mxu0 0
      %7171 = vmatpush1.bf16.msra.mxu0 %v7154
      %7172 = vmatprep.subr.bf16.mxu0 0
      %7173 = vmatpush1.bf16.msra.mxu0 %v7155
      %7174 = vmatprep.subr.bf16.mxu0 0
      %7175 = vmatpush1.bf16.msra.mxu0 %v7156
      %7176 = vmatprep.subr.bf16.mxu0 0
      %7177 = vmatpush1.bf16.msra.mxu0 %v7157
      %7178 = vmatprep.subr.bf16.mxu0 0
      %7179 = vmatpush1.bf16.msra.mxu0 %v7158
      %7180 = vmatprep.subr.bf16.mxu0 0
      %7181 = vmatpush1.bf16.msra.mxu0 %v7159
      %7182 = vmatprep.subr.bf16.mxu0 0
      %7183 = vmatpush1.bf16.msra.mxu0 %v7160
      %7184 = vmatprep.subr.bf16.mxu0 0
      %7185 = vmatpush1.bf16.msra.mxu0 %v7161
      %7186 = vmatprep.subr.bf16.mxu0 0
      %7187 = vmatpush1.bf16.msra.mxu0 0
      %7188 = vmatprep.subr.bf16.mxu0 0
      %7189 = vmatpush1.bf16.msra.mxu0 0
      %7190 = vmatprep.subr.bf16.mxu0 0
      %7191 = vmatpush1.bf16.msra.mxu0 0
      %7192 = vmatprep.subr.bf16.mxu0 0
      %7193 = vmatpush1.bf16.msra.mxu0 0
      %7194 = vmatprep.subr.bf16.mxu0 0
      %7195 = vmatpush1.bf16.msra.mxu0 0
      %7196 = vmatprep.subr.bf16.mxu0 0
      %7197 = vmatpush1.bf16.msra.mxu0 0
      %7198 = vmatprep.subr.bf16.mxu0 0
      %7199 = vmatpush1.bf16.msra.mxu0 0
      %7200 = vmatprep.subr.bf16.mxu0 0
      %7201 = vmatpush1.bf16.msra.mxu0 0
      %7202 = vmatprep.mubr.bf16.mxu0 0
      %7203 = vmatmul.mubr.bf16.gmra.mrb[0].mxu0 %v7090
      %v7204 = vpop.f32.mrb[0].mxu0
      %v7205 = vadd.f32 0.0, %v7204
      %v7206 = vpop.f32.mrb[0].mxu0
      %v7207 = vpop.f32.mrb[0].mxu0
      %v7208 = vadd.f32 0.0, %v7207
      %v7209 = vpop.f32.mrb[0].mxu0
      %7210 = vmatprep.mubr.bf16.mxu0 0
      %7211 = vmatmul.mubr.bf16.gmra.mrb[0].mxu0 %v7091
      %v7212 = vpop.f32.mrb[0].mxu0
      %v7213 = vadd.f32 0.0, %v7212
      %v7214 = vpop.f32.mrb[0].mxu0
      %v7215 = vpop.f32.mrb[0].mxu0
      %v7216 = vadd.f32 0.0, %v7215
      %v7217 = vpop.f32.mrb[0].mxu0
      %7218 = vmatprep.mubr.bf16.mxu0 0
      %7219 = vmatmul.mubr.bf16.gmra.mrb[0].mxu0 %v7092
      %v7220 = vpop.f32.mrb[0].mxu0
      %v7221 = vadd.f32 0.0, %v7220
      %v7222 = vpop.f32.mrb[0].mxu0
      %v7223 = vpop.f32.mrb[0].mxu0
      %v7224 = vadd.f32 0.0, %v7223
      %v7225 = vpop.f32.mrb[0].mxu0
      %7226 = vmatprep.mubr.bf16.mxu0 0
      %7227 = vmatmul.mubr.bf16.gmra.mrb[0].mxu0 %v7093
      %v7228 = vpop.f32.mrb[0].mxu0
      %v7229 = vadd.f32 0.0, %v7228
      %v7230 = vpop.f32.mrb[0].mxu0
      %v7231 = vpop.f32.mrb[0].mxu0
      %v7232 = vadd.f32 0.0, %v7231
      %v7233 = vpop.f32.mrb[0].mxu0
      %7234 = vmatprep.mubr.bf16.mxu0 0
      %7235 = vmatmul.mubr.bf16.gmra.mrb[0].mxu0 %v7094
      %v7236 = vpop.f32.mrb[0].mxu0
      %v7237 = vadd.f32 0.0, %v7236
      %v7238 = vpop.f32.mrb[0].mxu0
      %v7239 = vpop.f32.mrb[0].mxu0
      %v7240 = vadd.f32 0.0, %v7239
      %v7241 = vpop.f32.mrb[0].mxu0
      %7242 = vmatprep.mubr.bf16.mxu0 0
      %7243 = vmatmul.mubr.bf16.gmra.mrb[0].mxu0 %v7095
      %v7244 = vpop.f32.mrb[0].mxu0
      %v7245 = vadd.f32 0.0, %v7244
      %v7246 = vpop.f32.mrb[0].mxu0
      %v7247 = vpop.f32.mrb[0].mxu0
      %v7248 = vadd.f32 0.0, %v7247
      %v7249 = vpop.f32.mrb[0].mxu0
      %7250 = vmatprep.mubr.bf16.mxu0 0
      %7251 = vmatmul.mubr.bf16.gmra.mrb[0].mxu0 %v7096
      %v7252 = vpop.f32.mrb[0].mxu0
      %v7253 = vadd.f32 0.0, %v7252
      %v7254 = vpop.f32.mrb[0].mxu0
      %v7255 = vpop.f32.mrb[0].mxu0
      %v7256 = vadd.f32 0.0, %v7255
      %v7257 = vpop.f32.mrb[0].mxu0
      %7258 = vmatprep.mubr.bf16.mxu0 0
      %7259 = vmatmul.mubr.bf16.gmra.mrb[0].mxu0 %v7097
      %v7260 = vpop.f32.mrb[0].mxu0
      %v7261 = vadd.f32 0.0, %v7260
      %v7262 = vpop.f32.mrb[0].mxu0
      %v7263 = vpop.f32.mrb[0].mxu0
      %v7264 = vadd.f32 0.0, %v7263
      %v7265 = vpop.f32.mrb[0].mxu0
      %7266 = vmatprep.mubr.bf16.mxu0 0
      %7267 = vmatmul.mubr.bf16.gmra.mrb[0].mxu0 %v7098
      %v7268 = vpop.f32.mrb[0].mxu0
      %v7269 = vadd.f32 0.0, %v7268
      %v7270 = vpop.f32.mrb[0].mxu0
      %v7271 = vpop.f32.mrb[0].mxu0
      %v7272 = vadd.f32 0.0, %v7271
      %v7273 = vpop.f32.mrb[0].mxu0
      %7274 = vmatprep.mubr.bf16.mxu0 0
      %7275 = vmatmul.mubr.bf16.gmra.mrb[0].mxu0 %v7099
      %v7276 = vpop.f32.mrb[0].mxu0
      %v7277 = vadd.f32 0.0, %v7276
      %v7278 = vpop.f32.mrb[0].mxu0
      %v7279 = vpop.f32.mrb[0].mxu0
      %v7280 = vadd.f32 0.0, %v7279
      %v7281 = vpop.f32.mrb[0].mxu0
      %7282 = vmatprep.mubr.bf16.mxu0 0
      %7283 = vmatmul.mubr.bf16.gmra.mrb[0].mxu0 %v7100
      %v7284 = vpop.f32.mrb[0].mxu0
      %v7285 = vadd.f32 0.0, %v7284
      %v7286 = vpop.f32.mrb[0].mxu0
      %v7287 = vpop.f32.mrb[0].mxu0
      %v7288 = vadd.f32 0.0, %v7287
      %v7289 = vpop.f32.mrb[0].mxu0
      %7290 = vmatprep.mubr.bf16.mxu0 0
      %7291 = vmatmul.mubr.bf16.gmra.mrb[0].mxu0 %v7101
      %v7292 = vpop.f32.mrb[0].mxu0
      %v7293 = vadd.f32 0.0, %v7292
      %v7294 = vpop.f32.mrb[0].mxu0
      %v7295 = vpop.f32.mrb[0].mxu0
      %v7296 = vadd.f32 0.0, %v7295
      %v7297 = vpop.f32.mrb[0].mxu0
      %7298 = vmatprep.mubr.bf16.mxu0 0
      %7299 = vmatmul.mubr.bf16.gmra.mrb[0].mxu0 %v7102
      %v7300 = vpop.f32.mrb[0].mxu0
      %v7301 = vadd.f32 0.0, %v7300
      %v7302 = vpop.f32.mrb[0].mxu0
      %v7303 = vpop.f32.mrb[0].mxu0
      %v7304 = vadd.f32 0.0, %v7303
      %v7305 = vpop.f32.mrb[0].mxu0
      %7306 = vmatprep.mubr.bf16.mxu0 0
      %7307 = vmatmul.mubr.bf16.gmra.mrb[0].mxu0 %v7103
      %v7308 = vpop.f32.mrb[0].mxu0
      %v7309 = vadd.f32 0.0, %v7308
      %v7310 = vpop.f32.mrb[0].mxu0
      %v7311 = vpop.f32.mrb[0].mxu0
      %v7312 = vadd.f32 0.0, %v7311
      %v7313 = vpop.f32.mrb[0].mxu0
      %7314 = vmatprep.mubr.bf16.mxu0 0
      %7315 = vmatmul.mubr.bf16.gmra.mrb[0].mxu0 %v7104
      %v7316 = vpop.f32.mrb[0].mxu0
      %v7317 = vadd.f32 0.0, %v7316
      %v7318 = vpop.f32.mrb[0].mxu0
      %v7319 = vpop.f32.mrb[0].mxu0
      %v7320 = vadd.f32 0.0, %v7319
      %v7321 = vpop.f32.mrb[0].mxu0
      %7322 = vmatprep.mubr.bf16.mxu0 0
      %7323 = vmatmul.mubr.bf16.gmra.mrb[0].mxu0 %v7105
      %v7324 = vpop.f32.mrb[0].mxu0
      %v7325 = vadd.f32 0.0, %v7324
      %v7326 = vpop.f32.mrb[0].mxu0
      %v7327 = vpop.f32.mrb[0].mxu0
      %v7328 = vadd.f32 0.0, %v7327
      %v7329 = vpop.f32.mrb[0].mxu0
      %7330 = vdwg.mxu0
      %v7331 = vld [vmem:[%s5] sm:$0x1]
      %v7333 = vlaneseq
      %v7334 = vshrl.u32 %v7333, 7
      %v7335 = vsub.s32 0, %v7334
      %v7336 = vrot.slane %v7331, %v7335
      %v7338 = vmul.f32 %v7205, %v7336
      %v7339 = vmul.f32 %v7208, %v7336
      %v7340 = vmul.f32 %v7213, %v7336
      %v7341 = vmul.f32 %v7216, %v7336
      %v7342 = vmul.f32 %v7221, %v7336
      %v7343 = vmul.f32 %v7224, %v7336
      %v7344 = vmul.f32 %v7229, %v7336
      %v7345 = vmul.f32 %v7232, %v7336
      %v7346 = vmul.f32 %v7237, %v7336
      %v7347 = vmul.f32 %v7240, %v7336
      %v7348 = vmul.f32 %v7245, %v7336
      %v7349 = vmul.f32 %v7248, %v7336
      %v7350 = vmul.f32 %v7253, %v7336
      %v7351 = vmul.f32 %v7256, %v7336
      %v7352 = vmul.f32 %v7261, %v7336
      %v7353 = vmul.f32 %v7264, %v7336
      %v7354 = vmul.f32 %v7269, %v7336
      %v7355 = vmul.f32 %v7272, %v7336
      %v7356 = vmul.f32 %v7277, %v7336
      %v7357 = vmul.f32 %v7280, %v7336
      %v7358 = vmul.f32 %v7285, %v7336
      %v7359 = vmul.f32 %v7288, %v7336
      %v7360 = vmul.f32 %v7293, %v7336
      %v7361 = vmul.f32 %v7296, %v7336
      %v7362 = vmul.f32 %v7301, %v7336
      %v7363 = vmul.f32 %v7304, %v7336
      %v7364 = vmul.f32 %v7309, %v7336
      %v7365 = vmul.f32 %v7312, %v7336
      %v7366 = vmul.f32 %v7317, %v7336
      %v7367 = vmul.f32 %v7320, %v7336
      %v7368 = vmul.f32 %v7325, %v7336
      %v7369 = vmul.f32 %v7328, %v7336
      %v7370 = vld [vmem:[%s6] sm:$0x1]
      %v7372 = vlaneseq
      %v7373 = vshrl.u32 %v7372, 7
      %v7374 = vsub.s32 0, %v7373
      %v7375 = vrot.slane %v7370, %v7374
      %v7377 = vadd.f32 %v7338, %v7375
      %v7378 = vadd.f32 %v7339, %v7375
      %v7379 = vadd.f32 %v7340, %v7375
      %v7380 = vadd.f32 %v7341, %v7375
      %v7381 = vadd.f32 %v7342, %v7375
      %v7382 = vadd.f32 %v7343, %v7375
      %v7383 = vadd.f32 %v7344, %v7375
      %v7384 = vadd.f32 %v7345, %v7375
      %v7385 = vadd.f32 %v7346, %v7375
      %v7386 = vadd.f32 %v7347, %v7375
      %v7387 = vadd.f32 %v7348, %v7375
      %v7388 = vadd.f32 %v7349, %v7375
      %v7389 = vadd.f32 %v7350, %v7375
      %v7390 = vadd.f32 %v7351, %v7375
      %v7391 = vadd.f32 %v7352, %v7375
      %v7392 = vadd.f32 %v7353, %v7375
      %v7393 = vadd.f32 %v7354, %v7375
      %v7394 = vadd.f32 %v7355, %v7375
      %v7395 = vadd.f32 %v7356, %v7375
      %v7396 = vadd.f32 %v7357, %v7375
      %v7397 = vadd.f32 %v7358, %v7375
      %v7398 = vadd.f32 %v7359, %v7375
      %v7399 = vadd.f32 %v7360, %v7375
      %v7400 = vadd.f32 %v7361, %v7375
      %v7401 = vadd.f32 %v7362, %v7375
      %v7402 = vadd.f32 %v7363, %v7375
      %v7403 = vadd.f32 %v7364, %v7375
      %v7404 = vadd.f32 %v7365, %v7375
      %v7405 = vadd.f32 %v7366, %v7375
      %v7406 = vadd.f32 %v7367, %v7375
      %v7407 = vadd.f32 %v7368, %v7375
      %v7408 = vadd.f32 %v7369, %v7375
      %v7409 = vmax.f32 %v7377, 0.0
      %v7410 = vmax.f32 %v7378, 0.0
      %v7411 = vmax.f32 %v7379, 0.0
      %v7412 = vmax.f32 %v7380, 0.0
      %v7413 = vmax.f32 %v7381, 0.0
      %v7414 = vmax.f32 %v7382, 0.0
      %v7415 = vmax.f32 %v7383, 0.0
      %v7416 = vmax.f32 %v7384, 0.0
      %v7417 = vmax.f32 %v7385, 0.0
      %v7418 = vmax.f32 %v7386, 0.0
      %v7419 = vmax.f32 %v7387, 0.0
      %v7420 = vmax.f32 %v7388, 0.0
      %v7421 = vmax.f32 %v7389, 0.0
      %v7422 = vmax.f32 %v7390, 0.0
      %v7423 = vmax.f32 %v7391, 0.0
      %v7424 = vmax.f32 %v7392, 0.0
      %v7425 = vmax.f32 %v7393, 0.0
      %v7426 = vmax.f32 %v7394, 0.0
      %v7427 = vmax.f32 %v7395, 0.0
      %v7428 = vmax.f32 %v7396, 0.0
      %v7429 = vmax.f32 %v7397, 0.0
      %v7430 = vmax.f32 %v7398, 0.0
      %v7431 = vmax.f32 %v7399, 0.0
      %v7432 = vmax.f32 %v7400, 0.0
      %v7433 = vmax.f32 %v7401, 0.0
      %v7434 = vmax.f32 %v7402, 0.0
      %v7435 = vmax.f32 %v7403, 0.0
      %v7436 = vmax.f32 %v7404, 0.0
      %v7437 = vmax.f32 %v7405, 0.0
      %v7438 = vmax.f32 %v7406, 0.0
      %v7439 = vmax.f32 %v7407, 0.0
      %v7440 = vmax.f32 %v7408, 0.0
      %7441 = vst.msk [vmem:[%s278] sm:$0xff] %vm4553, %v7409
      %7442 = vst.msk [vmem:[%s278 + $0x8] sm:$0xff] %vm4553, %v7410
      %7443 = vst.msk [vmem:[%s278 + $0x10] sm:$0xff] %vm4553, %v7411
      %7444 = vst.msk [vmem:[%s278 + $0x18] sm:$0xff] %vm4553, %v7412
      %7445 = vst.msk [vmem:[%s278 + $0x20] sm:$0xff] %vm4553, %v7413
      %7446 = vst.msk [vmem:[%s278 + $0x28] sm:$0xff] %vm4553, %v7414
      %7447 = vst.msk [vmem:[%s278 + $0x30] sm:$0xff] %vm4553, %v7415
      %7448 = vst.msk [vmem:[%s278 + $0x38] sm:$0xff] %vm4553, %v7416
      %7449 = vst.msk [vmem:[%s278 + $0x40] sm:$0xff] %vm4553, %v7417
      %7450 = vst.msk [vmem:[%s278 + $0x48] sm:$0xff] %vm4553, %v7418
      %7451 = vst.msk [vmem:[%s278 + $0x50] sm:$0xff] %vm4553, %v7419
      %7452 = vst.msk [vmem:[%s278 + $0x58] sm:$0xff] %vm4553, %v7420
      %7453 = vst.msk [vmem:[%s278 + $0x60] sm:$0xff] %vm4553, %v7421
      %7454 = vst.msk [vmem:[%s278 + $0x68] sm:$0xff] %vm4553, %v7422
      %7455 = vst.msk [vmem:[%s278 + $0x70] sm:$0xff] %vm4553, %v7423
      %7456 = vst.msk [vmem:[%s278 + $0x78] sm:$0xff] %vm4553, %v7424
      %7457 = vst.msk [vmem:[%s278 + $0x80] sm:$0xff] %vm4553, %v7425
      %7458 = vst.msk [vmem:[%s278 + $0x88] sm:$0xff] %vm4553, %v7426
      %7459 = vst.msk [vmem:[%s278 + $0x90] sm:$0xff] %vm4553, %v7427
      %7460 = vst.msk [vmem:[%s278 + $0x98] sm:$0xff] %vm4553, %v7428
      %7461 = vst.msk [vmem:[%s278 + $0xa0] sm:$0xff] %vm4553, %v7429
      %7462 = vst.msk [vmem:[%s278 + $0xa8] sm:$0xff] %vm4553, %v7430
      %7463 = vst.msk [vmem:[%s278 + $0xb0] sm:$0xff] %vm4553, %v7431
      %7464 = vst.msk [vmem:[%s278 + $0xb8] sm:$0xff] %vm4553, %v7432
      %7465 = vst.msk [vmem:[%s278 + $0xc0] sm:$0xff] %vm4553, %v7433
      %7466 = vst.msk [vmem:[%s278 + $0xc8] sm:$0xff] %vm4553, %v7434
      %7467 = vst.msk [vmem:[%s278 + $0xd0] sm:$0xff] %vm4553, %v7435
      %7468 = vst.msk [vmem:[%s278 + $0xd8] sm:$0xff] %vm4553, %v7436
      %7469 = vst.msk [vmem:[%s278 + $0xe0] sm:$0xff] %vm4553, %v7437
      %7470 = vst.msk [vmem:[%s278 + $0xe8] sm:$0xff] %vm4553, %v7438
      %7471 = vst.msk [vmem:[%s278 + $0xf0] sm:$0xff] %vm4553, %v7439
      %7472 = vst.msk [vmem:[%s278 + $0xf8] sm:$0xff] %vm4553, %v7440
      %p7473 = scmp.lt.s32.totalorder %s18, 1
      %s7474 = scalar_select %p7473, %s18, 1
      %s7475 = smul.addr %s7474, 32
      %s7476 = smul.addr %s7475, 8
      %s7477 = scalar_lea.vmem %s7, %s7476
      // Predicated region
      $region49: #{double_conv.1} parent=47 // pred_check
        %p7478 = pneg %p188
      $region50: #{double_conv.1} parent=47 // pred_check_branch
        %7480 = sbr.rel (%p7478) target = $region52
      $region51: #{double_conv.1} parent=47 // pred_region
        _
      $region52: #{double_conv.1} parent=47 // pred_fallthru
        _
    $region48: #{double_conv.1} parent=5 // pred_fallthru
      _
    %p7481 = scmp.le.s32.totalorder 2, %s13
    // Predicated region
    $region53: #{double_conv.1} parent=5 // pred_check
      %p7482 = pneg %p7481
    $region54: #{double_conv.1} parent=5 // pred_check_branch
      %7484 = sbr.rel (%p7482) target = $region56
    $region55: #{double_conv.1} parent=5 // pred_region
      %s7485 = ssub.s32 %s13, 2
      // Predicated region
      $region57: #{double_conv.1} parent=55 // pred_check
        %p7486 = pneg %p194
      $region58: #{double_conv.1} parent=55 // pred_check_branch
        %7488 = sbr.rel (%p7486) target = $region60
      $region59: #{double_conv.1} parent=55 // pred_region
        %p7489 = scmp.lt.s32.totalorder %s19, 1
        %s7490 = scalar_select %p7489, %s19, 1
        %s7491 = smul.addr %s7490, 32
        %s7492 = smul.addr %s7491, 8
        %s7493 = scalar_lea.vmem %s7, %s7492
      $region60: #{double_conv.1} parent=55 // pred_fallthru
        _
    $region56: #{double_conv.1} parent=5 // pred_fallthru
      _
  $region6: #{double_conv.1} parent=0 // loop_footer
    %s17 = sadd.s32 1, %s13
  $region7: #{double_conv.1} parent=0 // loop_footer_branch
    %12 = sbr.rel target = $region3
  $region8: #{double_conv.1} parent=0 // loop_exit
    _

</llo_original>
